<compile_context>
chip_gen: v7x
topology: tpu7x:2x2x1
jax: 0.10.0
libtpu: 0.0.40
codegen_flags: <defaults>
</compile_context>

<pallas_src>
import math
from functools import partial

import jax
import jax.numpy as jnp
from jax import lax
from jax.experimental import pallas as pl
from jax.experimental.pallas import tpu as pltpu


# ----------------------------------------------------------------------------
# Fused kernel: conv3x3+bias+ReLU -> conv3x3+bias+ReLU -> GAP -> Linear
# ----------------------------------------------------------------------------
def _evalnet2_kernel(H, W, x_ref, w1_ref, b1_ref, w2_ref, b2_ref,
                     fcw_ref, fcb_ref, o_ref, p0_ref, p1_ref):
    """One grid step = TB images; everything stays in VMEM.

    x_ref  : (TB, H, W, Cin)      bf16 input tile (NHWC, channels lane-padded)
    w1_ref : (9, Cin, Cmid)       bf16 conv1 weights (tap-major)
    b1_ref : (1, Cmid)            f32
    w2_ref : (9, Cmid, Cout)      bf16 conv2 weights (tap-major)
    b2_ref : (1, Cout)            f32
    fcw_ref: (Cout, NPAD)         f32 classifier weights * 1/(H*W), lane-padded
    fcb_ref: (1, NPAD)            f32
    o_ref  : (TB, 1, NPAD)        f32 lane-dense logits tile
    p0_ref : (TB, H+2, W+2, Cin)  bf16 VMEM scratch: padded input
    p1_ref : (TB, H+2, W+2, Cmid) bf16 VMEM scratch: padded hidden activation
    """
    TB = x_ref.shape[0]
    Cin = x_ref.shape[-1]
    Cmid = w1_ref.shape[-1]
    Cout = w2_ref.shape[-1]
    M = TB * H * W

    # --- zero-padding halo via scratch: zero once, write the interior once.
    # (No jnp.concatenate / jnp.pad inside the kernel -> no tile-crossing
    #  relayout copies.)
    p0_ref[...] = jnp.zeros(p0_ref.shape, p0_ref.dtype)
    p1_ref[...] = jnp.zeros(p1_ref.shape, p1_ref.dtype)
    p0_ref[:, 1:H + 1, 1:W + 1, :] = x_ref[...]

    def conv3x3_relu(pad_ref, w_ref, b_ref, cin, cout):
        # 9 accumulating MXU dots; each tap is a shifted static-window load
        # from the padded scratch (dy on a leading dim = free address offset,
        # dx a small sublane shift). Bias is folded into the accumulator init.
        acc = jnp.broadcast_to(b_ref[...], (M, cout)).astype(jnp.float32)
        for t in range(9):
            dy, dx = t // 3, t % 3
            tap = pad_ref[:, dy:dy + H, dx:dx + W, :].reshape(M, cin)
            acc = acc + jnp.dot(tap, w_ref[t],
                                preferred_element_type=jnp.float32)
        return jnp.maximum(acc, 0.0)                      # ReLU in f32 (VPU)

    h1 = conv3x3_relu(p0_ref, w1_ref, b1_ref, Cin, Cmid)  # (M, Cmid) f32
    p1_ref[:, 1:H + 1, 1:W + 1, :] = (
        h1.reshape(TB, H, W, Cmid).astype(p1_ref.dtype))  # bf16 for conv2
    h2 = conv3x3_relu(p1_ref, w2_ref, b2_ref, Cmid, Cout)  # (M, Cout) f32

    # --- GAP + classifier as MXU matmuls (feature map never touches HBM).
    # Per-image spatial sum = selection-matrix matmul; 1/(H*W) already folded
    # into fcw host-side, so no cross-sublane jnp.sum and no extra scale.
    hw = H * W
    pos = lax.broadcasted_iota(jnp.int32, (TB, M), 1)
    img = lax.broadcasted_iota(jnp.int32, (TB, M), 0)
    sel = ((pos >= img * hw) & (pos < (img + 1) * hw)).astype(jnp.float32)
    pooled = jnp.dot(sel, h2, preferred_element_type=jnp.float32)   # (TB, Cout)
    logits = jnp.dot(pooled, fcw_ref[...],
                     preferred_element_type=jnp.float32) + fcb_ref[...]
    o_ref[...] = logits.reshape(TB, 1, -1).astype(o_ref.dtype)      # 128-lane vst


# ----------------------------------------------------------------------------
# Wrapper: layout, weight folding/padding, pallas_call plumbing
# ----------------------------------------------------------------------------
def evalnet2_forward(params, x_nchw):
    # PyTorch NCHW -> NHWC (channels on the lane dim).
    x = jnp.transpose(x_nchw, (0, 2, 3, 1)).astype(jnp.float32)
    B, H, W, Cin = x.shape
    Cmid = params["conv1_w"].shape[-1]
    Cout = params["conv2_w"].shape[-1]
    nclasses = params["fc_w"].shape[-1]
    npad = pl.cdiv(nclasses, 128) * 128                   # lane-dense output

    # Pad input channels to a multiple of 8 (zeros are inert: matching zero
    # rows are padded into w1). Cast activations to bf16 for the MXU dots.
    cin_p = pl.cdiv(Cin, 8) * 8
    if cin_p != Cin:
        x = jnp.pad(x, ((0, 0), (0, 0), (0, 0), (0, cin_p - Cin)))
    x = x.astype(jnp.bfloat16)

    # Fold the batch into the matmul M dimension, but keep >= 2 grid steps
    # whenever B >= 2 so both v7x TensorCores get work (1 TC on v5e/v6e).
    TB = 1 if B <= 1 else max(1, min(8, B // 2))
    steps = pl.cdiv(B, TB)
    Bp = steps * TB
    if Bp != B:
        x = jnp.pad(x, ((0, Bp - B), (0, 0), (0, 0), (0, 0)))

    # Conv weights: HWIO -> tap-major (9, Cin, Cout), bf16.
    # NOTE: PyTorch Conv2d weights are OIHW; permute (2, 3, 1, 0) first.
    w1 = params["conv1_w"]
    if cin_p != Cin:
        w1 = jnp.pad(w1, ((0, 0), (0, 0), (0, cin_p - Cin), (0, 0)))
    w1 = w1.reshape(9, cin_p, Cmid).astype(jnp.bfloat16)
    b1 = params["conv1_b"].reshape(1, Cmid).astype(jnp.float32)
    w2 = params["conv2_w"].reshape(9, Cmid, Cout).astype(jnp.bfloat16)
    b2 = params["conv2_b"].reshape(1, Cout).astype(jnp.float32)

    # Classifier: fold the 1/(H*W) GAP scale into the weights; zero-pad to
    # 128 lanes so the kernel's final store is an unmasked full-lane vst.
    fcw = jnp.zeros((Cout, npad), jnp.float32).at[:, :nclasses].set(
        params["fc_w"].astype(jnp.float32) * (1.0 / float(H * W)))
    fcb = jnp.zeros((1, npad), jnp.float32).at[:, :nclasses].set(
        params["fc_b"].astype(jnp.float32))

    kernel = partial(_evalnet2_kernel, H, W)
    out = pl.pallas_call(
        kernel,
        out_shape=jax.ShapeDtypeStruct((Bp, 1, npad), jnp.float32),
        grid_spec=pltpu.PrefetchScalarGridSpec(
            num_scalar_prefetch=0,
            grid=(steps,),                                # batch-block steps
            in_specs=[
                pl.BlockSpec((TB, H, W, cin_p), lambda b: (b, 0, 0, 0)),
                pl.BlockSpec((9, cin_p, Cmid), lambda b: (0, 0, 0)),
                pl.BlockSpec((1, Cmid), lambda b: (0, 0)),
                pl.BlockSpec((9, Cmid, Cout), lambda b: (0, 0, 0)),
                pl.BlockSpec((1, Cout), lambda b: (0, 0)),
                pl.BlockSpec((Cout, npad), lambda b: (0, 0)),
                pl.BlockSpec((1, npad), lambda b: (0, 0)),
            ],
            out_specs=pl.BlockSpec((TB, 1, npad), lambda b: (b, 0, 0)),
            scratch_shapes=[
                pltpu.VMEM((TB, H + 2, W + 2, cin_p), jnp.bfloat16),
                pltpu.VMEM((TB, H + 2, W + 2, Cmid), jnp.bfloat16),
            ],
        ),
        compiler_params=pltpu.CompilerParams(
            # Batch-block axis is truly parallel -> shards across v7x's 2 TCs.
            dimension_semantics=("parallel",),
            # Tiny actual usage (<1 MiB/step); 32 MiB is within every
            # generation's budget (v7x 64 MiB physical). Re-budget with a
            # spatial row-block grid axis before scaling to real EvoNet sizes.
            vmem_limit_bytes=32 * 1024 * 1024,
        ),
    )(x, w1, b1, w2, b2, fcw, fcb)

    return out[:B, 0, :nclasses]                          # strip padding


# ----------------------------------------------------------------------------
# Parameter init (deterministic, mirrors init_feature_network / nn.Linear)
# ----------------------------------------------------------------------------
def kaiming_uniform(key, shape, fan_in, a):
    gain = math.sqrt(2.0 / (1.0 + a * a))
    bound = gain * math.sqrt(3.0 / fan_in)
    return jax.random.uniform(key, shape, jnp.float32, -bound, bound)


def init_params(key, cin, cmid, cout, nclasses):
    k1, k2, k3, k4 = jax.random.split(key, 4)
    return {
        # Conv2d: kaiming_uniform(a=0.25), zero bias (init_feature_network).
        # Stored HWIO (PyTorch OIHW weights need a (2,3,1,0) permute).
        "conv1_w": kaiming_uniform(k1, (3, 3, cin, cmid), fan_in=cin * 9, a=0.25),
        "conv1_b": jnp.zeros((cmid,), jnp.float32),
        "conv2_w": kaiming_uniform(k2, (3, 3, cmid, cout), fan_in=cmid * 9, a=0.25),
        "conv2_b": jnp.zeros((cout,), jnp.float32),
        # Classifier (fc_neurons == 0 path): one Linear, PyTorch default init.
        # Stored as (in, out) = transposed PyTorch weight.
        "fc_w": kaiming_uniform(k3, (cout, nclasses), fan_in=cout, a=math.sqrt(5.0)),
        "fc_b": jax.random.uniform(k4, (nclasses,), jnp.float32,
                                   -1.0 / math.sqrt(cout), 1.0 / math.sqrt(cout)),
    }


if __name__ == "__main__":
    B, Cin, H, W = 2, 4, 16, 16
    Cmid, Cout, NCLASSES = 8, 8, 10

    key = jax.random.PRNGKey(0)
    kx, kp = jax.random.split(key)
    x = jax.random.normal(kx, (B, Cin, H, W), jnp.float32)   # NCHW, like PyTorch
    params = init_params(kp, Cin, Cmid, Cout, NCLASSES)

    out = jax.jit(evalnet2_forward)(params, x)
    out = jax.block_until_ready(out)
    assert out.shape == (B, NCLASSES), out.shape
    assert bool(jnp.all(jnp.isfinite(out)))
    print("KERNEL_OK")
</pallas_src>

<mosaic_0001>
module attributes {stable_mosaic.version = 11 : i64} {
  func.func @_evalnet2_kernel(%arg0: i32, %arg1: memref<1x16x16x8xbf16, #tpu.memory_space<vmem>>, %arg2: memref<9x8x8xbf16, #tpu.memory_space<vmem>>, %arg3: memref<1x8xf32, #tpu.memory_space<vmem>>, %arg4: memref<9x8x8xbf16, #tpu.memory_space<vmem>>, %arg5: memref<1x8xf32, #tpu.memory_space<vmem>>, %arg6: memref<8x128xf32, #tpu.memory_space<vmem>>, %arg7: memref<1x128xf32, #tpu.memory_space<vmem>>, %arg8: memref<1x1x128xf32, #tpu.memory_space<vmem>>, %arg9: memref<1x18x18x8xbf16, #tpu.memory_space<vmem>>, %arg10: memref<1x18x18x8xbf16, #tpu.memory_space<vmem>>) attributes {dimension_semantics = [#tpu.dimension_semantics<parallel>], iteration_bounds = array<i64: 2>, scalar_prefetch = 0 : i64, scratch_operands = 2 : i64, tpu.core_type = #tpu.core_type<tc>, window_params = [{transform_indices = @transform_0, window_bounds = array<i64: 1, 16, 16, 8>}, {pipeline_mode = #tpu.pipeline_mode<synchronous>, transform_indices = @transform_1, window_bounds = array<i64: 9, 8, 8>}, {pipeline_mode = #tpu.pipeline_mode<synchronous>, transform_indices = @transform_2, window_bounds = array<i64: 1, 8>}, {pipeline_mode = #tpu.pipeline_mode<synchronous>, transform_indices = @transform_3, window_bounds = array<i64: 9, 8, 8>}, {pipeline_mode = #tpu.pipeline_mode<synchronous>, transform_indices = @transform_4, window_bounds = array<i64: 1, 8>}, {pipeline_mode = #tpu.pipeline_mode<synchronous>, transform_indices = @transform_5, window_bounds = array<i64: 8, 128>}, {pipeline_mode = #tpu.pipeline_mode<synchronous>, transform_indices = @transform_6, window_bounds = array<i64: 1, 128>}, {transform_indices = @transform_7, window_bounds = array<i64: 1, 1, 128>}]} {
    %cst = arith.constant 0.000000e+00 : bf16
    %0 = vector.broadcast %cst : bf16 to vector<1x18x18x8xbf16>
    %c0 = arith.constant 0 : index
    %c0_0 = arith.constant 0 : index
    %c0_1 = arith.constant 0 : index
    %c0_2 = arith.constant 0 : index
    %1 = vector.load %arg9[%c0, %c0_0, %c0_1, %c0_2] : memref<1x18x18x8xbf16, #tpu.memory_space<vmem>>, vector<1x18x18x8xbf16>
    tpu.vector_store %arg9[%c0, %c0_0, %c0_1, %c0_2], %0 {strides = array<i32>} : memref<1x18x18x8xbf16, #tpu.memory_space<vmem>>, vector<1x18x18x8xbf16>,
    %cst_3 = arith.constant 0.000000e+00 : bf16
    %2 = vector.broadcast %cst_3 : bf16 to vector<1x18x18x8xbf16>
    %c0_4 = arith.constant 0 : index
    %c0_5 = arith.constant 0 : index
    %c0_6 = arith.constant 0 : index
    %c0_7 = arith.constant 0 : index
    %3 = vector.load %arg10[%c0_4, %c0_5, %c0_6, %c0_7] : memref<1x18x18x8xbf16, #tpu.memory_space<vmem>>, vector<1x18x18x8xbf16>
    tpu.vector_store %arg10[%c0_4, %c0_5, %c0_6, %c0_7], %2 {strides = array<i32>} : memref<1x18x18x8xbf16, #tpu.memory_space<vmem>>, vector<1x18x18x8xbf16>,
    %c0_8 = arith.constant 0 : index
    %c0_9 = arith.constant 0 : index
    %c0_10 = arith.constant 0 : index
    %c0_11 = arith.constant 0 : index
    %4 = vector.load %arg1[%c0_8, %c0_9, %c0_10, %c0_11] : memref<1x16x16x8xbf16, #tpu.memory_space<vmem>>, vector<1x16x16x8xbf16>
    %c0_12 = arith.constant 0 : index
    %c1 = arith.constant 1 : index
    %c1_13 = arith.constant 1 : index
    %c0_14 = arith.constant 0 : index
    %5 = vector.load %arg9[%c0_12, %c1, %c1_13, %c0_14] : memref<1x18x18x8xbf16, #tpu.memory_space<vmem>>, vector<1x16x16x8xbf16>
    tpu.vector_store %arg9[%c0_12, %c1, %c1_13, %c0_14], %4 {strides = array<i32>} : memref<1x18x18x8xbf16, #tpu.memory_space<vmem>>, vector<1x16x16x8xbf16>,
    %c0_15 = arith.constant 0 : index
    %c0_16 = arith.constant 0 : index
    %6 = vector.load %arg3[%c0_15, %c0_16] : memref<1x8xf32, #tpu.memory_space<vmem>>, vector<1x8xf32>
    %7 = vector.shape_cast %6 : vector<1x8xf32> to vector<1x8xf32>
    %8 = vector.broadcast %7 : vector<1x8xf32> to vector<256x8xf32>
    %c0_17 = arith.constant 0 : index
    %c0_18 = arith.constant 0 : index
    %c0_19 = arith.constant 0 : index
    %c0_20 = arith.constant 0 : index
    %9 = vector.load %arg9[%c0_17, %c0_18, %c0_19, %c0_20] : memref<1x18x18x8xbf16, #tpu.memory_space<vmem>>, vector<1x16x16x8xbf16>
    %10 = vector.shape_cast %9 : vector<1x16x16x8xbf16> to vector<256x8xbf16>
    %c0_21 = arith.constant 0 : index
    %c0_22 = arith.constant 0 : index
    %c0_23 = arith.constant 0 : index
    %11 = vector.load %arg2[%c0_21, %c0_22, %c0_23] : memref<9x8x8xbf16, #tpu.memory_space<vmem>>, vector<1x8x8xbf16>
    %12 = vector.shape_cast %11 : vector<1x8x8xbf16> to vector<8x8xbf16>
    %cst_24 = arith.constant dense<0.000000e+00> : vector<256x8xf32>
    %13 = tpu.matmul %10, %12, %cst_24 {dimension_numbers = #tpu.dot_dimension_numbers<[1], [0], [0], [1], [0, 0, 1, 1], [], []>} : vector<256x8xbf16>, vector<8x8xbf16>, vector<256x8xf32> -> vector<256x8xf32>
    %14 = arith.addf %8, %13 : vector<256x8xf32>
    %c0_25 = arith.constant 0 : index
    %c0_26 = arith.constant 0 : index
    %c1_27 = arith.constant 1 : index
    %c0_28 = arith.constant 0 : index
    %15 = vector.load %arg9[%c0_25, %c0_26, %c1_27, %c0_28] : memref<1x18x18x8xbf16, #tpu.memory_space<vmem>>, vector<1x16x16x8xbf16>
    %16 = vector.shape_cast %15 : vector<1x16x16x8xbf16> to vector<256x8xbf16>
    %c1_29 = arith.constant 1 : index
    %c0_30 = arith.constant 0 : index
    %c0_31 = arith.constant 0 : index
    %17 = vector.load %arg2[%c1_29, %c0_30, %c0_31] : memref<9x8x8xbf16, #tpu.memory_space<vmem>>, vector<1x8x8xbf16>
    %18 = vector.shape_cast %17 : vector<1x8x8xbf16> to vector<8x8xbf16>
    %cst_32 = arith.constant dense<0.000000e+00> : vector<256x8xf32>
    %19 = tpu.matmul %16, %18, %cst_32 {dimension_numbers = #tpu.dot_dimension_numbers<[1], [0], [0], [1], [0, 0, 1, 1], [], []>} : vector<256x8xbf16>, vector<8x8xbf16>, vector<256x8xf32> -> vector<256x8xf32>
    %20 = arith.addf %14, %19 : vector<256x8xf32>
    %c0_33 = arith.constant 0 : index
    %c0_34 = arith.constant 0 : index
    %c2 = arith.constant 2 : index
    %c0_35 = arith.constant 0 : index
    %21 = vector.load %arg9[%c0_33, %c0_34, %c2, %c0_35] : memref<1x18x18x8xbf16, #tpu.memory_space<vmem>>, vector<1x16x16x8xbf16>
    %22 = vector.shape_cast %21 : vector<1x16x16x8xbf16> to vector<256x8xbf16>
    %c2_36 = arith.constant 2 : index
    %c0_37 = arith.constant 0 : index
    %c0_38 = arith.constant 0 : index
    %23 = vector.load %arg2[%c2_36, %c0_37, %c0_38] : memref<9x8x8xbf16, #tpu.memory_space<vmem>>, vector<1x8x8xbf16>
    %24 = vector.shape_cast %23 : vector<1x8x8xbf16> to vector<8x8xbf16>
    %cst_39 = arith.constant dense<0.000000e+00> : vector<256x8xf32>
    %25 = tpu.matmul %22, %24, %cst_39 {dimension_numbers = #tpu.dot_dimension_numbers<[1], [0], [0], [1], [0, 0, 1, 1], [], []>} : vector<256x8xbf16>, vector<8x8xbf16>, vector<256x8xf32> -> vector<256x8xf32>
    %26 = arith.addf %20, %25 : vector<256x8xf32>
    %c0_40 = arith.constant 0 : index
    %c1_41 = arith.constant 1 : index
    %c0_42 = arith.constant 0 : index
    %c0_43 = arith.constant 0 : index
    %27 = vector.load %arg9[%c0_40, %c1_41, %c0_42, %c0_43] : memref<1x18x18x8xbf16, #tpu.memory_space<vmem>>, vector<1x16x16x8xbf16>
    %28 = vector.shape_cast %27 : vector<1x16x16x8xbf16> to vector<256x8xbf16>
    %c3 = arith.constant 3 : index
    %c0_44 = arith.constant 0 : index
    %c0_45 = arith.constant 0 : index
    %29 = vector.load %arg2[%c3, %c0_44, %c0_45] : memref<9x8x8xbf16, #tpu.memory_space<vmem>>, vector<1x8x8xbf16>
    %30 = vector.shape_cast %29 : vector<1x8x8xbf16> to vector<8x8xbf16>
    %cst_46 = arith.constant dense<0.000000e+00> : vector<256x8xf32>
    %31 = tpu.matmul %28, %30, %cst_46 {dimension_numbers = #tpu.dot_dimension_numbers<[1], [0], [0], [1], [0, 0, 1, 1], [], []>} : vector<256x8xbf16>, vector<8x8xbf16>, vector<256x8xf32> -> vector<256x8xf32>
    %32 = arith.addf %26, %31 : vector<256x8xf32>
    %c0_47 = arith.constant 0 : index
    %c1_48 = arith.constant 1 : index
    %c1_49 = arith.constant 1 : index
    %c0_50 = arith.constant 0 : index
    %33 = vector.load %arg9[%c0_47, %c1_48, %c1_49, %c0_50] : memref<1x18x18x8xbf16, #tpu.memory_space<vmem>>, vector<1x16x16x8xbf16>
    %34 = vector.shape_cast %33 : vector<1x16x16x8xbf16> to vector<256x8xbf16>
    %c4 = arith.constant 4 : index
    %c0_51 = arith.constant 0 : index
    %c0_52 = arith.constant 0 : index
    %35 = vector.load %arg2[%c4, %c0_51, %c0_52] : memref<9x8x8xbf16, #tpu.memory_space<vmem>>, vector<1x8x8xbf16>
    %36 = vector.shape_cast %35 : vector<1x8x8xbf16> to vector<8x8xbf16>
    %cst_53 = arith.constant dense<0.000000e+00> : vector<256x8xf32>
    %37 = tpu.matmul %34, %36, %cst_53 {dimension_numbers = #tpu.dot_dimension_numbers<[1], [0], [0], [1], [0, 0, 1, 1], [], []>} : vector<256x8xbf16>, vector<8x8xbf16>, vector<256x8xf32> -> vector<256x8xf32>
    %38 = arith.addf %32, %37 : vector<256x8xf32>
    %c0_54 = arith.constant 0 : index
    %c1_55 = arith.constant 1 : index
    %c2_56 = arith.constant 2 : index
    %c0_57 = arith.constant 0 : index
    %39 = vector.load %arg9[%c0_54, %c1_55, %c2_56, %c0_57] : memref<1x18x18x8xbf16, #tpu.memory_space<vmem>>, vector<1x16x16x8xbf16>
    %40 = vector.shape_cast %39 : vector<1x16x16x8xbf16> to vector<256x8xbf16>
    %c5 = arith.constant 5 : index
    %c0_58 = arith.constant 0 : index
    %c0_59 = arith.constant 0 : index
    %41 = vector.load %arg2[%c5, %c0_58, %c0_59] : memref<9x8x8xbf16, #tpu.memory_space<vmem>>, vector<1x8x8xbf16>
    %42 = vector.shape_cast %41 : vector<1x8x8xbf16> to vector<8x8xbf16>
    %cst_60 = arith.constant dense<0.000000e+00> : vector<256x8xf32>
    %43 = tpu.matmul %40, %42, %cst_60 {dimension_numbers = #tpu.dot_dimension_numbers<[1], [0], [0], [1], [0, 0, 1, 1], [], []>} : vector<256x8xbf16>, vector<8x8xbf16>, vector<256x8xf32> -> vector<256x8xf32>
    %44 = arith.addf %38, %43 : vector<256x8xf32>
    %c0_61 = arith.constant 0 : index
    %c2_62 = arith.constant 2 : index
    %c0_63 = arith.constant 0 : index
    %c0_64 = arith.constant 0 : index
    %45 = vector.load %arg9[%c0_61, %c2_62, %c0_63, %c0_64] : memref<1x18x18x8xbf16, #tpu.memory_space<vmem>>, vector<1x16x16x8xbf16>
    %46 = vector.shape_cast %45 : vector<1x16x16x8xbf16> to vector<256x8xbf16>
    %c6 = arith.constant 6 : index
    %c0_65 = arith.constant 0 : index
    %c0_66 = arith.constant 0 : index
    %47 = vector.load %arg2[%c6, %c0_65, %c0_66] : memref<9x8x8xbf16, #tpu.memory_space<vmem>>, vector<1x8x8xbf16>
    %48 = vector.shape_cast %47 : vector<1x8x8xbf16> to vector<8x8xbf16>
    %cst_67 = arith.constant dense<0.000000e+00> : vector<256x8xf32>
    %49 = tpu.matmul %46, %48, %cst_67 {dimension_numbers = #tpu.dot_dimension_numbers<[1], [0], [0], [1], [0, 0, 1, 1], [], []>} : vector<256x8xbf16>, vector<8x8xbf16>, vector<256x8xf32> -> vector<256x8xf32>
    %50 = arith.addf %44, %49 : vector<256x8xf32>
    %c0_68 = arith.constant 0 : index
    %c2_69 = arith.constant 2 : index
    %c1_70 = arith.constant 1 : index
    %c0_71 = arith.constant 0 : index
    %51 = vector.load %arg9[%c0_68, %c2_69, %c1_70, %c0_71] : memref<1x18x18x8xbf16, #tpu.memory_space<vmem>>, vector<1x16x16x8xbf16>
    %52 = vector.shape_cast %51 : vector<1x16x16x8xbf16> to vector<256x8xbf16>
    %c7 = arith.constant 7 : index
    %c0_72 = arith.constant 0 : index
    %c0_73 = arith.constant 0 : index
    %53 = vector.load %arg2[%c7, %c0_72, %c0_73] : memref<9x8x8xbf16, #tpu.memory_space<vmem>>, vector<1x8x8xbf16>
    %54 = vector.shape_cast %53 : vector<1x8x8xbf16> to vector<8x8xbf16>
    %cst_74 = arith.constant dense<0.000000e+00> : vector<256x8xf32>
    %55 = tpu.matmul %52, %54, %cst_74 {dimension_numbers = #tpu.dot_dimension_numbers<[1], [0], [0], [1], [0, 0, 1, 1], [], []>} : vector<256x8xbf16>, vector<8x8xbf16>, vector<256x8xf32> -> vector<256x8xf32>
    %56 = arith.addf %50, %55 : vector<256x8xf32>
    %c0_75 = arith.constant 0 : index
    %c2_76 = arith.constant 2 : index
    %c2_77 = arith.constant 2 : index
    %c0_78 = arith.constant 0 : index
    %57 = vector.load %arg9[%c0_75, %c2_76, %c2_77, %c0_78] : memref<1x18x18x8xbf16, #tpu.memory_space<vmem>>, vector<1x16x16x8xbf16>
    %58 = vector.shape_cast %57 : vector<1x16x16x8xbf16> to vector<256x8xbf16>
    %c8 = arith.constant 8 : index
    %c0_79 = arith.constant 0 : index
    %c0_80 = arith.constant 0 : index
    %59 = vector.load %arg2[%c8, %c0_79, %c0_80] : memref<9x8x8xbf16, #tpu.memory_space<vmem>>, vector<1x8x8xbf16>
    %60 = vector.shape_cast %59 : vector<1x8x8xbf16> to vector<8x8xbf16>
    %cst_81 = arith.constant dense<0.000000e+00> : vector<256x8xf32>
    %61 = tpu.matmul %58, %60, %cst_81 {dimension_numbers = #tpu.dot_dimension_numbers<[1], [0], [0], [1], [0, 0, 1, 1], [], []>} : vector<256x8xbf16>, vector<8x8xbf16>, vector<256x8xf32> -> vector<256x8xf32>
    %62 = arith.addf %56, %61 : vector<256x8xf32>
    %cst_82 = arith.constant 0.000000e+00 : f32
    %63 = vector.broadcast %cst_82 : f32 to vector<256x8xf32>
    %64 = arith.maximumf %62, %63 : vector<256x8xf32>
    %65 = vector.shape_cast %64 : vector<256x8xf32> to vector<1x16x16x8xf32>
    %66 = arith.truncf %65 : vector<1x16x16x8xf32> to vector<1x16x16x8xbf16>
    %c0_83 = arith.constant 0 : index
    %c1_84 = arith.constant 1 : index
    %c1_85 = arith.constant 1 : index
    %c0_86 = arith.constant 0 : index
    %67 = vector.load %arg10[%c0_83, %c1_84, %c1_85, %c0_86] : memref<1x18x18x8xbf16, #tpu.memory_space<vmem>>, vector<1x16x16x8xbf16>
    tpu.vector_store %arg10[%c0_83, %c1_84, %c1_85, %c0_86], %66 {strides = array<i32>} : memref<1x18x18x8xbf16, #tpu.memory_space<vmem>>, vector<1x16x16x8xbf16>,
    %c0_87 = arith.constant 0 : index
    %c0_88 = arith.constant 0 : index
    %68 = vector.load %arg5[%c0_87, %c0_88] : memref<1x8xf32, #tpu.memory_space<vmem>>, vector<1x8xf32>
    %69 = vector.shape_cast %68 : vector<1x8xf32> to vector<1x8xf32>
    %70 = vector.broadcast %69 : vector<1x8xf32> to vector<256x8xf32>
    %c0_89 = arith.constant 0 : index
    %c0_90 = arith.constant 0 : index
    %c0_91 = arith.constant 0 : index
    %c0_92 = arith.constant 0 : index
    %71 = vector.load %arg10[%c0_89, %c0_90, %c0_91, %c0_92] : memref<1x18x18x8xbf16, #tpu.memory_space<vmem>>, vector<1x16x16x8xbf16>
    %72 = vector.shape_cast %71 : vector<1x16x16x8xbf16> to vector<256x8xbf16>
    %c0_93 = arith.constant 0 : index
    %c0_94 = arith.constant 0 : index
    %c0_95 = arith.constant 0 : index
    %73 = vector.load %arg4[%c0_93, %c0_94, %c0_95] : memref<9x8x8xbf16, #tpu.memory_space<vmem>>, vector<1x8x8xbf16>
    %74 = vector.shape_cast %73 : vector<1x8x8xbf16> to vector<8x8xbf16>
    %cst_96 = arith.constant dense<0.000000e+00> : vector<256x8xf32>
    %75 = tpu.matmul %72, %74, %cst_96 {dimension_numbers = #tpu.dot_dimension_numbers<[1], [0], [0], [1], [0, 0, 1, 1], [], []>} : vector<256x8xbf16>, vector<8x8xbf16>, vector<256x8xf32> -> vector<256x8xf32>
    %76 = arith.addf %70, %75 : vector<256x8xf32>
    %c0_97 = arith.constant 0 : index
    %c0_98 = arith.constant 0 : index
    %c1_99 = arith.constant 1 : index
    %c0_100 = arith.constant 0 : index
    %77 = vector.load %arg10[%c0_97, %c0_98, %c1_99, %c0_100] : memref<1x18x18x8xbf16, #tpu.memory_space<vmem>>, vector<1x16x16x8xbf16>
    %78 = vector.shape_cast %77 : vector<1x16x16x8xbf16> to vector<256x8xbf16>
    %c1_101 = arith.constant 1 : index
    %c0_102 = arith.constant 0 : index
    %c0_103 = arith.constant 0 : index
    %79 = vector.load %arg4[%c1_101, %c0_102, %c0_103] : memref<9x8x8xbf16, #tpu.memory_space<vmem>>, vector<1x8x8xbf16>
    %80 = vector.shape_cast %79 : vector<1x8x8xbf16> to vector<8x8xbf16>
    %cst_104 = arith.constant dense<0.000000e+00> : vector<256x8xf32>
    %81 = tpu.matmul %78, %80, %cst_104 {dimension_numbers = #tpu.dot_dimension_numbers<[1], [0], [0], [1], [0, 0, 1, 1], [], []>} : vector<256x8xbf16>, vector<8x8xbf16>, vector<256x8xf32> -> vector<256x8xf32>
    %82 = arith.addf %76, %81 : vector<256x8xf32>
    %c0_105 = arith.constant 0 : index
    %c0_106 = arith.constant 0 : index
    %c2_107 = arith.constant 2 : index
    %c0_108 = arith.constant 0 : index
    %83 = vector.load %arg10[%c0_105, %c0_106, %c2_107, %c0_108] : memref<1x18x18x8xbf16, #tpu.memory_space<vmem>>, vector<1x16x16x8xbf16>
    %84 = vector.shape_cast %83 : vector<1x16x16x8xbf16> to vector<256x8xbf16>
    %c2_109 = arith.constant 2 : index
    %c0_110 = arith.constant 0 : index
    %c0_111 = arith.constant 0 : index
    %85 = vector.load %arg4[%c2_109, %c0_110, %c0_111] : memref<9x8x8xbf16, #tpu.memory_space<vmem>>, vector<1x8x8xbf16>
    %86 = vector.shape_cast %85 : vector<1x8x8xbf16> to vector<8x8xbf16>
    %cst_112 = arith.constant dense<0.000000e+00> : vector<256x8xf32>
    %87 = tpu.matmul %84, %86, %cst_112 {dimension_numbers = #tpu.dot_dimension_numbers<[1], [0], [0], [1], [0, 0, 1, 1], [], []>} : vector<256x8xbf16>, vector<8x8xbf16>, vector<256x8xf32> -> vector<256x8xf32>
    %88 = arith.addf %82, %87 : vector<256x8xf32>
    %c0_113 = arith.constant 0 : index
    %c1_114 = arith.constant 1 : index
    %c0_115 = arith.constant 0 : index
    %c0_116 = arith.constant 0 : index
    %89 = vector.load %arg10[%c0_113, %c1_114, %c0_115, %c0_116] : memref<1x18x18x8xbf16, #tpu.memory_space<vmem>>, vector<1x16x16x8xbf16>
    %90 = vector.shape_cast %89 : vector<1x16x16x8xbf16> to vector<256x8xbf16>
    %c3_117 = arith.constant 3 : index
    %c0_118 = arith.constant 0 : index
    %c0_119 = arith.constant 0 : index
    %91 = vector.load %arg4[%c3_117, %c0_118, %c0_119] : memref<9x8x8xbf16, #tpu.memory_space<vmem>>, vector<1x8x8xbf16>
    %92 = vector.shape_cast %91 : vector<1x8x8xbf16> to vector<8x8xbf16>
    %cst_120 = arith.constant dense<0.000000e+00> : vector<256x8xf32>
    %93 = tpu.matmul %90, %92, %cst_120 {dimension_numbers = #tpu.dot_dimension_numbers<[1], [0], [0], [1], [0, 0, 1, 1], [], []>} : vector<256x8xbf16>, vector<8x8xbf16>, vector<256x8xf32> -> vector<256x8xf32>
    %94 = arith.addf %88, %93 : vector<256x8xf32>
    %c0_121 = arith.constant 0 : index
    %c1_122 = arith.constant 1 : index
    %c1_123 = arith.constant 1 : index
    %c0_124 = arith.constant 0 : index
    %95 = vector.load %arg10[%c0_121, %c1_122, %c1_123, %c0_124] : memref<1x18x18x8xbf16, #tpu.memory_space<vmem>>, vector<1x16x16x8xbf16>
    %96 = vector.shape_cast %95 : vector<1x16x16x8xbf16> to vector<256x8xbf16>
    %c4_125 = arith.constant 4 : index
    %c0_126 = arith.constant 0 : index
    %c0_127 = arith.constant 0 : index
    %97 = vector.load %arg4[%c4_125, %c0_126, %c0_127] : memref<9x8x8xbf16, #tpu.memory_space<vmem>>, vector<1x8x8xbf16>
    %98 = vector.shape_cast %97 : vector<1x8x8xbf16> to vector<8x8xbf16>
    %cst_128 = arith.constant dense<0.000000e+00> : vector<256x8xf32>
    %99 = tpu.matmul %96, %98, %cst_128 {dimension_numbers = #tpu.dot_dimension_numbers<[1], [0], [0], [1], [0, 0, 1, 1], [], []>} : vector<256x8xbf16>, vector<8x8xbf16>, vector<256x8xf32> -> vector<256x8xf32>
    %100 = arith.addf %94, %99 : vector<256x8xf32>
    %c0_129 = arith.constant 0 : index
    %c1_130 = arith.constant 1 : index
    %c2_131 = arith.constant 2 : index
    %c0_132 = arith.constant 0 : index
    %101 = vector.load %arg10[%c0_129, %c1_130, %c2_131, %c0_132] : memref<1x18x18x8xbf16, #tpu.memory_space<vmem>>, vector<1x16x16x8xbf16>
    %102 = vector.shape_cast %101 : vector<1x16x16x8xbf16> to vector<256x8xbf16>
    %c5_133 = arith.constant 5 : index
    %c0_134 = arith.constant 0 : index
    %c0_135 = arith.constant 0 : index
    %103 = vector.load %arg4[%c5_133, %c0_134, %c0_135] : memref<9x8x8xbf16, #tpu.memory_space<vmem>>, vector<1x8x8xbf16>
    %104 = vector.shape_cast %103 : vector<1x8x8xbf16> to vector<8x8xbf16>
    %cst_136 = arith.constant dense<0.000000e+00> : vector<256x8xf32>
    %105 = tpu.matmul %102, %104, %cst_136 {dimension_numbers = #tpu.dot_dimension_numbers<[1], [0], [0], [1], [0, 0, 1, 1], [], []>} : vector<256x8xbf16>, vector<8x8xbf16>, vector<256x8xf32> -> vector<256x8xf32>
    %106 = arith.addf %100, %105 : vector<256x8xf32>
    %c0_137 = arith.constant 0 : index
    %c2_138 = arith.constant 2 : index
    %c0_139 = arith.constant 0 : index
    %c0_140 = arith.constant 0 : index
    %107 = vector.load %arg10[%c0_137, %c2_138, %c0_139, %c0_140] : memref<1x18x18x8xbf16, #tpu.memory_space<vmem>>, vector<1x16x16x8xbf16>
    %108 = vector.shape_cast %107 : vector<1x16x16x8xbf16> to vector<256x8xbf16>
    %c6_141 = arith.constant 6 : index
    %c0_142 = arith.constant 0 : index
    %c0_143 = arith.constant 0 : index
    %109 = vector.load %arg4[%c6_141, %c0_142, %c0_143] : memref<9x8x8xbf16, #tpu.memory_space<vmem>>, vector<1x8x8xbf16>
    %110 = vector.shape_cast %109 : vector<1x8x8xbf16> to vector<8x8xbf16>
    %cst_144 = arith.constant dense<0.000000e+00> : vector<256x8xf32>
    %111 = tpu.matmul %108, %110, %cst_144 {dimension_numbers = #tpu.dot_dimension_numbers<[1], [0], [0], [1], [0, 0, 1, 1], [], []>} : vector<256x8xbf16>, vector<8x8xbf16>, vector<256x8xf32> -> vector<256x8xf32>
    %112 = arith.addf %106, %111 : vector<256x8xf32>
    %c0_145 = arith.constant 0 : index
    %c2_146 = arith.constant 2 : index
    %c1_147 = arith.constant 1 : index
    %c0_148 = arith.constant 0 : index
    %113 = vector.load %arg10[%c0_145, %c2_146, %c1_147, %c0_148] : memref<1x18x18x8xbf16, #tpu.memory_space<vmem>>, vector<1x16x16x8xbf16>
    %114 = vector.shape_cast %113 : vector<1x16x16x8xbf16> to vector<256x8xbf16>
    %c7_149 = arith.constant 7 : index
    %c0_150 = arith.constant 0 : index
    %c0_151 = arith.constant 0 : index
    %115 = vector.load %arg4[%c7_149, %c0_150, %c0_151] : memref<9x8x8xbf16, #tpu.memory_space<vmem>>, vector<1x8x8xbf16>
    %116 = vector.shape_cast %115 : vector<1x8x8xbf16> to vector<8x8xbf16>
    %cst_152 = arith.constant dense<0.000000e+00> : vector<256x8xf32>
    %117 = tpu.matmul %114, %116, %cst_152 {dimension_numbers = #tpu.dot_dimension_numbers<[1], [0], [0], [1], [0, 0, 1, 1], [], []>} : vector<256x8xbf16>, vector<8x8xbf16>, vector<256x8xf32> -> vector<256x8xf32>
    %118 = arith.addf %112, %117 : vector<256x8xf32>
    %c0_153 = arith.constant 0 : index
    %c2_154 = arith.constant 2 : index
    %c2_155 = arith.constant 2 : index
    %c0_156 = arith.constant 0 : index
    %119 = vector.load %arg10[%c0_153, %c2_154, %c2_155, %c0_156] : memref<1x18x18x8xbf16, #tpu.memory_space<vmem>>, vector<1x16x16x8xbf16>
    %120 = vector.shape_cast %119 : vector<1x16x16x8xbf16> to vector<256x8xbf16>
    %c8_157 = arith.constant 8 : index
    %c0_158 = arith.constant 0 : index
    %c0_159 = arith.constant 0 : index
    %121 = vector.load %arg4[%c8_157, %c0_158, %c0_159] : memref<9x8x8xbf16, #tpu.memory_space<vmem>>, vector<1x8x8xbf16>
    %122 = vector.shape_cast %121 : vector<1x8x8xbf16> to vector<8x8xbf16>
    %cst_160 = arith.constant dense<0.000000e+00> : vector<256x8xf32>
    %123 = tpu.matmul %120, %122, %cst_160 {dimension_numbers = #tpu.dot_dimension_numbers<[1], [0], [0], [1], [0, 0, 1, 1], [], []>} : vector<256x8xbf16>, vector<8x8xbf16>, vector<256x8xf32> -> vector<256x8xf32>
    %124 = arith.addf %118, %123 : vector<256x8xf32>
    %cst_161 = arith.constant 0.000000e+00 : f32
    %125 = vector.broadcast %cst_161 : f32 to vector<256x8xf32>
    %126 = arith.maximumf %124, %125 : vector<256x8xf32>
    %127 = tpu.iota {dimensions = array<i32: 1>} : vector<1x256xi32>
    %128 = tpu.iota {dimensions = array<i32: 0>} : vector<1x256xi32>
    %c256_i32 = arith.constant 256 : i32
    %129 = vector.broadcast %c256_i32 : i32 to vector<1x256xi32>
    %130 = arith.muli %128, %129 : vector<1x256xi32>
    %131 = arith.cmpi sge, %127, %130 : vector<1x256xi32>
    %c1_i32 = arith.constant 1 : i32
    %132 = vector.broadcast %c1_i32 : i32 to vector<1x256xi32>
    %133 = arith.addi %128, %132 : vector<1x256xi32>
    %c256_i32_162 = arith.constant 256 : i32
    %134 = vector.broadcast %c256_i32_162 : i32 to vector<1x256xi32>
    %135 = arith.muli %133, %134 : vector<1x256xi32>
    %136 = arith.cmpi slt, %127, %135 : vector<1x256xi32>
    %137 = arith.andi %131, %136 : vector<1x256xi1>
    %138 = arith.extui %137 : vector<1x256xi1> to vector<1x256xi32>
    %139 = arith.sitofp %138 : vector<1x256xi32> to vector<1x256xf32>
    %cst_163 = arith.constant dense<0.000000e+00> : vector<1x8xf32>
    %140 = tpu.matmul %139, %126, %cst_163 {dimension_numbers = #tpu.dot_dimension_numbers<[1], [0], [0], [1], [0, 0, 1, 1], [], []>} : vector<1x256xf32>, vector<256x8xf32>, vector<1x8xf32> -> vector<1x8xf32>
    %c0_164 = arith.constant 0 : index
    %c0_165 = arith.constant 0 : index
    %141 = vector.load %arg6[%c0_164, %c0_165] : memref<8x128xf32, #tpu.memory_space<vmem>>, vector<8x128xf32>
    %cst_166 = arith.constant dense<0.000000e+00> : vector<1x128xf32>
    %142 = tpu.matmul %140, %141, %cst_166 {dimension_numbers = #tpu.dot_dimension_numbers<[1], [0], [0], [1], [0, 0, 1, 1], [], []>} : vector<1x8xf32>, vector<8x128xf32>, vector<1x128xf32> -> vector<1x128xf32>
    %c0_167 = arith.constant 0 : index
    %c0_168 = arith.constant 0 : index
    %143 = vector.load %arg7[%c0_167, %c0_168] : memref<1x128xf32, #tpu.memory_space<vmem>>, vector<1x128xf32>
    %144 = arith.addf %142, %143 : vector<1x128xf32>
    %145 = vector.shape_cast %144 : vector<1x128xf32> to vector<1x1x128xf32>
    %c0_169 = arith.constant 0 : index
    %c0_170 = arith.constant 0 : index
    %c0_171 = arith.constant 0 : index
    %146 = vector.load %arg8[%c0_169, %c0_170, %c0_171] : memref<1x1x128xf32, #tpu.memory_space<vmem>>, vector<1x1x128xf32>
    tpu.vector_store %arg8[%c0_169, %c0_170, %c0_171], %145 {strides = array<i32>} : memref<1x1x128xf32, #tpu.memory_space<vmem>>, vector<1x1x128xf32>,
    return
  }
  func.func @transform_0(%arg0: i32) -> (i32, i32, i32, i32) {
    %c0_i32 = arith.constant 0 : i32
    %c0_i32_0 = arith.constant 0 : i32
    %c0_i32_1 = arith.constant 0 : i32
    %c0_i32_2 = arith.constant 0 : i32
    return %arg0, %c0_i32, %c0_i32_0, %c0_i32_1 : i32, i32, i32, i32
  }
  func.func @transform_1(%arg0: i32) -> (i32, i32, i32) {
    %c0_i32 = arith.constant 0 : i32
    %c0_i32_0 = arith.constant 0 : i32
    %c0_i32_1 = arith.constant 0 : i32
    %c0_i32_2 = arith.constant 0 : i32
    return %c0_i32, %c0_i32_0, %c0_i32_1 : i32, i32, i32
  }
  func.func @transform_2(%arg0: i32) -> (i32, i32) {
    %c0_i32 = arith.constant 0 : i32
    %c0_i32_0 = arith.constant 0 : i32
    %c0_i32_1 = arith.constant 0 : i32
    return %c0_i32, %c0_i32_0 : i32, i32
  }
  func.func @transform_3(%arg0: i32) -> (i32, i32, i32) {
    %c0_i32 = arith.constant 0 : i32
    %c0_i32_0 = arith.constant 0 : i32
    %c0_i32_1 = arith.constant 0 : i32
    %c0_i32_2 = arith.constant 0 : i32
    return %c0_i32, %c0_i32_0, %c0_i32_1 : i32, i32, i32
  }
  func.func @transform_4(%arg0: i32) -> (i32, i32) {
    %c0_i32 = arith.constant 0 : i32
    %c0_i32_0 = arith.constant 0 : i32
    %c0_i32_1 = arith.constant 0 : i32
    return %c0_i32, %c0_i32_0 : i32, i32
  }
  func.func @transform_5(%arg0: i32) -> (i32, i32) {
    %c0_i32 = arith.constant 0 : i32
    %c0_i32_0 = arith.constant 0 : i32
    %c0_i32_1 = arith.constant 0 : i32
    return %c0_i32, %c0_i32_0 : i32, i32
  }
  func.func @transform_6(%arg0: i32) -> (i32, i32) {
    %c0_i32 = arith.constant 0 : i32
    %c0_i32_0 = arith.constant 0 : i32
    %c0_i32_1 = arith.constant 0 : i32
    return %c0_i32, %c0_i32_0 : i32, i32
  }
  func.func @transform_7(%arg0: i32) -> (i32, i32, i32) {
    %c0_i32 = arith.constant 0 : i32
    %c0_i32_0 = arith.constant 0 : i32
    %c0_i32_1 = arith.constant 0 : i32
    return %arg0, %c0_i32, %c0_i32_0 : i32, i32, i32
  }
}

</mosaic_0001>

<llo_original>
// kernel: evalnet2_forward.1
$region0: #{evalnet2_forward.1}
  #allocation0 [shape = 'u32[]', space=smem, size = 0x4, offset = 0x4, fixed_abs, tag = 'smem constant byte address 0x4 - core index']
  #allocation1 [shape = 'u32[144,128]{1,0:T(1,128)}', space=vmem, size = 0x12000, scoped, tag = 'internal scratch']
  #allocation2 [shape = 'bf16[1,18,18,8]{3,2,1,0:T(8,128)(2,1)}', space=vmem, size = 0x1b000, scoped, tag = 'scratch operand']
  #allocation3 [shape = 'bf16[1,18,18,8]{3,2,1,0:T(8,128)(2,1)}', space=vmem, size = 0x1b000, scoped, tag = 'scratch operand']
  %s0 = inlined_call_operand.vmem [shape: bf16[2,16,16,8], index: 0, kind: input, shape index: {}]
  %s1 = inlined_call_operand.vmem [shape: bf16[9,8,8], index: 1, kind: input, shape index: {}]
  %s2 = inlined_call_operand.vmem [shape: f32[1,8], index: 2, kind: input, shape index: {}]
  %s3 = inlined_call_operand.vmem [shape: bf16[9,8,8], index: 3, kind: input, shape index: {}]
  %s4 = inlined_call_operand.vmem [shape: f32[1,8], index: 4, kind: input, shape index: {}]
  %s5 = inlined_call_operand.vmem [shape: f32[8,128], index: 5, kind: input, shape index: {}]
  %s6 = inlined_call_operand.vmem [shape: f32[1,128], index: 6, kind: input, shape index: {}]
  %s7 = inlined_call_operand.hbm [shape: f32[2,1,128], index: 7, kind: output, shape index: {}]
  %s8 = sld [smem:[#allocation0]]
  $region61: #{evalnet2_forward.1} parent=0
    _
  %s10 = ssub.s32 1, %s8
  %s11 = scalar_select 0, %s10, %s8
  $region1: #{evalnet2_forward.1} parent=0
    #allocation4 [shape = 'u8[1024]{0}', space=vmem, size = 0x400, scoped, tag = 'output window, operand 0']
    #allocation5 [shape = 's32[2]{0}', space=sflag, size = 0x8, scoped, tag = 'scoped memory for evalnet2_forward.1']
    %12 = vsyncpa [#allocation5], 0
    %s13 = scalar_lea.sflag [#allocation5], 1
    %14 = vsyncpa %s13, 0
    loop: start=0, step=1, limit=4
    $region2: #{evalnet2_forward.1} parent=1 // loop_pre_header
      _
    $region3: #{evalnet2_forward.1} parent=1 // loop_header
      %s16 = sphi 0, %s20
      %p17 = scmp.ge.s32.totalorder %s16, 4
      %s26 = sphi 0, %s28
      %s29 = sphi 0, %s26
      %s30 = sphi 0, %s29
      %s46 = sphi 0, %s30
      %s50 = sphi 0, %s50
      %s52 = sphi 0, %s50
      %s53 = sphi 0, %s52
      %s67 = sphi 0, %s53
      %s71 = sphi 0, %s71
      %s73 = sphi 0, %s71
      %s74 = sphi 0, %s73
      %s88 = sphi 0, %s74
      %s92 = sphi 0, %s92
      %s94 = sphi 0, %s92
      %s95 = sphi 0, %s94
      %s109 = sphi 0, %s95
      %s113 = sphi 0, %s113
      %s115 = sphi 0, %s113
      %s116 = sphi 0, %s115
      %s130 = sphi 0, %s116
      %s134 = sphi 0, %s134
      %s136 = sphi 0, %s134
      %s137 = sphi 0, %s136
      %s151 = sphi 0, %s137
      %s155 = sphi 0, %s155
      %s157 = sphi 0, %s155
      %s158 = sphi 0, %s157
      %s172 = sphi 0, %s158
      %s178 = sphi 0, %s180
      %s181 = sphi 0, %s178
      %s182 = sphi 0, %s181
      %s198 = sphi 0, %s182
    $region4: #{evalnet2_forward.1} parent=1 // loop_header_branch
      %19 = sbr.rel (%p17) target = $region8
    $region5: #{evalnet2_forward.1} parent=1 // loop_body
      %s21 = ssub.s32 %s16, 1
      %s22 = ssub.s32 %s16, 2
      %s23 = sadd.s32 %s16, 1
      %s24 = ssub.s32 %s16, %s23
      %p25 = scmp.eq.s32.totalorder %s24, 0
      %s27 = sadd.s32 %s26, 1
      %s28 = scalar_select %p25, %s26, %s27
      %p31 = pneg %p25
      %p32 = scmp.eq.s32.totalorder %s16, 1
      %p33 = por %p31, %p32
      %p34 = scmp.ne.s32.totalorder %s26, %s29
      %p35 = scmp.eq.s32.totalorder %s16, 0
      %p36 = por %p34, %p35
      %p37 = scmp.ne.s32.totalorder %s26, %s29
      %p38 = scmp.eq.s32.totalorder %s21, 1
      %p39 = por %p37, %p38
      %p40 = scmp.ne.s32.totalorder %s29, %s30
      %p41 = scmp.eq.s32.totalorder %s21, 0
      %p42 = por %p40, %p41
      %p43 = scmp.ne.s32.totalorder %s29, %s30
      %p44 = scmp.eq.s32.totalorder %s22, 1
      %p45 = por %p43, %p44
      %p47 = scmp.ne.s32.totalorder %s30, %s46
      %p48 = scmp.eq.s32.totalorder %s22, 0
      %p49 = por %p47, %p48
      %s51 = sadd.s32 %s50, 1
      %p54 = scmp.eq.s32.totalorder %s16, 1
      %p55 = scmp.ne.s32.totalorder %s50, %s52
      %p56 = scmp.eq.s32.totalorder %s16, 0
      %p57 = por %p55, %p56
      %p58 = scmp.ne.s32.totalorder %s50, %s52
      %p59 = scmp.eq.s32.totalorder %s21, 1
      %p60 = por %p58, %p59
      %p61 = scmp.ne.s32.totalorder %s52, %s53
      %p62 = scmp.eq.s32.totalorder %s21, 0
      %p63 = por %p61, %p62
      %p64 = scmp.ne.s32.totalorder %s52, %s53
      %p65 = scmp.eq.s32.totalorder %s22, 1
      %p66 = por %p64, %p65
      %p68 = scmp.ne.s32.totalorder %s53, %s67
      %p69 = scmp.eq.s32.totalorder %s22, 0
      %p70 = por %p68, %p69
      %s72 = sadd.s32 %s71, 1
      %p75 = scmp.eq.s32.totalorder %s16, 1
      %p76 = scmp.ne.s32.totalorder %s71, %s73
      %p77 = scmp.eq.s32.totalorder %s16, 0
      %p78 = por %p76, %p77
      %p79 = scmp.ne.s32.totalorder %s71, %s73
      %p80 = scmp.eq.s32.totalorder %s21, 1
      %p81 = por %p79, %p80
      %p82 = scmp.ne.s32.totalorder %s73, %s74
      %p83 = scmp.eq.s32.totalorder %s21, 0
      %p84 = por %p82, %p83
      %p85 = scmp.ne.s32.totalorder %s73, %s74
      %p86 = scmp.eq.s32.totalorder %s22, 1
      %p87 = por %p85, %p86
      %p89 = scmp.ne.s32.totalorder %s74, %s88
      %p90 = scmp.eq.s32.totalorder %s22, 0
      %p91 = por %p89, %p90
      %s93 = sadd.s32 %s92, 1
      %p96 = scmp.eq.s32.totalorder %s16, 1
      %p97 = scmp.ne.s32.totalorder %s92, %s94
      %p98 = scmp.eq.s32.totalorder %s16, 0
      %p99 = por %p97, %p98
      %p100 = scmp.ne.s32.totalorder %s92, %s94
      %p101 = scmp.eq.s32.totalorder %s21, 1
      %p102 = por %p100, %p101
      %p103 = scmp.ne.s32.totalorder %s94, %s95
      %p104 = scmp.eq.s32.totalorder %s21, 0
      %p105 = por %p103, %p104
      %p106 = scmp.ne.s32.totalorder %s94, %s95
      %p107 = scmp.eq.s32.totalorder %s22, 1
      %p108 = por %p106, %p107
      %p110 = scmp.ne.s32.totalorder %s95, %s109
      %p111 = scmp.eq.s32.totalorder %s22, 0
      %p112 = por %p110, %p111
      %s114 = sadd.s32 %s113, 1
      %p117 = scmp.eq.s32.totalorder %s16, 1
      %p118 = scmp.ne.s32.totalorder %s113, %s115
      %p119 = scmp.eq.s32.totalorder %s16, 0
      %p120 = por %p118, %p119
      %p121 = scmp.ne.s32.totalorder %s113, %s115
      %p122 = scmp.eq.s32.totalorder %s21, 1
      %p123 = por %p121, %p122
      %p124 = scmp.ne.s32.totalorder %s115, %s116
      %p125 = scmp.eq.s32.totalorder %s21, 0
      %p126 = por %p124, %p125
      %p127 = scmp.ne.s32.totalorder %s115, %s116
      %p128 = scmp.eq.s32.totalorder %s22, 1
      %p129 = por %p127, %p128
      %p131 = scmp.ne.s32.totalorder %s116, %s130
      %p132 = scmp.eq.s32.totalorder %s22, 0
      %p133 = por %p131, %p132
      %s135 = sadd.s32 %s134, 1
      %p138 = scmp.eq.s32.totalorder %s16, 1
      %p139 = scmp.ne.s32.totalorder %s134, %s136
      %p140 = scmp.eq.s32.totalorder %s16, 0
      %p141 = por %p139, %p140
      %p142 = scmp.ne.s32.totalorder %s134, %s136
      %p143 = scmp.eq.s32.totalorder %s21, 1
      %p144 = por %p142, %p143
      %p145 = scmp.ne.s32.totalorder %s136, %s137
      %p146 = scmp.eq.s32.totalorder %s21, 0
      %p147 = por %p145, %p146
      %p148 = scmp.ne.s32.totalorder %s136, %s137
      %p149 = scmp.eq.s32.totalorder %s22, 1
      %p150 = por %p148, %p149
      %p152 = scmp.ne.s32.totalorder %s137, %s151
      %p153 = scmp.eq.s32.totalorder %s22, 0
      %p154 = por %p152, %p153
      %s156 = sadd.s32 %s155, 1
      %p159 = scmp.eq.s32.totalorder %s16, 1
      %p160 = scmp.ne.s32.totalorder %s155, %s157
      %p161 = scmp.eq.s32.totalorder %s16, 0
      %p162 = por %p160, %p161
      %p163 = scmp.ne.s32.totalorder %s155, %s157
      %p164 = scmp.eq.s32.totalorder %s21, 1
      %p165 = por %p163, %p164
      %p166 = scmp.ne.s32.totalorder %s157, %s158
      %p167 = scmp.eq.s32.totalorder %s21, 0
      %p168 = por %p166, %p167
      %p169 = scmp.ne.s32.totalorder %s157, %s158
      %p170 = scmp.eq.s32.totalorder %s22, 1
      %p171 = por %p169, %p170
      %p173 = scmp.ne.s32.totalorder %s158, %s172
      %p174 = scmp.eq.s32.totalorder %s22, 0
      %p175 = por %p173, %p174
      %s176 = ssub.s32 %s16, %s23
      %p177 = scmp.eq.s32.totalorder %s176, 0
      %s179 = sadd.s32 %s178, 1
      %s180 = scalar_select %p177, %s178, %s179
      %p183 = pneg %p177
      %p184 = scmp.eq.s32.totalorder %s16, 1
      %p185 = por %p183, %p184
      %p186 = scmp.ne.s32.totalorder %s178, %s181
      %p187 = scmp.eq.s32.totalorder %s16, 0
      %p188 = por %p186, %p187
      %p189 = scmp.ne.s32.totalorder %s178, %s181
      %p190 = scmp.eq.s32.totalorder %s21, 1
      %p191 = por %p189, %p190
      %p192 = scmp.ne.s32.totalorder %s181, %s182
      %p193 = scmp.eq.s32.totalorder %s21, 0
      %p194 = por %p192, %p193
      %p195 = scmp.ne.s32.totalorder %s181, %s182
      %p196 = scmp.eq.s32.totalorder %s22, 1
      %p197 = por %p195, %p196
      %p199 = scmp.ne.s32.totalorder %s182, %s198
      %p200 = scmp.eq.s32.totalorder %s22, 0
      %p201 = por %p199, %p200
      %p202 = scmp.le.s32.totalorder 1, %s16
      %p203 = scmp.lt.s32.totalorder %s16, 3
      %p204 = pnand %p202, %p203
      %p205 = pneg %p204
      // Predicated region
      $region9: #{evalnet2_forward.1} parent=5 // pred_check
        _
      $region10: #{evalnet2_forward.1} parent=5 // pred_check_branch
        %207 = sbr.rel (%p204) target = $region12
      $region11: #{evalnet2_forward.1} parent=5 // pred_region
        %s208 = ssub.s32 %s16, 1
        // Predicated region
        $region13: #{evalnet2_forward.1} parent=11 // pred_check
          %p209 = pneg %p63
        $region14: #{evalnet2_forward.1} parent=11 // pred_check_branch
          %211 = sbr.rel (%p209) target = $region16
        $region15: #{evalnet2_forward.1} parent=11 // pred_region
          _
        $region16: #{evalnet2_forward.1} parent=11 // pred_fallthru
          _
        // Predicated region
        $region17: #{evalnet2_forward.1} parent=11 // pred_check
          %p212 = pneg %p84
        $region18: #{evalnet2_forward.1} parent=11 // pred_check_branch
          %214 = sbr.rel (%p212) target = $region20
        $region19: #{evalnet2_forward.1} parent=11 // pred_region
          _
        $region20: #{evalnet2_forward.1} parent=11 // pred_fallthru
          _
        // Predicated region
        $region21: #{evalnet2_forward.1} parent=11 // pred_check
          %p215 = pneg %p105
        $region22: #{evalnet2_forward.1} parent=11 // pred_check_branch
          %217 = sbr.rel (%p215) target = $region24
        $region23: #{evalnet2_forward.1} parent=11 // pred_region
          _
        $region24: #{evalnet2_forward.1} parent=11 // pred_fallthru
          _
        // Predicated region
        $region25: #{evalnet2_forward.1} parent=11 // pred_check
          %p218 = pneg %p126
        $region26: #{evalnet2_forward.1} parent=11 // pred_check_branch
          %220 = sbr.rel (%p218) target = $region28
        $region27: #{evalnet2_forward.1} parent=11 // pred_region
          _
        $region28: #{evalnet2_forward.1} parent=11 // pred_fallthru
          _
        // Predicated region
        $region29: #{evalnet2_forward.1} parent=11 // pred_check
          %p221 = pneg %p147
        $region30: #{evalnet2_forward.1} parent=11 // pred_check_branch
          %223 = sbr.rel (%p221) target = $region32
        $region31: #{evalnet2_forward.1} parent=11 // pred_region
          _
        $region32: #{evalnet2_forward.1} parent=11 // pred_fallthru
          _
        // Predicated region
        $region33: #{evalnet2_forward.1} parent=11 // pred_check
          %p224 = pneg %p168
        $region34: #{evalnet2_forward.1} parent=11 // pred_check_branch
          %226 = sbr.rel (%p224) target = $region36
        $region35: #{evalnet2_forward.1} parent=11 // pred_region
          _
        $region36: #{evalnet2_forward.1} parent=11 // pred_fallthru
          _
      $region12: #{evalnet2_forward.1} parent=5 // pred_fallthru
        _
      %p227 = scmp.lt.s32.totalorder %s16, 2
      // Predicated region
      $region37: #{evalnet2_forward.1} parent=5 // pred_check
        %p228 = pneg %p227
      $region38: #{evalnet2_forward.1} parent=5 // pred_check_branch
        %230 = sbr.rel (%p228) target = $region40
      $region39: #{evalnet2_forward.1} parent=5 // pred_region
        // Predicated region
        $region41: #{evalnet2_forward.1} parent=39 // pred_check
          %p231 = pneg %p36
        $region42: #{evalnet2_forward.1} parent=39 // pred_check_branch
          %233 = sbr.rel (%p231) target = $region44
        $region43: #{evalnet2_forward.1} parent=39 // pred_region
          %p234 = scmp.lt.s32.totalorder %s16, 1
          %s235 = scalar_select %p234, %s16, 1
          %s236 = smul.addr %s235, 32
          %s237 = smul.addr %s236, 4
          %s238 = scalar_lea.vmem %s0, %s237
        $region44: #{evalnet2_forward.1} parent=39 // pred_fallthru
          _
      $region40: #{evalnet2_forward.1} parent=5 // pred_fallthru
        _
      %p239 = scmp.le.s32.totalorder 1, %s16
      %p240 = scmp.lt.s32.totalorder %s16, 3
      %p241 = pnand %p239, %p240
      %p242 = pneg %p241
      // Predicated region
      $region45: #{evalnet2_forward.1} parent=5 // pred_check
        _
      $region46: #{evalnet2_forward.1} parent=5 // pred_check_branch
        %244 = sbr.rel (%p241) target = $region48
      $region47: #{evalnet2_forward.1} parent=5 // pred_region
        %s245 = ssub.s32 %s16, 1
        %p246 = scmp.lt.s32.totalorder %s21, 1
        %s247 = scalar_select %p246, %s21, 1
        %s248 = smul.addr %s247, 32
        %s249 = smul.addr %s248, 4
        %s250 = scalar_lea.vmem %s0, %s249
        %p251 = pneg %p42
        %p252 = pneg %p39
        %p253 = pneg %p63
        %p254 = pneg %p60
        %p255 = pneg %p84
        %p256 = pneg %p81
        %p257 = pneg %p105
        %p258 = pneg %p102
        %p259 = pneg %p126
        %p260 = pneg %p123
        %p261 = pneg %p147
        %p262 = pneg %p144
        %p263 = pneg %p168
        %p264 = pneg %p165
        %p265 = pneg %p194
        %p266 = pneg %p191
        %s267 = sand.u32 %s181, 1
        %s268 = scalar_lea.sflag [#allocation5], %s267
        %s269 = sand.u32 %s181, 1
        %s270 = scalar_lea.vmem [#allocation4], %s269
        %p271 = scmp.lt.s32.totalorder %s21, 1
        %s272 = scalar_select %p271, %s21, 1
        %s273 = smul.addr %s272, 32
        %s274 = smul.addr %s273, 4
        %s275 = scalar_lea.vmem %s0, %s274
        %vm277 = vcmask 60416
        %278 = vst.msk [vmem:[#allocation2] sm:$0xf] %vm277, 0
        %279 = vst.msk [vmem:[#allocation2 + $0x4] sm:$0xf] %vm277, 0
        %vm280 = vcmask 57344
        %281 = vst.msk [vmem:[#allocation2 + $0x8] sm:$0x1] %vm280, 0
        %282 = vst.msk [vmem:[#allocation2 + $0xc] sm:$0xf] %vm277, 0
        %283 = vst.msk [vmem:[#allocation2 + $0x10] sm:$0xf] %vm277, 0
        %284 = vst.msk [vmem:[#allocation2 + $0x14] sm:$0x1] %vm280, 0
        %285 = vst.msk [vmem:[#allocation2 + $0x18] sm:$0xf] %vm277, 0
        %286 = vst.msk [vmem:[#allocation2 + $0x1c] sm:$0xf] %vm277, 0
        %287 = vst.msk [vmem:[#allocation2 + $0x20] sm:$0x1] %vm280, 0
        %288 = vst.msk [vmem:[#allocation2 + $0x24] sm:$0xf] %vm277, 0
        %289 = vst.msk [vmem:[#allocation2 + $0x28] sm:$0xf] %vm277, 0
        %290 = vst.msk [vmem:[#allocation2 + $0x2c] sm:$0x1] %vm280, 0
        %291 = vst.msk [vmem:[#allocation2 + $0x30] sm:$0xf] %vm277, 0
        %292 = vst.msk [vmem:[#allocation2 + $0x34] sm:$0xf] %vm277, 0
        %293 = vst.msk [vmem:[#allocation2 + $0x38] sm:$0x1] %vm280, 0
        %294 = vst.msk [vmem:[#allocation2 + $0x3c] sm:$0xf] %vm277, 0
        %295 = vst.msk [vmem:[#allocation2 + $0x40] sm:$0xf] %vm277, 0
        %296 = vst.msk [vmem:[#allocation2 + $0x44] sm:$0x1] %vm280, 0
        %297 = vst.msk [vmem:[#allocation2 + $0x48] sm:$0xf] %vm277, 0
        %298 = vst.msk [vmem:[#allocation2 + $0x4c] sm:$0xf] %vm277, 0
        %299 = vst.msk [vmem:[#allocation2 + $0x50] sm:$0x1] %vm280, 0
        %300 = vst.msk [vmem:[#allocation2 + $0x54] sm:$0xf] %vm277, 0
        %301 = vst.msk [vmem:[#allocation2 + $0x58] sm:$0xf] %vm277, 0
        %302 = vst.msk [vmem:[#allocation2 + $0x5c] sm:$0x1] %vm280, 0
        %303 = vst.msk [vmem:[#allocation2 + $0x60] sm:$0xf] %vm277, 0
        %304 = vst.msk [vmem:[#allocation2 + $0x64] sm:$0xf] %vm277, 0
        %305 = vst.msk [vmem:[#allocation2 + $0x68] sm:$0x1] %vm280, 0
        %306 = vst.msk [vmem:[#allocation2 + $0x6c] sm:$0xf] %vm277, 0
        %307 = vst.msk [vmem:[#allocation2 + $0x70] sm:$0xf] %vm277, 0
        %308 = vst.msk [vmem:[#allocation2 + $0x74] sm:$0x1] %vm280, 0
        %309 = vst.msk [vmem:[#allocation2 + $0x78] sm:$0xf] %vm277, 0
        %310 = vst.msk [vmem:[#allocation2 + $0x7c] sm:$0xf] %vm277, 0
        %311 = vst.msk [vmem:[#allocation2 + $0x80] sm:$0x1] %vm280, 0
        %312 = vst.msk [vmem:[#allocation2 + $0x84] sm:$0xf] %vm277, 0
        %313 = vst.msk [vmem:[#allocation2 + $0x88] sm:$0xf] %vm277, 0
        %314 = vst.msk [vmem:[#allocation2 + $0x8c] sm:$0x1] %vm280, 0
        %315 = vst.msk [vmem:[#allocation2 + $0x90] sm:$0xf] %vm277, 0
        %316 = vst.msk [vmem:[#allocation2 + $0x94] sm:$0xf] %vm277, 0
        %317 = vst.msk [vmem:[#allocation2 + $0x98] sm:$0x1] %vm280, 0
        %318 = vst.msk [vmem:[#allocation2 + $0x9c] sm:$0xf] %vm277, 0
        %319 = vst.msk [vmem:[#allocation2 + $0xa0] sm:$0xf] %vm277, 0
        %320 = vst.msk [vmem:[#allocation2 + $0xa4] sm:$0x1] %vm280, 0
        %321 = vst.msk [vmem:[#allocation2 + $0xa8] sm:$0xf] %vm277, 0
        %322 = vst.msk [vmem:[#allocation2 + $0xac] sm:$0xf] %vm277, 0
        %323 = vst.msk [vmem:[#allocation2 + $0xb0] sm:$0x1] %vm280, 0
        %324 = vst.msk [vmem:[#allocation2 + $0xb4] sm:$0xf] %vm277, 0
        %325 = vst.msk [vmem:[#allocation2 + $0xb8] sm:$0xf] %vm277, 0
        %326 = vst.msk [vmem:[#allocation2 + $0xbc] sm:$0x1] %vm280, 0
        %327 = vst.msk [vmem:[#allocation2 + $0xc0] sm:$0xf] %vm277, 0
        %328 = vst.msk [vmem:[#allocation2 + $0xc4] sm:$0xf] %vm277, 0
        %329 = vst.msk [vmem:[#allocation2 + $0xc8] sm:$0x1] %vm280, 0
        %330 = vst.msk [vmem:[#allocation2 + $0xcc] sm:$0xf] %vm277, 0
        %331 = vst.msk [vmem:[#allocation2 + $0xd0] sm:$0xf] %vm277, 0
        %332 = vst.msk [vmem:[#allocation2 + $0xd4] sm:$0x1] %vm280, 0
        %333 = vst.msk [vmem:[#allocation3] sm:$0xf] %vm277, 0
        %334 = vst.msk [vmem:[#allocation3 + $0x4] sm:$0xf] %vm277, 0
        %335 = vst.msk [vmem:[#allocation3 + $0x8] sm:$0x1] %vm280, 0
        %336 = vst.msk [vmem:[#allocation3 + $0xc] sm:$0xf] %vm277, 0
        %337 = vst.msk [vmem:[#allocation3 + $0x10] sm:$0xf] %vm277, 0
        %338 = vst.msk [vmem:[#allocation3 + $0x14] sm:$0x1] %vm280, 0
        %339 = vst.msk [vmem:[#allocation3 + $0x18] sm:$0xf] %vm277, 0
        %340 = vst.msk [vmem:[#allocation3 + $0x1c] sm:$0xf] %vm277, 0
        %341 = vst.msk [vmem:[#allocation3 + $0x20] sm:$0x1] %vm280, 0
        %342 = vst.msk [vmem:[#allocation3 + $0x24] sm:$0xf] %vm277, 0
        %343 = vst.msk [vmem:[#allocation3 + $0x28] sm:$0xf] %vm277, 0
        %344 = vst.msk [vmem:[#allocation3 + $0x2c] sm:$0x1] %vm280, 0
        %345 = vst.msk [vmem:[#allocation3 + $0x30] sm:$0xf] %vm277, 0
        %346 = vst.msk [vmem:[#allocation3 + $0x34] sm:$0xf] %vm277, 0
        %347 = vst.msk [vmem:[#allocation3 + $0x38] sm:$0x1] %vm280, 0
        %348 = vst.msk [vmem:[#allocation3 + $0x3c] sm:$0xf] %vm277, 0
        %349 = vst.msk [vmem:[#allocation3 + $0x40] sm:$0xf] %vm277, 0
        %350 = vst.msk [vmem:[#allocation3 + $0x44] sm:$0x1] %vm280, 0
        %351 = vst.msk [vmem:[#allocation3 + $0x48] sm:$0xf] %vm277, 0
        %352 = vst.msk [vmem:[#allocation3 + $0x4c] sm:$0xf] %vm277, 0
        %353 = vst.msk [vmem:[#allocation3 + $0x50] sm:$0x1] %vm280, 0
        %354 = vst.msk [vmem:[#allocation3 + $0x54] sm:$0xf] %vm277, 0
        %355 = vst.msk [vmem:[#allocation3 + $0x58] sm:$0xf] %vm277, 0
        %356 = vst.msk [vmem:[#allocation3 + $0x5c] sm:$0x1] %vm280, 0
        %357 = vst.msk [vmem:[#allocation3 + $0x60] sm:$0xf] %vm277, 0
        %358 = vst.msk [vmem:[#allocation3 + $0x64] sm:$0xf] %vm277, 0
        %359 = vst.msk [vmem:[#allocation3 + $0x68] sm:$0x1] %vm280, 0
        %360 = vst.msk [vmem:[#allocation3 + $0x6c] sm:$0xf] %vm277, 0
        %361 = vst.msk [vmem:[#allocation3 + $0x70] sm:$0xf] %vm277, 0
        %362 = vst.msk [vmem:[#allocation3 + $0x74] sm:$0x1] %vm280, 0
        %363 = vst.msk [vmem:[#allocation3 + $0x78] sm:$0xf] %vm277, 0
        %364 = vst.msk [vmem:[#allocation3 + $0x7c] sm:$0xf] %vm277, 0
        %365 = vst.msk [vmem:[#allocation3 + $0x80] sm:$0x1] %vm280, 0
        %366 = vst.msk [vmem:[#allocation3 + $0x84] sm:$0xf] %vm277, 0
        %367 = vst.msk [vmem:[#allocation3 + $0x88] sm:$0xf] %vm277, 0
        %368 = vst.msk [vmem:[#allocation3 + $0x8c] sm:$0x1] %vm280, 0
        %369 = vst.msk [vmem:[#allocation3 + $0x90] sm:$0xf] %vm277, 0
        %370 = vst.msk [vmem:[#allocation3 + $0x94] sm:$0xf] %vm277, 0
        %371 = vst.msk [vmem:[#allocation3 + $0x98] sm:$0x1] %vm280, 0
        %372 = vst.msk [vmem:[#allocation3 + $0x9c] sm:$0xf] %vm277, 0
        %373 = vst.msk [vmem:[#allocation3 + $0xa0] sm:$0xf] %vm277, 0
        %374 = vst.msk [vmem:[#allocation3 + $0xa4] sm:$0x1] %vm280, 0
        %375 = vst.msk [vmem:[#allocation3 + $0xa8] sm:$0xf] %vm277, 0
        %376 = vst.msk [vmem:[#allocation3 + $0xac] sm:$0xf] %vm277, 0
        %377 = vst.msk [vmem:[#allocation3 + $0xb0] sm:$0x1] %vm280, 0
        %378 = vst.msk [vmem:[#allocation3 + $0xb4] sm:$0xf] %vm277, 0
        %379 = vst.msk [vmem:[#allocation3 + $0xb8] sm:$0xf] %vm277, 0
        %380 = vst.msk [vmem:[#allocation3 + $0xbc] sm:$0x1] %vm280, 0
        %381 = vst.msk [vmem:[#allocation3 + $0xc0] sm:$0xf] %vm277, 0
        %382 = vst.msk [vmem:[#allocation3 + $0xc4] sm:$0xf] %vm277, 0
        %383 = vst.msk [vmem:[#allocation3 + $0xc8] sm:$0x1] %vm280, 0
        %384 = vst.msk [vmem:[#allocation3 + $0xcc] sm:$0xf] %vm277, 0
        %385 = vst.msk [vmem:[#allocation3 + $0xd0] sm:$0xf] %vm277, 0
        %386 = vst.msk [vmem:[#allocation3 + $0xd4] sm:$0x1] %vm280, 0
        %v387 = vld [vmem:[%s275] sm:$0xf]
        %v388 = vld [vmem:[%s275 + $0x4] sm:$0xf]
        %v389 = vld [vmem:[%s275 + $0x8] sm:$0xf]
        %v390 = vld [vmem:[%s275 + $0xc] sm:$0xf]
        %v391 = vld [vmem:[%s275 + $0x10] sm:$0xf]
        %v392 = vld [vmem:[%s275 + $0x14] sm:$0xf]
        %v393 = vld [vmem:[%s275 + $0x18] sm:$0xf]
        %v394 = vld [vmem:[%s275 + $0x1c] sm:$0xf]
        %v395 = vld [vmem:[%s275 + $0x20] sm:$0xf]
        %v396 = vld [vmem:[%s275 + $0x24] sm:$0xf]
        %v397 = vld [vmem:[%s275 + $0x28] sm:$0xf]
        %v398 = vld [vmem:[%s275 + $0x2c] sm:$0xf]
        %v399 = vld [vmem:[%s275 + $0x30] sm:$0xf]
        %v400 = vld [vmem:[%s275 + $0x34] sm:$0xf]
        %v401 = vld [vmem:[%s275 + $0x38] sm:$0xf]
        %v402 = vld [vmem:[%s275 + $0x3c] sm:$0xf]
        %v403 = vld [vmem:[%s275 + $0x40] sm:$0xf]
        %v404 = vld [vmem:[%s275 + $0x44] sm:$0xf]
        %v405 = vld [vmem:[%s275 + $0x48] sm:$0xf]
        %v406 = vld [vmem:[%s275 + $0x4c] sm:$0xf]
        %v407 = vld [vmem:[%s275 + $0x50] sm:$0xf]
        %v408 = vld [vmem:[%s275 + $0x54] sm:$0xf]
        %v409 = vld [vmem:[%s275 + $0x58] sm:$0xf]
        %v410 = vld [vmem:[%s275 + $0x5c] sm:$0xf]
        %v411 = vld [vmem:[%s275 + $0x60] sm:$0xf]
        %v412 = vld [vmem:[%s275 + $0x64] sm:$0xf]
        %v413 = vld [vmem:[%s275 + $0x68] sm:$0xf]
        %v414 = vld [vmem:[%s275 + $0x6c] sm:$0xf]
        %v415 = vld [vmem:[%s275 + $0x70] sm:$0xf]
        %v416 = vld [vmem:[%s275 + $0x74] sm:$0xf]
        %v417 = vld [vmem:[%s275 + $0x78] sm:$0xf]
        %v418 = vld [vmem:[%s275 + $0x7c] sm:$0xf]
        %vm419 = vsmask.f32 256
        %vm420 = vsmask.f32 4368
        %vm421 = vmor %vm419, %vm420
        %v423 = vshrl.u32 %v387, 16
        %v425 = vrot.slane %v423, 7
        %v426 = vshll.u32 %v387, 16
        %v428 = vor.u32 %v425, %v426
        %v429 = vrot.slane %v425, 4
        %v431 = vshrl.u32 %v388, 16
        %v433 = vrot.slane %v431, 7
        %v434 = vshll.u32 %v388, 16
        %v436 = vor.u32 %v433, %v434
        %v437 = vsel %vm421, %v429, %v436
        %v438 = vrot.slane %v433, 4
        %v440 = vshrl.u32 %v389, 16
        %v442 = vrot.slane %v440, 7
        %v443 = vshll.u32 %v389, 16
        %v445 = vor.u32 %v442, %v443
        %v446 = vrot.slane %v442, 4
        %v448 = vshrl.u32 %v390, 16
        %v450 = vrot.slane %v448, 7
        %v451 = vshll.u32 %v390, 16
        %v453 = vor.u32 %v450, %v451
        %v454 = vsel %vm421, %v446, %v453
        %v455 = vrot.slane %v450, 4
        %v457 = vshrl.u32 %v391, 16
        %v459 = vrot.slane %v457, 7
        %v460 = vshll.u32 %v391, 16
        %v462 = vor.u32 %v459, %v460
        %v463 = vrot.slane %v459, 4
        %v465 = vshrl.u32 %v392, 16
        %v467 = vrot.slane %v465, 7
        %v468 = vshll.u32 %v392, 16
        %v470 = vor.u32 %v467, %v468
        %v471 = vsel %vm421, %v463, %v470
        %v472 = vrot.slane %v467, 4
        %v474 = vshrl.u32 %v393, 16
        %v476 = vrot.slane %v474, 7
        %v477 = vshll.u32 %v393, 16
        %v479 = vor.u32 %v476, %v477
        %v480 = vrot.slane %v476, 4
        %v482 = vshrl.u32 %v394, 16
        %v484 = vrot.slane %v482, 7
        %v485 = vshll.u32 %v394, 16
        %v487 = vor.u32 %v484, %v485
        %v488 = vsel %vm421, %v480, %v487
        %v489 = vrot.slane %v484, 4
        %v491 = vshrl.u32 %v395, 16
        %v493 = vrot.slane %v491, 7
        %v494 = vshll.u32 %v395, 16
        %v496 = vor.u32 %v493, %v494
        %v497 = vrot.slane %v493, 4
        %v499 = vshrl.u32 %v396, 16
        %v501 = vrot.slane %v499, 7
        %v502 = vshll.u32 %v396, 16
        %v504 = vor.u32 %v501, %v502
        %v505 = vsel %vm421, %v497, %v504
        %v506 = vrot.slane %v501, 4
        %v508 = vshrl.u32 %v397, 16
        %v510 = vrot.slane %v508, 7
        %v511 = vshll.u32 %v397, 16
        %v513 = vor.u32 %v510, %v511
        %v514 = vrot.slane %v510, 4
        %v516 = vshrl.u32 %v398, 16
        %v518 = vrot.slane %v516, 7
        %v519 = vshll.u32 %v398, 16
        %v521 = vor.u32 %v518, %v519
        %v522 = vsel %vm421, %v514, %v521
        %v523 = vrot.slane %v518, 4
        %v525 = vshrl.u32 %v399, 16
        %v527 = vrot.slane %v525, 7
        %v528 = vshll.u32 %v399, 16
        %v530 = vor.u32 %v527, %v528
        %v531 = vrot.slane %v527, 4
        %v533 = vshrl.u32 %v400, 16
        %v535 = vrot.slane %v533, 7
        %v536 = vshll.u32 %v400, 16
        %v538 = vor.u32 %v535, %v536
        %v539 = vsel %vm421, %v531, %v538
        %v540 = vrot.slane %v535, 4
        %v542 = vshrl.u32 %v401, 16
        %v544 = vrot.slane %v542, 7
        %v545 = vshll.u32 %v401, 16
        %v547 = vor.u32 %v544, %v545
        %v548 = vrot.slane %v544, 4
        %v550 = vshrl.u32 %v402, 16
        %v552 = vrot.slane %v550, 7
        %v553 = vshll.u32 %v402, 16
        %v555 = vor.u32 %v552, %v553
        %v556 = vsel %vm421, %v548, %v555
        %v557 = vrot.slane %v552, 4
        %v559 = vshrl.u32 %v403, 16
        %v561 = vrot.slane %v559, 7
        %v562 = vshll.u32 %v403, 16
        %v564 = vor.u32 %v561, %v562
        %v565 = vrot.slane %v561, 4
        %v567 = vshrl.u32 %v404, 16
        %v569 = vrot.slane %v567, 7
        %v570 = vshll.u32 %v404, 16
        %v572 = vor.u32 %v569, %v570
        %v573 = vsel %vm421, %v565, %v572
        %v574 = vrot.slane %v569, 4
        %v576 = vshrl.u32 %v405, 16
        %v578 = vrot.slane %v576, 7
        %v579 = vshll.u32 %v405, 16
        %v581 = vor.u32 %v578, %v579
        %v582 = vrot.slane %v578, 4
        %v584 = vshrl.u32 %v406, 16
        %v586 = vrot.slane %v584, 7
        %v587 = vshll.u32 %v406, 16
        %v589 = vor.u32 %v586, %v587
        %v590 = vsel %vm421, %v582, %v589
        %v591 = vrot.slane %v586, 4
        %v593 = vshrl.u32 %v407, 16
        %v595 = vrot.slane %v593, 7
        %v596 = vshll.u32 %v407, 16
        %v598 = vor.u32 %v595, %v596
        %v599 = vrot.slane %v595, 4
        %v601 = vshrl.u32 %v408, 16
        %v603 = vrot.slane %v601, 7
        %v604 = vshll.u32 %v408, 16
        %v606 = vor.u32 %v603, %v604
        %v607 = vsel %vm421, %v599, %v606
        %v608 = vrot.slane %v603, 4
        %v610 = vshrl.u32 %v409, 16
        %v612 = vrot.slane %v610, 7
        %v613 = vshll.u32 %v409, 16
        %v615 = vor.u32 %v612, %v613
        %v616 = vrot.slane %v612, 4
        %v618 = vshrl.u32 %v410, 16
        %v620 = vrot.slane %v618, 7
        %v621 = vshll.u32 %v410, 16
        %v623 = vor.u32 %v620, %v621
        %v624 = vsel %vm421, %v616, %v623
        %v625 = vrot.slane %v620, 4
        %v627 = vshrl.u32 %v411, 16
        %v629 = vrot.slane %v627, 7
        %v630 = vshll.u32 %v411, 16
        %v632 = vor.u32 %v629, %v630
        %v633 = vrot.slane %v629, 4
        %v635 = vshrl.u32 %v412, 16
        %v637 = vrot.slane %v635, 7
        %v638 = vshll.u32 %v412, 16
        %v640 = vor.u32 %v637, %v638
        %v641 = vsel %vm421, %v633, %v640
        %v642 = vrot.slane %v637, 4
        %v644 = vshrl.u32 %v413, 16
        %v646 = vrot.slane %v644, 7
        %v647 = vshll.u32 %v413, 16
        %v649 = vor.u32 %v646, %v647
        %v650 = vrot.slane %v646, 4
        %v652 = vshrl.u32 %v414, 16
        %v654 = vrot.slane %v652, 7
        %v655 = vshll.u32 %v414, 16
        %v657 = vor.u32 %v654, %v655
        %v658 = vsel %vm421, %v650, %v657
        %v659 = vrot.slane %v654, 4
        %v661 = vshrl.u32 %v415, 16
        %v663 = vrot.slane %v661, 7
        %v664 = vshll.u32 %v415, 16
        %v666 = vor.u32 %v663, %v664
        %v667 = vrot.slane %v663, 4
        %v669 = vshrl.u32 %v416, 16
        %v671 = vrot.slane %v669, 7
        %v672 = vshll.u32 %v416, 16
        %v674 = vor.u32 %v671, %v672
        %v675 = vsel %vm421, %v667, %v674
        %v676 = vrot.slane %v671, 4
        %v678 = vshrl.u32 %v417, 16
        %v680 = vrot.slane %v678, 7
        %v681 = vshll.u32 %v417, 16
        %v683 = vor.u32 %v680, %v681
        %v684 = vrot.slane %v680, 4
        %v686 = vshrl.u32 %v418, 16
        %v688 = vrot.slane %v686, 7
        %v689 = vshll.u32 %v418, 16
        %v691 = vor.u32 %v688, %v689
        %v692 = vsel %vm421, %v684, %v691
        %v693 = vrot.slane %v688, 4
        %s742 = scalar_lea.vmem [#allocation2], 12
        %vm743 = vcmask 60416
        %vm744 = vsmask.f32 7938
        %vm745 = vmand %vm743, %vm744
        %v746 = vld [vmem:[%s742] sm:$0xf]
        %v747 = vsel %vm745, %v428, %v746
        %748 = vst [vmem:[%s742] sm:$0xf] %v747
        %749 = vst.msk [vmem:[%s742 + $0x4] sm:$0xf] %vm277, %v437
        %vm750 = vcmask 57344
        %vm751 = vmand %vm750, %vm419
        %v752 = vld [vmem:[%s742 + $0x8] sm:$0x1]
        %v753 = vsel %vm751, %v438, %v752
        %754 = vst [vmem:[%s742 + $0x8] sm:$0x1] %v753
        %v755 = vld [vmem:[%s742 + $0xc] sm:$0xf]
        %v756 = vsel %vm745, %v445, %v755
        %757 = vst [vmem:[%s742 + $0xc] sm:$0xf] %v756
        %758 = vst.msk [vmem:[%s742 + $0x10] sm:$0xf] %vm277, %v454
        %v759 = vld [vmem:[%s742 + $0x14] sm:$0x1]
        %v760 = vsel %vm751, %v455, %v759
        %761 = vst [vmem:[%s742 + $0x14] sm:$0x1] %v760
        %v762 = vld [vmem:[%s742 + $0x18] sm:$0xf]
        %v763 = vsel %vm745, %v462, %v762
        %764 = vst [vmem:[%s742 + $0x18] sm:$0xf] %v763
        %765 = vst.msk [vmem:[%s742 + $0x1c] sm:$0xf] %vm277, %v471
        %v766 = vld [vmem:[%s742 + $0x20] sm:$0x1]
        %v767 = vsel %vm751, %v472, %v766
        %768 = vst [vmem:[%s742 + $0x20] sm:$0x1] %v767
        %v769 = vld [vmem:[%s742 + $0x24] sm:$0xf]
        %v770 = vsel %vm745, %v479, %v769
        %771 = vst [vmem:[%s742 + $0x24] sm:$0xf] %v770
        %772 = vst.msk [vmem:[%s742 + $0x28] sm:$0xf] %vm277, %v488
        %v773 = vld [vmem:[%s742 + $0x2c] sm:$0x1]
        %v774 = vsel %vm751, %v489, %v773
        %775 = vst [vmem:[%s742 + $0x2c] sm:$0x1] %v774
        %v776 = vld [vmem:[%s742 + $0x30] sm:$0xf]
        %v777 = vsel %vm745, %v496, %v776
        %778 = vst [vmem:[%s742 + $0x30] sm:$0xf] %v777
        %779 = vst.msk [vmem:[%s742 + $0x34] sm:$0xf] %vm277, %v505
        %v780 = vld [vmem:[%s742 + $0x38] sm:$0x1]
        %v781 = vsel %vm751, %v506, %v780
        %782 = vst [vmem:[%s742 + $0x38] sm:$0x1] %v781
        %v783 = vld [vmem:[%s742 + $0x3c] sm:$0xf]
        %v784 = vsel %vm745, %v513, %v783
        %785 = vst [vmem:[%s742 + $0x3c] sm:$0xf] %v784
        %786 = vst.msk [vmem:[%s742 + $0x40] sm:$0xf] %vm277, %v522
        %v787 = vld [vmem:[%s742 + $0x44] sm:$0x1]
        %v788 = vsel %vm751, %v523, %v787
        %789 = vst [vmem:[%s742 + $0x44] sm:$0x1] %v788
        %v790 = vld [vmem:[%s742 + $0x48] sm:$0xf]
        %v791 = vsel %vm745, %v530, %v790
        %792 = vst [vmem:[%s742 + $0x48] sm:$0xf] %v791
        %793 = vst.msk [vmem:[%s742 + $0x4c] sm:$0xf] %vm277, %v539
        %v794 = vld [vmem:[%s742 + $0x50] sm:$0x1]
        %v795 = vsel %vm751, %v540, %v794
        %796 = vst [vmem:[%s742 + $0x50] sm:$0x1] %v795
        %v797 = vld [vmem:[%s742 + $0x54] sm:$0xf]
        %v798 = vsel %vm745, %v547, %v797
        %799 = vst [vmem:[%s742 + $0x54] sm:$0xf] %v798
        %800 = vst.msk [vmem:[%s742 + $0x58] sm:$0xf] %vm277, %v556
        %v801 = vld [vmem:[%s742 + $0x5c] sm:$0x1]
        %v802 = vsel %vm751, %v557, %v801
        %803 = vst [vmem:[%s742 + $0x5c] sm:$0x1] %v802
        %v804 = vld [vmem:[%s742 + $0x60] sm:$0xf]
        %v805 = vsel %vm745, %v564, %v804
        %806 = vst [vmem:[%s742 + $0x60] sm:$0xf] %v805
        %807 = vst.msk [vmem:[%s742 + $0x64] sm:$0xf] %vm277, %v573
        %v808 = vld [vmem:[%s742 + $0x68] sm:$0x1]
        %v809 = vsel %vm751, %v574, %v808
        %810 = vst [vmem:[%s742 + $0x68] sm:$0x1] %v809
        %v811 = vld [vmem:[%s742 + $0x6c] sm:$0xf]
        %v812 = vsel %vm745, %v581, %v811
        %813 = vst [vmem:[%s742 + $0x6c] sm:$0xf] %v812
        %814 = vst.msk [vmem:[%s742 + $0x70] sm:$0xf] %vm277, %v590
        %v815 = vld [vmem:[%s742 + $0x74] sm:$0x1]
        %v816 = vsel %vm751, %v591, %v815
        %817 = vst [vmem:[%s742 + $0x74] sm:$0x1] %v816
        %v818 = vld [vmem:[%s742 + $0x78] sm:$0xf]
        %v819 = vsel %vm745, %v598, %v818
        %820 = vst [vmem:[%s742 + $0x78] sm:$0xf] %v819
        %821 = vst.msk [vmem:[%s742 + $0x7c] sm:$0xf] %vm277, %v607
        %v822 = vld [vmem:[%s742 + $0x80] sm:$0x1]
        %v823 = vsel %vm751, %v608, %v822
        %824 = vst [vmem:[%s742 + $0x80] sm:$0x1] %v823
        %v825 = vld [vmem:[%s742 + $0x84] sm:$0xf]
        %v826 = vsel %vm745, %v615, %v825
        %827 = vst [vmem:[%s742 + $0x84] sm:$0xf] %v826
        %828 = vst.msk [vmem:[%s742 + $0x88] sm:$0xf] %vm277, %v624
        %v829 = vld [vmem:[%s742 + $0x8c] sm:$0x1]
        %v830 = vsel %vm751, %v625, %v829
        %831 = vst [vmem:[%s742 + $0x8c] sm:$0x1] %v830
        %v832 = vld [vmem:[%s742 + $0x90] sm:$0xf]
        %v833 = vsel %vm745, %v632, %v832
        %834 = vst [vmem:[%s742 + $0x90] sm:$0xf] %v833
        %835 = vst.msk [vmem:[%s742 + $0x94] sm:$0xf] %vm277, %v641
        %v836 = vld [vmem:[%s742 + $0x98] sm:$0x1]
        %v837 = vsel %vm751, %v642, %v836
        %838 = vst [vmem:[%s742 + $0x98] sm:$0x1] %v837
        %v839 = vld [vmem:[%s742 + $0x9c] sm:$0xf]
        %v840 = vsel %vm745, %v649, %v839
        %841 = vst [vmem:[%s742 + $0x9c] sm:$0xf] %v840
        %842 = vst.msk [vmem:[%s742 + $0xa0] sm:$0xf] %vm277, %v658
        %v843 = vld [vmem:[%s742 + $0xa4] sm:$0x1]
        %v844 = vsel %vm751, %v659, %v843
        %845 = vst [vmem:[%s742 + $0xa4] sm:$0x1] %v844
        %v846 = vld [vmem:[%s742 + $0xa8] sm:$0xf]
        %v847 = vsel %vm745, %v666, %v846
        %848 = vst [vmem:[%s742 + $0xa8] sm:$0xf] %v847
        %849 = vst.msk [vmem:[%s742 + $0xac] sm:$0xf] %vm277, %v675
        %v850 = vld [vmem:[%s742 + $0xb0] sm:$0x1]
        %v851 = vsel %vm751, %v676, %v850
        %852 = vst [vmem:[%s742 + $0xb0] sm:$0x1] %v851
        %v853 = vld [vmem:[%s742 + $0xb4] sm:$0xf]
        %v854 = vsel %vm745, %v683, %v853
        %855 = vst [vmem:[%s742 + $0xb4] sm:$0xf] %v854
        %856 = vst.msk [vmem:[%s742 + $0xb8] sm:$0xf] %vm277, %v692
        %v857 = vld [vmem:[%s742 + $0xbc] sm:$0x1]
        %v858 = vsel %vm751, %v693, %v857
        %859 = vst [vmem:[%s742 + $0xbc] sm:$0x1] %v858
        %v860 = vld [vmem:[%s2] sm:$0x1]
        %v862 = vlaneseq
        %v863 = vshrl.u32 %v862, 7
        %v864 = vsub.s32 0, %v863
        %v865 = vrot.slane %v860, %v864
        %v867 = vld [vmem:[#allocation2] sm:$0xf]
        %v868 = vld [vmem:[#allocation2 + $0x4] sm:$0xf]
        %v869 = vld [vmem:[#allocation2 + $0xc] sm:$0xf]
        %v870 = vld [vmem:[#allocation2 + $0x10] sm:$0xf]
        %v871 = vld [vmem:[#allocation2 + $0x18] sm:$0xf]
        %v872 = vld [vmem:[#allocation2 + $0x1c] sm:$0xf]
        %v873 = vld [vmem:[#allocation2 + $0x24] sm:$0xf]
        %v874 = vld [vmem:[#allocation2 + $0x28] sm:$0xf]
        %v875 = vld [vmem:[#allocation2 + $0x30] sm:$0xf]
        %v876 = vld [vmem:[#allocation2 + $0x34] sm:$0xf]
        %v877 = vld [vmem:[#allocation2 + $0x3c] sm:$0xf]
        %v878 = vld [vmem:[#allocation2 + $0x40] sm:$0xf]
        %v879 = vld [vmem:[#allocation2 + $0x48] sm:$0xf]
        %v880 = vld [vmem:[#allocation2 + $0x4c] sm:$0xf]
        %v881 = vld [vmem:[#allocation2 + $0x54] sm:$0xf]
        %v882 = vld [vmem:[#allocation2 + $0x58] sm:$0xf]
        %v883 = vld [vmem:[#allocation2 + $0x60] sm:$0xf]
        %v884 = vld [vmem:[#allocation2 + $0x64] sm:$0xf]
        %v885 = vld [vmem:[#allocation2 + $0x6c] sm:$0xf]
        %v886 = vld [vmem:[#allocation2 + $0x70] sm:$0xf]
        %v887 = vld [vmem:[#allocation2 + $0x78] sm:$0xf]
        %v888 = vld [vmem:[#allocation2 + $0x7c] sm:$0xf]
        %v889 = vld [vmem:[#allocation2 + $0x84] sm:$0xf]
        %v890 = vld [vmem:[#allocation2 + $0x88] sm:$0xf]
        %v891 = vld [vmem:[#allocation2 + $0x90] sm:$0xf]
        %v892 = vld [vmem:[#allocation2 + $0x94] sm:$0xf]
        %v893 = vld [vmem:[#allocation2 + $0x9c] sm:$0xf]
        %v894 = vld [vmem:[#allocation2 + $0xa0] sm:$0xf]
        %v895 = vld [vmem:[#allocation2 + $0xa8] sm:$0xf]
        %v896 = vld [vmem:[#allocation2 + $0xac] sm:$0xf]
        %v897 = vld [vmem:[#allocation2 + $0xb4] sm:$0xf]
        %v898 = vld [vmem:[#allocation2 + $0xb8] sm:$0xf]
        %v899 = vld [vmem:[%s1] sm:$0xf]
        %v932 = vunpack.c.l.b16 %v867
        %v933 = vunpack.c.l.b16 %v868
        %v934 = vunpack.c.l.b16 %v869
        %v935 = vunpack.c.l.b16 %v870
        %v936 = vunpack.c.l.b16 %v871
        %v937 = vunpack.c.l.b16 %v872
        %v938 = vunpack.c.l.b16 %v873
        %v939 = vunpack.c.l.b16 %v874
        %v940 = vunpack.c.l.b16 %v875
        %v941 = vunpack.c.l.b16 %v876
        %v942 = vunpack.c.l.b16 %v877
        %v943 = vunpack.c.l.b16 %v878
        %v944 = vunpack.c.l.b16 %v879
        %v945 = vunpack.c.l.b16 %v880
        %v946 = vunpack.c.l.b16 %v881
        %v947 = vunpack.c.l.b16 %v882
        %v948 = vunpack.c.l.b16 %v883
        %v949 = vunpack.c.l.b16 %v884
        %v950 = vunpack.c.l.b16 %v885
        %v951 = vunpack.c.l.b16 %v886
        %v952 = vunpack.c.l.b16 %v887
        %v953 = vunpack.c.l.b16 %v888
        %v954 = vunpack.c.l.b16 %v889
        %v955 = vunpack.c.l.b16 %v890
        %v956 = vunpack.c.l.b16 %v891
        %v957 = vunpack.c.l.b16 %v892
        %v958 = vunpack.c.l.b16 %v893
        %v959 = vunpack.c.l.b16 %v894
        %v960 = vunpack.c.l.b16 %v895
        %v961 = vunpack.c.l.b16 %v896
        %v962 = vunpack.c.l.b16 %v897
        %v963 = vunpack.c.l.b16 %v898
        %v964 = vpack.c.b16 %v933, %v932
        %v965 = vpack.c.b16 %v935, %v934
        %v966 = vpack.c.b16 %v937, %v936
        %v967 = vpack.c.b16 %v939, %v938
        %v968 = vpack.c.b16 %v941, %v940
        %v969 = vpack.c.b16 %v943, %v942
        %v970 = vpack.c.b16 %v945, %v944
        %v971 = vpack.c.b16 %v947, %v946
        %v972 = vpack.c.b16 %v949, %v948
        %v973 = vpack.c.b16 %v951, %v950
        %v974 = vpack.c.b16 %v953, %v952
        %v975 = vpack.c.b16 %v955, %v954
        %v976 = vpack.c.b16 %v957, %v956
        %v977 = vpack.c.b16 %v959, %v958
        %v978 = vpack.c.b16 %v961, %v960
        %v979 = vpack.c.b16 %v963, %v962
        %vm980 = vcmask 64512
        %v982 = vsel %vm980, %v964, 0
        %v985 = vsel %vm980, %v965, 0
        %v988 = vsel %vm980, %v966, 0
        %v991 = vsel %vm980, %v967, 0
        %v994 = vsel %vm980, %v968, 0
        %v997 = vsel %vm980, %v969, 0
        %v1000 = vsel %vm980, %v970, 0
        %v1003 = vsel %vm980, %v971, 0
        %v1006 = vsel %vm980, %v972, 0
        %v1009 = vsel %vm980, %v973, 0
        %v1012 = vsel %vm980, %v974, 0
        %v1015 = vsel %vm980, %v975, 0
        %v1018 = vsel %vm980, %v976, 0
        %v1021 = vsel %vm980, %v977, 0
        %v1024 = vsel %vm980, %v978, 0
        %v1027 = vsel %vm980, %v979, 0
        %vm1029 = vcmask 1043456
        %v1031 = vsel %vm1029, %v899, 0
        %1033 = vmatprep.subr.bf16.mxu0 0
        %1034 = vmatpush1.bf16.msra.mxu0 %v1031
        %1035 = vmatprep.subr.bf16.mxu0 0
        %1036 = vmatpush1.bf16.msra.mxu0 0
        %1037 = vmatprep.subr.bf16.mxu0 0
        %1038 = vmatpush1.bf16.msra.mxu0 0
        %1039 = vmatprep.subr.bf16.mxu0 0
        %1040 = vmatpush1.bf16.msra.mxu0 0
        %1041 = vmatprep.subr.bf16.mxu0 0
        %1042 = vmatpush1.bf16.msra.mxu0 0
        %1043 = vmatprep.subr.bf16.mxu0 0
        %1044 = vmatpush1.bf16.msra.mxu0 0
        %1045 = vmatprep.subr.bf16.mxu0 0
        %1046 = vmatpush1.bf16.msra.mxu0 0
        %1047 = vmatprep.subr.bf16.mxu0 0
        %1048 = vmatpush1.bf16.msra.mxu0 0
        %1049 = vmatprep.subr.bf16.mxu0 0
        %1050 = vmatpush1.bf16.msra.mxu0 0
        %1051 = vmatprep.subr.bf16.mxu0 0
        %1052 = vmatpush1.bf16.msra.mxu0 0
        %1053 = vmatprep.subr.bf16.mxu0 0
        %1054 = vmatpush1.bf16.msra.mxu0 0
        %1055 = vmatprep.subr.bf16.mxu0 0
        %1056 = vmatpush1.bf16.msra.mxu0 0
        %1057 = vmatprep.subr.bf16.mxu0 0
        %1058 = vmatpush1.bf16.msra.mxu0 0
        %1059 = vmatprep.subr.bf16.mxu0 0
        %1060 = vmatpush1.bf16.msra.mxu0 0
        %1061 = vmatprep.subr.bf16.mxu0 0
        %1062 = vmatpush1.bf16.msra.mxu0 0
        %1063 = vmatprep.subr.bf16.mxu0 0
        %1064 = vmatpush1.bf16.msra.mxu0 0
        %1065 = vmatprep.mubr.bf16.mxu0 0
        %1066 = vmatmul.mubr.bf16.gmra.mrb[0].mxu0 %v982
        %v1067 = vpop.f32.mrb[0].mxu0
        %v1068 = vadd.f32 0.0, %v1067
        %v1069 = vpop.f32.mrb[0].mxu0
        %v1070 = vpop.f32.mrb[0].mxu0
        %v1071 = vadd.f32 0.0, %v1070
        %v1072 = vpop.f32.mrb[0].mxu0
        %1073 = vmatprep.mubr.bf16.mxu0 0
        %1074 = vmatmul.mubr.bf16.gmra.mrb[0].mxu0 %v985
        %v1075 = vpop.f32.mrb[0].mxu0
        %v1076 = vadd.f32 0.0, %v1075
        %v1077 = vpop.f32.mrb[0].mxu0
        %v1078 = vpop.f32.mrb[0].mxu0
        %v1079 = vadd.f32 0.0, %v1078
        %v1080 = vpop.f32.mrb[0].mxu0
        %1081 = vmatprep.mubr.bf16.mxu0 0
        %1082 = vmatmul.mubr.bf16.gmra.mrb[0].mxu0 %v988
        %v1083 = vpop.f32.mrb[0].mxu0
        %v1084 = vadd.f32 0.0, %v1083
        %v1085 = vpop.f32.mrb[0].mxu0
        %v1086 = vpop.f32.mrb[0].mxu0
        %v1087 = vadd.f32 0.0, %v1086
        %v1088 = vpop.f32.mrb[0].mxu0
        %1089 = vmatprep.mubr.bf16.mxu0 0
        %1090 = vmatmul.mubr.bf16.gmra.mrb[0].mxu0 %v991
        %v1091 = vpop.f32.mrb[0].mxu0
        %v1092 = vadd.f32 0.0, %v1091
        %v1093 = vpop.f32.mrb[0].mxu0
        %v1094 = vpop.f32.mrb[0].mxu0
        %v1095 = vadd.f32 0.0, %v1094
        %v1096 = vpop.f32.mrb[0].mxu0
        %1097 = vmatprep.mubr.bf16.mxu0 0
        %1098 = vmatmul.mubr.bf16.gmra.mrb[0].mxu0 %v994
        %v1099 = vpop.f32.mrb[0].mxu0
        %v1100 = vadd.f32 0.0, %v1099
        %v1101 = vpop.f32.mrb[0].mxu0
        %v1102 = vpop.f32.mrb[0].mxu0
        %v1103 = vadd.f32 0.0, %v1102
        %v1104 = vpop.f32.mrb[0].mxu0
        %1105 = vmatprep.mubr.bf16.mxu0 0
        %1106 = vmatmul.mubr.bf16.gmra.mrb[0].mxu0 %v997
        %v1107 = vpop.f32.mrb[0].mxu0
        %v1108 = vadd.f32 0.0, %v1107
        %v1109 = vpop.f32.mrb[0].mxu0
        %v1110 = vpop.f32.mrb[0].mxu0
        %v1111 = vadd.f32 0.0, %v1110
        %v1112 = vpop.f32.mrb[0].mxu0
        %1113 = vmatprep.mubr.bf16.mxu0 0
        %1114 = vmatmul.mubr.bf16.gmra.mrb[0].mxu0 %v1000
        %v1115 = vpop.f32.mrb[0].mxu0
        %v1116 = vadd.f32 0.0, %v1115
        %v1117 = vpop.f32.mrb[0].mxu0
        %v1118 = vpop.f32.mrb[0].mxu0
        %v1119 = vadd.f32 0.0, %v1118
        %v1120 = vpop.f32.mrb[0].mxu0
        %1121 = vmatprep.mubr.bf16.mxu0 0
        %1122 = vmatmul.mubr.bf16.gmra.mrb[0].mxu0 %v1003
        %v1123 = vpop.f32.mrb[0].mxu0
        %v1124 = vadd.f32 0.0, %v1123
        %v1125 = vpop.f32.mrb[0].mxu0
        %v1126 = vpop.f32.mrb[0].mxu0
        %v1127 = vadd.f32 0.0, %v1126
        %v1128 = vpop.f32.mrb[0].mxu0
        %1129 = vmatprep.mubr.bf16.mxu0 0
        %1130 = vmatmul.mubr.bf16.gmra.mrb[0].mxu0 %v1006
        %v1131 = vpop.f32.mrb[0].mxu0
        %v1132 = vadd.f32 0.0, %v1131
        %v1133 = vpop.f32.mrb[0].mxu0
        %v1134 = vpop.f32.mrb[0].mxu0
        %v1135 = vadd.f32 0.0, %v1134
        %v1136 = vpop.f32.mrb[0].mxu0
        %1137 = vmatprep.mubr.bf16.mxu0 0
        %1138 = vmatmul.mubr.bf16.gmra.mrb[0].mxu0 %v1009
        %v1139 = vpop.f32.mrb[0].mxu0
        %v1140 = vadd.f32 0.0, %v1139
        %v1141 = vpop.f32.mrb[0].mxu0
        %v1142 = vpop.f32.mrb[0].mxu0
        %v1143 = vadd.f32 0.0, %v1142
        %v1144 = vpop.f32.mrb[0].mxu0
        %1145 = vmatprep.mubr.bf16.mxu0 0
        %1146 = vmatmul.mubr.bf16.gmra.mrb[0].mxu0 %v1012
        %v1147 = vpop.f32.mrb[0].mxu0
        %v1148 = vadd.f32 0.0, %v1147
        %v1149 = vpop.f32.mrb[0].mxu0
        %v1150 = vpop.f32.mrb[0].mxu0
        %v1151 = vadd.f32 0.0, %v1150
        %v1152 = vpop.f32.mrb[0].mxu0
        %1153 = vmatprep.mubr.bf16.mxu0 0
        %1154 = vmatmul.mubr.bf16.gmra.mrb[0].mxu0 %v1015
        %v1155 = vpop.f32.mrb[0].mxu0
        %v1156 = vadd.f32 0.0, %v1155
        %v1157 = vpop.f32.mrb[0].mxu0
        %v1158 = vpop.f32.mrb[0].mxu0
        %v1159 = vadd.f32 0.0, %v1158
        %v1160 = vpop.f32.mrb[0].mxu0
        %1161 = vmatprep.mubr.bf16.mxu0 0
        %1162 = vmatmul.mubr.bf16.gmra.mrb[0].mxu0 %v1018
        %v1163 = vpop.f32.mrb[0].mxu0
        %v1164 = vadd.f32 0.0, %v1163
        %v1165 = vpop.f32.mrb[0].mxu0
        %v1166 = vpop.f32.mrb[0].mxu0
        %v1167 = vadd.f32 0.0, %v1166
        %v1168 = vpop.f32.mrb[0].mxu0
        %1169 = vmatprep.mubr.bf16.mxu0 0
        %1170 = vmatmul.mubr.bf16.gmra.mrb[0].mxu0 %v1021
        %v1171 = vpop.f32.mrb[0].mxu0
        %v1172 = vadd.f32 0.0, %v1171
        %v1173 = vpop.f32.mrb[0].mxu0
        %v1174 = vpop.f32.mrb[0].mxu0
        %v1175 = vadd.f32 0.0, %v1174
        %v1176 = vpop.f32.mrb[0].mxu0
        %1177 = vmatprep.mubr.bf16.mxu0 0
        %1178 = vmatmul.mubr.bf16.gmra.mrb[0].mxu0 %v1024
        %v1179 = vpop.f32.mrb[0].mxu0
        %v1180 = vadd.f32 0.0, %v1179
        %v1181 = vpop.f32.mrb[0].mxu0
        %v1182 = vpop.f32.mrb[0].mxu0
        %v1183 = vadd.f32 0.0, %v1182
        %v1184 = vpop.f32.mrb[0].mxu0
        %1185 = vmatprep.mubr.bf16.mxu0 0
        %1186 = vmatmul.mubr.bf16.gmra.mrb[0].mxu0 %v1027
        %v1187 = vpop.f32.mrb[0].mxu0
        %v1188 = vadd.f32 0.0, %v1187
        %v1189 = vpop.f32.mrb[0].mxu0
        %v1190 = vpop.f32.mrb[0].mxu0
        %v1191 = vadd.f32 0.0, %v1190
        %v1192 = vpop.f32.mrb[0].mxu0
        %1193 = vdwg.mxu0
        %v1194 = vadd.f32 %v865, %v1068
        %v1195 = vadd.f32 %v865, %v1071
        %v1196 = vadd.f32 %v865, %v1076
        %v1197 = vadd.f32 %v865, %v1079
        %v1198 = vadd.f32 %v865, %v1084
        %v1199 = vadd.f32 %v865, %v1087
        %v1200 = vadd.f32 %v865, %v1092
        %v1201 = vadd.f32 %v865, %v1095
        %v1202 = vadd.f32 %v865, %v1100
        %v1203 = vadd.f32 %v865, %v1103
        %v1204 = vadd.f32 %v865, %v1108
        %v1205 = vadd.f32 %v865, %v1111
        %v1206 = vadd.f32 %v865, %v1116
        %v1207 = vadd.f32 %v865, %v1119
        %v1208 = vadd.f32 %v865, %v1124
        %v1209 = vadd.f32 %v865, %v1127
        %v1210 = vadd.f32 %v865, %v1132
        %v1211 = vadd.f32 %v865, %v1135
        %v1212 = vadd.f32 %v865, %v1140
        %v1213 = vadd.f32 %v865, %v1143
        %v1214 = vadd.f32 %v865, %v1148
        %v1215 = vadd.f32 %v865, %v1151
        %v1216 = vadd.f32 %v865, %v1156
        %v1217 = vadd.f32 %v865, %v1159
        %v1218 = vadd.f32 %v865, %v1164
        %v1219 = vadd.f32 %v865, %v1167
        %v1220 = vadd.f32 %v865, %v1172
        %v1221 = vadd.f32 %v865, %v1175
        %v1222 = vadd.f32 %v865, %v1180
        %v1223 = vadd.f32 %v865, %v1183
        %v1224 = vadd.f32 %v865, %v1188
        %v1225 = vadd.f32 %v865, %v1191
        %v1226 = vld [vmem:[#allocation2] sm:$0xf]
        %v1227 = vld [vmem:[#allocation2 + $0x4] sm:$0xf]
        %v1228 = vld [vmem:[#allocation2 + $0x8] sm:$0x1]
        %v1229 = vld [vmem:[#allocation2 + $0xc] sm:$0xf]
        %v1230 = vld [vmem:[#allocation2 + $0x10] sm:$0xf]
        %v1231 = vld [vmem:[#allocation2 + $0x14] sm:$0x1]
        %v1232 = vld [vmem:[#allocation2 + $0x18] sm:$0xf]
        %v1233 = vld [vmem:[#allocation2 + $0x1c] sm:$0xf]
        %v1234 = vld [vmem:[#allocation2 + $0x20] sm:$0x1]
        %v1235 = vld [vmem:[#allocation2 + $0x24] sm:$0xf]
        %v1236 = vld [vmem:[#allocation2 + $0x28] sm:$0xf]
        %v1237 = vld [vmem:[#allocation2 + $0x2c] sm:$0x1]
        %v1238 = vld [vmem:[#allocation2 + $0x30] sm:$0xf]
        %v1239 = vld [vmem:[#allocation2 + $0x34] sm:$0xf]
        %v1240 = vld [vmem:[#allocation2 + $0x38] sm:$0x1]
        %v1241 = vld [vmem:[#allocation2 + $0x3c] sm:$0xf]
        %v1242 = vld [vmem:[#allocation2 + $0x40] sm:$0xf]
        %v1243 = vld [vmem:[#allocation2 + $0x44] sm:$0x1]
        %v1244 = vld [vmem:[#allocation2 + $0x48] sm:$0xf]
        %v1245 = vld [vmem:[#allocation2 + $0x4c] sm:$0xf]
        %v1246 = vld [vmem:[#allocation2 + $0x50] sm:$0x1]
        %v1247 = vld [vmem:[#allocation2 + $0x54] sm:$0xf]
        %v1248 = vld [vmem:[#allocation2 + $0x58] sm:$0xf]
        %v1249 = vld [vmem:[#allocation2 + $0x5c] sm:$0x1]
        %v1250 = vld [vmem:[#allocation2 + $0x60] sm:$0xf]
        %v1251 = vld [vmem:[#allocation2 + $0x64] sm:$0xf]
        %v1252 = vld [vmem:[#allocation2 + $0x68] sm:$0x1]
        %v1253 = vld [vmem:[#allocation2 + $0x6c] sm:$0xf]
        %v1254 = vld [vmem:[#allocation2 + $0x70] sm:$0xf]
        %v1255 = vld [vmem:[#allocation2 + $0x74] sm:$0x1]
        %v1256 = vld [vmem:[#allocation2 + $0x78] sm:$0xf]
        %v1257 = vld [vmem:[#allocation2 + $0x7c] sm:$0xf]
        %v1258 = vld [vmem:[#allocation2 + $0x80] sm:$0x1]
        %v1259 = vld [vmem:[#allocation2 + $0x84] sm:$0xf]
        %v1260 = vld [vmem:[#allocation2 + $0x88] sm:$0xf]
        %v1261 = vld [vmem:[#allocation2 + $0x8c] sm:$0x1]
        %v1262 = vld [vmem:[#allocation2 + $0x90] sm:$0xf]
        %v1263 = vld [vmem:[#allocation2 + $0x94] sm:$0xf]
        %v1264 = vld [vmem:[#allocation2 + $0x98] sm:$0x1]
        %v1265 = vld [vmem:[#allocation2 + $0x9c] sm:$0xf]
        %v1266 = vld [vmem:[#allocation2 + $0xa0] sm:$0xf]
        %v1267 = vld [vmem:[#allocation2 + $0xa4] sm:$0x1]
        %v1268 = vld [vmem:[#allocation2 + $0xa8] sm:$0xf]
        %v1269 = vld [vmem:[#allocation2 + $0xac] sm:$0xf]
        %v1270 = vld [vmem:[#allocation2 + $0xb0] sm:$0x1]
        %v1271 = vld [vmem:[#allocation2 + $0xb4] sm:$0xf]
        %v1272 = vld [vmem:[#allocation2 + $0xb8] sm:$0xf]
        %v1273 = vld [vmem:[#allocation2 + $0xbc] sm:$0x1]
        %vm1274 = vsmask.f32 3328
        %vm1275 = vsmask.f32 7440
        %vm1276 = vmor %vm1274, %vm1275
        %v1278 = vshrl.u32 %v1226, 16
        %v1280 = vrot.slane %v1278, 4
        %v1281 = vshll.u32 %v1226, 16
        %v1283 = vrot.slane %v1281, 5
        %v1284 = vor.u32 %v1280, %v1283
        %v1285 = vrot.slane %v1284, 4
        %v1287 = vshll.u32 %v1227, 16
        %v1289 = vrot.slane %v1287, 5
        %v1290 = vsel %vm1276, %v1285, %v1289
        %v1291 = vshrl.u32 %v1227, 16
        %v1293 = vrot.slane %v1291, 4
        %v1294 = vor.u32 %v1293, %v1289
        %v1295 = vrot.slane %v1294, 4
        %v1297 = vshll.u32 %v1228, 16
        %v1299 = vrot.slane %v1297, 5
        %v1300 = vsel %vm1276, %v1295, %v1299
        %v1302 = vshrl.u32 %v1229, 16
        %v1304 = vrot.slane %v1302, 4
        %v1305 = vshll.u32 %v1229, 16
        %v1307 = vrot.slane %v1305, 5
        %v1308 = vor.u32 %v1304, %v1307
        %v1309 = vrot.slane %v1308, 4
        %v1311 = vshll.u32 %v1230, 16
        %v1313 = vrot.slane %v1311, 5
        %v1314 = vsel %vm1276, %v1309, %v1313
        %v1315 = vshrl.u32 %v1230, 16
        %v1317 = vrot.slane %v1315, 4
        %v1318 = vor.u32 %v1317, %v1313
        %v1319 = vrot.slane %v1318, 4
        %v1321 = vshll.u32 %v1231, 16
        %v1323 = vrot.slane %v1321, 5
        %v1324 = vsel %vm1276, %v1319, %v1323
        %v1326 = vshrl.u32 %v1232, 16
        %v1328 = vrot.slane %v1326, 4
        %v1329 = vshll.u32 %v1232, 16
        %v1331 = vrot.slane %v1329, 5
        %v1332 = vor.u32 %v1328, %v1331
        %v1333 = vrot.slane %v1332, 4
        %v1335 = vshll.u32 %v1233, 16
        %v1337 = vrot.slane %v1335, 5
        %v1338 = vsel %vm1276, %v1333, %v1337
        %v1339 = vshrl.u32 %v1233, 16
        %v1341 = vrot.slane %v1339, 4
        %v1342 = vor.u32 %v1341, %v1337
        %v1343 = vrot.slane %v1342, 4
        %v1345 = vshll.u32 %v1234, 16
        %v1347 = vrot.slane %v1345, 5
        %v1348 = vsel %vm1276, %v1343, %v1347
        %v1350 = vshrl.u32 %v1235, 16
        %v1352 = vrot.slane %v1350, 4
        %v1353 = vshll.u32 %v1235, 16
        %v1355 = vrot.slane %v1353, 5
        %v1356 = vor.u32 %v1352, %v1355
        %v1357 = vrot.slane %v1356, 4
        %v1359 = vshll.u32 %v1236, 16
        %v1361 = vrot.slane %v1359, 5
        %v1362 = vsel %vm1276, %v1357, %v1361
        %v1363 = vshrl.u32 %v1236, 16
        %v1365 = vrot.slane %v1363, 4
        %v1366 = vor.u32 %v1365, %v1361
        %v1367 = vrot.slane %v1366, 4
        %v1369 = vshll.u32 %v1237, 16
        %v1371 = vrot.slane %v1369, 5
        %v1372 = vsel %vm1276, %v1367, %v1371
        %v1374 = vshrl.u32 %v1238, 16
        %v1376 = vrot.slane %v1374, 4
        %v1377 = vshll.u32 %v1238, 16
        %v1379 = vrot.slane %v1377, 5
        %v1380 = vor.u32 %v1376, %v1379
        %v1381 = vrot.slane %v1380, 4
        %v1383 = vshll.u32 %v1239, 16
        %v1385 = vrot.slane %v1383, 5
        %v1386 = vsel %vm1276, %v1381, %v1385
        %v1387 = vshrl.u32 %v1239, 16
        %v1389 = vrot.slane %v1387, 4
        %v1390 = vor.u32 %v1389, %v1385
        %v1391 = vrot.slane %v1390, 4
        %v1393 = vshll.u32 %v1240, 16
        %v1395 = vrot.slane %v1393, 5
        %v1396 = vsel %vm1276, %v1391, %v1395
        %v1398 = vshrl.u32 %v1241, 16
        %v1400 = vrot.slane %v1398, 4
        %v1401 = vshll.u32 %v1241, 16
        %v1403 = vrot.slane %v1401, 5
        %v1404 = vor.u32 %v1400, %v1403
        %v1405 = vrot.slane %v1404, 4
        %v1407 = vshll.u32 %v1242, 16
        %v1409 = vrot.slane %v1407, 5
        %v1410 = vsel %vm1276, %v1405, %v1409
        %v1411 = vshrl.u32 %v1242, 16
        %v1413 = vrot.slane %v1411, 4
        %v1414 = vor.u32 %v1413, %v1409
        %v1415 = vrot.slane %v1414, 4
        %v1417 = vshll.u32 %v1243, 16
        %v1419 = vrot.slane %v1417, 5
        %v1420 = vsel %vm1276, %v1415, %v1419
        %v1422 = vshrl.u32 %v1244, 16
        %v1424 = vrot.slane %v1422, 4
        %v1425 = vshll.u32 %v1244, 16
        %v1427 = vrot.slane %v1425, 5
        %v1428 = vor.u32 %v1424, %v1427
        %v1429 = vrot.slane %v1428, 4
        %v1431 = vshll.u32 %v1245, 16
        %v1433 = vrot.slane %v1431, 5
        %v1434 = vsel %vm1276, %v1429, %v1433
        %v1435 = vshrl.u32 %v1245, 16
        %v1437 = vrot.slane %v1435, 4
        %v1438 = vor.u32 %v1437, %v1433
        %v1439 = vrot.slane %v1438, 4
        %v1441 = vshll.u32 %v1246, 16
        %v1443 = vrot.slane %v1441, 5
        %v1444 = vsel %vm1276, %v1439, %v1443
        %v1446 = vshrl.u32 %v1247, 16
        %v1448 = vrot.slane %v1446, 4
        %v1449 = vshll.u32 %v1247, 16
        %v1451 = vrot.slane %v1449, 5
        %v1452 = vor.u32 %v1448, %v1451
        %v1453 = vrot.slane %v1452, 4
        %v1455 = vshll.u32 %v1248, 16
        %v1457 = vrot.slane %v1455, 5
        %v1458 = vsel %vm1276, %v1453, %v1457
        %v1459 = vshrl.u32 %v1248, 16
        %v1461 = vrot.slane %v1459, 4
        %v1462 = vor.u32 %v1461, %v1457
        %v1463 = vrot.slane %v1462, 4
        %v1465 = vshll.u32 %v1249, 16
        %v1467 = vrot.slane %v1465, 5
        %v1468 = vsel %vm1276, %v1463, %v1467
        %v1470 = vshrl.u32 %v1250, 16
        %v1472 = vrot.slane %v1470, 4
        %v1473 = vshll.u32 %v1250, 16
        %v1475 = vrot.slane %v1473, 5
        %v1476 = vor.u32 %v1472, %v1475
        %v1477 = vrot.slane %v1476, 4
        %v1479 = vshll.u32 %v1251, 16
        %v1481 = vrot.slane %v1479, 5
        %v1482 = vsel %vm1276, %v1477, %v1481
        %v1483 = vshrl.u32 %v1251, 16
        %v1485 = vrot.slane %v1483, 4
        %v1486 = vor.u32 %v1485, %v1481
        %v1487 = vrot.slane %v1486, 4
        %v1489 = vshll.u32 %v1252, 16
        %v1491 = vrot.slane %v1489, 5
        %v1492 = vsel %vm1276, %v1487, %v1491
        %v1494 = vshrl.u32 %v1253, 16
        %v1496 = vrot.slane %v1494, 4
        %v1497 = vshll.u32 %v1253, 16
        %v1499 = vrot.slane %v1497, 5
        %v1500 = vor.u32 %v1496, %v1499
        %v1501 = vrot.slane %v1500, 4
        %v1503 = vshll.u32 %v1254, 16
        %v1505 = vrot.slane %v1503, 5
        %v1506 = vsel %vm1276, %v1501, %v1505
        %v1507 = vshrl.u32 %v1254, 16
        %v1509 = vrot.slane %v1507, 4
        %v1510 = vor.u32 %v1509, %v1505
        %v1511 = vrot.slane %v1510, 4
        %v1513 = vshll.u32 %v1255, 16
        %v1515 = vrot.slane %v1513, 5
        %v1516 = vsel %vm1276, %v1511, %v1515
        %v1518 = vshrl.u32 %v1256, 16
        %v1520 = vrot.slane %v1518, 4
        %v1521 = vshll.u32 %v1256, 16
        %v1523 = vrot.slane %v1521, 5
        %v1524 = vor.u32 %v1520, %v1523
        %v1525 = vrot.slane %v1524, 4
        %v1527 = vshll.u32 %v1257, 16
        %v1529 = vrot.slane %v1527, 5
        %v1530 = vsel %vm1276, %v1525, %v1529
        %v1531 = vshrl.u32 %v1257, 16
        %v1533 = vrot.slane %v1531, 4
        %v1534 = vor.u32 %v1533, %v1529
        %v1535 = vrot.slane %v1534, 4
        %v1537 = vshll.u32 %v1258, 16
        %v1539 = vrot.slane %v1537, 5
        %v1540 = vsel %vm1276, %v1535, %v1539
        %v1542 = vshrl.u32 %v1259, 16
        %v1544 = vrot.slane %v1542, 4
        %v1545 = vshll.u32 %v1259, 16
        %v1547 = vrot.slane %v1545, 5
        %v1548 = vor.u32 %v1544, %v1547
        %v1549 = vrot.slane %v1548, 4
        %v1551 = vshll.u32 %v1260, 16
        %v1553 = vrot.slane %v1551, 5
        %v1554 = vsel %vm1276, %v1549, %v1553
        %v1555 = vshrl.u32 %v1260, 16
        %v1557 = vrot.slane %v1555, 4
        %v1558 = vor.u32 %v1557, %v1553
        %v1559 = vrot.slane %v1558, 4
        %v1561 = vshll.u32 %v1261, 16
        %v1563 = vrot.slane %v1561, 5
        %v1564 = vsel %vm1276, %v1559, %v1563
        %v1566 = vshrl.u32 %v1262, 16
        %v1568 = vrot.slane %v1566, 4
        %v1569 = vshll.u32 %v1262, 16
        %v1571 = vrot.slane %v1569, 5
        %v1572 = vor.u32 %v1568, %v1571
        %v1573 = vrot.slane %v1572, 4
        %v1575 = vshll.u32 %v1263, 16
        %v1577 = vrot.slane %v1575, 5
        %v1578 = vsel %vm1276, %v1573, %v1577
        %v1579 = vshrl.u32 %v1263, 16
        %v1581 = vrot.slane %v1579, 4
        %v1582 = vor.u32 %v1581, %v1577
        %v1583 = vrot.slane %v1582, 4
        %v1585 = vshll.u32 %v1264, 16
        %v1587 = vrot.slane %v1585, 5
        %v1588 = vsel %vm1276, %v1583, %v1587
        %v1590 = vshrl.u32 %v1265, 16
        %v1592 = vrot.slane %v1590, 4
        %v1593 = vshll.u32 %v1265, 16
        %v1595 = vrot.slane %v1593, 5
        %v1596 = vor.u32 %v1592, %v1595
        %v1597 = vrot.slane %v1596, 4
        %v1599 = vshll.u32 %v1266, 16
        %v1601 = vrot.slane %v1599, 5
        %v1602 = vsel %vm1276, %v1597, %v1601
        %v1603 = vshrl.u32 %v1266, 16
        %v1605 = vrot.slane %v1603, 4
        %v1606 = vor.u32 %v1605, %v1601
        %v1607 = vrot.slane %v1606, 4
        %v1609 = vshll.u32 %v1267, 16
        %v1611 = vrot.slane %v1609, 5
        %v1612 = vsel %vm1276, %v1607, %v1611
        %v1614 = vshrl.u32 %v1268, 16
        %v1616 = vrot.slane %v1614, 4
        %v1617 = vshll.u32 %v1268, 16
        %v1619 = vrot.slane %v1617, 5
        %v1620 = vor.u32 %v1616, %v1619
        %v1621 = vrot.slane %v1620, 4
        %v1623 = vshll.u32 %v1269, 16
        %v1625 = vrot.slane %v1623, 5
        %v1626 = vsel %vm1276, %v1621, %v1625
        %v1627 = vshrl.u32 %v1269, 16
        %v1629 = vrot.slane %v1627, 4
        %v1630 = vor.u32 %v1629, %v1625
        %v1631 = vrot.slane %v1630, 4
        %v1633 = vshll.u32 %v1270, 16
        %v1635 = vrot.slane %v1633, 5
        %v1636 = vsel %vm1276, %v1631, %v1635
        %v1638 = vshrl.u32 %v1271, 16
        %v1640 = vrot.slane %v1638, 4
        %v1641 = vshll.u32 %v1271, 16
        %v1643 = vrot.slane %v1641, 5
        %v1644 = vor.u32 %v1640, %v1643
        %v1645 = vrot.slane %v1644, 4
        %v1647 = vshll.u32 %v1272, 16
        %v1649 = vrot.slane %v1647, 5
        %v1650 = vsel %vm1276, %v1645, %v1649
        %v1651 = vshrl.u32 %v1272, 16
        %v1653 = vrot.slane %v1651, 4
        %v1654 = vor.u32 %v1653, %v1649
        %v1655 = vrot.slane %v1654, 4
        %v1657 = vshll.u32 %v1273, 16
        %v1659 = vrot.slane %v1657, 5
        %v1660 = vsel %vm1276, %v1655, %v1659
        %s1661 = scalar_lea.vmem %s1, 4
        %v1662 = vld [vmem:[%s1661] sm:$0xf]
        %v1663 = vunpack.c.l.b16 %v1290
        %v1664 = vunpack.c.l.b16 %v1300
        %v1665 = vunpack.c.l.b16 %v1314
        %v1666 = vunpack.c.l.b16 %v1324
        %v1667 = vunpack.c.l.b16 %v1338
        %v1668 = vunpack.c.l.b16 %v1348
        %v1669 = vunpack.c.l.b16 %v1362
        %v1670 = vunpack.c.l.b16 %v1372
        %v1671 = vunpack.c.l.b16 %v1386
        %v1672 = vunpack.c.l.b16 %v1396
        %v1673 = vunpack.c.l.b16 %v1410
        %v1674 = vunpack.c.l.b16 %v1420
        %v1675 = vunpack.c.l.b16 %v1434
        %v1676 = vunpack.c.l.b16 %v1444
        %v1677 = vunpack.c.l.b16 %v1458
        %v1678 = vunpack.c.l.b16 %v1468
        %v1679 = vunpack.c.l.b16 %v1482
        %v1680 = vunpack.c.l.b16 %v1492
        %v1681 = vunpack.c.l.b16 %v1506
        %v1682 = vunpack.c.l.b16 %v1516
        %v1683 = vunpack.c.l.b16 %v1530
        %v1684 = vunpack.c.l.b16 %v1540
        %v1685 = vunpack.c.l.b16 %v1554
        %v1686 = vunpack.c.l.b16 %v1564
        %v1687 = vunpack.c.l.b16 %v1578
        %v1688 = vunpack.c.l.b16 %v1588
        %v1689 = vunpack.c.l.b16 %v1602
        %v1690 = vunpack.c.l.b16 %v1612
        %v1691 = vunpack.c.l.b16 %v1626
        %v1692 = vunpack.c.l.b16 %v1636
        %v1693 = vunpack.c.l.b16 %v1650
        %v1694 = vunpack.c.l.b16 %v1660
        %v1695 = vpack.c.b16 %v1664, %v1663
        %v1696 = vpack.c.b16 %v1666, %v1665
        %v1697 = vpack.c.b16 %v1668, %v1667
        %v1698 = vpack.c.b16 %v1670, %v1669
        %v1699 = vpack.c.b16 %v1672, %v1671
        %v1700 = vpack.c.b16 %v1674, %v1673
        %v1701 = vpack.c.b16 %v1676, %v1675
        %v1702 = vpack.c.b16 %v1678, %v1677
        %v1703 = vpack.c.b16 %v1680, %v1679
        %v1704 = vpack.c.b16 %v1682, %v1681
        %v1705 = vpack.c.b16 %v1684, %v1683
        %v1706 = vpack.c.b16 %v1686, %v1685
        %v1707 = vpack.c.b16 %v1688, %v1687
        %v1708 = vpack.c.b16 %v1690, %v1689
        %v1709 = vpack.c.b16 %v1692, %v1691
        %v1710 = vpack.c.b16 %v1694, %v1693
        %v1712 = vsel %vm980, %v1695, 0
        %v1715 = vsel %vm980, %v1696, 0
        %v1718 = vsel %vm980, %v1697, 0
        %v1721 = vsel %vm980, %v1698, 0
        %v1724 = vsel %vm980, %v1699, 0
        %v1727 = vsel %vm980, %v1700, 0
        %v1730 = vsel %vm980, %v1701, 0
        %v1733 = vsel %vm980, %v1702, 0
        %v1736 = vsel %vm980, %v1703, 0
        %v1739 = vsel %vm980, %v1704, 0
        %v1742 = vsel %vm980, %v1705, 0
        %v1745 = vsel %vm980, %v1706, 0
        %v1748 = vsel %vm980, %v1707, 0
        %v1751 = vsel %vm980, %v1708, 0
        %v1754 = vsel %vm980, %v1709, 0
        %v1757 = vsel %vm980, %v1710, 0
        %v1760 = vsel %vm1029, %v1662, 0
        %1762 = vmatprep.subr.bf16.mxu0 0
        %1763 = vmatpush1.bf16.msra.mxu0 %v1760
        %1764 = vmatprep.subr.bf16.mxu0 0
        %1765 = vmatpush1.bf16.msra.mxu0 0
        %1766 = vmatprep.subr.bf16.mxu0 0
        %1767 = vmatpush1.bf16.msra.mxu0 0
        %1768 = vmatprep.subr.bf16.mxu0 0
        %1769 = vmatpush1.bf16.msra.mxu0 0
        %1770 = vmatprep.subr.bf16.mxu0 0
        %1771 = vmatpush1.bf16.msra.mxu0 0
        %1772 = vmatprep.subr.bf16.mxu0 0
        %1773 = vmatpush1.bf16.msra.mxu0 0
        %1774 = vmatprep.subr.bf16.mxu0 0
        %1775 = vmatpush1.bf16.msra.mxu0 0
        %1776 = vmatprep.subr.bf16.mxu0 0
        %1777 = vmatpush1.bf16.msra.mxu0 0
        %1778 = vmatprep.subr.bf16.mxu0 0
        %1779 = vmatpush1.bf16.msra.mxu0 0
        %1780 = vmatprep.subr.bf16.mxu0 0
        %1781 = vmatpush1.bf16.msra.mxu0 0
        %1782 = vmatprep.subr.bf16.mxu0 0
        %1783 = vmatpush1.bf16.msra.mxu0 0
        %1784 = vmatprep.subr.bf16.mxu0 0
        %1785 = vmatpush1.bf16.msra.mxu0 0
        %1786 = vmatprep.subr.bf16.mxu0 0
        %1787 = vmatpush1.bf16.msra.mxu0 0
        %1788 = vmatprep.subr.bf16.mxu0 0
        %1789 = vmatpush1.bf16.msra.mxu0 0
        %1790 = vmatprep.subr.bf16.mxu0 0
        %1791 = vmatpush1.bf16.msra.mxu0 0
        %1792 = vmatprep.subr.bf16.mxu0 0
        %1793 = vmatpush1.bf16.msra.mxu0 0
        %1794 = vmatprep.mubr.bf16.mxu0 0
        %1795 = vmatmul.mubr.bf16.gmra.mrb[0].mxu0 %v1712
        %v1796 = vpop.f32.mrb[0].mxu0
        %v1797 = vadd.f32 0.0, %v1796
        %v1798 = vpop.f32.mrb[0].mxu0
        %v1799 = vpop.f32.mrb[0].mxu0
        %v1800 = vadd.f32 0.0, %v1799
        %v1801 = vpop.f32.mrb[0].mxu0
        %1802 = vmatprep.mubr.bf16.mxu0 0
        %1803 = vmatmul.mubr.bf16.gmra.mrb[0].mxu0 %v1715
        %v1804 = vpop.f32.mrb[0].mxu0
        %v1805 = vadd.f32 0.0, %v1804
        %v1806 = vpop.f32.mrb[0].mxu0
        %v1807 = vpop.f32.mrb[0].mxu0
        %v1808 = vadd.f32 0.0, %v1807
        %v1809 = vpop.f32.mrb[0].mxu0
        %1810 = vmatprep.mubr.bf16.mxu0 0
        %1811 = vmatmul.mubr.bf16.gmra.mrb[0].mxu0 %v1718
        %v1812 = vpop.f32.mrb[0].mxu0
        %v1813 = vadd.f32 0.0, %v1812
        %v1814 = vpop.f32.mrb[0].mxu0
        %v1815 = vpop.f32.mrb[0].mxu0
        %v1816 = vadd.f32 0.0, %v1815
        %v1817 = vpop.f32.mrb[0].mxu0
        %1818 = vmatprep.mubr.bf16.mxu0 0
        %1819 = vmatmul.mubr.bf16.gmra.mrb[0].mxu0 %v1721
        %v1820 = vpop.f32.mrb[0].mxu0
        %v1821 = vadd.f32 0.0, %v1820
        %v1822 = vpop.f32.mrb[0].mxu0
        %v1823 = vpop.f32.mrb[0].mxu0
        %v1824 = vadd.f32 0.0, %v1823
        %v1825 = vpop.f32.mrb[0].mxu0
        %1826 = vmatprep.mubr.bf16.mxu0 0
        %1827 = vmatmul.mubr.bf16.gmra.mrb[0].mxu0 %v1724
        %v1828 = vpop.f32.mrb[0].mxu0
        %v1829 = vadd.f32 0.0, %v1828
        %v1830 = vpop.f32.mrb[0].mxu0
        %v1831 = vpop.f32.mrb[0].mxu0
        %v1832 = vadd.f32 0.0, %v1831
        %v1833 = vpop.f32.mrb[0].mxu0
        %1834 = vmatprep.mubr.bf16.mxu0 0
        %1835 = vmatmul.mubr.bf16.gmra.mrb[0].mxu0 %v1727
        %v1836 = vpop.f32.mrb[0].mxu0
        %v1837 = vadd.f32 0.0, %v1836
        %v1838 = vpop.f32.mrb[0].mxu0
        %v1839 = vpop.f32.mrb[0].mxu0
        %v1840 = vadd.f32 0.0, %v1839
        %v1841 = vpop.f32.mrb[0].mxu0
        %1842 = vmatprep.mubr.bf16.mxu0 0
        %1843 = vmatmul.mubr.bf16.gmra.mrb[0].mxu0 %v1730
        %v1844 = vpop.f32.mrb[0].mxu0
        %v1845 = vadd.f32 0.0, %v1844
        %v1846 = vpop.f32.mrb[0].mxu0
        %v1847 = vpop.f32.mrb[0].mxu0
        %v1848 = vadd.f32 0.0, %v1847
        %v1849 = vpop.f32.mrb[0].mxu0
        %1850 = vmatprep.mubr.bf16.mxu0 0
        %1851 = vmatmul.mubr.bf16.gmra.mrb[0].mxu0 %v1733
        %v1852 = vpop.f32.mrb[0].mxu0
        %v1853 = vadd.f32 0.0, %v1852
        %v1854 = vpop.f32.mrb[0].mxu0
        %v1855 = vpop.f32.mrb[0].mxu0
        %v1856 = vadd.f32 0.0, %v1855
        %v1857 = vpop.f32.mrb[0].mxu0
        %1858 = vmatprep.mubr.bf16.mxu0 0
        %1859 = vmatmul.mubr.bf16.gmra.mrb[0].mxu0 %v1736
        %v1860 = vpop.f32.mrb[0].mxu0
        %v1861 = vadd.f32 0.0, %v1860
        %v1862 = vpop.f32.mrb[0].mxu0
        %v1863 = vpop.f32.mrb[0].mxu0
        %v1864 = vadd.f32 0.0, %v1863
        %v1865 = vpop.f32.mrb[0].mxu0
        %1866 = vmatprep.mubr.bf16.mxu0 0
        %1867 = vmatmul.mubr.bf16.gmra.mrb[0].mxu0 %v1739
        %v1868 = vpop.f32.mrb[0].mxu0
        %v1869 = vadd.f32 0.0, %v1868
        %v1870 = vpop.f32.mrb[0].mxu0
        %v1871 = vpop.f32.mrb[0].mxu0
        %v1872 = vadd.f32 0.0, %v1871
        %v1873 = vpop.f32.mrb[0].mxu0
        %1874 = vmatprep.mubr.bf16.mxu0 0
        %1875 = vmatmul.mubr.bf16.gmra.mrb[0].mxu0 %v1742
        %v1876 = vpop.f32.mrb[0].mxu0
        %v1877 = vadd.f32 0.0, %v1876
        %v1878 = vpop.f32.mrb[0].mxu0
        %v1879 = vpop.f32.mrb[0].mxu0
        %v1880 = vadd.f32 0.0, %v1879
        %v1881 = vpop.f32.mrb[0].mxu0
        %1882 = vmatprep.mubr.bf16.mxu0 0
        %1883 = vmatmul.mubr.bf16.gmra.mrb[0].mxu0 %v1745
        %v1884 = vpop.f32.mrb[0].mxu0
        %v1885 = vadd.f32 0.0, %v1884
        %v1886 = vpop.f32.mrb[0].mxu0
        %v1887 = vpop.f32.mrb[0].mxu0
        %v1888 = vadd.f32 0.0, %v1887
        %v1889 = vpop.f32.mrb[0].mxu0
        %1890 = vmatprep.mubr.bf16.mxu0 0
        %1891 = vmatmul.mubr.bf16.gmra.mrb[0].mxu0 %v1748
        %v1892 = vpop.f32.mrb[0].mxu0
        %v1893 = vadd.f32 0.0, %v1892
        %v1894 = vpop.f32.mrb[0].mxu0
        %v1895 = vpop.f32.mrb[0].mxu0
        %v1896 = vadd.f32 0.0, %v1895
        %v1897 = vpop.f32.mrb[0].mxu0
        %1898 = vmatprep.mubr.bf16.mxu0 0
        %1899 = vmatmul.mubr.bf16.gmra.mrb[0].mxu0 %v1751
        %v1900 = vpop.f32.mrb[0].mxu0
        %v1901 = vadd.f32 0.0, %v1900
        %v1902 = vpop.f32.mrb[0].mxu0
        %v1903 = vpop.f32.mrb[0].mxu0
        %v1904 = vadd.f32 0.0, %v1903
        %v1905 = vpop.f32.mrb[0].mxu0
        %1906 = vmatprep.mubr.bf16.mxu0 0
        %1907 = vmatmul.mubr.bf16.gmra.mrb[0].mxu0 %v1754
        %v1908 = vpop.f32.mrb[0].mxu0
        %v1909 = vadd.f32 0.0, %v1908
        %v1910 = vpop.f32.mrb[0].mxu0
        %v1911 = vpop.f32.mrb[0].mxu0
        %v1912 = vadd.f32 0.0, %v1911
        %v1913 = vpop.f32.mrb[0].mxu0
        %1914 = vmatprep.mubr.bf16.mxu0 0
        %1915 = vmatmul.mubr.bf16.gmra.mrb[0].mxu0 %v1757
        %v1916 = vpop.f32.mrb[0].mxu0
        %v1917 = vadd.f32 0.0, %v1916
        %v1918 = vpop.f32.mrb[0].mxu0
        %v1919 = vpop.f32.mrb[0].mxu0
        %v1920 = vadd.f32 0.0, %v1919
        %v1921 = vpop.f32.mrb[0].mxu0
        %1922 = vdwg.mxu0
        %v1923 = vadd.f32 %v1194, %v1797
        %v1924 = vadd.f32 %v1195, %v1800
        %v1925 = vadd.f32 %v1196, %v1805
        %v1926 = vadd.f32 %v1197, %v1808
        %v1927 = vadd.f32 %v1198, %v1813
        %v1928 = vadd.f32 %v1199, %v1816
        %v1929 = vadd.f32 %v1200, %v1821
        %v1930 = vadd.f32 %v1201, %v1824
        %v1931 = vadd.f32 %v1202, %v1829
        %v1932 = vadd.f32 %v1203, %v1832
        %v1933 = vadd.f32 %v1204, %v1837
        %v1934 = vadd.f32 %v1205, %v1840
        %v1935 = vadd.f32 %v1206, %v1845
        %v1936 = vadd.f32 %v1207, %v1848
        %v1937 = vadd.f32 %v1208, %v1853
        %v1938 = vadd.f32 %v1209, %v1856
        %v1939 = vadd.f32 %v1210, %v1861
        %v1940 = vadd.f32 %v1211, %v1864
        %v1941 = vadd.f32 %v1212, %v1869
        %v1942 = vadd.f32 %v1213, %v1872
        %v1943 = vadd.f32 %v1214, %v1877
        %v1944 = vadd.f32 %v1215, %v1880
        %v1945 = vadd.f32 %v1216, %v1885
        %v1946 = vadd.f32 %v1217, %v1888
        %v1947 = vadd.f32 %v1218, %v1893
        %v1948 = vadd.f32 %v1219, %v1896
        %v1949 = vadd.f32 %v1220, %v1901
        %v1950 = vadd.f32 %v1221, %v1904
        %v1951 = vadd.f32 %v1222, %v1909
        %v1952 = vadd.f32 %v1223, %v1912
        %v1953 = vadd.f32 %v1224, %v1917
        %v1954 = vadd.f32 %v1225, %v1920
        %v1955 = vld [vmem:[#allocation2] sm:$0xe]
        %v1956 = vld [vmem:[#allocation2 + $0xc] sm:$0xe]
        %v1957 = vld [vmem:[#allocation2 + $0x18] sm:$0xe]
        %v1958 = vld [vmem:[#allocation2 + $0x24] sm:$0xe]
        %v1959 = vld [vmem:[#allocation2 + $0x30] sm:$0xe]
        %v1960 = vld [vmem:[#allocation2 + $0x3c] sm:$0xe]
        %v1961 = vld [vmem:[#allocation2 + $0x48] sm:$0xe]
        %v1962 = vld [vmem:[#allocation2 + $0x54] sm:$0xe]
        %v1963 = vld [vmem:[#allocation2 + $0x60] sm:$0xe]
        %v1964 = vld [vmem:[#allocation2 + $0x6c] sm:$0xe]
        %v1965 = vld [vmem:[#allocation2 + $0x78] sm:$0xe]
        %v1966 = vld [vmem:[#allocation2 + $0x84] sm:$0xe]
        %v1967 = vld [vmem:[#allocation2 + $0x90] sm:$0xe]
        %v1968 = vld [vmem:[#allocation2 + $0x9c] sm:$0xe]
        %v1969 = vld [vmem:[#allocation2 + $0xa8] sm:$0xe]
        %v1970 = vld [vmem:[#allocation2 + $0xb4] sm:$0xe]
        %vm2019 = vcmask 1042432
        %vm2020 = vcmask 1046532
        %vm2021 = vmor %vm2019, %vm2020
        %v2022 = vrot.slane %v1955, 5
        %v2023 = vrot.slane %v2022, 4
        %v2024 = vrot.slane %v1227, 5
        %v2025 = vsel %vm2021, %v2023, %v2024
        %v2026 = vrot.slane %v2024, 4
        %v2027 = vrot.slane %v1228, 5
        %v2028 = vsel %vm2021, %v2026, %v2027
        %v2029 = vrot.slane %v1956, 5
        %v2030 = vrot.slane %v2029, 4
        %v2031 = vrot.slane %v1230, 5
        %v2032 = vsel %vm2021, %v2030, %v2031
        %v2033 = vrot.slane %v2031, 4
        %v2034 = vrot.slane %v1231, 5
        %v2035 = vsel %vm2021, %v2033, %v2034
        %v2036 = vrot.slane %v1957, 5
        %v2037 = vrot.slane %v2036, 4
        %v2038 = vrot.slane %v1233, 5
        %v2039 = vsel %vm2021, %v2037, %v2038
        %v2040 = vrot.slane %v2038, 4
        %v2041 = vrot.slane %v1234, 5
        %v2042 = vsel %vm2021, %v2040, %v2041
        %v2043 = vrot.slane %v1958, 5
        %v2044 = vrot.slane %v2043, 4
        %v2045 = vrot.slane %v1236, 5
        %v2046 = vsel %vm2021, %v2044, %v2045
        %v2047 = vrot.slane %v2045, 4
        %v2048 = vrot.slane %v1237, 5
        %v2049 = vsel %vm2021, %v2047, %v2048
        %v2050 = vrot.slane %v1959, 5
        %v2051 = vrot.slane %v2050, 4
        %v2052 = vrot.slane %v1239, 5
        %v2053 = vsel %vm2021, %v2051, %v2052
        %v2054 = vrot.slane %v2052, 4
        %v2055 = vrot.slane %v1240, 5
        %v2056 = vsel %vm2021, %v2054, %v2055
        %v2057 = vrot.slane %v1960, 5
        %v2058 = vrot.slane %v2057, 4
        %v2059 = vrot.slane %v1242, 5
        %v2060 = vsel %vm2021, %v2058, %v2059
        %v2061 = vrot.slane %v2059, 4
        %v2062 = vrot.slane %v1243, 5
        %v2063 = vsel %vm2021, %v2061, %v2062
        %v2064 = vrot.slane %v1961, 5
        %v2065 = vrot.slane %v2064, 4
        %v2066 = vrot.slane %v1245, 5
        %v2067 = vsel %vm2021, %v2065, %v2066
        %v2068 = vrot.slane %v2066, 4
        %v2069 = vrot.slane %v1246, 5
        %v2070 = vsel %vm2021, %v2068, %v2069
        %v2071 = vrot.slane %v1962, 5
        %v2072 = vrot.slane %v2071, 4
        %v2073 = vrot.slane %v1248, 5
        %v2074 = vsel %vm2021, %v2072, %v2073
        %v2075 = vrot.slane %v2073, 4
        %v2076 = vrot.slane %v1249, 5
        %v2077 = vsel %vm2021, %v2075, %v2076
        %v2078 = vrot.slane %v1963, 5
        %v2079 = vrot.slane %v2078, 4
        %v2080 = vrot.slane %v1251, 5
        %v2081 = vsel %vm2021, %v2079, %v2080
        %v2082 = vrot.slane %v2080, 4
        %v2083 = vrot.slane %v1252, 5
        %v2084 = vsel %vm2021, %v2082, %v2083
        %v2085 = vrot.slane %v1964, 5
        %v2086 = vrot.slane %v2085, 4
        %v2087 = vrot.slane %v1254, 5
        %v2088 = vsel %vm2021, %v2086, %v2087
        %v2089 = vrot.slane %v2087, 4
        %v2090 = vrot.slane %v1255, 5
        %v2091 = vsel %vm2021, %v2089, %v2090
        %v2092 = vrot.slane %v1965, 5
        %v2093 = vrot.slane %v2092, 4
        %v2094 = vrot.slane %v1257, 5
        %v2095 = vsel %vm2021, %v2093, %v2094
        %v2096 = vrot.slane %v2094, 4
        %v2097 = vrot.slane %v1258, 5
        %v2098 = vsel %vm2021, %v2096, %v2097
        %v2099 = vrot.slane %v1966, 5
        %v2100 = vrot.slane %v2099, 4
        %v2101 = vrot.slane %v1260, 5
        %v2102 = vsel %vm2021, %v2100, %v2101
        %v2103 = vrot.slane %v2101, 4
        %v2104 = vrot.slane %v1261, 5
        %v2105 = vsel %vm2021, %v2103, %v2104
        %v2106 = vrot.slane %v1967, 5
        %v2107 = vrot.slane %v2106, 4
        %v2108 = vrot.slane %v1263, 5
        %v2109 = vsel %vm2021, %v2107, %v2108
        %v2110 = vrot.slane %v2108, 4
        %v2111 = vrot.slane %v1264, 5
        %v2112 = vsel %vm2021, %v2110, %v2111
        %v2113 = vrot.slane %v1968, 5
        %v2114 = vrot.slane %v2113, 4
        %v2115 = vrot.slane %v1266, 5
        %v2116 = vsel %vm2021, %v2114, %v2115
        %v2117 = vrot.slane %v2115, 4
        %v2118 = vrot.slane %v1267, 5
        %v2119 = vsel %vm2021, %v2117, %v2118
        %v2120 = vrot.slane %v1969, 5
        %v2121 = vrot.slane %v2120, 4
        %v2122 = vrot.slane %v1269, 5
        %v2123 = vsel %vm2021, %v2121, %v2122
        %v2124 = vrot.slane %v2122, 4
        %v2125 = vrot.slane %v1270, 5
        %v2126 = vsel %vm2021, %v2124, %v2125
        %v2127 = vrot.slane %v1970, 5
        %v2128 = vrot.slane %v2127, 4
        %v2129 = vrot.slane %v1272, 5
        %v2130 = vsel %vm2021, %v2128, %v2129
        %v2131 = vrot.slane %v2129, 4
        %v2132 = vrot.slane %v1273, 5
        %v2133 = vsel %vm2021, %v2131, %v2132
        %s2134 = scalar_lea.vmem %s1, 8
        %v2135 = vld [vmem:[%s2134] sm:$0xf]
        %v2136 = vunpack.c.l.b16 %v2025
        %v2137 = vunpack.c.l.b16 %v2028
        %v2138 = vunpack.c.l.b16 %v2032
        %v2139 = vunpack.c.l.b16 %v2035
        %v2140 = vunpack.c.l.b16 %v2039
        %v2141 = vunpack.c.l.b16 %v2042
        %v2142 = vunpack.c.l.b16 %v2046
        %v2143 = vunpack.c.l.b16 %v2049
        %v2144 = vunpack.c.l.b16 %v2053
        %v2145 = vunpack.c.l.b16 %v2056
        %v2146 = vunpack.c.l.b16 %v2060
        %v2147 = vunpack.c.l.b16 %v2063
        %v2148 = vunpack.c.l.b16 %v2067
        %v2149 = vunpack.c.l.b16 %v2070
        %v2150 = vunpack.c.l.b16 %v2074
        %v2151 = vunpack.c.l.b16 %v2077
        %v2152 = vunpack.c.l.b16 %v2081
        %v2153 = vunpack.c.l.b16 %v2084
        %v2154 = vunpack.c.l.b16 %v2088
        %v2155 = vunpack.c.l.b16 %v2091
        %v2156 = vunpack.c.l.b16 %v2095
        %v2157 = vunpack.c.l.b16 %v2098
        %v2158 = vunpack.c.l.b16 %v2102
        %v2159 = vunpack.c.l.b16 %v2105
        %v2160 = vunpack.c.l.b16 %v2109
        %v2161 = vunpack.c.l.b16 %v2112
        %v2162 = vunpack.c.l.b16 %v2116
        %v2163 = vunpack.c.l.b16 %v2119
        %v2164 = vunpack.c.l.b16 %v2123
        %v2165 = vunpack.c.l.b16 %v2126
        %v2166 = vunpack.c.l.b16 %v2130
        %v2167 = vunpack.c.l.b16 %v2133
        %v2168 = vpack.c.b16 %v2137, %v2136
        %v2169 = vpack.c.b16 %v2139, %v2138
        %v2170 = vpack.c.b16 %v2141, %v2140
        %v2171 = vpack.c.b16 %v2143, %v2142
        %v2172 = vpack.c.b16 %v2145, %v2144
        %v2173 = vpack.c.b16 %v2147, %v2146
        %v2174 = vpack.c.b16 %v2149, %v2148
        %v2175 = vpack.c.b16 %v2151, %v2150
        %v2176 = vpack.c.b16 %v2153, %v2152
        %v2177 = vpack.c.b16 %v2155, %v2154
        %v2178 = vpack.c.b16 %v2157, %v2156
        %v2179 = vpack.c.b16 %v2159, %v2158
        %v2180 = vpack.c.b16 %v2161, %v2160
        %v2181 = vpack.c.b16 %v2163, %v2162
        %v2182 = vpack.c.b16 %v2165, %v2164
        %v2183 = vpack.c.b16 %v2167, %v2166
        %v2185 = vsel %vm980, %v2168, 0
        %v2188 = vsel %vm980, %v2169, 0
        %v2191 = vsel %vm980, %v2170, 0
        %v2194 = vsel %vm980, %v2171, 0
        %v2197 = vsel %vm980, %v2172, 0
        %v2200 = vsel %vm980, %v2173, 0
        %v2203 = vsel %vm980, %v2174, 0
        %v2206 = vsel %vm980, %v2175, 0
        %v2209 = vsel %vm980, %v2176, 0
        %v2212 = vsel %vm980, %v2177, 0
        %v2215 = vsel %vm980, %v2178, 0
        %v2218 = vsel %vm980, %v2179, 0
        %v2221 = vsel %vm980, %v2180, 0
        %v2224 = vsel %vm980, %v2181, 0
        %v2227 = vsel %vm980, %v2182, 0
        %v2230 = vsel %vm980, %v2183, 0
        %v2233 = vsel %vm1029, %v2135, 0
        %2235 = vmatprep.subr.bf16.mxu0 0
        %2236 = vmatpush1.bf16.msra.mxu0 %v2233
        %2237 = vmatprep.subr.bf16.mxu0 0
        %2238 = vmatpush1.bf16.msra.mxu0 0
        %2239 = vmatprep.subr.bf16.mxu0 0
        %2240 = vmatpush1.bf16.msra.mxu0 0
        %2241 = vmatprep.subr.bf16.mxu0 0
        %2242 = vmatpush1.bf16.msra.mxu0 0
        %2243 = vmatprep.subr.bf16.mxu0 0
        %2244 = vmatpush1.bf16.msra.mxu0 0
        %2245 = vmatprep.subr.bf16.mxu0 0
        %2246 = vmatpush1.bf16.msra.mxu0 0
        %2247 = vmatprep.subr.bf16.mxu0 0
        %2248 = vmatpush1.bf16.msra.mxu0 0
        %2249 = vmatprep.subr.bf16.mxu0 0
        %2250 = vmatpush1.bf16.msra.mxu0 0
        %2251 = vmatprep.subr.bf16.mxu0 0
        %2252 = vmatpush1.bf16.msra.mxu0 0
        %2253 = vmatprep.subr.bf16.mxu0 0
        %2254 = vmatpush1.bf16.msra.mxu0 0
        %2255 = vmatprep.subr.bf16.mxu0 0
        %2256 = vmatpush1.bf16.msra.mxu0 0
        %2257 = vmatprep.subr.bf16.mxu0 0
        %2258 = vmatpush1.bf16.msra.mxu0 0
        %2259 = vmatprep.subr.bf16.mxu0 0
        %2260 = vmatpush1.bf16.msra.mxu0 0
        %2261 = vmatprep.subr.bf16.mxu0 0
        %2262 = vmatpush1.bf16.msra.mxu0 0
        %2263 = vmatprep.subr.bf16.mxu0 0
        %2264 = vmatpush1.bf16.msra.mxu0 0
        %2265 = vmatprep.subr.bf16.mxu0 0
        %2266 = vmatpush1.bf16.msra.mxu0 0
        %2267 = vmatprep.mubr.bf16.mxu0 0
        %2268 = vmatmul.mubr.bf16.gmra.mrb[0].mxu0 %v2185
        %v2269 = vpop.f32.mrb[0].mxu0
        %v2270 = vadd.f32 0.0, %v2269
        %v2271 = vpop.f32.mrb[0].mxu0
        %v2272 = vpop.f32.mrb[0].mxu0
        %v2273 = vadd.f32 0.0, %v2272
        %v2274 = vpop.f32.mrb[0].mxu0
        %2275 = vmatprep.mubr.bf16.mxu0 0
        %2276 = vmatmul.mubr.bf16.gmra.mrb[0].mxu0 %v2188
        %v2277 = vpop.f32.mrb[0].mxu0
        %v2278 = vadd.f32 0.0, %v2277
        %v2279 = vpop.f32.mrb[0].mxu0
        %v2280 = vpop.f32.mrb[0].mxu0
        %v2281 = vadd.f32 0.0, %v2280
        %v2282 = vpop.f32.mrb[0].mxu0
        %2283 = vmatprep.mubr.bf16.mxu0 0
        %2284 = vmatmul.mubr.bf16.gmra.mrb[0].mxu0 %v2191
        %v2285 = vpop.f32.mrb[0].mxu0
        %v2286 = vadd.f32 0.0, %v2285
        %v2287 = vpop.f32.mrb[0].mxu0
        %v2288 = vpop.f32.mrb[0].mxu0
        %v2289 = vadd.f32 0.0, %v2288
        %v2290 = vpop.f32.mrb[0].mxu0
        %2291 = vmatprep.mubr.bf16.mxu0 0
        %2292 = vmatmul.mubr.bf16.gmra.mrb[0].mxu0 %v2194
        %v2293 = vpop.f32.mrb[0].mxu0
        %v2294 = vadd.f32 0.0, %v2293
        %v2295 = vpop.f32.mrb[0].mxu0
        %v2296 = vpop.f32.mrb[0].mxu0
        %v2297 = vadd.f32 0.0, %v2296
        %v2298 = vpop.f32.mrb[0].mxu0
        %2299 = vmatprep.mubr.bf16.mxu0 0
        %2300 = vmatmul.mubr.bf16.gmra.mrb[0].mxu0 %v2197
        %v2301 = vpop.f32.mrb[0].mxu0
        %v2302 = vadd.f32 0.0, %v2301
        %v2303 = vpop.f32.mrb[0].mxu0
        %v2304 = vpop.f32.mrb[0].mxu0
        %v2305 = vadd.f32 0.0, %v2304
        %v2306 = vpop.f32.mrb[0].mxu0
        %2307 = vmatprep.mubr.bf16.mxu0 0
        %2308 = vmatmul.mubr.bf16.gmra.mrb[0].mxu0 %v2200
        %v2309 = vpop.f32.mrb[0].mxu0
        %v2310 = vadd.f32 0.0, %v2309
        %v2311 = vpop.f32.mrb[0].mxu0
        %v2312 = vpop.f32.mrb[0].mxu0
        %v2313 = vadd.f32 0.0, %v2312
        %v2314 = vpop.f32.mrb[0].mxu0
        %2315 = vmatprep.mubr.bf16.mxu0 0
        %2316 = vmatmul.mubr.bf16.gmra.mrb[0].mxu0 %v2203
        %v2317 = vpop.f32.mrb[0].mxu0
        %v2318 = vadd.f32 0.0, %v2317
        %v2319 = vpop.f32.mrb[0].mxu0
        %v2320 = vpop.f32.mrb[0].mxu0
        %v2321 = vadd.f32 0.0, %v2320
        %v2322 = vpop.f32.mrb[0].mxu0
        %2323 = vmatprep.mubr.bf16.mxu0 0
        %2324 = vmatmul.mubr.bf16.gmra.mrb[0].mxu0 %v2206
        %v2325 = vpop.f32.mrb[0].mxu0
        %v2326 = vadd.f32 0.0, %v2325
        %v2327 = vpop.f32.mrb[0].mxu0
        %v2328 = vpop.f32.mrb[0].mxu0
        %v2329 = vadd.f32 0.0, %v2328
        %v2330 = vpop.f32.mrb[0].mxu0
        %2331 = vmatprep.mubr.bf16.mxu0 0
        %2332 = vmatmul.mubr.bf16.gmra.mrb[0].mxu0 %v2209
        %v2333 = vpop.f32.mrb[0].mxu0
        %v2334 = vadd.f32 0.0, %v2333
        %v2335 = vpop.f32.mrb[0].mxu0
        %v2336 = vpop.f32.mrb[0].mxu0
        %v2337 = vadd.f32 0.0, %v2336
        %v2338 = vpop.f32.mrb[0].mxu0
        %2339 = vmatprep.mubr.bf16.mxu0 0
        %2340 = vmatmul.mubr.bf16.gmra.mrb[0].mxu0 %v2212
        %v2341 = vpop.f32.mrb[0].mxu0
        %v2342 = vadd.f32 0.0, %v2341
        %v2343 = vpop.f32.mrb[0].mxu0
        %v2344 = vpop.f32.mrb[0].mxu0
        %v2345 = vadd.f32 0.0, %v2344
        %v2346 = vpop.f32.mrb[0].mxu0
        %2347 = vmatprep.mubr.bf16.mxu0 0
        %2348 = vmatmul.mubr.bf16.gmra.mrb[0].mxu0 %v2215
        %v2349 = vpop.f32.mrb[0].mxu0
        %v2350 = vadd.f32 0.0, %v2349
        %v2351 = vpop.f32.mrb[0].mxu0
        %v2352 = vpop.f32.mrb[0].mxu0
        %v2353 = vadd.f32 0.0, %v2352
        %v2354 = vpop.f32.mrb[0].mxu0
        %2355 = vmatprep.mubr.bf16.mxu0 0
        %2356 = vmatmul.mubr.bf16.gmra.mrb[0].mxu0 %v2218
        %v2357 = vpop.f32.mrb[0].mxu0
        %v2358 = vadd.f32 0.0, %v2357
        %v2359 = vpop.f32.mrb[0].mxu0
        %v2360 = vpop.f32.mrb[0].mxu0
        %v2361 = vadd.f32 0.0, %v2360
        %v2362 = vpop.f32.mrb[0].mxu0
        %2363 = vmatprep.mubr.bf16.mxu0 0
        %2364 = vmatmul.mubr.bf16.gmra.mrb[0].mxu0 %v2221
        %v2365 = vpop.f32.mrb[0].mxu0
        %v2366 = vadd.f32 0.0, %v2365
        %v2367 = vpop.f32.mrb[0].mxu0
        %v2368 = vpop.f32.mrb[0].mxu0
        %v2369 = vadd.f32 0.0, %v2368
        %v2370 = vpop.f32.mrb[0].mxu0
        %2371 = vmatprep.mubr.bf16.mxu0 0
        %2372 = vmatmul.mubr.bf16.gmra.mrb[0].mxu0 %v2224
        %v2373 = vpop.f32.mrb[0].mxu0
        %v2374 = vadd.f32 0.0, %v2373
        %v2375 = vpop.f32.mrb[0].mxu0
        %v2376 = vpop.f32.mrb[0].mxu0
        %v2377 = vadd.f32 0.0, %v2376
        %v2378 = vpop.f32.mrb[0].mxu0
        %2379 = vmatprep.mubr.bf16.mxu0 0
        %2380 = vmatmul.mubr.bf16.gmra.mrb[0].mxu0 %v2227
        %v2381 = vpop.f32.mrb[0].mxu0
        %v2382 = vadd.f32 0.0, %v2381
        %v2383 = vpop.f32.mrb[0].mxu0
        %v2384 = vpop.f32.mrb[0].mxu0
        %v2385 = vadd.f32 0.0, %v2384
        %v2386 = vpop.f32.mrb[0].mxu0
        %2387 = vmatprep.mubr.bf16.mxu0 0
        %2388 = vmatmul.mubr.bf16.gmra.mrb[0].mxu0 %v2230
        %v2389 = vpop.f32.mrb[0].mxu0
        %v2390 = vadd.f32 0.0, %v2389
        %v2391 = vpop.f32.mrb[0].mxu0
        %v2392 = vpop.f32.mrb[0].mxu0
        %v2393 = vadd.f32 0.0, %v2392
        %v2394 = vpop.f32.mrb[0].mxu0
        %2395 = vdwg.mxu0
        %v2396 = vadd.f32 %v1923, %v2270
        %v2397 = vadd.f32 %v1924, %v2273
        %v2398 = vadd.f32 %v1925, %v2278
        %v2399 = vadd.f32 %v1926, %v2281
        %v2400 = vadd.f32 %v1927, %v2286
        %v2401 = vadd.f32 %v1928, %v2289
        %v2402 = vadd.f32 %v1929, %v2294
        %v2403 = vadd.f32 %v1930, %v2297
        %v2404 = vadd.f32 %v1931, %v2302
        %v2405 = vadd.f32 %v1932, %v2305
        %v2406 = vadd.f32 %v1933, %v2310
        %v2407 = vadd.f32 %v1934, %v2313
        %v2408 = vadd.f32 %v1935, %v2318
        %v2409 = vadd.f32 %v1936, %v2321
        %v2410 = vadd.f32 %v1937, %v2326
        %v2411 = vadd.f32 %v1938, %v2329
        %v2412 = vadd.f32 %v1939, %v2334
        %v2413 = vadd.f32 %v1940, %v2337
        %v2414 = vadd.f32 %v1941, %v2342
        %v2415 = vadd.f32 %v1942, %v2345
        %v2416 = vadd.f32 %v1943, %v2350
        %v2417 = vadd.f32 %v1944, %v2353
        %v2418 = vadd.f32 %v1945, %v2358
        %v2419 = vadd.f32 %v1946, %v2361
        %v2420 = vadd.f32 %v1947, %v2366
        %v2421 = vadd.f32 %v1948, %v2369
        %v2422 = vadd.f32 %v1949, %v2374
        %v2423 = vadd.f32 %v1950, %v2377
        %v2424 = vadd.f32 %v1951, %v2382
        %v2425 = vadd.f32 %v1952, %v2385
        %v2426 = vadd.f32 %v1953, %v2390
        %v2427 = vadd.f32 %v1954, %v2393
        %v2428 = vld [vmem:[%s742] sm:$0xf]
        %v2429 = vld [vmem:[%s742 + $0x4] sm:$0xf]
        %v2430 = vld [vmem:[%s742 + $0xc] sm:$0xf]
        %v2431 = vld [vmem:[%s742 + $0x10] sm:$0xf]
        %v2432 = vld [vmem:[%s742 + $0x18] sm:$0xf]
        %v2433 = vld [vmem:[%s742 + $0x1c] sm:$0xf]
        %v2434 = vld [vmem:[%s742 + $0x24] sm:$0xf]
        %v2435 = vld [vmem:[%s742 + $0x28] sm:$0xf]
        %v2436 = vld [vmem:[%s742 + $0x30] sm:$0xf]
        %v2437 = vld [vmem:[%s742 + $0x34] sm:$0xf]
        %v2438 = vld [vmem:[%s742 + $0x3c] sm:$0xf]
        %v2439 = vld [vmem:[%s742 + $0x40] sm:$0xf]
        %v2440 = vld [vmem:[%s742 + $0x48] sm:$0xf]
        %v2441 = vld [vmem:[%s742 + $0x4c] sm:$0xf]
        %v2442 = vld [vmem:[%s742 + $0x54] sm:$0xf]
        %v2443 = vld [vmem:[%s742 + $0x58] sm:$0xf]
        %v2444 = vld [vmem:[%s742 + $0x60] sm:$0xf]
        %v2445 = vld [vmem:[%s742 + $0x64] sm:$0xf]
        %v2446 = vld [vmem:[%s742 + $0x6c] sm:$0xf]
        %v2447 = vld [vmem:[%s742 + $0x70] sm:$0xf]
        %v2448 = vld [vmem:[%s742 + $0x78] sm:$0xf]
        %v2449 = vld [vmem:[%s742 + $0x7c] sm:$0xf]
        %v2450 = vld [vmem:[%s742 + $0x84] sm:$0xf]
        %v2451 = vld [vmem:[%s742 + $0x88] sm:$0xf]
        %v2452 = vld [vmem:[%s742 + $0x90] sm:$0xf]
        %v2453 = vld [vmem:[%s742 + $0x94] sm:$0xf]
        %v2454 = vld [vmem:[%s742 + $0x9c] sm:$0xf]
        %v2455 = vld [vmem:[%s742 + $0xa0] sm:$0xf]
        %v2456 = vld [vmem:[%s742 + $0xa8] sm:$0xf]
        %v2457 = vld [vmem:[%s742 + $0xac] sm:$0xf]
        %v2458 = vld [vmem:[%s742 + $0xb4] sm:$0xf]
        %v2459 = vld [vmem:[%s742 + $0xb8] sm:$0xf]
        %s2460 = scalar_lea.vmem %s1, 12
        %v2461 = vld [vmem:[%s2460] sm:$0xf]
        %v2494 = vunpack.c.l.b16 %v2428
        %v2495 = vunpack.c.l.b16 %v2429
        %v2496 = vunpack.c.l.b16 %v2430
        %v2497 = vunpack.c.l.b16 %v2431
        %v2498 = vunpack.c.l.b16 %v2432
        %v2499 = vunpack.c.l.b16 %v2433
        %v2500 = vunpack.c.l.b16 %v2434
        %v2501 = vunpack.c.l.b16 %v2435
        %v2502 = vunpack.c.l.b16 %v2436
        %v2503 = vunpack.c.l.b16 %v2437
        %v2504 = vunpack.c.l.b16 %v2438
        %v2505 = vunpack.c.l.b16 %v2439
        %v2506 = vunpack.c.l.b16 %v2440
        %v2507 = vunpack.c.l.b16 %v2441
        %v2508 = vunpack.c.l.b16 %v2442
        %v2509 = vunpack.c.l.b16 %v2443
        %v2510 = vunpack.c.l.b16 %v2444
        %v2511 = vunpack.c.l.b16 %v2445
        %v2512 = vunpack.c.l.b16 %v2446
        %v2513 = vunpack.c.l.b16 %v2447
        %v2514 = vunpack.c.l.b16 %v2448
        %v2515 = vunpack.c.l.b16 %v2449
        %v2516 = vunpack.c.l.b16 %v2450
        %v2517 = vunpack.c.l.b16 %v2451
        %v2518 = vunpack.c.l.b16 %v2452
        %v2519 = vunpack.c.l.b16 %v2453
        %v2520 = vunpack.c.l.b16 %v2454
        %v2521 = vunpack.c.l.b16 %v2455
        %v2522 = vunpack.c.l.b16 %v2456
        %v2523 = vunpack.c.l.b16 %v2457
        %v2524 = vunpack.c.l.b16 %v2458
        %v2525 = vunpack.c.l.b16 %v2459
        %v2526 = vpack.c.b16 %v2495, %v2494
        %v2527 = vpack.c.b16 %v2497, %v2496
        %v2528 = vpack.c.b16 %v2499, %v2498
        %v2529 = vpack.c.b16 %v2501, %v2500
        %v2530 = vpack.c.b16 %v2503, %v2502
        %v2531 = vpack.c.b16 %v2505, %v2504
        %v2532 = vpack.c.b16 %v2507, %v2506
        %v2533 = vpack.c.b16 %v2509, %v2508
        %v2534 = vpack.c.b16 %v2511, %v2510
        %v2535 = vpack.c.b16 %v2513, %v2512
        %v2536 = vpack.c.b16 %v2515, %v2514
        %v2537 = vpack.c.b16 %v2517, %v2516
        %v2538 = vpack.c.b16 %v2519, %v2518
        %v2539 = vpack.c.b16 %v2521, %v2520
        %v2540 = vpack.c.b16 %v2523, %v2522
        %v2541 = vpack.c.b16 %v2525, %v2524
        %v2543 = vsel %vm980, %v2526, 0
        %v2546 = vsel %vm980, %v2527, 0
        %v2549 = vsel %vm980, %v2528, 0
        %v2552 = vsel %vm980, %v2529, 0
        %v2555 = vsel %vm980, %v2530, 0
        %v2558 = vsel %vm980, %v2531, 0
        %v2561 = vsel %vm980, %v2532, 0
        %v2564 = vsel %vm980, %v2533, 0
        %v2567 = vsel %vm980, %v2534, 0
        %v2570 = vsel %vm980, %v2535, 0
        %v2573 = vsel %vm980, %v2536, 0
        %v2576 = vsel %vm980, %v2537, 0
        %v2579 = vsel %vm980, %v2538, 0
        %v2582 = vsel %vm980, %v2539, 0
        %v2585 = vsel %vm980, %v2540, 0
        %v2588 = vsel %vm980, %v2541, 0
        %v2591 = vsel %vm1029, %v2461, 0
        %2593 = vmatprep.subr.bf16.mxu0 0
        %2594 = vmatpush1.bf16.msra.mxu0 %v2591
        %2595 = vmatprep.subr.bf16.mxu0 0
        %2596 = vmatpush1.bf16.msra.mxu0 0
        %2597 = vmatprep.subr.bf16.mxu0 0
        %2598 = vmatpush1.bf16.msra.mxu0 0
        %2599 = vmatprep.subr.bf16.mxu0 0
        %2600 = vmatpush1.bf16.msra.mxu0 0
        %2601 = vmatprep.subr.bf16.mxu0 0
        %2602 = vmatpush1.bf16.msra.mxu0 0
        %2603 = vmatprep.subr.bf16.mxu0 0
        %2604 = vmatpush1.bf16.msra.mxu0 0
        %2605 = vmatprep.subr.bf16.mxu0 0
        %2606 = vmatpush1.bf16.msra.mxu0 0
        %2607 = vmatprep.subr.bf16.mxu0 0
        %2608 = vmatpush1.bf16.msra.mxu0 0
        %2609 = vmatprep.subr.bf16.mxu0 0
        %2610 = vmatpush1.bf16.msra.mxu0 0
        %2611 = vmatprep.subr.bf16.mxu0 0
        %2612 = vmatpush1.bf16.msra.mxu0 0
        %2613 = vmatprep.subr.bf16.mxu0 0
        %2614 = vmatpush1.bf16.msra.mxu0 0
        %2615 = vmatprep.subr.bf16.mxu0 0
        %2616 = vmatpush1.bf16.msra.mxu0 0
        %2617 = vmatprep.subr.bf16.mxu0 0
        %2618 = vmatpush1.bf16.msra.mxu0 0
        %2619 = vmatprep.subr.bf16.mxu0 0
        %2620 = vmatpush1.bf16.msra.mxu0 0
        %2621 = vmatprep.subr.bf16.mxu0 0
        %2622 = vmatpush1.bf16.msra.mxu0 0
        %2623 = vmatprep.subr.bf16.mxu0 0
        %2624 = vmatpush1.bf16.msra.mxu0 0
        %2625 = vmatprep.mubr.bf16.mxu0 0
        %2626 = vmatmul.mubr.bf16.gmra.mrb[0].mxu0 %v2543
        %v2627 = vpop.f32.mrb[0].mxu0
        %v2628 = vadd.f32 0.0, %v2627
        %v2629 = vpop.f32.mrb[0].mxu0
        %v2630 = vpop.f32.mrb[0].mxu0
        %v2631 = vadd.f32 0.0, %v2630
        %v2632 = vpop.f32.mrb[0].mxu0
        %2633 = vmatprep.mubr.bf16.mxu0 0
        %2634 = vmatmul.mubr.bf16.gmra.mrb[0].mxu0 %v2546
        %v2635 = vpop.f32.mrb[0].mxu0
        %v2636 = vadd.f32 0.0, %v2635
        %v2637 = vpop.f32.mrb[0].mxu0
        %v2638 = vpop.f32.mrb[0].mxu0
        %v2639 = vadd.f32 0.0, %v2638
        %v2640 = vpop.f32.mrb[0].mxu0
        %2641 = vmatprep.mubr.bf16.mxu0 0
        %2642 = vmatmul.mubr.bf16.gmra.mrb[0].mxu0 %v2549
        %v2643 = vpop.f32.mrb[0].mxu0
        %v2644 = vadd.f32 0.0, %v2643
        %v2645 = vpop.f32.mrb[0].mxu0
        %v2646 = vpop.f32.mrb[0].mxu0
        %v2647 = vadd.f32 0.0, %v2646
        %v2648 = vpop.f32.mrb[0].mxu0
        %2649 = vmatprep.mubr.bf16.mxu0 0
        %2650 = vmatmul.mubr.bf16.gmra.mrb[0].mxu0 %v2552
        %v2651 = vpop.f32.mrb[0].mxu0
        %v2652 = vadd.f32 0.0, %v2651
        %v2653 = vpop.f32.mrb[0].mxu0
        %v2654 = vpop.f32.mrb[0].mxu0
        %v2655 = vadd.f32 0.0, %v2654
        %v2656 = vpop.f32.mrb[0].mxu0
        %2657 = vmatprep.mubr.bf16.mxu0 0
        %2658 = vmatmul.mubr.bf16.gmra.mrb[0].mxu0 %v2555
        %v2659 = vpop.f32.mrb[0].mxu0
        %v2660 = vadd.f32 0.0, %v2659
        %v2661 = vpop.f32.mrb[0].mxu0
        %v2662 = vpop.f32.mrb[0].mxu0
        %v2663 = vadd.f32 0.0, %v2662
        %v2664 = vpop.f32.mrb[0].mxu0
        %2665 = vmatprep.mubr.bf16.mxu0 0
        %2666 = vmatmul.mubr.bf16.gmra.mrb[0].mxu0 %v2558
        %v2667 = vpop.f32.mrb[0].mxu0
        %v2668 = vadd.f32 0.0, %v2667
        %v2669 = vpop.f32.mrb[0].mxu0
        %v2670 = vpop.f32.mrb[0].mxu0
        %v2671 = vadd.f32 0.0, %v2670
        %v2672 = vpop.f32.mrb[0].mxu0
        %2673 = vmatprep.mubr.bf16.mxu0 0
        %2674 = vmatmul.mubr.bf16.gmra.mrb[0].mxu0 %v2561
        %v2675 = vpop.f32.mrb[0].mxu0
        %v2676 = vadd.f32 0.0, %v2675
        %v2677 = vpop.f32.mrb[0].mxu0
        %v2678 = vpop.f32.mrb[0].mxu0
        %v2679 = vadd.f32 0.0, %v2678
        %v2680 = vpop.f32.mrb[0].mxu0
        %2681 = vmatprep.mubr.bf16.mxu0 0
        %2682 = vmatmul.mubr.bf16.gmra.mrb[0].mxu0 %v2564
        %v2683 = vpop.f32.mrb[0].mxu0
        %v2684 = vadd.f32 0.0, %v2683
        %v2685 = vpop.f32.mrb[0].mxu0
        %v2686 = vpop.f32.mrb[0].mxu0
        %v2687 = vadd.f32 0.0, %v2686
        %v2688 = vpop.f32.mrb[0].mxu0
        %2689 = vmatprep.mubr.bf16.mxu0 0
        %2690 = vmatmul.mubr.bf16.gmra.mrb[0].mxu0 %v2567
        %v2691 = vpop.f32.mrb[0].mxu0
        %v2692 = vadd.f32 0.0, %v2691
        %v2693 = vpop.f32.mrb[0].mxu0
        %v2694 = vpop.f32.mrb[0].mxu0
        %v2695 = vadd.f32 0.0, %v2694
        %v2696 = vpop.f32.mrb[0].mxu0
        %2697 = vmatprep.mubr.bf16.mxu0 0
        %2698 = vmatmul.mubr.bf16.gmra.mrb[0].mxu0 %v2570
        %v2699 = vpop.f32.mrb[0].mxu0
        %v2700 = vadd.f32 0.0, %v2699
        %v2701 = vpop.f32.mrb[0].mxu0
        %v2702 = vpop.f32.mrb[0].mxu0
        %v2703 = vadd.f32 0.0, %v2702
        %v2704 = vpop.f32.mrb[0].mxu0
        %2705 = vmatprep.mubr.bf16.mxu0 0
        %2706 = vmatmul.mubr.bf16.gmra.mrb[0].mxu0 %v2573
        %v2707 = vpop.f32.mrb[0].mxu0
        %v2708 = vadd.f32 0.0, %v2707
        %v2709 = vpop.f32.mrb[0].mxu0
        %v2710 = vpop.f32.mrb[0].mxu0
        %v2711 = vadd.f32 0.0, %v2710
        %v2712 = vpop.f32.mrb[0].mxu0
        %2713 = vmatprep.mubr.bf16.mxu0 0
        %2714 = vmatmul.mubr.bf16.gmra.mrb[0].mxu0 %v2576
        %v2715 = vpop.f32.mrb[0].mxu0
        %v2716 = vadd.f32 0.0, %v2715
        %v2717 = vpop.f32.mrb[0].mxu0
        %v2718 = vpop.f32.mrb[0].mxu0
        %v2719 = vadd.f32 0.0, %v2718
        %v2720 = vpop.f32.mrb[0].mxu0
        %2721 = vmatprep.mubr.bf16.mxu0 0
        %2722 = vmatmul.mubr.bf16.gmra.mrb[0].mxu0 %v2579
        %v2723 = vpop.f32.mrb[0].mxu0
        %v2724 = vadd.f32 0.0, %v2723
        %v2725 = vpop.f32.mrb[0].mxu0
        %v2726 = vpop.f32.mrb[0].mxu0
        %v2727 = vadd.f32 0.0, %v2726
        %v2728 = vpop.f32.mrb[0].mxu0
        %2729 = vmatprep.mubr.bf16.mxu0 0
        %2730 = vmatmul.mubr.bf16.gmra.mrb[0].mxu0 %v2582
        %v2731 = vpop.f32.mrb[0].mxu0
        %v2732 = vadd.f32 0.0, %v2731
        %v2733 = vpop.f32.mrb[0].mxu0
        %v2734 = vpop.f32.mrb[0].mxu0
        %v2735 = vadd.f32 0.0, %v2734
        %v2736 = vpop.f32.mrb[0].mxu0
        %2737 = vmatprep.mubr.bf16.mxu0 0
        %2738 = vmatmul.mubr.bf16.gmra.mrb[0].mxu0 %v2585
        %v2739 = vpop.f32.mrb[0].mxu0
        %v2740 = vadd.f32 0.0, %v2739
        %v2741 = vpop.f32.mrb[0].mxu0
        %v2742 = vpop.f32.mrb[0].mxu0
        %v2743 = vadd.f32 0.0, %v2742
        %v2744 = vpop.f32.mrb[0].mxu0
        %2745 = vmatprep.mubr.bf16.mxu0 0
        %2746 = vmatmul.mubr.bf16.gmra.mrb[0].mxu0 %v2588
        %v2747 = vpop.f32.mrb[0].mxu0
        %v2748 = vadd.f32 0.0, %v2747
        %v2749 = vpop.f32.mrb[0].mxu0
        %v2750 = vpop.f32.mrb[0].mxu0
        %v2751 = vadd.f32 0.0, %v2750
        %v2752 = vpop.f32.mrb[0].mxu0
        %2753 = vdwg.mxu0
        %v2754 = vadd.f32 %v2396, %v2628
        %v2755 = vadd.f32 %v2397, %v2631
        %v2756 = vadd.f32 %v2398, %v2636
        %v2757 = vadd.f32 %v2399, %v2639
        %v2758 = vadd.f32 %v2400, %v2644
        %v2759 = vadd.f32 %v2401, %v2647
        %v2760 = vadd.f32 %v2402, %v2652
        %v2761 = vadd.f32 %v2403, %v2655
        %v2762 = vadd.f32 %v2404, %v2660
        %v2763 = vadd.f32 %v2405, %v2663
        %v2764 = vadd.f32 %v2406, %v2668
        %v2765 = vadd.f32 %v2407, %v2671
        %v2766 = vadd.f32 %v2408, %v2676
        %v2767 = vadd.f32 %v2409, %v2679
        %v2768 = vadd.f32 %v2410, %v2684
        %v2769 = vadd.f32 %v2411, %v2687
        %v2770 = vadd.f32 %v2412, %v2692
        %v2771 = vadd.f32 %v2413, %v2695
        %v2772 = vadd.f32 %v2414, %v2700
        %v2773 = vadd.f32 %v2415, %v2703
        %v2774 = vadd.f32 %v2416, %v2708
        %v2775 = vadd.f32 %v2417, %v2711
        %v2776 = vadd.f32 %v2418, %v2716
        %v2777 = vadd.f32 %v2419, %v2719
        %v2778 = vadd.f32 %v2420, %v2724
        %v2779 = vadd.f32 %v2421, %v2727
        %v2780 = vadd.f32 %v2422, %v2732
        %v2781 = vadd.f32 %v2423, %v2735
        %v2782 = vadd.f32 %v2424, %v2740
        %v2783 = vadd.f32 %v2425, %v2743
        %v2784 = vadd.f32 %v2426, %v2748
        %v2785 = vadd.f32 %v2427, %v2751
        %v2786 = vld [vmem:[%s742] sm:$0xf]
        %v2787 = vld [vmem:[%s742 + $0x4] sm:$0xf]
        %v2788 = vld [vmem:[%s742 + $0x8] sm:$0x1]
        %v2789 = vld [vmem:[%s742 + $0xc] sm:$0xf]
        %v2790 = vld [vmem:[%s742 + $0x10] sm:$0xf]
        %v2791 = vld [vmem:[%s742 + $0x14] sm:$0x1]
        %v2792 = vld [vmem:[%s742 + $0x18] sm:$0xf]
        %v2793 = vld [vmem:[%s742 + $0x1c] sm:$0xf]
        %v2794 = vld [vmem:[%s742 + $0x20] sm:$0x1]
        %v2795 = vld [vmem:[%s742 + $0x24] sm:$0xf]
        %v2796 = vld [vmem:[%s742 + $0x28] sm:$0xf]
        %v2797 = vld [vmem:[%s742 + $0x2c] sm:$0x1]
        %v2798 = vld [vmem:[%s742 + $0x30] sm:$0xf]
        %v2799 = vld [vmem:[%s742 + $0x34] sm:$0xf]
        %v2800 = vld [vmem:[%s742 + $0x38] sm:$0x1]
        %v2801 = vld [vmem:[%s742 + $0x3c] sm:$0xf]
        %v2802 = vld [vmem:[%s742 + $0x40] sm:$0xf]
        %v2803 = vld [vmem:[%s742 + $0x44] sm:$0x1]
        %v2804 = vld [vmem:[%s742 + $0x48] sm:$0xf]
        %v2805 = vld [vmem:[%s742 + $0x4c] sm:$0xf]
        %v2806 = vld [vmem:[%s742 + $0x50] sm:$0x1]
        %v2807 = vld [vmem:[%s742 + $0x54] sm:$0xf]
        %v2808 = vld [vmem:[%s742 + $0x58] sm:$0xf]
        %v2809 = vld [vmem:[%s742 + $0x5c] sm:$0x1]
        %v2810 = vld [vmem:[%s742 + $0x60] sm:$0xf]
        %v2811 = vld [vmem:[%s742 + $0x64] sm:$0xf]
        %v2812 = vld [vmem:[%s742 + $0x68] sm:$0x1]
        %v2813 = vld [vmem:[%s742 + $0x6c] sm:$0xf]
        %v2814 = vld [vmem:[%s742 + $0x70] sm:$0xf]
        %v2815 = vld [vmem:[%s742 + $0x74] sm:$0x1]
        %v2816 = vld [vmem:[%s742 + $0x78] sm:$0xf]
        %v2817 = vld [vmem:[%s742 + $0x7c] sm:$0xf]
        %v2818 = vld [vmem:[%s742 + $0x80] sm:$0x1]
        %v2819 = vld [vmem:[%s742 + $0x84] sm:$0xf]
        %v2820 = vld [vmem:[%s742 + $0x88] sm:$0xf]
        %v2821 = vld [vmem:[%s742 + $0x8c] sm:$0x1]
        %v2822 = vld [vmem:[%s742 + $0x90] sm:$0xf]
        %v2823 = vld [vmem:[%s742 + $0x94] sm:$0xf]
        %v2824 = vld [vmem:[%s742 + $0x98] sm:$0x1]
        %v2825 = vld [vmem:[%s742 + $0x9c] sm:$0xf]
        %v2826 = vld [vmem:[%s742 + $0xa0] sm:$0xf]
        %v2827 = vld [vmem:[%s742 + $0xa4] sm:$0x1]
        %v2828 = vld [vmem:[%s742 + $0xa8] sm:$0xf]
        %v2829 = vld [vmem:[%s742 + $0xac] sm:$0xf]
        %v2830 = vld [vmem:[%s742 + $0xb0] sm:$0x1]
        %v2831 = vld [vmem:[%s742 + $0xb4] sm:$0xf]
        %v2832 = vld [vmem:[%s742 + $0xb8] sm:$0xf]
        %v2833 = vld [vmem:[%s742 + $0xbc] sm:$0x1]
        %v2835 = vshrl.u32 %v2786, 16
        %v2837 = vrot.slane %v2835, 4
        %v2838 = vshll.u32 %v2786, 16
        %v2840 = vrot.slane %v2838, 5
        %v2841 = vor.u32 %v2837, %v2840
        %v2842 = vrot.slane %v2841, 4
        %v2844 = vshll.u32 %v2787, 16
        %v2846 = vrot.slane %v2844, 5
        %v2847 = vsel %vm1276, %v2842, %v2846
        %v2848 = vshrl.u32 %v2787, 16
        %v2850 = vrot.slane %v2848, 4
        %v2851 = vor.u32 %v2850, %v2846
        %v2852 = vrot.slane %v2851, 4
        %v2854 = vshll.u32 %v2788, 16
        %v2856 = vrot.slane %v2854, 5
        %v2857 = vsel %vm1276, %v2852, %v2856
        %v2859 = vshrl.u32 %v2789, 16
        %v2861 = vrot.slane %v2859, 4
        %v2862 = vshll.u32 %v2789, 16
        %v2864 = vrot.slane %v2862, 5
        %v2865 = vor.u32 %v2861, %v2864
        %v2866 = vrot.slane %v2865, 4
        %v2868 = vshll.u32 %v2790, 16
        %v2870 = vrot.slane %v2868, 5
        %v2871 = vsel %vm1276, %v2866, %v2870
        %v2872 = vshrl.u32 %v2790, 16
        %v2874 = vrot.slane %v2872, 4
        %v2875 = vor.u32 %v2874, %v2870
        %v2876 = vrot.slane %v2875, 4
        %v2878 = vshll.u32 %v2791, 16
        %v2880 = vrot.slane %v2878, 5
        %v2881 = vsel %vm1276, %v2876, %v2880
        %v2883 = vshrl.u32 %v2792, 16
        %v2885 = vrot.slane %v2883, 4
        %v2886 = vshll.u32 %v2792, 16
        %v2888 = vrot.slane %v2886, 5
        %v2889 = vor.u32 %v2885, %v2888
        %v2890 = vrot.slane %v2889, 4
        %v2892 = vshll.u32 %v2793, 16
        %v2894 = vrot.slane %v2892, 5
        %v2895 = vsel %vm1276, %v2890, %v2894
        %v2896 = vshrl.u32 %v2793, 16
        %v2898 = vrot.slane %v2896, 4
        %v2899 = vor.u32 %v2898, %v2894
        %v2900 = vrot.slane %v2899, 4
        %v2902 = vshll.u32 %v2794, 16
        %v2904 = vrot.slane %v2902, 5
        %v2905 = vsel %vm1276, %v2900, %v2904
        %v2907 = vshrl.u32 %v2795, 16
        %v2909 = vrot.slane %v2907, 4
        %v2910 = vshll.u32 %v2795, 16
        %v2912 = vrot.slane %v2910, 5
        %v2913 = vor.u32 %v2909, %v2912
        %v2914 = vrot.slane %v2913, 4
        %v2916 = vshll.u32 %v2796, 16
        %v2918 = vrot.slane %v2916, 5
        %v2919 = vsel %vm1276, %v2914, %v2918
        %v2920 = vshrl.u32 %v2796, 16
        %v2922 = vrot.slane %v2920, 4
        %v2923 = vor.u32 %v2922, %v2918
        %v2924 = vrot.slane %v2923, 4
        %v2926 = vshll.u32 %v2797, 16
        %v2928 = vrot.slane %v2926, 5
        %v2929 = vsel %vm1276, %v2924, %v2928
        %v2931 = vshrl.u32 %v2798, 16
        %v2933 = vrot.slane %v2931, 4
        %v2934 = vshll.u32 %v2798, 16
        %v2936 = vrot.slane %v2934, 5
        %v2937 = vor.u32 %v2933, %v2936
        %v2938 = vrot.slane %v2937, 4
        %v2940 = vshll.u32 %v2799, 16
        %v2942 = vrot.slane %v2940, 5
        %v2943 = vsel %vm1276, %v2938, %v2942
        %v2944 = vshrl.u32 %v2799, 16
        %v2946 = vrot.slane %v2944, 4
        %v2947 = vor.u32 %v2946, %v2942
        %v2948 = vrot.slane %v2947, 4
        %v2950 = vshll.u32 %v2800, 16
        %v2952 = vrot.slane %v2950, 5
        %v2953 = vsel %vm1276, %v2948, %v2952
        %v2955 = vshrl.u32 %v2801, 16
        %v2957 = vrot.slane %v2955, 4
        %v2958 = vshll.u32 %v2801, 16
        %v2960 = vrot.slane %v2958, 5
        %v2961 = vor.u32 %v2957, %v2960
        %v2962 = vrot.slane %v2961, 4
        %v2964 = vshll.u32 %v2802, 16
        %v2966 = vrot.slane %v2964, 5
        %v2967 = vsel %vm1276, %v2962, %v2966
        %v2968 = vshrl.u32 %v2802, 16
        %v2970 = vrot.slane %v2968, 4
        %v2971 = vor.u32 %v2970, %v2966
        %v2972 = vrot.slane %v2971, 4
        %v2974 = vshll.u32 %v2803, 16
        %v2976 = vrot.slane %v2974, 5
        %v2977 = vsel %vm1276, %v2972, %v2976
        %v2979 = vshrl.u32 %v2804, 16
        %v2981 = vrot.slane %v2979, 4
        %v2982 = vshll.u32 %v2804, 16
        %v2984 = vrot.slane %v2982, 5
        %v2985 = vor.u32 %v2981, %v2984
        %v2986 = vrot.slane %v2985, 4
        %v2988 = vshll.u32 %v2805, 16
        %v2990 = vrot.slane %v2988, 5
        %v2991 = vsel %vm1276, %v2986, %v2990
        %v2992 = vshrl.u32 %v2805, 16
        %v2994 = vrot.slane %v2992, 4
        %v2995 = vor.u32 %v2994, %v2990
        %v2996 = vrot.slane %v2995, 4
        %v2998 = vshll.u32 %v2806, 16
        %v3000 = vrot.slane %v2998, 5
        %v3001 = vsel %vm1276, %v2996, %v3000
        %v3003 = vshrl.u32 %v2807, 16
        %v3005 = vrot.slane %v3003, 4
        %v3006 = vshll.u32 %v2807, 16
        %v3008 = vrot.slane %v3006, 5
        %v3009 = vor.u32 %v3005, %v3008
        %v3010 = vrot.slane %v3009, 4
        %v3012 = vshll.u32 %v2808, 16
        %v3014 = vrot.slane %v3012, 5
        %v3015 = vsel %vm1276, %v3010, %v3014
        %v3016 = vshrl.u32 %v2808, 16
        %v3018 = vrot.slane %v3016, 4
        %v3019 = vor.u32 %v3018, %v3014
        %v3020 = vrot.slane %v3019, 4
        %v3022 = vshll.u32 %v2809, 16
        %v3024 = vrot.slane %v3022, 5
        %v3025 = vsel %vm1276, %v3020, %v3024
        %v3027 = vshrl.u32 %v2810, 16
        %v3029 = vrot.slane %v3027, 4
        %v3030 = vshll.u32 %v2810, 16
        %v3032 = vrot.slane %v3030, 5
        %v3033 = vor.u32 %v3029, %v3032
        %v3034 = vrot.slane %v3033, 4
        %v3036 = vshll.u32 %v2811, 16
        %v3038 = vrot.slane %v3036, 5
        %v3039 = vsel %vm1276, %v3034, %v3038
        %v3040 = vshrl.u32 %v2811, 16
        %v3042 = vrot.slane %v3040, 4
        %v3043 = vor.u32 %v3042, %v3038
        %v3044 = vrot.slane %v3043, 4
        %v3046 = vshll.u32 %v2812, 16
        %v3048 = vrot.slane %v3046, 5
        %v3049 = vsel %vm1276, %v3044, %v3048
        %v3051 = vshrl.u32 %v2813, 16
        %v3053 = vrot.slane %v3051, 4
        %v3054 = vshll.u32 %v2813, 16
        %v3056 = vrot.slane %v3054, 5
        %v3057 = vor.u32 %v3053, %v3056
        %v3058 = vrot.slane %v3057, 4
        %v3060 = vshll.u32 %v2814, 16
        %v3062 = vrot.slane %v3060, 5
        %v3063 = vsel %vm1276, %v3058, %v3062
        %v3064 = vshrl.u32 %v2814, 16
        %v3066 = vrot.slane %v3064, 4
        %v3067 = vor.u32 %v3066, %v3062
        %v3068 = vrot.slane %v3067, 4
        %v3070 = vshll.u32 %v2815, 16
        %v3072 = vrot.slane %v3070, 5
        %v3073 = vsel %vm1276, %v3068, %v3072
        %v3075 = vshrl.u32 %v2816, 16
        %v3077 = vrot.slane %v3075, 4
        %v3078 = vshll.u32 %v2816, 16
        %v3080 = vrot.slane %v3078, 5
        %v3081 = vor.u32 %v3077, %v3080
        %v3082 = vrot.slane %v3081, 4
        %v3084 = vshll.u32 %v2817, 16
        %v3086 = vrot.slane %v3084, 5
        %v3087 = vsel %vm1276, %v3082, %v3086
        %v3088 = vshrl.u32 %v2817, 16
        %v3090 = vrot.slane %v3088, 4
        %v3091 = vor.u32 %v3090, %v3086
        %v3092 = vrot.slane %v3091, 4
        %v3094 = vshll.u32 %v2818, 16
        %v3096 = vrot.slane %v3094, 5
        %v3097 = vsel %vm1276, %v3092, %v3096
        %v3099 = vshrl.u32 %v2819, 16
        %v3101 = vrot.slane %v3099, 4
        %v3102 = vshll.u32 %v2819, 16
        %v3104 = vrot.slane %v3102, 5
        %v3105 = vor.u32 %v3101, %v3104
        %v3106 = vrot.slane %v3105, 4
        %v3108 = vshll.u32 %v2820, 16
        %v3110 = vrot.slane %v3108, 5
        %v3111 = vsel %vm1276, %v3106, %v3110
        %v3112 = vshrl.u32 %v2820, 16
        %v3114 = vrot.slane %v3112, 4
        %v3115 = vor.u32 %v3114, %v3110
        %v3116 = vrot.slane %v3115, 4
        %v3118 = vshll.u32 %v2821, 16
        %v3120 = vrot.slane %v3118, 5
        %v3121 = vsel %vm1276, %v3116, %v3120
        %v3123 = vshrl.u32 %v2822, 16
        %v3125 = vrot.slane %v3123, 4
        %v3126 = vshll.u32 %v2822, 16
        %v3128 = vrot.slane %v3126, 5
        %v3129 = vor.u32 %v3125, %v3128
        %v3130 = vrot.slane %v3129, 4
        %v3132 = vshll.u32 %v2823, 16
        %v3134 = vrot.slane %v3132, 5
        %v3135 = vsel %vm1276, %v3130, %v3134
        %v3136 = vshrl.u32 %v2823, 16
        %v3138 = vrot.slane %v3136, 4
        %v3139 = vor.u32 %v3138, %v3134
        %v3140 = vrot.slane %v3139, 4
        %v3142 = vshll.u32 %v2824, 16
        %v3144 = vrot.slane %v3142, 5
        %v3145 = vsel %vm1276, %v3140, %v3144
        %v3147 = vshrl.u32 %v2825, 16
        %v3149 = vrot.slane %v3147, 4
        %v3150 = vshll.u32 %v2825, 16
        %v3152 = vrot.slane %v3150, 5
        %v3153 = vor.u32 %v3149, %v3152
        %v3154 = vrot.slane %v3153, 4
        %v3156 = vshll.u32 %v2826, 16
        %v3158 = vrot.slane %v3156, 5
        %v3159 = vsel %vm1276, %v3154, %v3158
        %v3160 = vshrl.u32 %v2826, 16
        %v3162 = vrot.slane %v3160, 4
        %v3163 = vor.u32 %v3162, %v3158
        %v3164 = vrot.slane %v3163, 4
        %v3166 = vshll.u32 %v2827, 16
        %v3168 = vrot.slane %v3166, 5
        %v3169 = vsel %vm1276, %v3164, %v3168
        %v3171 = vshrl.u32 %v2828, 16
        %v3173 = vrot.slane %v3171, 4
        %v3174 = vshll.u32 %v2828, 16
        %v3176 = vrot.slane %v3174, 5
        %v3177 = vor.u32 %v3173, %v3176
        %v3178 = vrot.slane %v3177, 4
        %v3180 = vshll.u32 %v2829, 16
        %v3182 = vrot.slane %v3180, 5
        %v3183 = vsel %vm1276, %v3178, %v3182
        %v3184 = vshrl.u32 %v2829, 16
        %v3186 = vrot.slane %v3184, 4
        %v3187 = vor.u32 %v3186, %v3182
        %v3188 = vrot.slane %v3187, 4
        %v3190 = vshll.u32 %v2830, 16
        %v3192 = vrot.slane %v3190, 5
        %v3193 = vsel %vm1276, %v3188, %v3192
        %v3195 = vshrl.u32 %v2831, 16
        %v3197 = vrot.slane %v3195, 4
        %v3198 = vshll.u32 %v2831, 16
        %v3200 = vrot.slane %v3198, 5
        %v3201 = vor.u32 %v3197, %v3200
        %v3202 = vrot.slane %v3201, 4
        %v3204 = vshll.u32 %v2832, 16
        %v3206 = vrot.slane %v3204, 5
        %v3207 = vsel %vm1276, %v3202, %v3206
        %v3208 = vshrl.u32 %v2832, 16
        %v3210 = vrot.slane %v3208, 4
        %v3211 = vor.u32 %v3210, %v3206
        %v3212 = vrot.slane %v3211, 4
        %v3214 = vshll.u32 %v2833, 16
        %v3216 = vrot.slane %v3214, 5
        %v3217 = vsel %vm1276, %v3212, %v3216
        %s3218 = scalar_lea.vmem %s1, 16
        %v3219 = vld [vmem:[%s3218] sm:$0xf]
        %v3220 = vunpack.c.l.b16 %v2847
        %v3221 = vunpack.c.l.b16 %v2857
        %v3222 = vunpack.c.l.b16 %v2871
        %v3223 = vunpack.c.l.b16 %v2881
        %v3224 = vunpack.c.l.b16 %v2895
        %v3225 = vunpack.c.l.b16 %v2905
        %v3226 = vunpack.c.l.b16 %v2919
        %v3227 = vunpack.c.l.b16 %v2929
        %v3228 = vunpack.c.l.b16 %v2943
        %v3229 = vunpack.c.l.b16 %v2953
        %v3230 = vunpack.c.l.b16 %v2967
        %v3231 = vunpack.c.l.b16 %v2977
        %v3232 = vunpack.c.l.b16 %v2991
        %v3233 = vunpack.c.l.b16 %v3001
        %v3234 = vunpack.c.l.b16 %v3015
        %v3235 = vunpack.c.l.b16 %v3025
        %v3236 = vunpack.c.l.b16 %v3039
        %v3237 = vunpack.c.l.b16 %v3049
        %v3238 = vunpack.c.l.b16 %v3063
        %v3239 = vunpack.c.l.b16 %v3073
        %v3240 = vunpack.c.l.b16 %v3087
        %v3241 = vunpack.c.l.b16 %v3097
        %v3242 = vunpack.c.l.b16 %v3111
        %v3243 = vunpack.c.l.b16 %v3121
        %v3244 = vunpack.c.l.b16 %v3135
        %v3245 = vunpack.c.l.b16 %v3145
        %v3246 = vunpack.c.l.b16 %v3159
        %v3247 = vunpack.c.l.b16 %v3169
        %v3248 = vunpack.c.l.b16 %v3183
        %v3249 = vunpack.c.l.b16 %v3193
        %v3250 = vunpack.c.l.b16 %v3207
        %v3251 = vunpack.c.l.b16 %v3217
        %v3252 = vpack.c.b16 %v3221, %v3220
        %v3253 = vpack.c.b16 %v3223, %v3222
        %v3254 = vpack.c.b16 %v3225, %v3224
        %v3255 = vpack.c.b16 %v3227, %v3226
        %v3256 = vpack.c.b16 %v3229, %v3228
        %v3257 = vpack.c.b16 %v3231, %v3230
        %v3258 = vpack.c.b16 %v3233, %v3232
        %v3259 = vpack.c.b16 %v3235, %v3234
        %v3260 = vpack.c.b16 %v3237, %v3236
        %v3261 = vpack.c.b16 %v3239, %v3238
        %v3262 = vpack.c.b16 %v3241, %v3240
        %v3263 = vpack.c.b16 %v3243, %v3242
        %v3264 = vpack.c.b16 %v3245, %v3244
        %v3265 = vpack.c.b16 %v3247, %v3246
        %v3266 = vpack.c.b16 %v3249, %v3248
        %v3267 = vpack.c.b16 %v3251, %v3250
        %v3269 = vsel %vm980, %v3252, 0
        %v3272 = vsel %vm980, %v3253, 0
        %v3275 = vsel %vm980, %v3254, 0
        %v3278 = vsel %vm980, %v3255, 0
        %v3281 = vsel %vm980, %v3256, 0
        %v3284 = vsel %vm980, %v3257, 0
        %v3287 = vsel %vm980, %v3258, 0
        %v3290 = vsel %vm980, %v3259, 0
        %v3293 = vsel %vm980, %v3260, 0
        %v3296 = vsel %vm980, %v3261, 0
        %v3299 = vsel %vm980, %v3262, 0
        %v3302 = vsel %vm980, %v3263, 0
        %v3305 = vsel %vm980, %v3264, 0
        %v3308 = vsel %vm980, %v3265, 0
        %v3311 = vsel %vm980, %v3266, 0
        %v3314 = vsel %vm980, %v3267, 0
        %v3317 = vsel %vm1029, %v3219, 0
        %3319 = vmatprep.subr.bf16.mxu0 0
        %3320 = vmatpush1.bf16.msra.mxu0 %v3317
        %3321 = vmatprep.subr.bf16.mxu0 0
        %3322 = vmatpush1.bf16.msra.mxu0 0
        %3323 = vmatprep.subr.bf16.mxu0 0
        %3324 = vmatpush1.bf16.msra.mxu0 0
        %3325 = vmatprep.subr.bf16.mxu0 0
        %3326 = vmatpush1.bf16.msra.mxu0 0
        %3327 = vmatprep.subr.bf16.mxu0 0
        %3328 = vmatpush1.bf16.msra.mxu0 0
        %3329 = vmatprep.subr.bf16.mxu0 0
        %3330 = vmatpush1.bf16.msra.mxu0 0
        %3331 = vmatprep.subr.bf16.mxu0 0
        %3332 = vmatpush1.bf16.msra.mxu0 0
        %3333 = vmatprep.subr.bf16.mxu0 0
        %3334 = vmatpush1.bf16.msra.mxu0 0
        %3335 = vmatprep.subr.bf16.mxu0 0
        %3336 = vmatpush1.bf16.msra.mxu0 0
        %3337 = vmatprep.subr.bf16.mxu0 0
        %3338 = vmatpush1.bf16.msra.mxu0 0
        %3339 = vmatprep.subr.bf16.mxu0 0
        %3340 = vmatpush1.bf16.msra.mxu0 0
        %3341 = vmatprep.subr.bf16.mxu0 0
        %3342 = vmatpush1.bf16.msra.mxu0 0
        %3343 = vmatprep.subr.bf16.mxu0 0
        %3344 = vmatpush1.bf16.msra.mxu0 0
        %3345 = vmatprep.subr.bf16.mxu0 0
        %3346 = vmatpush1.bf16.msra.mxu0 0
        %3347 = vmatprep.subr.bf16.mxu0 0
        %3348 = vmatpush1.bf16.msra.mxu0 0
        %3349 = vmatprep.subr.bf16.mxu0 0
        %3350 = vmatpush1.bf16.msra.mxu0 0
        %3351 = vmatprep.mubr.bf16.mxu0 0
        %3352 = vmatmul.mubr.bf16.gmra.mrb[0].mxu0 %v3269
        %v3353 = vpop.f32.mrb[0].mxu0
        %v3354 = vadd.f32 0.0, %v3353
        %v3355 = vpop.f32.mrb[0].mxu0
        %v3356 = vpop.f32.mrb[0].mxu0
        %v3357 = vadd.f32 0.0, %v3356
        %v3358 = vpop.f32.mrb[0].mxu0
        %3359 = vmatprep.mubr.bf16.mxu0 0
        %3360 = vmatmul.mubr.bf16.gmra.mrb[0].mxu0 %v3272
        %v3361 = vpop.f32.mrb[0].mxu0
        %v3362 = vadd.f32 0.0, %v3361
        %v3363 = vpop.f32.mrb[0].mxu0
        %v3364 = vpop.f32.mrb[0].mxu0
        %v3365 = vadd.f32 0.0, %v3364
        %v3366 = vpop.f32.mrb[0].mxu0
        %3367 = vmatprep.mubr.bf16.mxu0 0
        %3368 = vmatmul.mubr.bf16.gmra.mrb[0].mxu0 %v3275
        %v3369 = vpop.f32.mrb[0].mxu0
        %v3370 = vadd.f32 0.0, %v3369
        %v3371 = vpop.f32.mrb[0].mxu0
        %v3372 = vpop.f32.mrb[0].mxu0
        %v3373 = vadd.f32 0.0, %v3372
        %v3374 = vpop.f32.mrb[0].mxu0
        %3375 = vmatprep.mubr.bf16.mxu0 0
        %3376 = vmatmul.mubr.bf16.gmra.mrb[0].mxu0 %v3278
        %v3377 = vpop.f32.mrb[0].mxu0
        %v3378 = vadd.f32 0.0, %v3377
        %v3379 = vpop.f32.mrb[0].mxu0
        %v3380 = vpop.f32.mrb[0].mxu0
        %v3381 = vadd.f32 0.0, %v3380
        %v3382 = vpop.f32.mrb[0].mxu0
        %3383 = vmatprep.mubr.bf16.mxu0 0
        %3384 = vmatmul.mubr.bf16.gmra.mrb[0].mxu0 %v3281
        %v3385 = vpop.f32.mrb[0].mxu0
        %v3386 = vadd.f32 0.0, %v3385
        %v3387 = vpop.f32.mrb[0].mxu0
        %v3388 = vpop.f32.mrb[0].mxu0
        %v3389 = vadd.f32 0.0, %v3388
        %v3390 = vpop.f32.mrb[0].mxu0
        %3391 = vmatprep.mubr.bf16.mxu0 0
        %3392 = vmatmul.mubr.bf16.gmra.mrb[0].mxu0 %v3284
        %v3393 = vpop.f32.mrb[0].mxu0
        %v3394 = vadd.f32 0.0, %v3393
        %v3395 = vpop.f32.mrb[0].mxu0
        %v3396 = vpop.f32.mrb[0].mxu0
        %v3397 = vadd.f32 0.0, %v3396
        %v3398 = vpop.f32.mrb[0].mxu0
        %3399 = vmatprep.mubr.bf16.mxu0 0
        %3400 = vmatmul.mubr.bf16.gmra.mrb[0].mxu0 %v3287
        %v3401 = vpop.f32.mrb[0].mxu0
        %v3402 = vadd.f32 0.0, %v3401
        %v3403 = vpop.f32.mrb[0].mxu0
        %v3404 = vpop.f32.mrb[0].mxu0
        %v3405 = vadd.f32 0.0, %v3404
        %v3406 = vpop.f32.mrb[0].mxu0
        %3407 = vmatprep.mubr.bf16.mxu0 0
        %3408 = vmatmul.mubr.bf16.gmra.mrb[0].mxu0 %v3290
        %v3409 = vpop.f32.mrb[0].mxu0
        %v3410 = vadd.f32 0.0, %v3409
        %v3411 = vpop.f32.mrb[0].mxu0
        %v3412 = vpop.f32.mrb[0].mxu0
        %v3413 = vadd.f32 0.0, %v3412
        %v3414 = vpop.f32.mrb[0].mxu0
        %3415 = vmatprep.mubr.bf16.mxu0 0
        %3416 = vmatmul.mubr.bf16.gmra.mrb[0].mxu0 %v3293
        %v3417 = vpop.f32.mrb[0].mxu0
        %v3418 = vadd.f32 0.0, %v3417
        %v3419 = vpop.f32.mrb[0].mxu0
        %v3420 = vpop.f32.mrb[0].mxu0
        %v3421 = vadd.f32 0.0, %v3420
        %v3422 = vpop.f32.mrb[0].mxu0
        %3423 = vmatprep.mubr.bf16.mxu0 0
        %3424 = vmatmul.mubr.bf16.gmra.mrb[0].mxu0 %v3296
        %v3425 = vpop.f32.mrb[0].mxu0
        %v3426 = vadd.f32 0.0, %v3425
        %v3427 = vpop.f32.mrb[0].mxu0
        %v3428 = vpop.f32.mrb[0].mxu0
        %v3429 = vadd.f32 0.0, %v3428
        %v3430 = vpop.f32.mrb[0].mxu0
        %3431 = vmatprep.mubr.bf16.mxu0 0
        %3432 = vmatmul.mubr.bf16.gmra.mrb[0].mxu0 %v3299
        %v3433 = vpop.f32.mrb[0].mxu0
        %v3434 = vadd.f32 0.0, %v3433
        %v3435 = vpop.f32.mrb[0].mxu0
        %v3436 = vpop.f32.mrb[0].mxu0
        %v3437 = vadd.f32 0.0, %v3436
        %v3438 = vpop.f32.mrb[0].mxu0
        %3439 = vmatprep.mubr.bf16.mxu0 0
        %3440 = vmatmul.mubr.bf16.gmra.mrb[0].mxu0 %v3302
        %v3441 = vpop.f32.mrb[0].mxu0
        %v3442 = vadd.f32 0.0, %v3441
        %v3443 = vpop.f32.mrb[0].mxu0
        %v3444 = vpop.f32.mrb[0].mxu0
        %v3445 = vadd.f32 0.0, %v3444
        %v3446 = vpop.f32.mrb[0].mxu0
        %3447 = vmatprep.mubr.bf16.mxu0 0
        %3448 = vmatmul.mubr.bf16.gmra.mrb[0].mxu0 %v3305
        %v3449 = vpop.f32.mrb[0].mxu0
        %v3450 = vadd.f32 0.0, %v3449
        %v3451 = vpop.f32.mrb[0].mxu0
        %v3452 = vpop.f32.mrb[0].mxu0
        %v3453 = vadd.f32 0.0, %v3452
        %v3454 = vpop.f32.mrb[0].mxu0
        %3455 = vmatprep.mubr.bf16.mxu0 0
        %3456 = vmatmul.mubr.bf16.gmra.mrb[0].mxu0 %v3308
        %v3457 = vpop.f32.mrb[0].mxu0
        %v3458 = vadd.f32 0.0, %v3457
        %v3459 = vpop.f32.mrb[0].mxu0
        %v3460 = vpop.f32.mrb[0].mxu0
        %v3461 = vadd.f32 0.0, %v3460
        %v3462 = vpop.f32.mrb[0].mxu0
        %3463 = vmatprep.mubr.bf16.mxu0 0
        %3464 = vmatmul.mubr.bf16.gmra.mrb[0].mxu0 %v3311
        %v3465 = vpop.f32.mrb[0].mxu0
        %v3466 = vadd.f32 0.0, %v3465
        %v3467 = vpop.f32.mrb[0].mxu0
        %v3468 = vpop.f32.mrb[0].mxu0
        %v3469 = vadd.f32 0.0, %v3468
        %v3470 = vpop.f32.mrb[0].mxu0
        %3471 = vmatprep.mubr.bf16.mxu0 0
        %3472 = vmatmul.mubr.bf16.gmra.mrb[0].mxu0 %v3314
        %v3473 = vpop.f32.mrb[0].mxu0
        %v3474 = vadd.f32 0.0, %v3473
        %v3475 = vpop.f32.mrb[0].mxu0
        %v3476 = vpop.f32.mrb[0].mxu0
        %v3477 = vadd.f32 0.0, %v3476
        %v3478 = vpop.f32.mrb[0].mxu0
        %3479 = vdwg.mxu0
        %v3480 = vadd.f32 %v2754, %v3354
        %v3481 = vadd.f32 %v2755, %v3357
        %v3482 = vadd.f32 %v2756, %v3362
        %v3483 = vadd.f32 %v2757, %v3365
        %v3484 = vadd.f32 %v2758, %v3370
        %v3485 = vadd.f32 %v2759, %v3373
        %v3486 = vadd.f32 %v2760, %v3378
        %v3487 = vadd.f32 %v2761, %v3381
        %v3488 = vadd.f32 %v2762, %v3386
        %v3489 = vadd.f32 %v2763, %v3389
        %v3490 = vadd.f32 %v2764, %v3394
        %v3491 = vadd.f32 %v2765, %v3397
        %v3492 = vadd.f32 %v2766, %v3402
        %v3493 = vadd.f32 %v2767, %v3405
        %v3494 = vadd.f32 %v2768, %v3410
        %v3495 = vadd.f32 %v2769, %v3413
        %v3496 = vadd.f32 %v2770, %v3418
        %v3497 = vadd.f32 %v2771, %v3421
        %v3498 = vadd.f32 %v2772, %v3426
        %v3499 = vadd.f32 %v2773, %v3429
        %v3500 = vadd.f32 %v2774, %v3434
        %v3501 = vadd.f32 %v2775, %v3437
        %v3502 = vadd.f32 %v2776, %v3442
        %v3503 = vadd.f32 %v2777, %v3445
        %v3504 = vadd.f32 %v2778, %v3450
        %v3505 = vadd.f32 %v2779, %v3453
        %v3506 = vadd.f32 %v2780, %v3458
        %v3507 = vadd.f32 %v2781, %v3461
        %v3508 = vadd.f32 %v2782, %v3466
        %v3509 = vadd.f32 %v2783, %v3469
        %v3510 = vadd.f32 %v2784, %v3474
        %v3511 = vadd.f32 %v2785, %v3477
        %v3512 = vld [vmem:[%s742] sm:$0xe]
        %v3513 = vld [vmem:[%s742 + $0xc] sm:$0xe]
        %v3514 = vld [vmem:[%s742 + $0x18] sm:$0xe]
        %v3515 = vld [vmem:[%s742 + $0x24] sm:$0xe]
        %v3516 = vld [vmem:[%s742 + $0x30] sm:$0xe]
        %v3517 = vld [vmem:[%s742 + $0x3c] sm:$0xe]
        %v3518 = vld [vmem:[%s742 + $0x48] sm:$0xe]
        %v3519 = vld [vmem:[%s742 + $0x54] sm:$0xe]
        %v3520 = vld [vmem:[%s742 + $0x60] sm:$0xe]
        %v3521 = vld [vmem:[%s742 + $0x6c] sm:$0xe]
        %v3522 = vld [vmem:[%s742 + $0x78] sm:$0xe]
        %v3523 = vld [vmem:[%s742 + $0x84] sm:$0xe]
        %v3524 = vld [vmem:[%s742 + $0x90] sm:$0xe]
        %v3525 = vld [vmem:[%s742 + $0x9c] sm:$0xe]
        %v3526 = vld [vmem:[%s742 + $0xa8] sm:$0xe]
        %v3527 = vld [vmem:[%s742 + $0xb4] sm:$0xe]
        %v3576 = vrot.slane %v3512, 5
        %v3577 = vrot.slane %v3576, 4
        %v3578 = vrot.slane %v2787, 5
        %v3579 = vsel %vm2021, %v3577, %v3578
        %v3580 = vrot.slane %v3578, 4
        %v3581 = vrot.slane %v2788, 5
        %v3582 = vsel %vm2021, %v3580, %v3581
        %v3583 = vrot.slane %v3513, 5
        %v3584 = vrot.slane %v3583, 4
        %v3585 = vrot.slane %v2790, 5
        %v3586 = vsel %vm2021, %v3584, %v3585
        %v3587 = vrot.slane %v3585, 4
        %v3588 = vrot.slane %v2791, 5
        %v3589 = vsel %vm2021, %v3587, %v3588
        %v3590 = vrot.slane %v3514, 5
        %v3591 = vrot.slane %v3590, 4
        %v3592 = vrot.slane %v2793, 5
        %v3593 = vsel %vm2021, %v3591, %v3592
        %v3594 = vrot.slane %v3592, 4
        %v3595 = vrot.slane %v2794, 5
        %v3596 = vsel %vm2021, %v3594, %v3595
        %v3597 = vrot.slane %v3515, 5
        %v3598 = vrot.slane %v3597, 4
        %v3599 = vrot.slane %v2796, 5
        %v3600 = vsel %vm2021, %v3598, %v3599
        %v3601 = vrot.slane %v3599, 4
        %v3602 = vrot.slane %v2797, 5
        %v3603 = vsel %vm2021, %v3601, %v3602
        %v3604 = vrot.slane %v3516, 5
        %v3605 = vrot.slane %v3604, 4
        %v3606 = vrot.slane %v2799, 5
        %v3607 = vsel %vm2021, %v3605, %v3606
        %v3608 = vrot.slane %v3606, 4
        %v3609 = vrot.slane %v2800, 5
        %v3610 = vsel %vm2021, %v3608, %v3609
        %v3611 = vrot.slane %v3517, 5
        %v3612 = vrot.slane %v3611, 4
        %v3613 = vrot.slane %v2802, 5
        %v3614 = vsel %vm2021, %v3612, %v3613
        %v3615 = vrot.slane %v3613, 4
        %v3616 = vrot.slane %v2803, 5
        %v3617 = vsel %vm2021, %v3615, %v3616
        %v3618 = vrot.slane %v3518, 5
        %v3619 = vrot.slane %v3618, 4
        %v3620 = vrot.slane %v2805, 5
        %v3621 = vsel %vm2021, %v3619, %v3620
        %v3622 = vrot.slane %v3620, 4
        %v3623 = vrot.slane %v2806, 5
        %v3624 = vsel %vm2021, %v3622, %v3623
        %v3625 = vrot.slane %v3519, 5
        %v3626 = vrot.slane %v3625, 4
        %v3627 = vrot.slane %v2808, 5
        %v3628 = vsel %vm2021, %v3626, %v3627
        %v3629 = vrot.slane %v3627, 4
        %v3630 = vrot.slane %v2809, 5
        %v3631 = vsel %vm2021, %v3629, %v3630
        %v3632 = vrot.slane %v3520, 5
        %v3633 = vrot.slane %v3632, 4
        %v3634 = vrot.slane %v2811, 5
        %v3635 = vsel %vm2021, %v3633, %v3634
        %v3636 = vrot.slane %v3634, 4
        %v3637 = vrot.slane %v2812, 5
        %v3638 = vsel %vm2021, %v3636, %v3637
        %v3639 = vrot.slane %v3521, 5
        %v3640 = vrot.slane %v3639, 4
        %v3641 = vrot.slane %v2814, 5
        %v3642 = vsel %vm2021, %v3640, %v3641
        %v3643 = vrot.slane %v3641, 4
        %v3644 = vrot.slane %v2815, 5
        %v3645 = vsel %vm2021, %v3643, %v3644
        %v3646 = vrot.slane %v3522, 5
        %v3647 = vrot.slane %v3646, 4
        %v3648 = vrot.slane %v2817, 5
        %v3649 = vsel %vm2021, %v3647, %v3648
        %v3650 = vrot.slane %v3648, 4
        %v3651 = vrot.slane %v2818, 5
        %v3652 = vsel %vm2021, %v3650, %v3651
        %v3653 = vrot.slane %v3523, 5
        %v3654 = vrot.slane %v3653, 4
        %v3655 = vrot.slane %v2820, 5
        %v3656 = vsel %vm2021, %v3654, %v3655
        %v3657 = vrot.slane %v3655, 4
        %v3658 = vrot.slane %v2821, 5
        %v3659 = vsel %vm2021, %v3657, %v3658
        %v3660 = vrot.slane %v3524, 5
        %v3661 = vrot.slane %v3660, 4
        %v3662 = vrot.slane %v2823, 5
        %v3663 = vsel %vm2021, %v3661, %v3662
        %v3664 = vrot.slane %v3662, 4
        %v3665 = vrot.slane %v2824, 5
        %v3666 = vsel %vm2021, %v3664, %v3665
        %v3667 = vrot.slane %v3525, 5
        %v3668 = vrot.slane %v3667, 4
        %v3669 = vrot.slane %v2826, 5
        %v3670 = vsel %vm2021, %v3668, %v3669
        %v3671 = vrot.slane %v3669, 4
        %v3672 = vrot.slane %v2827, 5
        %v3673 = vsel %vm2021, %v3671, %v3672
        %v3674 = vrot.slane %v3526, 5
        %v3675 = vrot.slane %v3674, 4
        %v3676 = vrot.slane %v2829, 5
        %v3677 = vsel %vm2021, %v3675, %v3676
        %v3678 = vrot.slane %v3676, 4
        %v3679 = vrot.slane %v2830, 5
        %v3680 = vsel %vm2021, %v3678, %v3679
        %v3681 = vrot.slane %v3527, 5
        %v3682 = vrot.slane %v3681, 4
        %v3683 = vrot.slane %v2832, 5
        %v3684 = vsel %vm2021, %v3682, %v3683
        %v3685 = vrot.slane %v3683, 4
        %v3686 = vrot.slane %v2833, 5
        %v3687 = vsel %vm2021, %v3685, %v3686
        %s3688 = scalar_lea.vmem %s1, 20
        %v3689 = vld [vmem:[%s3688] sm:$0xf]
        %v3690 = vunpack.c.l.b16 %v3579
        %v3691 = vunpack.c.l.b16 %v3582
        %v3692 = vunpack.c.l.b16 %v3586
        %v3693 = vunpack.c.l.b16 %v3589
        %v3694 = vunpack.c.l.b16 %v3593
        %v3695 = vunpack.c.l.b16 %v3596
        %v3696 = vunpack.c.l.b16 %v3600
        %v3697 = vunpack.c.l.b16 %v3603
        %v3698 = vunpack.c.l.b16 %v3607
        %v3699 = vunpack.c.l.b16 %v3610
        %v3700 = vunpack.c.l.b16 %v3614
        %v3701 = vunpack.c.l.b16 %v3617
        %v3702 = vunpack.c.l.b16 %v3621
        %v3703 = vunpack.c.l.b16 %v3624
        %v3704 = vunpack.c.l.b16 %v3628
        %v3705 = vunpack.c.l.b16 %v3631
        %v3706 = vunpack.c.l.b16 %v3635
        %v3707 = vunpack.c.l.b16 %v3638
        %v3708 = vunpack.c.l.b16 %v3642
        %v3709 = vunpack.c.l.b16 %v3645
        %v3710 = vunpack.c.l.b16 %v3649
        %v3711 = vunpack.c.l.b16 %v3652
        %v3712 = vunpack.c.l.b16 %v3656
        %v3713 = vunpack.c.l.b16 %v3659
        %v3714 = vunpack.c.l.b16 %v3663
        %v3715 = vunpack.c.l.b16 %v3666
        %v3716 = vunpack.c.l.b16 %v3670
        %v3717 = vunpack.c.l.b16 %v3673
        %v3718 = vunpack.c.l.b16 %v3677
        %v3719 = vunpack.c.l.b16 %v3680
        %v3720 = vunpack.c.l.b16 %v3684
        %v3721 = vunpack.c.l.b16 %v3687
        %v3722 = vpack.c.b16 %v3691, %v3690
        %v3723 = vpack.c.b16 %v3693, %v3692
        %v3724 = vpack.c.b16 %v3695, %v3694
        %v3725 = vpack.c.b16 %v3697, %v3696
        %v3726 = vpack.c.b16 %v3699, %v3698
        %v3727 = vpack.c.b16 %v3701, %v3700
        %v3728 = vpack.c.b16 %v3703, %v3702
        %v3729 = vpack.c.b16 %v3705, %v3704
        %v3730 = vpack.c.b16 %v3707, %v3706
        %v3731 = vpack.c.b16 %v3709, %v3708
        %v3732 = vpack.c.b16 %v3711, %v3710
        %v3733 = vpack.c.b16 %v3713, %v3712
        %v3734 = vpack.c.b16 %v3715, %v3714
        %v3735 = vpack.c.b16 %v3717, %v3716
        %v3736 = vpack.c.b16 %v3719, %v3718
        %v3737 = vpack.c.b16 %v3721, %v3720
        %v3739 = vsel %vm980, %v3722, 0
        %v3742 = vsel %vm980, %v3723, 0
        %v3745 = vsel %vm980, %v3724, 0
        %v3748 = vsel %vm980, %v3725, 0
        %v3751 = vsel %vm980, %v3726, 0
        %v3754 = vsel %vm980, %v3727, 0
        %v3757 = vsel %vm980, %v3728, 0
        %v3760 = vsel %vm980, %v3729, 0
        %v3763 = vsel %vm980, %v3730, 0
        %v3766 = vsel %vm980, %v3731, 0
        %v3769 = vsel %vm980, %v3732, 0
        %v3772 = vsel %vm980, %v3733, 0
        %v3775 = vsel %vm980, %v3734, 0
        %v3778 = vsel %vm980, %v3735, 0
        %v3781 = vsel %vm980, %v3736, 0
        %v3784 = vsel %vm980, %v3737, 0
        %v3787 = vsel %vm1029, %v3689, 0
        %3789 = vmatprep.subr.bf16.mxu0 0
        %3790 = vmatpush1.bf16.msra.mxu0 %v3787
        %3791 = vmatprep.subr.bf16.mxu0 0
        %3792 = vmatpush1.bf16.msra.mxu0 0
        %3793 = vmatprep.subr.bf16.mxu0 0
        %3794 = vmatpush1.bf16.msra.mxu0 0
        %3795 = vmatprep.subr.bf16.mxu0 0
        %3796 = vmatpush1.bf16.msra.mxu0 0
        %3797 = vmatprep.subr.bf16.mxu0 0
        %3798 = vmatpush1.bf16.msra.mxu0 0
        %3799 = vmatprep.subr.bf16.mxu0 0
        %3800 = vmatpush1.bf16.msra.mxu0 0
        %3801 = vmatprep.subr.bf16.mxu0 0
        %3802 = vmatpush1.bf16.msra.mxu0 0
        %3803 = vmatprep.subr.bf16.mxu0 0
        %3804 = vmatpush1.bf16.msra.mxu0 0
        %3805 = vmatprep.subr.bf16.mxu0 0
        %3806 = vmatpush1.bf16.msra.mxu0 0
        %3807 = vmatprep.subr.bf16.mxu0 0
        %3808 = vmatpush1.bf16.msra.mxu0 0
        %3809 = vmatprep.subr.bf16.mxu0 0
        %3810 = vmatpush1.bf16.msra.mxu0 0
        %3811 = vmatprep.subr.bf16.mxu0 0
        %3812 = vmatpush1.bf16.msra.mxu0 0
        %3813 = vmatprep.subr.bf16.mxu0 0
        %3814 = vmatpush1.bf16.msra.mxu0 0
        %3815 = vmatprep.subr.bf16.mxu0 0
        %3816 = vmatpush1.bf16.msra.mxu0 0
        %3817 = vmatprep.subr.bf16.mxu0 0
        %3818 = vmatpush1.bf16.msra.mxu0 0
        %3819 = vmatprep.subr.bf16.mxu0 0
        %3820 = vmatpush1.bf16.msra.mxu0 0
        %3821 = vmatprep.mubr.bf16.mxu0 0
        %3822 = vmatmul.mubr.bf16.gmra.mrb[0].mxu0 %v3739
        %v3823 = vpop.f32.mrb[0].mxu0
        %v3824 = vadd.f32 0.0, %v3823
        %v3825 = vpop.f32.mrb[0].mxu0
        %v3826 = vpop.f32.mrb[0].mxu0
        %v3827 = vadd.f32 0.0, %v3826
        %v3828 = vpop.f32.mrb[0].mxu0
        %3829 = vmatprep.mubr.bf16.mxu0 0
        %3830 = vmatmul.mubr.bf16.gmra.mrb[0].mxu0 %v3742
        %v3831 = vpop.f32.mrb[0].mxu0
        %v3832 = vadd.f32 0.0, %v3831
        %v3833 = vpop.f32.mrb[0].mxu0
        %v3834 = vpop.f32.mrb[0].mxu0
        %v3835 = vadd.f32 0.0, %v3834
        %v3836 = vpop.f32.mrb[0].mxu0
        %3837 = vmatprep.mubr.bf16.mxu0 0
        %3838 = vmatmul.mubr.bf16.gmra.mrb[0].mxu0 %v3745
        %v3839 = vpop.f32.mrb[0].mxu0
        %v3840 = vadd.f32 0.0, %v3839
        %v3841 = vpop.f32.mrb[0].mxu0
        %v3842 = vpop.f32.mrb[0].mxu0
        %v3843 = vadd.f32 0.0, %v3842
        %v3844 = vpop.f32.mrb[0].mxu0
        %3845 = vmatprep.mubr.bf16.mxu0 0
        %3846 = vmatmul.mubr.bf16.gmra.mrb[0].mxu0 %v3748
        %v3847 = vpop.f32.mrb[0].mxu0
        %v3848 = vadd.f32 0.0, %v3847
        %v3849 = vpop.f32.mrb[0].mxu0
        %v3850 = vpop.f32.mrb[0].mxu0
        %v3851 = vadd.f32 0.0, %v3850
        %v3852 = vpop.f32.mrb[0].mxu0
        %3853 = vmatprep.mubr.bf16.mxu0 0
        %3854 = vmatmul.mubr.bf16.gmra.mrb[0].mxu0 %v3751
        %v3855 = vpop.f32.mrb[0].mxu0
        %v3856 = vadd.f32 0.0, %v3855
        %v3857 = vpop.f32.mrb[0].mxu0
        %v3858 = vpop.f32.mrb[0].mxu0
        %v3859 = vadd.f32 0.0, %v3858
        %v3860 = vpop.f32.mrb[0].mxu0
        %3861 = vmatprep.mubr.bf16.mxu0 0
        %3862 = vmatmul.mubr.bf16.gmra.mrb[0].mxu0 %v3754
        %v3863 = vpop.f32.mrb[0].mxu0
        %v3864 = vadd.f32 0.0, %v3863
        %v3865 = vpop.f32.mrb[0].mxu0
        %v3866 = vpop.f32.mrb[0].mxu0
        %v3867 = vadd.f32 0.0, %v3866
        %v3868 = vpop.f32.mrb[0].mxu0
        %3869 = vmatprep.mubr.bf16.mxu0 0
        %3870 = vmatmul.mubr.bf16.gmra.mrb[0].mxu0 %v3757
        %v3871 = vpop.f32.mrb[0].mxu0
        %v3872 = vadd.f32 0.0, %v3871
        %v3873 = vpop.f32.mrb[0].mxu0
        %v3874 = vpop.f32.mrb[0].mxu0
        %v3875 = vadd.f32 0.0, %v3874
        %v3876 = vpop.f32.mrb[0].mxu0
        %3877 = vmatprep.mubr.bf16.mxu0 0
        %3878 = vmatmul.mubr.bf16.gmra.mrb[0].mxu0 %v3760
        %v3879 = vpop.f32.mrb[0].mxu0
        %v3880 = vadd.f32 0.0, %v3879
        %v3881 = vpop.f32.mrb[0].mxu0
        %v3882 = vpop.f32.mrb[0].mxu0
        %v3883 = vadd.f32 0.0, %v3882
        %v3884 = vpop.f32.mrb[0].mxu0
        %3885 = vmatprep.mubr.bf16.mxu0 0
        %3886 = vmatmul.mubr.bf16.gmra.mrb[0].mxu0 %v3763
        %v3887 = vpop.f32.mrb[0].mxu0
        %v3888 = vadd.f32 0.0, %v3887
        %v3889 = vpop.f32.mrb[0].mxu0
        %v3890 = vpop.f32.mrb[0].mxu0
        %v3891 = vadd.f32 0.0, %v3890
        %v3892 = vpop.f32.mrb[0].mxu0
        %3893 = vmatprep.mubr.bf16.mxu0 0
        %3894 = vmatmul.mubr.bf16.gmra.mrb[0].mxu0 %v3766
        %v3895 = vpop.f32.mrb[0].mxu0
        %v3896 = vadd.f32 0.0, %v3895
        %v3897 = vpop.f32.mrb[0].mxu0
        %v3898 = vpop.f32.mrb[0].mxu0
        %v3899 = vadd.f32 0.0, %v3898
        %v3900 = vpop.f32.mrb[0].mxu0
        %3901 = vmatprep.mubr.bf16.mxu0 0
        %3902 = vmatmul.mubr.bf16.gmra.mrb[0].mxu0 %v3769
        %v3903 = vpop.f32.mrb[0].mxu0
        %v3904 = vadd.f32 0.0, %v3903
        %v3905 = vpop.f32.mrb[0].mxu0
        %v3906 = vpop.f32.mrb[0].mxu0
        %v3907 = vadd.f32 0.0, %v3906
        %v3908 = vpop.f32.mrb[0].mxu0
        %3909 = vmatprep.mubr.bf16.mxu0 0
        %3910 = vmatmul.mubr.bf16.gmra.mrb[0].mxu0 %v3772
        %v3911 = vpop.f32.mrb[0].mxu0
        %v3912 = vadd.f32 0.0, %v3911
        %v3913 = vpop.f32.mrb[0].mxu0
        %v3914 = vpop.f32.mrb[0].mxu0
        %v3915 = vadd.f32 0.0, %v3914
        %v3916 = vpop.f32.mrb[0].mxu0
        %3917 = vmatprep.mubr.bf16.mxu0 0
        %3918 = vmatmul.mubr.bf16.gmra.mrb[0].mxu0 %v3775
        %v3919 = vpop.f32.mrb[0].mxu0
        %v3920 = vadd.f32 0.0, %v3919
        %v3921 = vpop.f32.mrb[0].mxu0
        %v3922 = vpop.f32.mrb[0].mxu0
        %v3923 = vadd.f32 0.0, %v3922
        %v3924 = vpop.f32.mrb[0].mxu0
        %3925 = vmatprep.mubr.bf16.mxu0 0
        %3926 = vmatmul.mubr.bf16.gmra.mrb[0].mxu0 %v3778
        %v3927 = vpop.f32.mrb[0].mxu0
        %v3928 = vadd.f32 0.0, %v3927
        %v3929 = vpop.f32.mrb[0].mxu0
        %v3930 = vpop.f32.mrb[0].mxu0
        %v3931 = vadd.f32 0.0, %v3930
        %v3932 = vpop.f32.mrb[0].mxu0
        %3933 = vmatprep.mubr.bf16.mxu0 0
        %3934 = vmatmul.mubr.bf16.gmra.mrb[0].mxu0 %v3781
        %v3935 = vpop.f32.mrb[0].mxu0
        %v3936 = vadd.f32 0.0, %v3935
        %v3937 = vpop.f32.mrb[0].mxu0
        %v3938 = vpop.f32.mrb[0].mxu0
        %v3939 = vadd.f32 0.0, %v3938
        %v3940 = vpop.f32.mrb[0].mxu0
        %3941 = vmatprep.mubr.bf16.mxu0 0
        %3942 = vmatmul.mubr.bf16.gmra.mrb[0].mxu0 %v3784
        %v3943 = vpop.f32.mrb[0].mxu0
        %v3944 = vadd.f32 0.0, %v3943
        %v3945 = vpop.f32.mrb[0].mxu0
        %v3946 = vpop.f32.mrb[0].mxu0
        %v3947 = vadd.f32 0.0, %v3946
        %v3948 = vpop.f32.mrb[0].mxu0
        %3949 = vdwg.mxu0
        %v3950 = vadd.f32 %v3480, %v3824
        %v3951 = vadd.f32 %v3481, %v3827
        %v3952 = vadd.f32 %v3482, %v3832
        %v3953 = vadd.f32 %v3483, %v3835
        %v3954 = vadd.f32 %v3484, %v3840
        %v3955 = vadd.f32 %v3485, %v3843
        %v3956 = vadd.f32 %v3486, %v3848
        %v3957 = vadd.f32 %v3487, %v3851
        %v3958 = vadd.f32 %v3488, %v3856
        %v3959 = vadd.f32 %v3489, %v3859
        %v3960 = vadd.f32 %v3490, %v3864
        %v3961 = vadd.f32 %v3491, %v3867
        %v3962 = vadd.f32 %v3492, %v3872
        %v3963 = vadd.f32 %v3493, %v3875
        %v3964 = vadd.f32 %v3494, %v3880
        %v3965 = vadd.f32 %v3495, %v3883
        %v3966 = vadd.f32 %v3496, %v3888
        %v3967 = vadd.f32 %v3497, %v3891
        %v3968 = vadd.f32 %v3498, %v3896
        %v3969 = vadd.f32 %v3499, %v3899
        %v3970 = vadd.f32 %v3500, %v3904
        %v3971 = vadd.f32 %v3501, %v3907
        %v3972 = vadd.f32 %v3502, %v3912
        %v3973 = vadd.f32 %v3503, %v3915
        %v3974 = vadd.f32 %v3504, %v3920
        %v3975 = vadd.f32 %v3505, %v3923
        %v3976 = vadd.f32 %v3506, %v3928
        %v3977 = vadd.f32 %v3507, %v3931
        %v3978 = vadd.f32 %v3508, %v3936
        %v3979 = vadd.f32 %v3509, %v3939
        %v3980 = vadd.f32 %v3510, %v3944
        %v3981 = vadd.f32 %v3511, %v3947
        %s3982 = scalar_lea.vmem [#allocation2], 24
        %v3983 = vld [vmem:[%s3982] sm:$0xf]
        %v3984 = vld [vmem:[%s3982 + $0x4] sm:$0xf]
        %v3985 = vld [vmem:[%s3982 + $0xc] sm:$0xf]
        %v3986 = vld [vmem:[%s3982 + $0x10] sm:$0xf]
        %v3987 = vld [vmem:[%s3982 + $0x18] sm:$0xf]
        %v3988 = vld [vmem:[%s3982 + $0x1c] sm:$0xf]
        %v3989 = vld [vmem:[%s3982 + $0x24] sm:$0xf]
        %v3990 = vld [vmem:[%s3982 + $0x28] sm:$0xf]
        %v3991 = vld [vmem:[%s3982 + $0x30] sm:$0xf]
        %v3992 = vld [vmem:[%s3982 + $0x34] sm:$0xf]
        %v3993 = vld [vmem:[%s3982 + $0x3c] sm:$0xf]
        %v3994 = vld [vmem:[%s3982 + $0x40] sm:$0xf]
        %v3995 = vld [vmem:[%s3982 + $0x48] sm:$0xf]
        %v3996 = vld [vmem:[%s3982 + $0x4c] sm:$0xf]
        %v3997 = vld [vmem:[%s3982 + $0x54] sm:$0xf]
        %v3998 = vld [vmem:[%s3982 + $0x58] sm:$0xf]
        %v3999 = vld [vmem:[%s3982 + $0x60] sm:$0xf]
        %v4000 = vld [vmem:[%s3982 + $0x64] sm:$0xf]
        %v4001 = vld [vmem:[%s3982 + $0x6c] sm:$0xf]
        %v4002 = vld [vmem:[%s3982 + $0x70] sm:$0xf]
        %v4003 = vld [vmem:[%s3982 + $0x78] sm:$0xf]
        %v4004 = vld [vmem:[%s3982 + $0x7c] sm:$0xf]
        %v4005 = vld [vmem:[%s3982 + $0x84] sm:$0xf]
        %v4006 = vld [vmem:[%s3982 + $0x88] sm:$0xf]
        %v4007 = vld [vmem:[%s3982 + $0x90] sm:$0xf]
        %v4008 = vld [vmem:[%s3982 + $0x94] sm:$0xf]
        %v4009 = vld [vmem:[%s3982 + $0x9c] sm:$0xf]
        %v4010 = vld [vmem:[%s3982 + $0xa0] sm:$0xf]
        %v4011 = vld [vmem:[%s3982 + $0xa8] sm:$0xf]
        %v4012 = vld [vmem:[%s3982 + $0xac] sm:$0xf]
        %v4013 = vld [vmem:[%s3982 + $0xb4] sm:$0xf]
        %v4014 = vld [vmem:[%s3982 + $0xb8] sm:$0xf]
        %s4015 = scalar_lea.vmem %s1, 24
        %v4016 = vld [vmem:[%s4015] sm:$0xf]
        %v4049 = vunpack.c.l.b16 %v3983
        %v4050 = vunpack.c.l.b16 %v3984
        %v4051 = vunpack.c.l.b16 %v3985
        %v4052 = vunpack.c.l.b16 %v3986
        %v4053 = vunpack.c.l.b16 %v3987
        %v4054 = vunpack.c.l.b16 %v3988
        %v4055 = vunpack.c.l.b16 %v3989
        %v4056 = vunpack.c.l.b16 %v3990
        %v4057 = vunpack.c.l.b16 %v3991
        %v4058 = vunpack.c.l.b16 %v3992
        %v4059 = vunpack.c.l.b16 %v3993
        %v4060 = vunpack.c.l.b16 %v3994
        %v4061 = vunpack.c.l.b16 %v3995
        %v4062 = vunpack.c.l.b16 %v3996
        %v4063 = vunpack.c.l.b16 %v3997
        %v4064 = vunpack.c.l.b16 %v3998
        %v4065 = vunpack.c.l.b16 %v3999
        %v4066 = vunpack.c.l.b16 %v4000
        %v4067 = vunpack.c.l.b16 %v4001
        %v4068 = vunpack.c.l.b16 %v4002
        %v4069 = vunpack.c.l.b16 %v4003
        %v4070 = vunpack.c.l.b16 %v4004
        %v4071 = vunpack.c.l.b16 %v4005
        %v4072 = vunpack.c.l.b16 %v4006
        %v4073 = vunpack.c.l.b16 %v4007
        %v4074 = vunpack.c.l.b16 %v4008
        %v4075 = vunpack.c.l.b16 %v4009
        %v4076 = vunpack.c.l.b16 %v4010
        %v4077 = vunpack.c.l.b16 %v4011
        %v4078 = vunpack.c.l.b16 %v4012
        %v4079 = vunpack.c.l.b16 %v4013
        %v4080 = vunpack.c.l.b16 %v4014
        %v4081 = vpack.c.b16 %v4050, %v4049
        %v4082 = vpack.c.b16 %v4052, %v4051
        %v4083 = vpack.c.b16 %v4054, %v4053
        %v4084 = vpack.c.b16 %v4056, %v4055
        %v4085 = vpack.c.b16 %v4058, %v4057
        %v4086 = vpack.c.b16 %v4060, %v4059
        %v4087 = vpack.c.b16 %v4062, %v4061
        %v4088 = vpack.c.b16 %v4064, %v4063
        %v4089 = vpack.c.b16 %v4066, %v4065
        %v4090 = vpack.c.b16 %v4068, %v4067
        %v4091 = vpack.c.b16 %v4070, %v4069
        %v4092 = vpack.c.b16 %v4072, %v4071
        %v4093 = vpack.c.b16 %v4074, %v4073
        %v4094 = vpack.c.b16 %v4076, %v4075
        %v4095 = vpack.c.b16 %v4078, %v4077
        %v4096 = vpack.c.b16 %v4080, %v4079
        %v4098 = vsel %vm980, %v4081, 0
        %v4101 = vsel %vm980, %v4082, 0
        %v4104 = vsel %vm980, %v4083, 0
        %v4107 = vsel %vm980, %v4084, 0
        %v4110 = vsel %vm980, %v4085, 0
        %v4113 = vsel %vm980, %v4086, 0
        %v4116 = vsel %vm980, %v4087, 0
        %v4119 = vsel %vm980, %v4088, 0
        %v4122 = vsel %vm980, %v4089, 0
        %v4125 = vsel %vm980, %v4090, 0
        %v4128 = vsel %vm980, %v4091, 0
        %v4131 = vsel %vm980, %v4092, 0
        %v4134 = vsel %vm980, %v4093, 0
        %v4137 = vsel %vm980, %v4094, 0
        %v4140 = vsel %vm980, %v4095, 0
        %v4143 = vsel %vm980, %v4096, 0
        %v4146 = vsel %vm1029, %v4016, 0
        %4148 = vmatprep.subr.bf16.mxu0 0
        %4149 = vmatpush1.bf16.msra.mxu0 %v4146
        %4150 = vmatprep.subr.bf16.mxu0 0
        %4151 = vmatpush1.bf16.msra.mxu0 0
        %4152 = vmatprep.subr.bf16.mxu0 0
        %4153 = vmatpush1.bf16.msra.mxu0 0
        %4154 = vmatprep.subr.bf16.mxu0 0
        %4155 = vmatpush1.bf16.msra.mxu0 0
        %4156 = vmatprep.subr.bf16.mxu0 0
        %4157 = vmatpush1.bf16.msra.mxu0 0
        %4158 = vmatprep.subr.bf16.mxu0 0
        %4159 = vmatpush1.bf16.msra.mxu0 0
        %4160 = vmatprep.subr.bf16.mxu0 0
        %4161 = vmatpush1.bf16.msra.mxu0 0
        %4162 = vmatprep.subr.bf16.mxu0 0
        %4163 = vmatpush1.bf16.msra.mxu0 0
        %4164 = vmatprep.subr.bf16.mxu0 0
        %4165 = vmatpush1.bf16.msra.mxu0 0
        %4166 = vmatprep.subr.bf16.mxu0 0
        %4167 = vmatpush1.bf16.msra.mxu0 0
        %4168 = vmatprep.subr.bf16.mxu0 0
        %4169 = vmatpush1.bf16.msra.mxu0 0
        %4170 = vmatprep.subr.bf16.mxu0 0
        %4171 = vmatpush1.bf16.msra.mxu0 0
        %4172 = vmatprep.subr.bf16.mxu0 0
        %4173 = vmatpush1.bf16.msra.mxu0 0
        %4174 = vmatprep.subr.bf16.mxu0 0
        %4175 = vmatpush1.bf16.msra.mxu0 0
        %4176 = vmatprep.subr.bf16.mxu0 0
        %4177 = vmatpush1.bf16.msra.mxu0 0
        %4178 = vmatprep.subr.bf16.mxu0 0
        %4179 = vmatpush1.bf16.msra.mxu0 0
        %4180 = vmatprep.mubr.bf16.mxu0 0
        %4181 = vmatmul.mubr.bf16.gmra.mrb[0].mxu0 %v4098
        %v4182 = vpop.f32.mrb[0].mxu0
        %v4183 = vadd.f32 0.0, %v4182
        %v4184 = vpop.f32.mrb[0].mxu0
        %v4185 = vpop.f32.mrb[0].mxu0
        %v4186 = vadd.f32 0.0, %v4185
        %v4187 = vpop.f32.mrb[0].mxu0
        %4188 = vmatprep.mubr.bf16.mxu0 0
        %4189 = vmatmul.mubr.bf16.gmra.mrb[0].mxu0 %v4101
        %v4190 = vpop.f32.mrb[0].mxu0
        %v4191 = vadd.f32 0.0, %v4190
        %v4192 = vpop.f32.mrb[0].mxu0
        %v4193 = vpop.f32.mrb[0].mxu0
        %v4194 = vadd.f32 0.0, %v4193
        %v4195 = vpop.f32.mrb[0].mxu0
        %4196 = vmatprep.mubr.bf16.mxu0 0
        %4197 = vmatmul.mubr.bf16.gmra.mrb[0].mxu0 %v4104
        %v4198 = vpop.f32.mrb[0].mxu0
        %v4199 = vadd.f32 0.0, %v4198
        %v4200 = vpop.f32.mrb[0].mxu0
        %v4201 = vpop.f32.mrb[0].mxu0
        %v4202 = vadd.f32 0.0, %v4201
        %v4203 = vpop.f32.mrb[0].mxu0
        %4204 = vmatprep.mubr.bf16.mxu0 0
        %4205 = vmatmul.mubr.bf16.gmra.mrb[0].mxu0 %v4107
        %v4206 = vpop.f32.mrb[0].mxu0
        %v4207 = vadd.f32 0.0, %v4206
        %v4208 = vpop.f32.mrb[0].mxu0
        %v4209 = vpop.f32.mrb[0].mxu0
        %v4210 = vadd.f32 0.0, %v4209
        %v4211 = vpop.f32.mrb[0].mxu0
        %4212 = vmatprep.mubr.bf16.mxu0 0
        %4213 = vmatmul.mubr.bf16.gmra.mrb[0].mxu0 %v4110
        %v4214 = vpop.f32.mrb[0].mxu0
        %v4215 = vadd.f32 0.0, %v4214
        %v4216 = vpop.f32.mrb[0].mxu0
        %v4217 = vpop.f32.mrb[0].mxu0
        %v4218 = vadd.f32 0.0, %v4217
        %v4219 = vpop.f32.mrb[0].mxu0
        %4220 = vmatprep.mubr.bf16.mxu0 0
        %4221 = vmatmul.mubr.bf16.gmra.mrb[0].mxu0 %v4113
        %v4222 = vpop.f32.mrb[0].mxu0
        %v4223 = vadd.f32 0.0, %v4222
        %v4224 = vpop.f32.mrb[0].mxu0
        %v4225 = vpop.f32.mrb[0].mxu0
        %v4226 = vadd.f32 0.0, %v4225
        %v4227 = vpop.f32.mrb[0].mxu0
        %4228 = vmatprep.mubr.bf16.mxu0 0
        %4229 = vmatmul.mubr.bf16.gmra.mrb[0].mxu0 %v4116
        %v4230 = vpop.f32.mrb[0].mxu0
        %v4231 = vadd.f32 0.0, %v4230
        %v4232 = vpop.f32.mrb[0].mxu0
        %v4233 = vpop.f32.mrb[0].mxu0
        %v4234 = vadd.f32 0.0, %v4233
        %v4235 = vpop.f32.mrb[0].mxu0
        %4236 = vmatprep.mubr.bf16.mxu0 0
        %4237 = vmatmul.mubr.bf16.gmra.mrb[0].mxu0 %v4119
        %v4238 = vpop.f32.mrb[0].mxu0
        %v4239 = vadd.f32 0.0, %v4238
        %v4240 = vpop.f32.mrb[0].mxu0
        %v4241 = vpop.f32.mrb[0].mxu0
        %v4242 = vadd.f32 0.0, %v4241
        %v4243 = vpop.f32.mrb[0].mxu0
        %4244 = vmatprep.mubr.bf16.mxu0 0
        %4245 = vmatmul.mubr.bf16.gmra.mrb[0].mxu0 %v4122
        %v4246 = vpop.f32.mrb[0].mxu0
        %v4247 = vadd.f32 0.0, %v4246
        %v4248 = vpop.f32.mrb[0].mxu0
        %v4249 = vpop.f32.mrb[0].mxu0
        %v4250 = vadd.f32 0.0, %v4249
        %v4251 = vpop.f32.mrb[0].mxu0
        %4252 = vmatprep.mubr.bf16.mxu0 0
        %4253 = vmatmul.mubr.bf16.gmra.mrb[0].mxu0 %v4125
        %v4254 = vpop.f32.mrb[0].mxu0
        %v4255 = vadd.f32 0.0, %v4254
        %v4256 = vpop.f32.mrb[0].mxu0
        %v4257 = vpop.f32.mrb[0].mxu0
        %v4258 = vadd.f32 0.0, %v4257
        %v4259 = vpop.f32.mrb[0].mxu0
        %4260 = vmatprep.mubr.bf16.mxu0 0
        %4261 = vmatmul.mubr.bf16.gmra.mrb[0].mxu0 %v4128
        %v4262 = vpop.f32.mrb[0].mxu0
        %v4263 = vadd.f32 0.0, %v4262
        %v4264 = vpop.f32.mrb[0].mxu0
        %v4265 = vpop.f32.mrb[0].mxu0
        %v4266 = vadd.f32 0.0, %v4265
        %v4267 = vpop.f32.mrb[0].mxu0
        %4268 = vmatprep.mubr.bf16.mxu0 0
        %4269 = vmatmul.mubr.bf16.gmra.mrb[0].mxu0 %v4131
        %v4270 = vpop.f32.mrb[0].mxu0
        %v4271 = vadd.f32 0.0, %v4270
        %v4272 = vpop.f32.mrb[0].mxu0
        %v4273 = vpop.f32.mrb[0].mxu0
        %v4274 = vadd.f32 0.0, %v4273
        %v4275 = vpop.f32.mrb[0].mxu0
        %4276 = vmatprep.mubr.bf16.mxu0 0
        %4277 = vmatmul.mubr.bf16.gmra.mrb[0].mxu0 %v4134
        %v4278 = vpop.f32.mrb[0].mxu0
        %v4279 = vadd.f32 0.0, %v4278
        %v4280 = vpop.f32.mrb[0].mxu0
        %v4281 = vpop.f32.mrb[0].mxu0
        %v4282 = vadd.f32 0.0, %v4281
        %v4283 = vpop.f32.mrb[0].mxu0
        %4284 = vmatprep.mubr.bf16.mxu0 0
        %4285 = vmatmul.mubr.bf16.gmra.mrb[0].mxu0 %v4137
        %v4286 = vpop.f32.mrb[0].mxu0
        %v4287 = vadd.f32 0.0, %v4286
        %v4288 = vpop.f32.mrb[0].mxu0
        %v4289 = vpop.f32.mrb[0].mxu0
        %v4290 = vadd.f32 0.0, %v4289
        %v4291 = vpop.f32.mrb[0].mxu0
        %4292 = vmatprep.mubr.bf16.mxu0 0
        %4293 = vmatmul.mubr.bf16.gmra.mrb[0].mxu0 %v4140
        %v4294 = vpop.f32.mrb[0].mxu0
        %v4295 = vadd.f32 0.0, %v4294
        %v4296 = vpop.f32.mrb[0].mxu0
        %v4297 = vpop.f32.mrb[0].mxu0
        %v4298 = vadd.f32 0.0, %v4297
        %v4299 = vpop.f32.mrb[0].mxu0
        %4300 = vmatprep.mubr.bf16.mxu0 0
        %4301 = vmatmul.mubr.bf16.gmra.mrb[0].mxu0 %v4143
        %v4302 = vpop.f32.mrb[0].mxu0
        %v4303 = vadd.f32 0.0, %v4302
        %v4304 = vpop.f32.mrb[0].mxu0
        %v4305 = vpop.f32.mrb[0].mxu0
        %v4306 = vadd.f32 0.0, %v4305
        %v4307 = vpop.f32.mrb[0].mxu0
        %4308 = vdwg.mxu0
        %v4309 = vadd.f32 %v3950, %v4183
        %v4310 = vadd.f32 %v3951, %v4186
        %v4311 = vadd.f32 %v3952, %v4191
        %v4312 = vadd.f32 %v3953, %v4194
        %v4313 = vadd.f32 %v3954, %v4199
        %v4314 = vadd.f32 %v3955, %v4202
        %v4315 = vadd.f32 %v3956, %v4207
        %v4316 = vadd.f32 %v3957, %v4210
        %v4317 = vadd.f32 %v3958, %v4215
        %v4318 = vadd.f32 %v3959, %v4218
        %v4319 = vadd.f32 %v3960, %v4223
        %v4320 = vadd.f32 %v3961, %v4226
        %v4321 = vadd.f32 %v3962, %v4231
        %v4322 = vadd.f32 %v3963, %v4234
        %v4323 = vadd.f32 %v3964, %v4239
        %v4324 = vadd.f32 %v3965, %v4242
        %v4325 = vadd.f32 %v3966, %v4247
        %v4326 = vadd.f32 %v3967, %v4250
        %v4327 = vadd.f32 %v3968, %v4255
        %v4328 = vadd.f32 %v3969, %v4258
        %v4329 = vadd.f32 %v3970, %v4263
        %v4330 = vadd.f32 %v3971, %v4266
        %v4331 = vadd.f32 %v3972, %v4271
        %v4332 = vadd.f32 %v3973, %v4274
        %v4333 = vadd.f32 %v3974, %v4279
        %v4334 = vadd.f32 %v3975, %v4282
        %v4335 = vadd.f32 %v3976, %v4287
        %v4336 = vadd.f32 %v3977, %v4290
        %v4337 = vadd.f32 %v3978, %v4295
        %v4338 = vadd.f32 %v3979, %v4298
        %v4339 = vadd.f32 %v3980, %v4303
        %v4340 = vadd.f32 %v3981, %v4306
        %v4341 = vld [vmem:[%s3982] sm:$0xf]
        %v4342 = vld [vmem:[%s3982 + $0x4] sm:$0xf]
        %v4343 = vld [vmem:[%s3982 + $0x8] sm:$0x1]
        %v4344 = vld [vmem:[%s3982 + $0xc] sm:$0xf]
        %v4345 = vld [vmem:[%s3982 + $0x10] sm:$0xf]
        %v4346 = vld [vmem:[%s3982 + $0x14] sm:$0x1]
        %v4347 = vld [vmem:[%s3982 + $0x18] sm:$0xf]
        %v4348 = vld [vmem:[%s3982 + $0x1c] sm:$0xf]
        %v4349 = vld [vmem:[%s3982 + $0x20] sm:$0x1]
        %v4350 = vld [vmem:[%s3982 + $0x24] sm:$0xf]
        %v4351 = vld [vmem:[%s3982 + $0x28] sm:$0xf]
        %v4352 = vld [vmem:[%s3982 + $0x2c] sm:$0x1]
        %v4353 = vld [vmem:[%s3982 + $0x30] sm:$0xf]
        %v4354 = vld [vmem:[%s3982 + $0x34] sm:$0xf]
        %v4355 = vld [vmem:[%s3982 + $0x38] sm:$0x1]
        %v4356 = vld [vmem:[%s3982 + $0x3c] sm:$0xf]
        %v4357 = vld [vmem:[%s3982 + $0x40] sm:$0xf]
        %v4358 = vld [vmem:[%s3982 + $0x44] sm:$0x1]
        %v4359 = vld [vmem:[%s3982 + $0x48] sm:$0xf]
        %v4360 = vld [vmem:[%s3982 + $0x4c] sm:$0xf]
        %v4361 = vld [vmem:[%s3982 + $0x50] sm:$0x1]
        %v4362 = vld [vmem:[%s3982 + $0x54] sm:$0xf]
        %v4363 = vld [vmem:[%s3982 + $0x58] sm:$0xf]
        %v4364 = vld [vmem:[%s3982 + $0x5c] sm:$0x1]
        %v4365 = vld [vmem:[%s3982 + $0x60] sm:$0xf]
        %v4366 = vld [vmem:[%s3982 + $0x64] sm:$0xf]
        %v4367 = vld [vmem:[%s3982 + $0x68] sm:$0x1]
        %v4368 = vld [vmem:[%s3982 + $0x6c] sm:$0xf]
        %v4369 = vld [vmem:[%s3982 + $0x70] sm:$0xf]
        %v4370 = vld [vmem:[%s3982 + $0x74] sm:$0x1]
        %v4371 = vld [vmem:[%s3982 + $0x78] sm:$0xf]
        %v4372 = vld [vmem:[%s3982 + $0x7c] sm:$0xf]
        %v4373 = vld [vmem:[%s3982 + $0x80] sm:$0x1]
        %v4374 = vld [vmem:[%s3982 + $0x84] sm:$0xf]
        %v4375 = vld [vmem:[%s3982 + $0x88] sm:$0xf]
        %v4376 = vld [vmem:[%s3982 + $0x8c] sm:$0x1]
        %v4377 = vld [vmem:[%s3982 + $0x90] sm:$0xf]
        %v4378 = vld [vmem:[%s3982 + $0x94] sm:$0xf]
        %v4379 = vld [vmem:[%s3982 + $0x98] sm:$0x1]
        %v4380 = vld [vmem:[%s3982 + $0x9c] sm:$0xf]
        %v4381 = vld [vmem:[%s3982 + $0xa0] sm:$0xf]
        %v4382 = vld [vmem:[%s3982 + $0xa4] sm:$0x1]
        %v4383 = vld [vmem:[%s3982 + $0xa8] sm:$0xf]
        %v4384 = vld [vmem:[%s3982 + $0xac] sm:$0xf]
        %v4385 = vld [vmem:[%s3982 + $0xb0] sm:$0x1]
        %v4386 = vld [vmem:[%s3982 + $0xb4] sm:$0xf]
        %v4387 = vld [vmem:[%s3982 + $0xb8] sm:$0xf]
        %v4388 = vld [vmem:[%s3982 + $0xbc] sm:$0x1]
        %v4390 = vshrl.u32 %v4341, 16
        %v4392 = vrot.slane %v4390, 4
        %v4393 = vshll.u32 %v4341, 16
        %v4395 = vrot.slane %v4393, 5
        %v4396 = vor.u32 %v4392, %v4395
        %v4397 = vrot.slane %v4396, 4
        %v4399 = vshll.u32 %v4342, 16
        %v4401 = vrot.slane %v4399, 5
        %v4402 = vsel %vm1276, %v4397, %v4401
        %v4403 = vshrl.u32 %v4342, 16
        %v4405 = vrot.slane %v4403, 4
        %v4406 = vor.u32 %v4405, %v4401
        %v4407 = vrot.slane %v4406, 4
        %v4409 = vshll.u32 %v4343, 16
        %v4411 = vrot.slane %v4409, 5
        %v4412 = vsel %vm1276, %v4407, %v4411
        %v4414 = vshrl.u32 %v4344, 16
        %v4416 = vrot.slane %v4414, 4
        %v4417 = vshll.u32 %v4344, 16
        %v4419 = vrot.slane %v4417, 5
        %v4420 = vor.u32 %v4416, %v4419
        %v4421 = vrot.slane %v4420, 4
        %v4423 = vshll.u32 %v4345, 16
        %v4425 = vrot.slane %v4423, 5
        %v4426 = vsel %vm1276, %v4421, %v4425
        %v4427 = vshrl.u32 %v4345, 16
        %v4429 = vrot.slane %v4427, 4
        %v4430 = vor.u32 %v4429, %v4425
        %v4431 = vrot.slane %v4430, 4
        %v4433 = vshll.u32 %v4346, 16
        %v4435 = vrot.slane %v4433, 5
        %v4436 = vsel %vm1276, %v4431, %v4435
        %v4438 = vshrl.u32 %v4347, 16
        %v4440 = vrot.slane %v4438, 4
        %v4441 = vshll.u32 %v4347, 16
        %v4443 = vrot.slane %v4441, 5
        %v4444 = vor.u32 %v4440, %v4443
        %v4445 = vrot.slane %v4444, 4
        %v4447 = vshll.u32 %v4348, 16
        %v4449 = vrot.slane %v4447, 5
        %v4450 = vsel %vm1276, %v4445, %v4449
        %v4451 = vshrl.u32 %v4348, 16
        %v4453 = vrot.slane %v4451, 4
        %v4454 = vor.u32 %v4453, %v4449
        %v4455 = vrot.slane %v4454, 4
        %v4457 = vshll.u32 %v4349, 16
        %v4459 = vrot.slane %v4457, 5
        %v4460 = vsel %vm1276, %v4455, %v4459
        %v4462 = vshrl.u32 %v4350, 16
        %v4464 = vrot.slane %v4462, 4
        %v4465 = vshll.u32 %v4350, 16
        %v4467 = vrot.slane %v4465, 5
        %v4468 = vor.u32 %v4464, %v4467
        %v4469 = vrot.slane %v4468, 4
        %v4471 = vshll.u32 %v4351, 16
        %v4473 = vrot.slane %v4471, 5
        %v4474 = vsel %vm1276, %v4469, %v4473
        %v4475 = vshrl.u32 %v4351, 16
        %v4477 = vrot.slane %v4475, 4
        %v4478 = vor.u32 %v4477, %v4473
        %v4479 = vrot.slane %v4478, 4
        %v4481 = vshll.u32 %v4352, 16
        %v4483 = vrot.slane %v4481, 5
        %v4484 = vsel %vm1276, %v4479, %v4483
        %v4486 = vshrl.u32 %v4353, 16
        %v4488 = vrot.slane %v4486, 4
        %v4489 = vshll.u32 %v4353, 16
        %v4491 = vrot.slane %v4489, 5
        %v4492 = vor.u32 %v4488, %v4491
        %v4493 = vrot.slane %v4492, 4
        %v4495 = vshll.u32 %v4354, 16
        %v4497 = vrot.slane %v4495, 5
        %v4498 = vsel %vm1276, %v4493, %v4497
        %v4499 = vshrl.u32 %v4354, 16
        %v4501 = vrot.slane %v4499, 4
        %v4502 = vor.u32 %v4501, %v4497
        %v4503 = vrot.slane %v4502, 4
        %v4505 = vshll.u32 %v4355, 16
        %v4507 = vrot.slane %v4505, 5
        %v4508 = vsel %vm1276, %v4503, %v4507
        %v4510 = vshrl.u32 %v4356, 16
        %v4512 = vrot.slane %v4510, 4
        %v4513 = vshll.u32 %v4356, 16
        %v4515 = vrot.slane %v4513, 5
        %v4516 = vor.u32 %v4512, %v4515
        %v4517 = vrot.slane %v4516, 4
        %v4519 = vshll.u32 %v4357, 16
        %v4521 = vrot.slane %v4519, 5
        %v4522 = vsel %vm1276, %v4517, %v4521
        %v4523 = vshrl.u32 %v4357, 16
        %v4525 = vrot.slane %v4523, 4
        %v4526 = vor.u32 %v4525, %v4521
        %v4527 = vrot.slane %v4526, 4
        %v4529 = vshll.u32 %v4358, 16
        %v4531 = vrot.slane %v4529, 5
        %v4532 = vsel %vm1276, %v4527, %v4531
        %v4534 = vshrl.u32 %v4359, 16
        %v4536 = vrot.slane %v4534, 4
        %v4537 = vshll.u32 %v4359, 16
        %v4539 = vrot.slane %v4537, 5
        %v4540 = vor.u32 %v4536, %v4539
        %v4541 = vrot.slane %v4540, 4
        %v4543 = vshll.u32 %v4360, 16
        %v4545 = vrot.slane %v4543, 5
        %v4546 = vsel %vm1276, %v4541, %v4545
        %v4547 = vshrl.u32 %v4360, 16
        %v4549 = vrot.slane %v4547, 4
        %v4550 = vor.u32 %v4549, %v4545
        %v4551 = vrot.slane %v4550, 4
        %v4553 = vshll.u32 %v4361, 16
        %v4555 = vrot.slane %v4553, 5
        %v4556 = vsel %vm1276, %v4551, %v4555
        %v4558 = vshrl.u32 %v4362, 16
        %v4560 = vrot.slane %v4558, 4
        %v4561 = vshll.u32 %v4362, 16
        %v4563 = vrot.slane %v4561, 5
        %v4564 = vor.u32 %v4560, %v4563
        %v4565 = vrot.slane %v4564, 4
        %v4567 = vshll.u32 %v4363, 16
        %v4569 = vrot.slane %v4567, 5
        %v4570 = vsel %vm1276, %v4565, %v4569
        %v4571 = vshrl.u32 %v4363, 16
        %v4573 = vrot.slane %v4571, 4
        %v4574 = vor.u32 %v4573, %v4569
        %v4575 = vrot.slane %v4574, 4
        %v4577 = vshll.u32 %v4364, 16
        %v4579 = vrot.slane %v4577, 5
        %v4580 = vsel %vm1276, %v4575, %v4579
        %v4582 = vshrl.u32 %v4365, 16
        %v4584 = vrot.slane %v4582, 4
        %v4585 = vshll.u32 %v4365, 16
        %v4587 = vrot.slane %v4585, 5
        %v4588 = vor.u32 %v4584, %v4587
        %v4589 = vrot.slane %v4588, 4
        %v4591 = vshll.u32 %v4366, 16
        %v4593 = vrot.slane %v4591, 5
        %v4594 = vsel %vm1276, %v4589, %v4593
        %v4595 = vshrl.u32 %v4366, 16
        %v4597 = vrot.slane %v4595, 4
        %v4598 = vor.u32 %v4597, %v4593
        %v4599 = vrot.slane %v4598, 4
        %v4601 = vshll.u32 %v4367, 16
        %v4603 = vrot.slane %v4601, 5
        %v4604 = vsel %vm1276, %v4599, %v4603
        %v4606 = vshrl.u32 %v4368, 16
        %v4608 = vrot.slane %v4606, 4
        %v4609 = vshll.u32 %v4368, 16
        %v4611 = vrot.slane %v4609, 5
        %v4612 = vor.u32 %v4608, %v4611
        %v4613 = vrot.slane %v4612, 4
        %v4615 = vshll.u32 %v4369, 16
        %v4617 = vrot.slane %v4615, 5
        %v4618 = vsel %vm1276, %v4613, %v4617
        %v4619 = vshrl.u32 %v4369, 16
        %v4621 = vrot.slane %v4619, 4
        %v4622 = vor.u32 %v4621, %v4617
        %v4623 = vrot.slane %v4622, 4
        %v4625 = vshll.u32 %v4370, 16
        %v4627 = vrot.slane %v4625, 5
        %v4628 = vsel %vm1276, %v4623, %v4627
        %v4630 = vshrl.u32 %v4371, 16
        %v4632 = vrot.slane %v4630, 4
        %v4633 = vshll.u32 %v4371, 16
        %v4635 = vrot.slane %v4633, 5
        %v4636 = vor.u32 %v4632, %v4635
        %v4637 = vrot.slane %v4636, 4
        %v4639 = vshll.u32 %v4372, 16
        %v4641 = vrot.slane %v4639, 5
        %v4642 = vsel %vm1276, %v4637, %v4641
        %v4643 = vshrl.u32 %v4372, 16
        %v4645 = vrot.slane %v4643, 4
        %v4646 = vor.u32 %v4645, %v4641
        %v4647 = vrot.slane %v4646, 4
        %v4649 = vshll.u32 %v4373, 16
        %v4651 = vrot.slane %v4649, 5
        %v4652 = vsel %vm1276, %v4647, %v4651
        %v4654 = vshrl.u32 %v4374, 16
        %v4656 = vrot.slane %v4654, 4
        %v4657 = vshll.u32 %v4374, 16
        %v4659 = vrot.slane %v4657, 5
        %v4660 = vor.u32 %v4656, %v4659
        %v4661 = vrot.slane %v4660, 4
        %v4663 = vshll.u32 %v4375, 16
        %v4665 = vrot.slane %v4663, 5
        %v4666 = vsel %vm1276, %v4661, %v4665
        %v4667 = vshrl.u32 %v4375, 16
        %v4669 = vrot.slane %v4667, 4
        %v4670 = vor.u32 %v4669, %v4665
        %v4671 = vrot.slane %v4670, 4
        %v4673 = vshll.u32 %v4376, 16
        %v4675 = vrot.slane %v4673, 5
        %v4676 = vsel %vm1276, %v4671, %v4675
        %v4678 = vshrl.u32 %v4377, 16
        %v4680 = vrot.slane %v4678, 4
        %v4681 = vshll.u32 %v4377, 16
        %v4683 = vrot.slane %v4681, 5
        %v4684 = vor.u32 %v4680, %v4683
        %v4685 = vrot.slane %v4684, 4
        %v4687 = vshll.u32 %v4378, 16
        %v4689 = vrot.slane %v4687, 5
        %v4690 = vsel %vm1276, %v4685, %v4689
        %v4691 = vshrl.u32 %v4378, 16
        %v4693 = vrot.slane %v4691, 4
        %v4694 = vor.u32 %v4693, %v4689
        %v4695 = vrot.slane %v4694, 4
        %v4697 = vshll.u32 %v4379, 16
        %v4699 = vrot.slane %v4697, 5
        %v4700 = vsel %vm1276, %v4695, %v4699
        %v4702 = vshrl.u32 %v4380, 16
        %v4704 = vrot.slane %v4702, 4
        %v4705 = vshll.u32 %v4380, 16
        %v4707 = vrot.slane %v4705, 5
        %v4708 = vor.u32 %v4704, %v4707
        %v4709 = vrot.slane %v4708, 4
        %v4711 = vshll.u32 %v4381, 16
        %v4713 = vrot.slane %v4711, 5
        %v4714 = vsel %vm1276, %v4709, %v4713
        %v4715 = vshrl.u32 %v4381, 16
        %v4717 = vrot.slane %v4715, 4
        %v4718 = vor.u32 %v4717, %v4713
        %v4719 = vrot.slane %v4718, 4
        %v4721 = vshll.u32 %v4382, 16
        %v4723 = vrot.slane %v4721, 5
        %v4724 = vsel %vm1276, %v4719, %v4723
        %v4726 = vshrl.u32 %v4383, 16
        %v4728 = vrot.slane %v4726, 4
        %v4729 = vshll.u32 %v4383, 16
        %v4731 = vrot.slane %v4729, 5
        %v4732 = vor.u32 %v4728, %v4731
        %v4733 = vrot.slane %v4732, 4
        %v4735 = vshll.u32 %v4384, 16
        %v4737 = vrot.slane %v4735, 5
        %v4738 = vsel %vm1276, %v4733, %v4737
        %v4739 = vshrl.u32 %v4384, 16
        %v4741 = vrot.slane %v4739, 4
        %v4742 = vor.u32 %v4741, %v4737
        %v4743 = vrot.slane %v4742, 4
        %v4745 = vshll.u32 %v4385, 16
        %v4747 = vrot.slane %v4745, 5
        %v4748 = vsel %vm1276, %v4743, %v4747
        %v4750 = vshrl.u32 %v4386, 16
        %v4752 = vrot.slane %v4750, 4
        %v4753 = vshll.u32 %v4386, 16
        %v4755 = vrot.slane %v4753, 5
        %v4756 = vor.u32 %v4752, %v4755
        %v4757 = vrot.slane %v4756, 4
        %v4759 = vshll.u32 %v4387, 16
        %v4761 = vrot.slane %v4759, 5
        %v4762 = vsel %vm1276, %v4757, %v4761
        %v4763 = vshrl.u32 %v4387, 16
        %v4765 = vrot.slane %v4763, 4
        %v4766 = vor.u32 %v4765, %v4761
        %v4767 = vrot.slane %v4766, 4
        %v4769 = vshll.u32 %v4388, 16
        %v4771 = vrot.slane %v4769, 5
        %v4772 = vsel %vm1276, %v4767, %v4771
        %s4773 = scalar_lea.vmem %s1, 28
        %v4774 = vld [vmem:[%s4773] sm:$0xf]
        %v4775 = vunpack.c.l.b16 %v4402
        %v4776 = vunpack.c.l.b16 %v4412
        %v4777 = vunpack.c.l.b16 %v4426
        %v4778 = vunpack.c.l.b16 %v4436
        %v4779 = vunpack.c.l.b16 %v4450
        %v4780 = vunpack.c.l.b16 %v4460
        %v4781 = vunpack.c.l.b16 %v4474
        %v4782 = vunpack.c.l.b16 %v4484
        %v4783 = vunpack.c.l.b16 %v4498
        %v4784 = vunpack.c.l.b16 %v4508
        %v4785 = vunpack.c.l.b16 %v4522
        %v4786 = vunpack.c.l.b16 %v4532
        %v4787 = vunpack.c.l.b16 %v4546
        %v4788 = vunpack.c.l.b16 %v4556
        %v4789 = vunpack.c.l.b16 %v4570
        %v4790 = vunpack.c.l.b16 %v4580
        %v4791 = vunpack.c.l.b16 %v4594
        %v4792 = vunpack.c.l.b16 %v4604
        %v4793 = vunpack.c.l.b16 %v4618
        %v4794 = vunpack.c.l.b16 %v4628
        %v4795 = vunpack.c.l.b16 %v4642
        %v4796 = vunpack.c.l.b16 %v4652
        %v4797 = vunpack.c.l.b16 %v4666
        %v4798 = vunpack.c.l.b16 %v4676
        %v4799 = vunpack.c.l.b16 %v4690
        %v4800 = vunpack.c.l.b16 %v4700
        %v4801 = vunpack.c.l.b16 %v4714
        %v4802 = vunpack.c.l.b16 %v4724
        %v4803 = vunpack.c.l.b16 %v4738
        %v4804 = vunpack.c.l.b16 %v4748
        %v4805 = vunpack.c.l.b16 %v4762
        %v4806 = vunpack.c.l.b16 %v4772
        %v4807 = vpack.c.b16 %v4776, %v4775
        %v4808 = vpack.c.b16 %v4778, %v4777
        %v4809 = vpack.c.b16 %v4780, %v4779
        %v4810 = vpack.c.b16 %v4782, %v4781
        %v4811 = vpack.c.b16 %v4784, %v4783
        %v4812 = vpack.c.b16 %v4786, %v4785
        %v4813 = vpack.c.b16 %v4788, %v4787
        %v4814 = vpack.c.b16 %v4790, %v4789
        %v4815 = vpack.c.b16 %v4792, %v4791
        %v4816 = vpack.c.b16 %v4794, %v4793
        %v4817 = vpack.c.b16 %v4796, %v4795
        %v4818 = vpack.c.b16 %v4798, %v4797
        %v4819 = vpack.c.b16 %v4800, %v4799
        %v4820 = vpack.c.b16 %v4802, %v4801
        %v4821 = vpack.c.b16 %v4804, %v4803
        %v4822 = vpack.c.b16 %v4806, %v4805
        %v4824 = vsel %vm980, %v4807, 0
        %v4827 = vsel %vm980, %v4808, 0
        %v4830 = vsel %vm980, %v4809, 0
        %v4833 = vsel %vm980, %v4810, 0
        %v4836 = vsel %vm980, %v4811, 0
        %v4839 = vsel %vm980, %v4812, 0
        %v4842 = vsel %vm980, %v4813, 0
        %v4845 = vsel %vm980, %v4814, 0
        %v4848 = vsel %vm980, %v4815, 0
        %v4851 = vsel %vm980, %v4816, 0
        %v4854 = vsel %vm980, %v4817, 0
        %v4857 = vsel %vm980, %v4818, 0
        %v4860 = vsel %vm980, %v4819, 0
        %v4863 = vsel %vm980, %v4820, 0
        %v4866 = vsel %vm980, %v4821, 0
        %v4869 = vsel %vm980, %v4822, 0
        %v4872 = vsel %vm1029, %v4774, 0
        %4874 = vmatprep.subr.bf16.mxu0 0
        %4875 = vmatpush1.bf16.msra.mxu0 %v4872
        %4876 = vmatprep.subr.bf16.mxu0 0
        %4877 = vmatpush1.bf16.msra.mxu0 0
        %4878 = vmatprep.subr.bf16.mxu0 0
        %4879 = vmatpush1.bf16.msra.mxu0 0
        %4880 = vmatprep.subr.bf16.mxu0 0
        %4881 = vmatpush1.bf16.msra.mxu0 0
        %4882 = vmatprep.subr.bf16.mxu0 0
        %4883 = vmatpush1.bf16.msra.mxu0 0
        %4884 = vmatprep.subr.bf16.mxu0 0
        %4885 = vmatpush1.bf16.msra.mxu0 0
        %4886 = vmatprep.subr.bf16.mxu0 0
        %4887 = vmatpush1.bf16.msra.mxu0 0
        %4888 = vmatprep.subr.bf16.mxu0 0
        %4889 = vmatpush1.bf16.msra.mxu0 0
        %4890 = vmatprep.subr.bf16.mxu0 0
        %4891 = vmatpush1.bf16.msra.mxu0 0
        %4892 = vmatprep.subr.bf16.mxu0 0
        %4893 = vmatpush1.bf16.msra.mxu0 0
        %4894 = vmatprep.subr.bf16.mxu0 0
        %4895 = vmatpush1.bf16.msra.mxu0 0
        %4896 = vmatprep.subr.bf16.mxu0 0
        %4897 = vmatpush1.bf16.msra.mxu0 0
        %4898 = vmatprep.subr.bf16.mxu0 0
        %4899 = vmatpush1.bf16.msra.mxu0 0
        %4900 = vmatprep.subr.bf16.mxu0 0
        %4901 = vmatpush1.bf16.msra.mxu0 0
        %4902 = vmatprep.subr.bf16.mxu0 0
        %4903 = vmatpush1.bf16.msra.mxu0 0
        %4904 = vmatprep.subr.bf16.mxu0 0
        %4905 = vmatpush1.bf16.msra.mxu0 0
        %4906 = vmatprep.mubr.bf16.mxu0 0
        %4907 = vmatmul.mubr.bf16.gmra.mrb[0].mxu0 %v4824
        %v4908 = vpop.f32.mrb[0].mxu0
        %v4909 = vadd.f32 0.0, %v4908
        %v4910 = vpop.f32.mrb[0].mxu0
        %v4911 = vpop.f32.mrb[0].mxu0
        %v4912 = vadd.f32 0.0, %v4911
        %v4913 = vpop.f32.mrb[0].mxu0
        %4914 = vmatprep.mubr.bf16.mxu0 0
        %4915 = vmatmul.mubr.bf16.gmra.mrb[0].mxu0 %v4827
        %v4916 = vpop.f32.mrb[0].mxu0
        %v4917 = vadd.f32 0.0, %v4916
        %v4918 = vpop.f32.mrb[0].mxu0
        %v4919 = vpop.f32.mrb[0].mxu0
        %v4920 = vadd.f32 0.0, %v4919
        %v4921 = vpop.f32.mrb[0].mxu0
        %4922 = vmatprep.mubr.bf16.mxu0 0
        %4923 = vmatmul.mubr.bf16.gmra.mrb[0].mxu0 %v4830
        %v4924 = vpop.f32.mrb[0].mxu0
        %v4925 = vadd.f32 0.0, %v4924
        %v4926 = vpop.f32.mrb[0].mxu0
        %v4927 = vpop.f32.mrb[0].mxu0
        %v4928 = vadd.f32 0.0, %v4927
        %v4929 = vpop.f32.mrb[0].mxu0
        %4930 = vmatprep.mubr.bf16.mxu0 0
        %4931 = vmatmul.mubr.bf16.gmra.mrb[0].mxu0 %v4833
        %v4932 = vpop.f32.mrb[0].mxu0
        %v4933 = vadd.f32 0.0, %v4932
        %v4934 = vpop.f32.mrb[0].mxu0
        %v4935 = vpop.f32.mrb[0].mxu0
        %v4936 = vadd.f32 0.0, %v4935
        %v4937 = vpop.f32.mrb[0].mxu0
        %4938 = vmatprep.mubr.bf16.mxu0 0
        %4939 = vmatmul.mubr.bf16.gmra.mrb[0].mxu0 %v4836
        %v4940 = vpop.f32.mrb[0].mxu0
        %v4941 = vadd.f32 0.0, %v4940
        %v4942 = vpop.f32.mrb[0].mxu0
        %v4943 = vpop.f32.mrb[0].mxu0
        %v4944 = vadd.f32 0.0, %v4943
        %v4945 = vpop.f32.mrb[0].mxu0
        %4946 = vmatprep.mubr.bf16.mxu0 0
        %4947 = vmatmul.mubr.bf16.gmra.mrb[0].mxu0 %v4839
        %v4948 = vpop.f32.mrb[0].mxu0
        %v4949 = vadd.f32 0.0, %v4948
        %v4950 = vpop.f32.mrb[0].mxu0
        %v4951 = vpop.f32.mrb[0].mxu0
        %v4952 = vadd.f32 0.0, %v4951
        %v4953 = vpop.f32.mrb[0].mxu0
        %4954 = vmatprep.mubr.bf16.mxu0 0
        %4955 = vmatmul.mubr.bf16.gmra.mrb[0].mxu0 %v4842
        %v4956 = vpop.f32.mrb[0].mxu0
        %v4957 = vadd.f32 0.0, %v4956
        %v4958 = vpop.f32.mrb[0].mxu0
        %v4959 = vpop.f32.mrb[0].mxu0
        %v4960 = vadd.f32 0.0, %v4959
        %v4961 = vpop.f32.mrb[0].mxu0
        %4962 = vmatprep.mubr.bf16.mxu0 0
        %4963 = vmatmul.mubr.bf16.gmra.mrb[0].mxu0 %v4845
        %v4964 = vpop.f32.mrb[0].mxu0
        %v4965 = vadd.f32 0.0, %v4964
        %v4966 = vpop.f32.mrb[0].mxu0
        %v4967 = vpop.f32.mrb[0].mxu0
        %v4968 = vadd.f32 0.0, %v4967
        %v4969 = vpop.f32.mrb[0].mxu0
        %4970 = vmatprep.mubr.bf16.mxu0 0
        %4971 = vmatmul.mubr.bf16.gmra.mrb[0].mxu0 %v4848
        %v4972 = vpop.f32.mrb[0].mxu0
        %v4973 = vadd.f32 0.0, %v4972
        %v4974 = vpop.f32.mrb[0].mxu0
        %v4975 = vpop.f32.mrb[0].mxu0
        %v4976 = vadd.f32 0.0, %v4975
        %v4977 = vpop.f32.mrb[0].mxu0
        %4978 = vmatprep.mubr.bf16.mxu0 0
        %4979 = vmatmul.mubr.bf16.gmra.mrb[0].mxu0 %v4851
        %v4980 = vpop.f32.mrb[0].mxu0
        %v4981 = vadd.f32 0.0, %v4980
        %v4982 = vpop.f32.mrb[0].mxu0
        %v4983 = vpop.f32.mrb[0].mxu0
        %v4984 = vadd.f32 0.0, %v4983
        %v4985 = vpop.f32.mrb[0].mxu0
        %4986 = vmatprep.mubr.bf16.mxu0 0
        %4987 = vmatmul.mubr.bf16.gmra.mrb[0].mxu0 %v4854
        %v4988 = vpop.f32.mrb[0].mxu0
        %v4989 = vadd.f32 0.0, %v4988
        %v4990 = vpop.f32.mrb[0].mxu0
        %v4991 = vpop.f32.mrb[0].mxu0
        %v4992 = vadd.f32 0.0, %v4991
        %v4993 = vpop.f32.mrb[0].mxu0
        %4994 = vmatprep.mubr.bf16.mxu0 0
        %4995 = vmatmul.mubr.bf16.gmra.mrb[0].mxu0 %v4857
        %v4996 = vpop.f32.mrb[0].mxu0
        %v4997 = vadd.f32 0.0, %v4996
        %v4998 = vpop.f32.mrb[0].mxu0
        %v4999 = vpop.f32.mrb[0].mxu0
        %v5000 = vadd.f32 0.0, %v4999
        %v5001 = vpop.f32.mrb[0].mxu0
        %5002 = vmatprep.mubr.bf16.mxu0 0
        %5003 = vmatmul.mubr.bf16.gmra.mrb[0].mxu0 %v4860
        %v5004 = vpop.f32.mrb[0].mxu0
        %v5005 = vadd.f32 0.0, %v5004
        %v5006 = vpop.f32.mrb[0].mxu0
        %v5007 = vpop.f32.mrb[0].mxu0
        %v5008 = vadd.f32 0.0, %v5007
        %v5009 = vpop.f32.mrb[0].mxu0
        %5010 = vmatprep.mubr.bf16.mxu0 0
        %5011 = vmatmul.mubr.bf16.gmra.mrb[0].mxu0 %v4863
        %v5012 = vpop.f32.mrb[0].mxu0
        %v5013 = vadd.f32 0.0, %v5012
        %v5014 = vpop.f32.mrb[0].mxu0
        %v5015 = vpop.f32.mrb[0].mxu0
        %v5016 = vadd.f32 0.0, %v5015
        %v5017 = vpop.f32.mrb[0].mxu0
        %5018 = vmatprep.mubr.bf16.mxu0 0
        %5019 = vmatmul.mubr.bf16.gmra.mrb[0].mxu0 %v4866
        %v5020 = vpop.f32.mrb[0].mxu0
        %v5021 = vadd.f32 0.0, %v5020
        %v5022 = vpop.f32.mrb[0].mxu0
        %v5023 = vpop.f32.mrb[0].mxu0
        %v5024 = vadd.f32 0.0, %v5023
        %v5025 = vpop.f32.mrb[0].mxu0
        %5026 = vmatprep.mubr.bf16.mxu0 0
        %5027 = vmatmul.mubr.bf16.gmra.mrb[0].mxu0 %v4869
        %v5028 = vpop.f32.mrb[0].mxu0
        %v5029 = vadd.f32 0.0, %v5028
        %v5030 = vpop.f32.mrb[0].mxu0
        %v5031 = vpop.f32.mrb[0].mxu0
        %v5032 = vadd.f32 0.0, %v5031
        %v5033 = vpop.f32.mrb[0].mxu0
        %5034 = vdwg.mxu0
        %v5035 = vadd.f32 %v4309, %v4909
        %v5036 = vadd.f32 %v4310, %v4912
        %v5037 = vadd.f32 %v4311, %v4917
        %v5038 = vadd.f32 %v4312, %v4920
        %v5039 = vadd.f32 %v4313, %v4925
        %v5040 = vadd.f32 %v4314, %v4928
        %v5041 = vadd.f32 %v4315, %v4933
        %v5042 = vadd.f32 %v4316, %v4936
        %v5043 = vadd.f32 %v4317, %v4941
        %v5044 = vadd.f32 %v4318, %v4944
        %v5045 = vadd.f32 %v4319, %v4949
        %v5046 = vadd.f32 %v4320, %v4952
        %v5047 = vadd.f32 %v4321, %v4957
        %v5048 = vadd.f32 %v4322, %v4960
        %v5049 = vadd.f32 %v4323, %v4965
        %v5050 = vadd.f32 %v4324, %v4968
        %v5051 = vadd.f32 %v4325, %v4973
        %v5052 = vadd.f32 %v4326, %v4976
        %v5053 = vadd.f32 %v4327, %v4981
        %v5054 = vadd.f32 %v4328, %v4984
        %v5055 = vadd.f32 %v4329, %v4989
        %v5056 = vadd.f32 %v4330, %v4992
        %v5057 = vadd.f32 %v4331, %v4997
        %v5058 = vadd.f32 %v4332, %v5000
        %v5059 = vadd.f32 %v4333, %v5005
        %v5060 = vadd.f32 %v4334, %v5008
        %v5061 = vadd.f32 %v4335, %v5013
        %v5062 = vadd.f32 %v4336, %v5016
        %v5063 = vadd.f32 %v4337, %v5021
        %v5064 = vadd.f32 %v4338, %v5024
        %v5065 = vadd.f32 %v4339, %v5029
        %v5066 = vadd.f32 %v4340, %v5032
        %v5067 = vld [vmem:[%s3982] sm:$0xe]
        %v5068 = vld [vmem:[%s3982 + $0xc] sm:$0xe]
        %v5069 = vld [vmem:[%s3982 + $0x18] sm:$0xe]
        %v5070 = vld [vmem:[%s3982 + $0x24] sm:$0xe]
        %v5071 = vld [vmem:[%s3982 + $0x30] sm:$0xe]
        %v5072 = vld [vmem:[%s3982 + $0x3c] sm:$0xe]
        %v5073 = vld [vmem:[%s3982 + $0x48] sm:$0xe]
        %v5074 = vld [vmem:[%s3982 + $0x54] sm:$0xe]
        %v5075 = vld [vmem:[%s3982 + $0x60] sm:$0xe]
        %v5076 = vld [vmem:[%s3982 + $0x6c] sm:$0xe]
        %v5077 = vld [vmem:[%s3982 + $0x78] sm:$0xe]
        %v5078 = vld [vmem:[%s3982 + $0x84] sm:$0xe]
        %v5079 = vld [vmem:[%s3982 + $0x90] sm:$0xe]
        %v5080 = vld [vmem:[%s3982 + $0x9c] sm:$0xe]
        %v5081 = vld [vmem:[%s3982 + $0xa8] sm:$0xe]
        %v5082 = vld [vmem:[%s3982 + $0xb4] sm:$0xe]
        %v5131 = vrot.slane %v5067, 5
        %v5132 = vrot.slane %v5131, 4
        %v5133 = vrot.slane %v4342, 5
        %v5134 = vsel %vm2021, %v5132, %v5133
        %v5135 = vrot.slane %v5133, 4
        %v5136 = vrot.slane %v4343, 5
        %v5137 = vsel %vm2021, %v5135, %v5136
        %v5138 = vrot.slane %v5068, 5
        %v5139 = vrot.slane %v5138, 4
        %v5140 = vrot.slane %v4345, 5
        %v5141 = vsel %vm2021, %v5139, %v5140
        %v5142 = vrot.slane %v5140, 4
        %v5143 = vrot.slane %v4346, 5
        %v5144 = vsel %vm2021, %v5142, %v5143
        %v5145 = vrot.slane %v5069, 5
        %v5146 = vrot.slane %v5145, 4
        %v5147 = vrot.slane %v4348, 5
        %v5148 = vsel %vm2021, %v5146, %v5147
        %v5149 = vrot.slane %v5147, 4
        %v5150 = vrot.slane %v4349, 5
        %v5151 = vsel %vm2021, %v5149, %v5150
        %v5152 = vrot.slane %v5070, 5
        %v5153 = vrot.slane %v5152, 4
        %v5154 = vrot.slane %v4351, 5
        %v5155 = vsel %vm2021, %v5153, %v5154
        %v5156 = vrot.slane %v5154, 4
        %v5157 = vrot.slane %v4352, 5
        %v5158 = vsel %vm2021, %v5156, %v5157
        %v5159 = vrot.slane %v5071, 5
        %v5160 = vrot.slane %v5159, 4
        %v5161 = vrot.slane %v4354, 5
        %v5162 = vsel %vm2021, %v5160, %v5161
        %v5163 = vrot.slane %v5161, 4
        %v5164 = vrot.slane %v4355, 5
        %v5165 = vsel %vm2021, %v5163, %v5164
        %v5166 = vrot.slane %v5072, 5
        %v5167 = vrot.slane %v5166, 4
        %v5168 = vrot.slane %v4357, 5
        %v5169 = vsel %vm2021, %v5167, %v5168
        %v5170 = vrot.slane %v5168, 4
        %v5171 = vrot.slane %v4358, 5
        %v5172 = vsel %vm2021, %v5170, %v5171
        %v5173 = vrot.slane %v5073, 5
        %v5174 = vrot.slane %v5173, 4
        %v5175 = vrot.slane %v4360, 5
        %v5176 = vsel %vm2021, %v5174, %v5175
        %v5177 = vrot.slane %v5175, 4
        %v5178 = vrot.slane %v4361, 5
        %v5179 = vsel %vm2021, %v5177, %v5178
        %v5180 = vrot.slane %v5074, 5
        %v5181 = vrot.slane %v5180, 4
        %v5182 = vrot.slane %v4363, 5
        %v5183 = vsel %vm2021, %v5181, %v5182
        %v5184 = vrot.slane %v5182, 4
        %v5185 = vrot.slane %v4364, 5
        %v5186 = vsel %vm2021, %v5184, %v5185
        %v5187 = vrot.slane %v5075, 5
        %v5188 = vrot.slane %v5187, 4
        %v5189 = vrot.slane %v4366, 5
        %v5190 = vsel %vm2021, %v5188, %v5189
        %v5191 = vrot.slane %v5189, 4
        %v5192 = vrot.slane %v4367, 5
        %v5193 = vsel %vm2021, %v5191, %v5192
        %v5194 = vrot.slane %v5076, 5
        %v5195 = vrot.slane %v5194, 4
        %v5196 = vrot.slane %v4369, 5
        %v5197 = vsel %vm2021, %v5195, %v5196
        %v5198 = vrot.slane %v5196, 4
        %v5199 = vrot.slane %v4370, 5
        %v5200 = vsel %vm2021, %v5198, %v5199
        %v5201 = vrot.slane %v5077, 5
        %v5202 = vrot.slane %v5201, 4
        %v5203 = vrot.slane %v4372, 5
        %v5204 = vsel %vm2021, %v5202, %v5203
        %v5205 = vrot.slane %v5203, 4
        %v5206 = vrot.slane %v4373, 5
        %v5207 = vsel %vm2021, %v5205, %v5206
        %v5208 = vrot.slane %v5078, 5
        %v5209 = vrot.slane %v5208, 4
        %v5210 = vrot.slane %v4375, 5
        %v5211 = vsel %vm2021, %v5209, %v5210
        %v5212 = vrot.slane %v5210, 4
        %v5213 = vrot.slane %v4376, 5
        %v5214 = vsel %vm2021, %v5212, %v5213
        %v5215 = vrot.slane %v5079, 5
        %v5216 = vrot.slane %v5215, 4
        %v5217 = vrot.slane %v4378, 5
        %v5218 = vsel %vm2021, %v5216, %v5217
        %v5219 = vrot.slane %v5217, 4
        %v5220 = vrot.slane %v4379, 5
        %v5221 = vsel %vm2021, %v5219, %v5220
        %v5222 = vrot.slane %v5080, 5
        %v5223 = vrot.slane %v5222, 4
        %v5224 = vrot.slane %v4381, 5
        %v5225 = vsel %vm2021, %v5223, %v5224
        %v5226 = vrot.slane %v5224, 4
        %v5227 = vrot.slane %v4382, 5
        %v5228 = vsel %vm2021, %v5226, %v5227
        %v5229 = vrot.slane %v5081, 5
        %v5230 = vrot.slane %v5229, 4
        %v5231 = vrot.slane %v4384, 5
        %v5232 = vsel %vm2021, %v5230, %v5231
        %v5233 = vrot.slane %v5231, 4
        %v5234 = vrot.slane %v4385, 5
        %v5235 = vsel %vm2021, %v5233, %v5234
        %v5236 = vrot.slane %v5082, 5
        %v5237 = vrot.slane %v5236, 4
        %v5238 = vrot.slane %v4387, 5
        %v5239 = vsel %vm2021, %v5237, %v5238
        %v5240 = vrot.slane %v5238, 4
        %v5241 = vrot.slane %v4388, 5
        %v5242 = vsel %vm2021, %v5240, %v5241
        %s5243 = scalar_lea.vmem %s1, 32
        %v5244 = vld [vmem:[%s5243] sm:$0xf]
        %v5245 = vunpack.c.l.b16 %v5134
        %v5246 = vunpack.c.l.b16 %v5137
        %v5247 = vunpack.c.l.b16 %v5141
        %v5248 = vunpack.c.l.b16 %v5144
        %v5249 = vunpack.c.l.b16 %v5148
        %v5250 = vunpack.c.l.b16 %v5151
        %v5251 = vunpack.c.l.b16 %v5155
        %v5252 = vunpack.c.l.b16 %v5158
        %v5253 = vunpack.c.l.b16 %v5162
        %v5254 = vunpack.c.l.b16 %v5165
        %v5255 = vunpack.c.l.b16 %v5169
        %v5256 = vunpack.c.l.b16 %v5172
        %v5257 = vunpack.c.l.b16 %v5176
        %v5258 = vunpack.c.l.b16 %v5179
        %v5259 = vunpack.c.l.b16 %v5183
        %v5260 = vunpack.c.l.b16 %v5186
        %v5261 = vunpack.c.l.b16 %v5190
        %v5262 = vunpack.c.l.b16 %v5193
        %v5263 = vunpack.c.l.b16 %v5197
        %v5264 = vunpack.c.l.b16 %v5200
        %v5265 = vunpack.c.l.b16 %v5204
        %v5266 = vunpack.c.l.b16 %v5207
        %v5267 = vunpack.c.l.b16 %v5211
        %v5268 = vunpack.c.l.b16 %v5214
        %v5269 = vunpack.c.l.b16 %v5218
        %v5270 = vunpack.c.l.b16 %v5221
        %v5271 = vunpack.c.l.b16 %v5225
        %v5272 = vunpack.c.l.b16 %v5228
        %v5273 = vunpack.c.l.b16 %v5232
        %v5274 = vunpack.c.l.b16 %v5235
        %v5275 = vunpack.c.l.b16 %v5239
        %v5276 = vunpack.c.l.b16 %v5242
        %v5277 = vpack.c.b16 %v5246, %v5245
        %v5278 = vpack.c.b16 %v5248, %v5247
        %v5279 = vpack.c.b16 %v5250, %v5249
        %v5280 = vpack.c.b16 %v5252, %v5251
        %v5281 = vpack.c.b16 %v5254, %v5253
        %v5282 = vpack.c.b16 %v5256, %v5255
        %v5283 = vpack.c.b16 %v5258, %v5257
        %v5284 = vpack.c.b16 %v5260, %v5259
        %v5285 = vpack.c.b16 %v5262, %v5261
        %v5286 = vpack.c.b16 %v5264, %v5263
        %v5287 = vpack.c.b16 %v5266, %v5265
        %v5288 = vpack.c.b16 %v5268, %v5267
        %v5289 = vpack.c.b16 %v5270, %v5269
        %v5290 = vpack.c.b16 %v5272, %v5271
        %v5291 = vpack.c.b16 %v5274, %v5273
        %v5292 = vpack.c.b16 %v5276, %v5275
        %v5294 = vsel %vm980, %v5277, 0
        %v5297 = vsel %vm980, %v5278, 0
        %v5300 = vsel %vm980, %v5279, 0
        %v5303 = vsel %vm980, %v5280, 0
        %v5306 = vsel %vm980, %v5281, 0
        %v5309 = vsel %vm980, %v5282, 0
        %v5312 = vsel %vm980, %v5283, 0
        %v5315 = vsel %vm980, %v5284, 0
        %v5318 = vsel %vm980, %v5285, 0
        %v5321 = vsel %vm980, %v5286, 0
        %v5324 = vsel %vm980, %v5287, 0
        %v5327 = vsel %vm980, %v5288, 0
        %v5330 = vsel %vm980, %v5289, 0
        %v5333 = vsel %vm980, %v5290, 0
        %v5336 = vsel %vm980, %v5291, 0
        %v5339 = vsel %vm980, %v5292, 0
        %v5342 = vsel %vm1029, %v5244, 0
        %5344 = vmatprep.subr.bf16.mxu0 0
        %5345 = vmatpush1.bf16.msra.mxu0 %v5342
        %5346 = vmatprep.subr.bf16.mxu0 0
        %5347 = vmatpush1.bf16.msra.mxu0 0
        %5348 = vmatprep.subr.bf16.mxu0 0
        %5349 = vmatpush1.bf16.msra.mxu0 0
        %5350 = vmatprep.subr.bf16.mxu0 0
        %5351 = vmatpush1.bf16.msra.mxu0 0
        %5352 = vmatprep.subr.bf16.mxu0 0
        %5353 = vmatpush1.bf16.msra.mxu0 0
        %5354 = vmatprep.subr.bf16.mxu0 0
        %5355 = vmatpush1.bf16.msra.mxu0 0
        %5356 = vmatprep.subr.bf16.mxu0 0
        %5357 = vmatpush1.bf16.msra.mxu0 0
        %5358 = vmatprep.subr.bf16.mxu0 0
        %5359 = vmatpush1.bf16.msra.mxu0 0
        %5360 = vmatprep.subr.bf16.mxu0 0
        %5361 = vmatpush1.bf16.msra.mxu0 0
        %5362 = vmatprep.subr.bf16.mxu0 0
        %5363 = vmatpush1.bf16.msra.mxu0 0
        %5364 = vmatprep.subr.bf16.mxu0 0
        %5365 = vmatpush1.bf16.msra.mxu0 0
        %5366 = vmatprep.subr.bf16.mxu0 0
        %5367 = vmatpush1.bf16.msra.mxu0 0
        %5368 = vmatprep.subr.bf16.mxu0 0
        %5369 = vmatpush1.bf16.msra.mxu0 0
        %5370 = vmatprep.subr.bf16.mxu0 0
        %5371 = vmatpush1.bf16.msra.mxu0 0
        %5372 = vmatprep.subr.bf16.mxu0 0
        %5373 = vmatpush1.bf16.msra.mxu0 0
        %5374 = vmatprep.subr.bf16.mxu0 0
        %5375 = vmatpush1.bf16.msra.mxu0 0
        %5376 = vmatprep.mubr.bf16.mxu0 0
        %5377 = vmatmul.mubr.bf16.gmra.mrb[0].mxu0 %v5294
        %v5378 = vpop.f32.mrb[0].mxu0
        %v5379 = vadd.f32 0.0, %v5378
        %v5380 = vpop.f32.mrb[0].mxu0
        %v5381 = vpop.f32.mrb[0].mxu0
        %v5382 = vadd.f32 0.0, %v5381
        %v5383 = vpop.f32.mrb[0].mxu0
        %5384 = vmatprep.mubr.bf16.mxu0 0
        %5385 = vmatmul.mubr.bf16.gmra.mrb[0].mxu0 %v5297
        %v5386 = vpop.f32.mrb[0].mxu0
        %v5387 = vadd.f32 0.0, %v5386
        %v5388 = vpop.f32.mrb[0].mxu0
        %v5389 = vpop.f32.mrb[0].mxu0
        %v5390 = vadd.f32 0.0, %v5389
        %v5391 = vpop.f32.mrb[0].mxu0
        %5392 = vmatprep.mubr.bf16.mxu0 0
        %5393 = vmatmul.mubr.bf16.gmra.mrb[0].mxu0 %v5300
        %v5394 = vpop.f32.mrb[0].mxu0
        %v5395 = vadd.f32 0.0, %v5394
        %v5396 = vpop.f32.mrb[0].mxu0
        %v5397 = vpop.f32.mrb[0].mxu0
        %v5398 = vadd.f32 0.0, %v5397
        %v5399 = vpop.f32.mrb[0].mxu0
        %5400 = vmatprep.mubr.bf16.mxu0 0
        %5401 = vmatmul.mubr.bf16.gmra.mrb[0].mxu0 %v5303
        %v5402 = vpop.f32.mrb[0].mxu0
        %v5403 = vadd.f32 0.0, %v5402
        %v5404 = vpop.f32.mrb[0].mxu0
        %v5405 = vpop.f32.mrb[0].mxu0
        %v5406 = vadd.f32 0.0, %v5405
        %v5407 = vpop.f32.mrb[0].mxu0
        %5408 = vmatprep.mubr.bf16.mxu0 0
        %5409 = vmatmul.mubr.bf16.gmra.mrb[0].mxu0 %v5306
        %v5410 = vpop.f32.mrb[0].mxu0
        %v5411 = vadd.f32 0.0, %v5410
        %v5412 = vpop.f32.mrb[0].mxu0
        %v5413 = vpop.f32.mrb[0].mxu0
        %v5414 = vadd.f32 0.0, %v5413
        %v5415 = vpop.f32.mrb[0].mxu0
        %5416 = vmatprep.mubr.bf16.mxu0 0
        %5417 = vmatmul.mubr.bf16.gmra.mrb[0].mxu0 %v5309
        %v5418 = vpop.f32.mrb[0].mxu0
        %v5419 = vadd.f32 0.0, %v5418
        %v5420 = vpop.f32.mrb[0].mxu0
        %v5421 = vpop.f32.mrb[0].mxu0
        %v5422 = vadd.f32 0.0, %v5421
        %v5423 = vpop.f32.mrb[0].mxu0
        %5424 = vmatprep.mubr.bf16.mxu0 0
        %5425 = vmatmul.mubr.bf16.gmra.mrb[0].mxu0 %v5312
        %v5426 = vpop.f32.mrb[0].mxu0
        %v5427 = vadd.f32 0.0, %v5426
        %v5428 = vpop.f32.mrb[0].mxu0
        %v5429 = vpop.f32.mrb[0].mxu0
        %v5430 = vadd.f32 0.0, %v5429
        %v5431 = vpop.f32.mrb[0].mxu0
        %5432 = vmatprep.mubr.bf16.mxu0 0
        %5433 = vmatmul.mubr.bf16.gmra.mrb[0].mxu0 %v5315
        %v5434 = vpop.f32.mrb[0].mxu0
        %v5435 = vadd.f32 0.0, %v5434
        %v5436 = vpop.f32.mrb[0].mxu0
        %v5437 = vpop.f32.mrb[0].mxu0
        %v5438 = vadd.f32 0.0, %v5437
        %v5439 = vpop.f32.mrb[0].mxu0
        %5440 = vmatprep.mubr.bf16.mxu0 0
        %5441 = vmatmul.mubr.bf16.gmra.mrb[0].mxu0 %v5318
        %v5442 = vpop.f32.mrb[0].mxu0
        %v5443 = vadd.f32 0.0, %v5442
        %v5444 = vpop.f32.mrb[0].mxu0
        %v5445 = vpop.f32.mrb[0].mxu0
        %v5446 = vadd.f32 0.0, %v5445
        %v5447 = vpop.f32.mrb[0].mxu0
        %5448 = vmatprep.mubr.bf16.mxu0 0
        %5449 = vmatmul.mubr.bf16.gmra.mrb[0].mxu0 %v5321
        %v5450 = vpop.f32.mrb[0].mxu0
        %v5451 = vadd.f32 0.0, %v5450
        %v5452 = vpop.f32.mrb[0].mxu0
        %v5453 = vpop.f32.mrb[0].mxu0
        %v5454 = vadd.f32 0.0, %v5453
        %v5455 = vpop.f32.mrb[0].mxu0
        %5456 = vmatprep.mubr.bf16.mxu0 0
        %5457 = vmatmul.mubr.bf16.gmra.mrb[0].mxu0 %v5324
        %v5458 = vpop.f32.mrb[0].mxu0
        %v5459 = vadd.f32 0.0, %v5458
        %v5460 = vpop.f32.mrb[0].mxu0
        %v5461 = vpop.f32.mrb[0].mxu0
        %v5462 = vadd.f32 0.0, %v5461
        %v5463 = vpop.f32.mrb[0].mxu0
        %5464 = vmatprep.mubr.bf16.mxu0 0
        %5465 = vmatmul.mubr.bf16.gmra.mrb[0].mxu0 %v5327
        %v5466 = vpop.f32.mrb[0].mxu0
        %v5467 = vadd.f32 0.0, %v5466
        %v5468 = vpop.f32.mrb[0].mxu0
        %v5469 = vpop.f32.mrb[0].mxu0
        %v5470 = vadd.f32 0.0, %v5469
        %v5471 = vpop.f32.mrb[0].mxu0
        %5472 = vmatprep.mubr.bf16.mxu0 0
        %5473 = vmatmul.mubr.bf16.gmra.mrb[0].mxu0 %v5330
        %v5474 = vpop.f32.mrb[0].mxu0
        %v5475 = vadd.f32 0.0, %v5474
        %v5476 = vpop.f32.mrb[0].mxu0
        %v5477 = vpop.f32.mrb[0].mxu0
        %v5478 = vadd.f32 0.0, %v5477
        %v5479 = vpop.f32.mrb[0].mxu0
        %5480 = vmatprep.mubr.bf16.mxu0 0
        %5481 = vmatmul.mubr.bf16.gmra.mrb[0].mxu0 %v5333
        %v5482 = vpop.f32.mrb[0].mxu0
        %v5483 = vadd.f32 0.0, %v5482
        %v5484 = vpop.f32.mrb[0].mxu0
        %v5485 = vpop.f32.mrb[0].mxu0
        %v5486 = vadd.f32 0.0, %v5485
        %v5487 = vpop.f32.mrb[0].mxu0
        %5488 = vmatprep.mubr.bf16.mxu0 0
        %5489 = vmatmul.mubr.bf16.gmra.mrb[0].mxu0 %v5336
        %v5490 = vpop.f32.mrb[0].mxu0
        %v5491 = vadd.f32 0.0, %v5490
        %v5492 = vpop.f32.mrb[0].mxu0
        %v5493 = vpop.f32.mrb[0].mxu0
        %v5494 = vadd.f32 0.0, %v5493
        %v5495 = vpop.f32.mrb[0].mxu0
        %5496 = vmatprep.mubr.bf16.mxu0 0
        %5497 = vmatmul.mubr.bf16.gmra.mrb[0].mxu0 %v5339
        %v5498 = vpop.f32.mrb[0].mxu0
        %v5499 = vadd.f32 0.0, %v5498
        %v5500 = vpop.f32.mrb[0].mxu0
        %v5501 = vpop.f32.mrb[0].mxu0
        %v5502 = vadd.f32 0.0, %v5501
        %v5503 = vpop.f32.mrb[0].mxu0
        %5504 = vdwg.mxu0
        %v5505 = vadd.f32 %v5035, %v5379
        %v5506 = vadd.f32 %v5036, %v5382
        %v5507 = vadd.f32 %v5037, %v5387
        %v5508 = vadd.f32 %v5038, %v5390
        %v5509 = vadd.f32 %v5039, %v5395
        %v5510 = vadd.f32 %v5040, %v5398
        %v5511 = vadd.f32 %v5041, %v5403
        %v5512 = vadd.f32 %v5042, %v5406
        %v5513 = vadd.f32 %v5043, %v5411
        %v5514 = vadd.f32 %v5044, %v5414
        %v5515 = vadd.f32 %v5045, %v5419
        %v5516 = vadd.f32 %v5046, %v5422
        %v5517 = vadd.f32 %v5047, %v5427
        %v5518 = vadd.f32 %v5048, %v5430
        %v5519 = vadd.f32 %v5049, %v5435
        %v5520 = vadd.f32 %v5050, %v5438
        %v5521 = vadd.f32 %v5051, %v5443
        %v5522 = vadd.f32 %v5052, %v5446
        %v5523 = vadd.f32 %v5053, %v5451
        %v5524 = vadd.f32 %v5054, %v5454
        %v5525 = vadd.f32 %v5055, %v5459
        %v5526 = vadd.f32 %v5056, %v5462
        %v5527 = vadd.f32 %v5057, %v5467
        %v5528 = vadd.f32 %v5058, %v5470
        %v5529 = vadd.f32 %v5059, %v5475
        %v5530 = vadd.f32 %v5060, %v5478
        %v5531 = vadd.f32 %v5061, %v5483
        %v5532 = vadd.f32 %v5062, %v5486
        %v5533 = vadd.f32 %v5063, %v5491
        %v5534 = vadd.f32 %v5064, %v5494
        %v5535 = vadd.f32 %v5065, %v5499
        %v5536 = vadd.f32 %v5066, %v5502
        %v5537 = vmax.f32 %v5505, 0.0
        %v5538 = vmax.f32 %v5506, 0.0
        %v5539 = vmax.f32 %v5507, 0.0
        %v5540 = vmax.f32 %v5508, 0.0
        %v5541 = vmax.f32 %v5509, 0.0
        %v5542 = vmax.f32 %v5510, 0.0
        %v5543 = vmax.f32 %v5511, 0.0
        %v5544 = vmax.f32 %v5512, 0.0
        %v5545 = vmax.f32 %v5513, 0.0
        %v5546 = vmax.f32 %v5514, 0.0
        %v5547 = vmax.f32 %v5515, 0.0
        %v5548 = vmax.f32 %v5516, 0.0
        %v5549 = vmax.f32 %v5517, 0.0
        %v5550 = vmax.f32 %v5518, 0.0
        %v5551 = vmax.f32 %v5519, 0.0
        %v5552 = vmax.f32 %v5520, 0.0
        %v5553 = vmax.f32 %v5521, 0.0
        %v5554 = vmax.f32 %v5522, 0.0
        %v5555 = vmax.f32 %v5523, 0.0
        %v5556 = vmax.f32 %v5524, 0.0
        %v5557 = vmax.f32 %v5525, 0.0
        %v5558 = vmax.f32 %v5526, 0.0
        %v5559 = vmax.f32 %v5527, 0.0
        %v5560 = vmax.f32 %v5528, 0.0
        %v5561 = vmax.f32 %v5529, 0.0
        %v5562 = vmax.f32 %v5530, 0.0
        %v5563 = vmax.f32 %v5531, 0.0
        %v5564 = vmax.f32 %v5532, 0.0
        %v5565 = vmax.f32 %v5533, 0.0
        %v5566 = vmax.f32 %v5534, 0.0
        %v5567 = vmax.f32 %v5535, 0.0
        %v5568 = vmax.f32 %v5536, 0.0
        %v5569 = vpack.c.bf16 %v5538, %v5537
        %v5570 = vpack.c.bf16 %v5540, %v5539
        %v5571 = vpack.c.bf16 %v5542, %v5541
        %v5572 = vpack.c.bf16 %v5544, %v5543
        %v5573 = vpack.c.bf16 %v5546, %v5545
        %v5574 = vpack.c.bf16 %v5548, %v5547
        %v5575 = vpack.c.bf16 %v5550, %v5549
        %v5576 = vpack.c.bf16 %v5552, %v5551
        %v5577 = vpack.c.bf16 %v5554, %v5553
        %v5578 = vpack.c.bf16 %v5556, %v5555
        %v5579 = vpack.c.bf16 %v5558, %v5557
        %v5580 = vpack.c.bf16 %v5560, %v5559
        %v5581 = vpack.c.bf16 %v5562, %v5561
        %v5582 = vpack.c.bf16 %v5564, %v5563
        %v5583 = vpack.c.bf16 %v5566, %v5565
        %v5584 = vpack.c.bf16 %v5568, %v5567
        %v5601 = vunpack.c.l.b16 %v5569
        %v5602 = vunpack.c.h.b16 %v5569
        %v5603 = vunpack.c.l.b16 %v5570
        %v5604 = vunpack.c.h.b16 %v5570
        %v5605 = vunpack.c.l.b16 %v5571
        %v5606 = vunpack.c.h.b16 %v5571
        %v5607 = vunpack.c.l.b16 %v5572
        %v5608 = vunpack.c.h.b16 %v5572
        %v5609 = vunpack.c.l.b16 %v5573
        %v5610 = vunpack.c.h.b16 %v5573
        %v5611 = vunpack.c.l.b16 %v5574
        %v5612 = vunpack.c.h.b16 %v5574
        %v5613 = vunpack.c.l.b16 %v5575
        %v5614 = vunpack.c.h.b16 %v5575
        %v5615 = vunpack.c.l.b16 %v5576
        %v5616 = vunpack.c.h.b16 %v5576
        %v5617 = vunpack.c.l.b16 %v5577
        %v5618 = vunpack.c.h.b16 %v5577
        %v5619 = vunpack.c.l.b16 %v5578
        %v5620 = vunpack.c.h.b16 %v5578
        %v5621 = vunpack.c.l.b16 %v5579
        %v5622 = vunpack.c.h.b16 %v5579
        %v5623 = vunpack.c.l.b16 %v5580
        %v5624 = vunpack.c.h.b16 %v5580
        %v5625 = vunpack.c.l.b16 %v5581
        %v5626 = vunpack.c.h.b16 %v5581
        %v5627 = vunpack.c.l.b16 %v5582
        %v5628 = vunpack.c.h.b16 %v5582
        %v5629 = vunpack.c.l.b16 %v5583
        %v5630 = vunpack.c.h.b16 %v5583
        %v5631 = vunpack.c.l.b16 %v5584
        %v5632 = vunpack.c.h.b16 %v5584
        %v5633 = vpack.c.b16 %v5601, %v5601
        %v5634 = vpack.c.b16 %v5602, %v5602
        %v5635 = vpack.c.b16 %v5603, %v5603
        %v5636 = vpack.c.b16 %v5604, %v5604
        %v5637 = vpack.c.b16 %v5605, %v5605
        %v5638 = vpack.c.b16 %v5606, %v5606
        %v5639 = vpack.c.b16 %v5607, %v5607
        %v5640 = vpack.c.b16 %v5608, %v5608
        %v5641 = vpack.c.b16 %v5609, %v5609
        %v5642 = vpack.c.b16 %v5610, %v5610
        %v5643 = vpack.c.b16 %v5611, %v5611
        %v5644 = vpack.c.b16 %v5612, %v5612
        %v5645 = vpack.c.b16 %v5613, %v5613
        %v5646 = vpack.c.b16 %v5614, %v5614
        %v5647 = vpack.c.b16 %v5615, %v5615
        %v5648 = vpack.c.b16 %v5616, %v5616
        %v5649 = vpack.c.b16 %v5617, %v5617
        %v5650 = vpack.c.b16 %v5618, %v5618
        %v5651 = vpack.c.b16 %v5619, %v5619
        %v5652 = vpack.c.b16 %v5620, %v5620
        %v5653 = vpack.c.b16 %v5621, %v5621
        %v5654 = vpack.c.b16 %v5622, %v5622
        %v5655 = vpack.c.b16 %v5623, %v5623
        %v5656 = vpack.c.b16 %v5624, %v5624
        %v5657 = vpack.c.b16 %v5625, %v5625
        %v5658 = vpack.c.b16 %v5626, %v5626
        %v5659 = vpack.c.b16 %v5627, %v5627
        %v5660 = vpack.c.b16 %v5628, %v5628
        %v5661 = vpack.c.b16 %v5629, %v5629
        %v5662 = vpack.c.b16 %v5630, %v5630
        %v5663 = vpack.c.b16 %v5631, %v5631
        %v5664 = vpack.c.b16 %v5632, %v5632
        %v5666 = vshrl.u32 %v5633, 16
        %v5668 = vrot.slane %v5666, 7
        %v5669 = vshll.u32 %v5633, 16
        %v5671 = vor.u32 %v5668, %v5669
        %v5672 = vrot.slane %v5668, 4
        %v5674 = vshrl.u32 %v5634, 16
        %v5676 = vrot.slane %v5674, 7
        %v5677 = vshll.u32 %v5634, 16
        %v5679 = vor.u32 %v5676, %v5677
        %v5680 = vsel %vm421, %v5672, %v5679
        %v5681 = vrot.slane %v5676, 4
        %v5683 = vshrl.u32 %v5635, 16
        %v5685 = vrot.slane %v5683, 7
        %v5686 = vshll.u32 %v5635, 16
        %v5688 = vor.u32 %v5685, %v5686
        %v5689 = vrot.slane %v5685, 4
        %v5691 = vshrl.u32 %v5636, 16
        %v5693 = vrot.slane %v5691, 7
        %v5694 = vshll.u32 %v5636, 16
        %v5696 = vor.u32 %v5693, %v5694
        %v5697 = vsel %vm421, %v5689, %v5696
        %v5698 = vrot.slane %v5693, 4
        %v5700 = vshrl.u32 %v5637, 16
        %v5702 = vrot.slane %v5700, 7
        %v5703 = vshll.u32 %v5637, 16
        %v5705 = vor.u32 %v5702, %v5703
        %v5706 = vrot.slane %v5702, 4
        %v5708 = vshrl.u32 %v5638, 16
        %v5710 = vrot.slane %v5708, 7
        %v5711 = vshll.u32 %v5638, 16
        %v5713 = vor.u32 %v5710, %v5711
        %v5714 = vsel %vm421, %v5706, %v5713
        %v5715 = vrot.slane %v5710, 4
        %v5717 = vshrl.u32 %v5639, 16
        %v5719 = vrot.slane %v5717, 7
        %v5720 = vshll.u32 %v5639, 16
        %v5722 = vor.u32 %v5719, %v5720
        %v5723 = vrot.slane %v5719, 4
        %v5725 = vshrl.u32 %v5640, 16
        %v5727 = vrot.slane %v5725, 7
        %v5728 = vshll.u32 %v5640, 16
        %v5730 = vor.u32 %v5727, %v5728
        %v5731 = vsel %vm421, %v5723, %v5730
        %v5732 = vrot.slane %v5727, 4
        %v5734 = vshrl.u32 %v5641, 16
        %v5736 = vrot.slane %v5734, 7
        %v5737 = vshll.u32 %v5641, 16
        %v5739 = vor.u32 %v5736, %v5737
        %v5740 = vrot.slane %v5736, 4
        %v5742 = vshrl.u32 %v5642, 16
        %v5744 = vrot.slane %v5742, 7
        %v5745 = vshll.u32 %v5642, 16
        %v5747 = vor.u32 %v5744, %v5745
        %v5748 = vsel %vm421, %v5740, %v5747
        %v5749 = vrot.slane %v5744, 4
        %v5751 = vshrl.u32 %v5643, 16
        %v5753 = vrot.slane %v5751, 7
        %v5754 = vshll.u32 %v5643, 16
        %v5756 = vor.u32 %v5753, %v5754
        %v5757 = vrot.slane %v5753, 4
        %v5759 = vshrl.u32 %v5644, 16
        %v5761 = vrot.slane %v5759, 7
        %v5762 = vshll.u32 %v5644, 16
        %v5764 = vor.u32 %v5761, %v5762
        %v5765 = vsel %vm421, %v5757, %v5764
        %v5766 = vrot.slane %v5761, 4
        %v5768 = vshrl.u32 %v5645, 16
        %v5770 = vrot.slane %v5768, 7
        %v5771 = vshll.u32 %v5645, 16
        %v5773 = vor.u32 %v5770, %v5771
        %v5774 = vrot.slane %v5770, 4
        %v5776 = vshrl.u32 %v5646, 16
        %v5778 = vrot.slane %v5776, 7
        %v5779 = vshll.u32 %v5646, 16
        %v5781 = vor.u32 %v5778, %v5779
        %v5782 = vsel %vm421, %v5774, %v5781
        %v5783 = vrot.slane %v5778, 4
        %v5785 = vshrl.u32 %v5647, 16
        %v5787 = vrot.slane %v5785, 7
        %v5788 = vshll.u32 %v5647, 16
        %v5790 = vor.u32 %v5787, %v5788
        %v5791 = vrot.slane %v5787, 4
        %v5793 = vshrl.u32 %v5648, 16
        %v5795 = vrot.slane %v5793, 7
        %v5796 = vshll.u32 %v5648, 16
        %v5798 = vor.u32 %v5795, %v5796
        %v5799 = vsel %vm421, %v5791, %v5798
        %v5800 = vrot.slane %v5795, 4
        %v5802 = vshrl.u32 %v5649, 16
        %v5804 = vrot.slane %v5802, 7
        %v5805 = vshll.u32 %v5649, 16
        %v5807 = vor.u32 %v5804, %v5805
        %v5808 = vrot.slane %v5804, 4
        %v5810 = vshrl.u32 %v5650, 16
        %v5812 = vrot.slane %v5810, 7
        %v5813 = vshll.u32 %v5650, 16
        %v5815 = vor.u32 %v5812, %v5813
        %v5816 = vsel %vm421, %v5808, %v5815
        %v5817 = vrot.slane %v5812, 4
        %v5819 = vshrl.u32 %v5651, 16
        %v5821 = vrot.slane %v5819, 7
        %v5822 = vshll.u32 %v5651, 16
        %v5824 = vor.u32 %v5821, %v5822
        %v5825 = vrot.slane %v5821, 4
        %v5827 = vshrl.u32 %v5652, 16
        %v5829 = vrot.slane %v5827, 7
        %v5830 = vshll.u32 %v5652, 16
        %v5832 = vor.u32 %v5829, %v5830
        %v5833 = vsel %vm421, %v5825, %v5832
        %v5834 = vrot.slane %v5829, 4
        %v5836 = vshrl.u32 %v5653, 16
        %v5838 = vrot.slane %v5836, 7
        %v5839 = vshll.u32 %v5653, 16
        %v5841 = vor.u32 %v5838, %v5839
        %v5842 = vrot.slane %v5838, 4
        %v5844 = vshrl.u32 %v5654, 16
        %v5846 = vrot.slane %v5844, 7
        %v5847 = vshll.u32 %v5654, 16
        %v5849 = vor.u32 %v5846, %v5847
        %v5850 = vsel %vm421, %v5842, %v5849
        %v5851 = vrot.slane %v5846, 4
        %v5853 = vshrl.u32 %v5655, 16
        %v5855 = vrot.slane %v5853, 7
        %v5856 = vshll.u32 %v5655, 16
        %v5858 = vor.u32 %v5855, %v5856
        %v5859 = vrot.slane %v5855, 4
        %v5861 = vshrl.u32 %v5656, 16
        %v5863 = vrot.slane %v5861, 7
        %v5864 = vshll.u32 %v5656, 16
        %v5866 = vor.u32 %v5863, %v5864
        %v5867 = vsel %vm421, %v5859, %v5866
        %v5868 = vrot.slane %v5863, 4
        %v5870 = vshrl.u32 %v5657, 16
        %v5872 = vrot.slane %v5870, 7
        %v5873 = vshll.u32 %v5657, 16
        %v5875 = vor.u32 %v5872, %v5873
        %v5876 = vrot.slane %v5872, 4
        %v5878 = vshrl.u32 %v5658, 16
        %v5880 = vrot.slane %v5878, 7
        %v5881 = vshll.u32 %v5658, 16
        %v5883 = vor.u32 %v5880, %v5881
        %v5884 = vsel %vm421, %v5876, %v5883
        %v5885 = vrot.slane %v5880, 4
        %v5887 = vshrl.u32 %v5659, 16
        %v5889 = vrot.slane %v5887, 7
        %v5890 = vshll.u32 %v5659, 16
        %v5892 = vor.u32 %v5889, %v5890
        %v5893 = vrot.slane %v5889, 4
        %v5895 = vshrl.u32 %v5660, 16
        %v5897 = vrot.slane %v5895, 7
        %v5898 = vshll.u32 %v5660, 16
        %v5900 = vor.u32 %v5897, %v5898
        %v5901 = vsel %vm421, %v5893, %v5900
        %v5902 = vrot.slane %v5897, 4
        %v5904 = vshrl.u32 %v5661, 16
        %v5906 = vrot.slane %v5904, 7
        %v5907 = vshll.u32 %v5661, 16
        %v5909 = vor.u32 %v5906, %v5907
        %v5910 = vrot.slane %v5906, 4
        %v5912 = vshrl.u32 %v5662, 16
        %v5914 = vrot.slane %v5912, 7
        %v5915 = vshll.u32 %v5662, 16
        %v5917 = vor.u32 %v5914, %v5915
        %v5918 = vsel %vm421, %v5910, %v5917
        %v5919 = vrot.slane %v5914, 4
        %v5921 = vshrl.u32 %v5663, 16
        %v5923 = vrot.slane %v5921, 7
        %v5924 = vshll.u32 %v5663, 16
        %v5926 = vor.u32 %v5923, %v5924
        %v5927 = vrot.slane %v5923, 4
        %v5929 = vshrl.u32 %v5664, 16
        %v5931 = vrot.slane %v5929, 7
        %v5932 = vshll.u32 %v5664, 16
        %v5934 = vor.u32 %v5931, %v5932
        %v5935 = vsel %vm421, %v5927, %v5934
        %v5936 = vrot.slane %v5931, 4
        %s5985 = scalar_lea.vmem [#allocation3], 12
        %v5986 = vld [vmem:[%s5985] sm:$0xf]
        %v5987 = vsel %vm745, %v5671, %v5986
        %5988 = vst [vmem:[%s5985] sm:$0xf] %v5987
        %5989 = vst.msk [vmem:[%s5985 + $0x4] sm:$0xf] %vm277, %v5680
        %v5990 = vld [vmem:[%s5985 + $0x8] sm:$0x1]
        %v5991 = vsel %vm751, %v5681, %v5990
        %5992 = vst [vmem:[%s5985 + $0x8] sm:$0x1] %v5991
        %v5993 = vld [vmem:[%s5985 + $0xc] sm:$0xf]
        %v5994 = vsel %vm745, %v5688, %v5993
        %5995 = vst [vmem:[%s5985 + $0xc] sm:$0xf] %v5994
        %5996 = vst.msk [vmem:[%s5985 + $0x10] sm:$0xf] %vm277, %v5697
        %v5997 = vld [vmem:[%s5985 + $0x14] sm:$0x1]
        %v5998 = vsel %vm751, %v5698, %v5997
        %5999 = vst [vmem:[%s5985 + $0x14] sm:$0x1] %v5998
        %v6000 = vld [vmem:[%s5985 + $0x18] sm:$0xf]
        %v6001 = vsel %vm745, %v5705, %v6000
        %6002 = vst [vmem:[%s5985 + $0x18] sm:$0xf] %v6001
        %6003 = vst.msk [vmem:[%s5985 + $0x1c] sm:$0xf] %vm277, %v5714
        %v6004 = vld [vmem:[%s5985 + $0x20] sm:$0x1]
        %v6005 = vsel %vm751, %v5715, %v6004
        %6006 = vst [vmem:[%s5985 + $0x20] sm:$0x1] %v6005
        %v6007 = vld [vmem:[%s5985 + $0x24] sm:$0xf]
        %v6008 = vsel %vm745, %v5722, %v6007
        %6009 = vst [vmem:[%s5985 + $0x24] sm:$0xf] %v6008
        %6010 = vst.msk [vmem:[%s5985 + $0x28] sm:$0xf] %vm277, %v5731
        %v6011 = vld [vmem:[%s5985 + $0x2c] sm:$0x1]
        %v6012 = vsel %vm751, %v5732, %v6011
        %6013 = vst [vmem:[%s5985 + $0x2c] sm:$0x1] %v6012
        %v6014 = vld [vmem:[%s5985 + $0x30] sm:$0xf]
        %v6015 = vsel %vm745, %v5739, %v6014
        %6016 = vst [vmem:[%s5985 + $0x30] sm:$0xf] %v6015
        %6017 = vst.msk [vmem:[%s5985 + $0x34] sm:$0xf] %vm277, %v5748
        %v6018 = vld [vmem:[%s5985 + $0x38] sm:$0x1]
        %v6019 = vsel %vm751, %v5749, %v6018
        %6020 = vst [vmem:[%s5985 + $0x38] sm:$0x1] %v6019
        %v6021 = vld [vmem:[%s5985 + $0x3c] sm:$0xf]
        %v6022 = vsel %vm745, %v5756, %v6021
        %6023 = vst [vmem:[%s5985 + $0x3c] sm:$0xf] %v6022
        %6024 = vst.msk [vmem:[%s5985 + $0x40] sm:$0xf] %vm277, %v5765
        %v6025 = vld [vmem:[%s5985 + $0x44] sm:$0x1]
        %v6026 = vsel %vm751, %v5766, %v6025
        %6027 = vst [vmem:[%s5985 + $0x44] sm:$0x1] %v6026
        %v6028 = vld [vmem:[%s5985 + $0x48] sm:$0xf]
        %v6029 = vsel %vm745, %v5773, %v6028
        %6030 = vst [vmem:[%s5985 + $0x48] sm:$0xf] %v6029
        %6031 = vst.msk [vmem:[%s5985 + $0x4c] sm:$0xf] %vm277, %v5782
        %v6032 = vld [vmem:[%s5985 + $0x50] sm:$0x1]
        %v6033 = vsel %vm751, %v5783, %v6032
        %6034 = vst [vmem:[%s5985 + $0x50] sm:$0x1] %v6033
        %v6035 = vld [vmem:[%s5985 + $0x54] sm:$0xf]
        %v6036 = vsel %vm745, %v5790, %v6035
        %6037 = vst [vmem:[%s5985 + $0x54] sm:$0xf] %v6036
        %6038 = vst.msk [vmem:[%s5985 + $0x58] sm:$0xf] %vm277, %v5799
        %v6039 = vld [vmem:[%s5985 + $0x5c] sm:$0x1]
        %v6040 = vsel %vm751, %v5800, %v6039
        %6041 = vst [vmem:[%s5985 + $0x5c] sm:$0x1] %v6040
        %v6042 = vld [vmem:[%s5985 + $0x60] sm:$0xf]
        %v6043 = vsel %vm745, %v5807, %v6042
        %6044 = vst [vmem:[%s5985 + $0x60] sm:$0xf] %v6043
        %6045 = vst.msk [vmem:[%s5985 + $0x64] sm:$0xf] %vm277, %v5816
        %v6046 = vld [vmem:[%s5985 + $0x68] sm:$0x1]
        %v6047 = vsel %vm751, %v5817, %v6046
        %6048 = vst [vmem:[%s5985 + $0x68] sm:$0x1] %v6047
        %v6049 = vld [vmem:[%s5985 + $0x6c] sm:$0xf]
        %v6050 = vsel %vm745, %v5824, %v6049
        %6051 = vst [vmem:[%s5985 + $0x6c] sm:$0xf] %v6050
        %6052 = vst.msk [vmem:[%s5985 + $0x70] sm:$0xf] %vm277, %v5833
        %v6053 = vld [vmem:[%s5985 + $0x74] sm:$0x1]
        %v6054 = vsel %vm751, %v5834, %v6053
        %6055 = vst [vmem:[%s5985 + $0x74] sm:$0x1] %v6054
        %v6056 = vld [vmem:[%s5985 + $0x78] sm:$0xf]
        %v6057 = vsel %vm745, %v5841, %v6056
        %6058 = vst [vmem:[%s5985 + $0x78] sm:$0xf] %v6057
        %6059 = vst.msk [vmem:[%s5985 + $0x7c] sm:$0xf] %vm277, %v5850
        %v6060 = vld [vmem:[%s5985 + $0x80] sm:$0x1]
        %v6061 = vsel %vm751, %v5851, %v6060
        %6062 = vst [vmem:[%s5985 + $0x80] sm:$0x1] %v6061
        %v6063 = vld [vmem:[%s5985 + $0x84] sm:$0xf]
        %v6064 = vsel %vm745, %v5858, %v6063
        %6065 = vst [vmem:[%s5985 + $0x84] sm:$0xf] %v6064
        %6066 = vst.msk [vmem:[%s5985 + $0x88] sm:$0xf] %vm277, %v5867
        %v6067 = vld [vmem:[%s5985 + $0x8c] sm:$0x1]
        %v6068 = vsel %vm751, %v5868, %v6067
        %6069 = vst [vmem:[%s5985 + $0x8c] sm:$0x1] %v6068
        %v6070 = vld [vmem:[%s5985 + $0x90] sm:$0xf]
        %v6071 = vsel %vm745, %v5875, %v6070
        %6072 = vst [vmem:[%s5985 + $0x90] sm:$0xf] %v6071
        %6073 = vst.msk [vmem:[%s5985 + $0x94] sm:$0xf] %vm277, %v5884
        %v6074 = vld [vmem:[%s5985 + $0x98] sm:$0x1]
        %v6075 = vsel %vm751, %v5885, %v6074
        %6076 = vst [vmem:[%s5985 + $0x98] sm:$0x1] %v6075
        %v6077 = vld [vmem:[%s5985 + $0x9c] sm:$0xf]
        %v6078 = vsel %vm745, %v5892, %v6077
        %6079 = vst [vmem:[%s5985 + $0x9c] sm:$0xf] %v6078
        %6080 = vst.msk [vmem:[%s5985 + $0xa0] sm:$0xf] %vm277, %v5901
        %v6081 = vld [vmem:[%s5985 + $0xa4] sm:$0x1]
        %v6082 = vsel %vm751, %v5902, %v6081
        %6083 = vst [vmem:[%s5985 + $0xa4] sm:$0x1] %v6082
        %v6084 = vld [vmem:[%s5985 + $0xa8] sm:$0xf]
        %v6085 = vsel %vm745, %v5909, %v6084
        %6086 = vst [vmem:[%s5985 + $0xa8] sm:$0xf] %v6085
        %6087 = vst.msk [vmem:[%s5985 + $0xac] sm:$0xf] %vm277, %v5918
        %v6088 = vld [vmem:[%s5985 + $0xb0] sm:$0x1]
        %v6089 = vsel %vm751, %v5919, %v6088
        %6090 = vst [vmem:[%s5985 + $0xb0] sm:$0x1] %v6089
        %v6091 = vld [vmem:[%s5985 + $0xb4] sm:$0xf]
        %v6092 = vsel %vm745, %v5926, %v6091
        %6093 = vst [vmem:[%s5985 + $0xb4] sm:$0xf] %v6092
        %6094 = vst.msk [vmem:[%s5985 + $0xb8] sm:$0xf] %vm277, %v5935
        %v6095 = vld [vmem:[%s5985 + $0xbc] sm:$0x1]
        %v6096 = vsel %vm751, %v5936, %v6095
        %6097 = vst [vmem:[%s5985 + $0xbc] sm:$0x1] %v6096
        %v6098 = vld [vmem:[%s4] sm:$0x1]
        %v6100 = vlaneseq
        %v6101 = vshrl.u32 %v6100, 7
        %v6102 = vsub.s32 0, %v6101
        %v6103 = vrot.slane %v6098, %v6102
        %v6105 = vld [vmem:[#allocation3] sm:$0xf]
        %v6106 = vld [vmem:[#allocation3 + $0x4] sm:$0xf]
        %v6107 = vld [vmem:[#allocation3 + $0xc] sm:$0xf]
        %v6108 = vld [vmem:[#allocation3 + $0x10] sm:$0xf]
        %v6109 = vld [vmem:[#allocation3 + $0x18] sm:$0xf]
        %v6110 = vld [vmem:[#allocation3 + $0x1c] sm:$0xf]
        %v6111 = vld [vmem:[#allocation3 + $0x24] sm:$0xf]
        %v6112 = vld [vmem:[#allocation3 + $0x28] sm:$0xf]
        %v6113 = vld [vmem:[#allocation3 + $0x30] sm:$0xf]
        %v6114 = vld [vmem:[#allocation3 + $0x34] sm:$0xf]
        %v6115 = vld [vmem:[#allocation3 + $0x3c] sm:$0xf]
        %v6116 = vld [vmem:[#allocation3 + $0x40] sm:$0xf]
        %v6117 = vld [vmem:[#allocation3 + $0x48] sm:$0xf]
        %v6118 = vld [vmem:[#allocation3 + $0x4c] sm:$0xf]
        %v6119 = vld [vmem:[#allocation3 + $0x54] sm:$0xf]
        %v6120 = vld [vmem:[#allocation3 + $0x58] sm:$0xf]
        %v6121 = vld [vmem:[#allocation3 + $0x60] sm:$0xf]
        %v6122 = vld [vmem:[#allocation3 + $0x64] sm:$0xf]
        %v6123 = vld [vmem:[#allocation3 + $0x6c] sm:$0xf]
        %v6124 = vld [vmem:[#allocation3 + $0x70] sm:$0xf]
        %v6125 = vld [vmem:[#allocation3 + $0x78] sm:$0xf]
        %v6126 = vld [vmem:[#allocation3 + $0x7c] sm:$0xf]
        %v6127 = vld [vmem:[#allocation3 + $0x84] sm:$0xf]
        %v6128 = vld [vmem:[#allocation3 + $0x88] sm:$0xf]
        %v6129 = vld [vmem:[#allocation3 + $0x90] sm:$0xf]
        %v6130 = vld [vmem:[#allocation3 + $0x94] sm:$0xf]
        %v6131 = vld [vmem:[#allocation3 + $0x9c] sm:$0xf]
        %v6132 = vld [vmem:[#allocation3 + $0xa0] sm:$0xf]
        %v6133 = vld [vmem:[#allocation3 + $0xa8] sm:$0xf]
        %v6134 = vld [vmem:[#allocation3 + $0xac] sm:$0xf]
        %v6135 = vld [vmem:[#allocation3 + $0xb4] sm:$0xf]
        %v6136 = vld [vmem:[#allocation3 + $0xb8] sm:$0xf]
        %v6137 = vld [vmem:[%s3] sm:$0xf]
        %v6170 = vunpack.c.l.b16 %v6105
        %v6171 = vunpack.c.l.b16 %v6106
        %v6172 = vunpack.c.l.b16 %v6107
        %v6173 = vunpack.c.l.b16 %v6108
        %v6174 = vunpack.c.l.b16 %v6109
        %v6175 = vunpack.c.l.b16 %v6110
        %v6176 = vunpack.c.l.b16 %v6111
        %v6177 = vunpack.c.l.b16 %v6112
        %v6178 = vunpack.c.l.b16 %v6113
        %v6179 = vunpack.c.l.b16 %v6114
        %v6180 = vunpack.c.l.b16 %v6115
        %v6181 = vunpack.c.l.b16 %v6116
        %v6182 = vunpack.c.l.b16 %v6117
        %v6183 = vunpack.c.l.b16 %v6118
        %v6184 = vunpack.c.l.b16 %v6119
        %v6185 = vunpack.c.l.b16 %v6120
        %v6186 = vunpack.c.l.b16 %v6121
        %v6187 = vunpack.c.l.b16 %v6122
        %v6188 = vunpack.c.l.b16 %v6123
        %v6189 = vunpack.c.l.b16 %v6124
        %v6190 = vunpack.c.l.b16 %v6125
        %v6191 = vunpack.c.l.b16 %v6126
        %v6192 = vunpack.c.l.b16 %v6127
        %v6193 = vunpack.c.l.b16 %v6128
        %v6194 = vunpack.c.l.b16 %v6129
        %v6195 = vunpack.c.l.b16 %v6130
        %v6196 = vunpack.c.l.b16 %v6131
        %v6197 = vunpack.c.l.b16 %v6132
        %v6198 = vunpack.c.l.b16 %v6133
        %v6199 = vunpack.c.l.b16 %v6134
        %v6200 = vunpack.c.l.b16 %v6135
        %v6201 = vunpack.c.l.b16 %v6136
        %v6202 = vpack.c.b16 %v6171, %v6170
        %v6203 = vpack.c.b16 %v6173, %v6172
        %v6204 = vpack.c.b16 %v6175, %v6174
        %v6205 = vpack.c.b16 %v6177, %v6176
        %v6206 = vpack.c.b16 %v6179, %v6178
        %v6207 = vpack.c.b16 %v6181, %v6180
        %v6208 = vpack.c.b16 %v6183, %v6182
        %v6209 = vpack.c.b16 %v6185, %v6184
        %v6210 = vpack.c.b16 %v6187, %v6186
        %v6211 = vpack.c.b16 %v6189, %v6188
        %v6212 = vpack.c.b16 %v6191, %v6190
        %v6213 = vpack.c.b16 %v6193, %v6192
        %v6214 = vpack.c.b16 %v6195, %v6194
        %v6215 = vpack.c.b16 %v6197, %v6196
        %v6216 = vpack.c.b16 %v6199, %v6198
        %v6217 = vpack.c.b16 %v6201, %v6200
        %v6219 = vsel %vm980, %v6202, 0
        %v6222 = vsel %vm980, %v6203, 0
        %v6225 = vsel %vm980, %v6204, 0
        %v6228 = vsel %vm980, %v6205, 0
        %v6231 = vsel %vm980, %v6206, 0
        %v6234 = vsel %vm980, %v6207, 0
        %v6237 = vsel %vm980, %v6208, 0
        %v6240 = vsel %vm980, %v6209, 0
        %v6243 = vsel %vm980, %v6210, 0
        %v6246 = vsel %vm980, %v6211, 0
        %v6249 = vsel %vm980, %v6212, 0
        %v6252 = vsel %vm980, %v6213, 0
        %v6255 = vsel %vm980, %v6214, 0
        %v6258 = vsel %vm980, %v6215, 0
        %v6261 = vsel %vm980, %v6216, 0
        %v6264 = vsel %vm980, %v6217, 0
        %v6267 = vsel %vm1029, %v6137, 0
        %6269 = vmatprep.subr.bf16.mxu0 0
        %6270 = vmatpush1.bf16.msra.mxu0 %v6267
        %6271 = vmatprep.subr.bf16.mxu0 0
        %6272 = vmatpush1.bf16.msra.mxu0 0
        %6273 = vmatprep.subr.bf16.mxu0 0
        %6274 = vmatpush1.bf16.msra.mxu0 0
        %6275 = vmatprep.subr.bf16.mxu0 0
        %6276 = vmatpush1.bf16.msra.mxu0 0
        %6277 = vmatprep.subr.bf16.mxu0 0
        %6278 = vmatpush1.bf16.msra.mxu0 0
        %6279 = vmatprep.subr.bf16.mxu0 0
        %6280 = vmatpush1.bf16.msra.mxu0 0
        %6281 = vmatprep.subr.bf16.mxu0 0
        %6282 = vmatpush1.bf16.msra.mxu0 0
        %6283 = vmatprep.subr.bf16.mxu0 0
        %6284 = vmatpush1.bf16.msra.mxu0 0
        %6285 = vmatprep.subr.bf16.mxu0 0
        %6286 = vmatpush1.bf16.msra.mxu0 0
        %6287 = vmatprep.subr.bf16.mxu0 0
        %6288 = vmatpush1.bf16.msra.mxu0 0
        %6289 = vmatprep.subr.bf16.mxu0 0
        %6290 = vmatpush1.bf16.msra.mxu0 0
        %6291 = vmatprep.subr.bf16.mxu0 0
        %6292 = vmatpush1.bf16.msra.mxu0 0
        %6293 = vmatprep.subr.bf16.mxu0 0
        %6294 = vmatpush1.bf16.msra.mxu0 0
        %6295 = vmatprep.subr.bf16.mxu0 0
        %6296 = vmatpush1.bf16.msra.mxu0 0
        %6297 = vmatprep.subr.bf16.mxu0 0
        %6298 = vmatpush1.bf16.msra.mxu0 0
        %6299 = vmatprep.subr.bf16.mxu0 0
        %6300 = vmatpush1.bf16.msra.mxu0 0
        %6301 = vmatprep.mubr.bf16.mxu0 0
        %6302 = vmatmul.mubr.bf16.gmra.mrb[0].mxu0 %v6219
        %v6303 = vpop.f32.mrb[0].mxu0
        %v6304 = vadd.f32 0.0, %v6303
        %v6305 = vpop.f32.mrb[0].mxu0
        %v6306 = vpop.f32.mrb[0].mxu0
        %v6307 = vadd.f32 0.0, %v6306
        %v6308 = vpop.f32.mrb[0].mxu0
        %6309 = vmatprep.mubr.bf16.mxu0 0
        %6310 = vmatmul.mubr.bf16.gmra.mrb[0].mxu0 %v6222
        %v6311 = vpop.f32.mrb[0].mxu0
        %v6312 = vadd.f32 0.0, %v6311
        %v6313 = vpop.f32.mrb[0].mxu0
        %v6314 = vpop.f32.mrb[0].mxu0
        %v6315 = vadd.f32 0.0, %v6314
        %v6316 = vpop.f32.mrb[0].mxu0
        %6317 = vmatprep.mubr.bf16.mxu0 0
        %6318 = vmatmul.mubr.bf16.gmra.mrb[0].mxu0 %v6225
        %v6319 = vpop.f32.mrb[0].mxu0
        %v6320 = vadd.f32 0.0, %v6319
        %v6321 = vpop.f32.mrb[0].mxu0
        %v6322 = vpop.f32.mrb[0].mxu0
        %v6323 = vadd.f32 0.0, %v6322
        %v6324 = vpop.f32.mrb[0].mxu0
        %6325 = vmatprep.mubr.bf16.mxu0 0
        %6326 = vmatmul.mubr.bf16.gmra.mrb[0].mxu0 %v6228
        %v6327 = vpop.f32.mrb[0].mxu0
        %v6328 = vadd.f32 0.0, %v6327
        %v6329 = vpop.f32.mrb[0].mxu0
        %v6330 = vpop.f32.mrb[0].mxu0
        %v6331 = vadd.f32 0.0, %v6330
        %v6332 = vpop.f32.mrb[0].mxu0
        %6333 = vmatprep.mubr.bf16.mxu0 0
        %6334 = vmatmul.mubr.bf16.gmra.mrb[0].mxu0 %v6231
        %v6335 = vpop.f32.mrb[0].mxu0
        %v6336 = vadd.f32 0.0, %v6335
        %v6337 = vpop.f32.mrb[0].mxu0
        %v6338 = vpop.f32.mrb[0].mxu0
        %v6339 = vadd.f32 0.0, %v6338
        %v6340 = vpop.f32.mrb[0].mxu0
        %6341 = vmatprep.mubr.bf16.mxu0 0
        %6342 = vmatmul.mubr.bf16.gmra.mrb[0].mxu0 %v6234
        %v6343 = vpop.f32.mrb[0].mxu0
        %v6344 = vadd.f32 0.0, %v6343
        %v6345 = vpop.f32.mrb[0].mxu0
        %v6346 = vpop.f32.mrb[0].mxu0
        %v6347 = vadd.f32 0.0, %v6346
        %v6348 = vpop.f32.mrb[0].mxu0
        %6349 = vmatprep.mubr.bf16.mxu0 0
        %6350 = vmatmul.mubr.bf16.gmra.mrb[0].mxu0 %v6237
        %v6351 = vpop.f32.mrb[0].mxu0
        %v6352 = vadd.f32 0.0, %v6351
        %v6353 = vpop.f32.mrb[0].mxu0
        %v6354 = vpop.f32.mrb[0].mxu0
        %v6355 = vadd.f32 0.0, %v6354
        %v6356 = vpop.f32.mrb[0].mxu0
        %6357 = vmatprep.mubr.bf16.mxu0 0
        %6358 = vmatmul.mubr.bf16.gmra.mrb[0].mxu0 %v6240
        %v6359 = vpop.f32.mrb[0].mxu0
        %v6360 = vadd.f32 0.0, %v6359
        %v6361 = vpop.f32.mrb[0].mxu0
        %v6362 = vpop.f32.mrb[0].mxu0
        %v6363 = vadd.f32 0.0, %v6362
        %v6364 = vpop.f32.mrb[0].mxu0
        %6365 = vmatprep.mubr.bf16.mxu0 0
        %6366 = vmatmul.mubr.bf16.gmra.mrb[0].mxu0 %v6243
        %v6367 = vpop.f32.mrb[0].mxu0
        %v6368 = vadd.f32 0.0, %v6367
        %v6369 = vpop.f32.mrb[0].mxu0
        %v6370 = vpop.f32.mrb[0].mxu0
        %v6371 = vadd.f32 0.0, %v6370
        %v6372 = vpop.f32.mrb[0].mxu0
        %6373 = vmatprep.mubr.bf16.mxu0 0
        %6374 = vmatmul.mubr.bf16.gmra.mrb[0].mxu0 %v6246
        %v6375 = vpop.f32.mrb[0].mxu0
        %v6376 = vadd.f32 0.0, %v6375
        %v6377 = vpop.f32.mrb[0].mxu0
        %v6378 = vpop.f32.mrb[0].mxu0
        %v6379 = vadd.f32 0.0, %v6378
        %v6380 = vpop.f32.mrb[0].mxu0
        %6381 = vmatprep.mubr.bf16.mxu0 0
        %6382 = vmatmul.mubr.bf16.gmra.mrb[0].mxu0 %v6249
        %v6383 = vpop.f32.mrb[0].mxu0
        %v6384 = vadd.f32 0.0, %v6383
        %v6385 = vpop.f32.mrb[0].mxu0
        %v6386 = vpop.f32.mrb[0].mxu0
        %v6387 = vadd.f32 0.0, %v6386
        %v6388 = vpop.f32.mrb[0].mxu0
        %6389 = vmatprep.mubr.bf16.mxu0 0
        %6390 = vmatmul.mubr.bf16.gmra.mrb[0].mxu0 %v6252
        %v6391 = vpop.f32.mrb[0].mxu0
        %v6392 = vadd.f32 0.0, %v6391
        %v6393 = vpop.f32.mrb[0].mxu0
        %v6394 = vpop.f32.mrb[0].mxu0
        %v6395 = vadd.f32 0.0, %v6394
        %v6396 = vpop.f32.mrb[0].mxu0
        %6397 = vmatprep.mubr.bf16.mxu0 0
        %6398 = vmatmul.mubr.bf16.gmra.mrb[0].mxu0 %v6255
        %v6399 = vpop.f32.mrb[0].mxu0
        %v6400 = vadd.f32 0.0, %v6399
        %v6401 = vpop.f32.mrb[0].mxu0
        %v6402 = vpop.f32.mrb[0].mxu0
        %v6403 = vadd.f32 0.0, %v6402
        %v6404 = vpop.f32.mrb[0].mxu0
        %6405 = vmatprep.mubr.bf16.mxu0 0
        %6406 = vmatmul.mubr.bf16.gmra.mrb[0].mxu0 %v6258
        %v6407 = vpop.f32.mrb[0].mxu0
        %v6408 = vadd.f32 0.0, %v6407
        %v6409 = vpop.f32.mrb[0].mxu0
        %v6410 = vpop.f32.mrb[0].mxu0
        %v6411 = vadd.f32 0.0, %v6410
        %v6412 = vpop.f32.mrb[0].mxu0
        %6413 = vmatprep.mubr.bf16.mxu0 0
        %6414 = vmatmul.mubr.bf16.gmra.mrb[0].mxu0 %v6261
        %v6415 = vpop.f32.mrb[0].mxu0
        %v6416 = vadd.f32 0.0, %v6415
        %v6417 = vpop.f32.mrb[0].mxu0
        %v6418 = vpop.f32.mrb[0].mxu0
        %v6419 = vadd.f32 0.0, %v6418
        %v6420 = vpop.f32.mrb[0].mxu0
        %6421 = vmatprep.mubr.bf16.mxu0 0
        %6422 = vmatmul.mubr.bf16.gmra.mrb[0].mxu0 %v6264
        %v6423 = vpop.f32.mrb[0].mxu0
        %v6424 = vadd.f32 0.0, %v6423
        %v6425 = vpop.f32.mrb[0].mxu0
        %v6426 = vpop.f32.mrb[0].mxu0
        %v6427 = vadd.f32 0.0, %v6426
        %v6428 = vpop.f32.mrb[0].mxu0
        %6429 = vdwg.mxu0
        %v6430 = vadd.f32 %v6103, %v6304
        %v6431 = vadd.f32 %v6103, %v6307
        %v6432 = vadd.f32 %v6103, %v6312
        %v6433 = vadd.f32 %v6103, %v6315
        %v6434 = vadd.f32 %v6103, %v6320
        %v6435 = vadd.f32 %v6103, %v6323
        %v6436 = vadd.f32 %v6103, %v6328
        %v6437 = vadd.f32 %v6103, %v6331
        %v6438 = vadd.f32 %v6103, %v6336
        %v6439 = vadd.f32 %v6103, %v6339
        %v6440 = vadd.f32 %v6103, %v6344
        %v6441 = vadd.f32 %v6103, %v6347
        %v6442 = vadd.f32 %v6103, %v6352
        %v6443 = vadd.f32 %v6103, %v6355
        %v6444 = vadd.f32 %v6103, %v6360
        %v6445 = vadd.f32 %v6103, %v6363
        %v6446 = vadd.f32 %v6103, %v6368
        %v6447 = vadd.f32 %v6103, %v6371
        %v6448 = vadd.f32 %v6103, %v6376
        %v6449 = vadd.f32 %v6103, %v6379
        %v6450 = vadd.f32 %v6103, %v6384
        %v6451 = vadd.f32 %v6103, %v6387
        %v6452 = vadd.f32 %v6103, %v6392
        %v6453 = vadd.f32 %v6103, %v6395
        %v6454 = vadd.f32 %v6103, %v6400
        %v6455 = vadd.f32 %v6103, %v6403
        %v6456 = vadd.f32 %v6103, %v6408
        %v6457 = vadd.f32 %v6103, %v6411
        %v6458 = vadd.f32 %v6103, %v6416
        %v6459 = vadd.f32 %v6103, %v6419
        %v6460 = vadd.f32 %v6103, %v6424
        %v6461 = vadd.f32 %v6103, %v6427
        %v6462 = vld [vmem:[#allocation3] sm:$0xf]
        %v6463 = vld [vmem:[#allocation3 + $0x4] sm:$0xf]
        %v6464 = vld [vmem:[#allocation3 + $0x8] sm:$0x1]
        %v6465 = vld [vmem:[#allocation3 + $0xc] sm:$0xf]
        %v6466 = vld [vmem:[#allocation3 + $0x10] sm:$0xf]
        %v6467 = vld [vmem:[#allocation3 + $0x14] sm:$0x1]
        %v6468 = vld [vmem:[#allocation3 + $0x18] sm:$0xf]
        %v6469 = vld [vmem:[#allocation3 + $0x1c] sm:$0xf]
        %v6470 = vld [vmem:[#allocation3 + $0x20] sm:$0x1]
        %v6471 = vld [vmem:[#allocation3 + $0x24] sm:$0xf]
        %v6472 = vld [vmem:[#allocation3 + $0x28] sm:$0xf]
        %v6473 = vld [vmem:[#allocation3 + $0x2c] sm:$0x1]
        %v6474 = vld [vmem:[#allocation3 + $0x30] sm:$0xf]
        %v6475 = vld [vmem:[#allocation3 + $0x34] sm:$0xf]
        %v6476 = vld [vmem:[#allocation3 + $0x38] sm:$0x1]
        %v6477 = vld [vmem:[#allocation3 + $0x3c] sm:$0xf]
        %v6478 = vld [vmem:[#allocation3 + $0x40] sm:$0xf]
        %v6479 = vld [vmem:[#allocation3 + $0x44] sm:$0x1]
        %v6480 = vld [vmem:[#allocation3 + $0x48] sm:$0xf]
        %v6481 = vld [vmem:[#allocation3 + $0x4c] sm:$0xf]
        %v6482 = vld [vmem:[#allocation3 + $0x50] sm:$0x1]
        %v6483 = vld [vmem:[#allocation3 + $0x54] sm:$0xf]
        %v6484 = vld [vmem:[#allocation3 + $0x58] sm:$0xf]
        %v6485 = vld [vmem:[#allocation3 + $0x5c] sm:$0x1]
        %v6486 = vld [vmem:[#allocation3 + $0x60] sm:$0xf]
        %v6487 = vld [vmem:[#allocation3 + $0x64] sm:$0xf]
        %v6488 = vld [vmem:[#allocation3 + $0x68] sm:$0x1]
        %v6489 = vld [vmem:[#allocation3 + $0x6c] sm:$0xf]
        %v6490 = vld [vmem:[#allocation3 + $0x70] sm:$0xf]
        %v6491 = vld [vmem:[#allocation3 + $0x74] sm:$0x1]
        %v6492 = vld [vmem:[#allocation3 + $0x78] sm:$0xf]
        %v6493 = vld [vmem:[#allocation3 + $0x7c] sm:$0xf]
        %v6494 = vld [vmem:[#allocation3 + $0x80] sm:$0x1]
        %v6495 = vld [vmem:[#allocation3 + $0x84] sm:$0xf]
        %v6496 = vld [vmem:[#allocation3 + $0x88] sm:$0xf]
        %v6497 = vld [vmem:[#allocation3 + $0x8c] sm:$0x1]
        %v6498 = vld [vmem:[#allocation3 + $0x90] sm:$0xf]
        %v6499 = vld [vmem:[#allocation3 + $0x94] sm:$0xf]
        %v6500 = vld [vmem:[#allocation3 + $0x98] sm:$0x1]
        %v6501 = vld [vmem:[#allocation3 + $0x9c] sm:$0xf]
        %v6502 = vld [vmem:[#allocation3 + $0xa0] sm:$0xf]
        %v6503 = vld [vmem:[#allocation3 + $0xa4] sm:$0x1]
        %v6504 = vld [vmem:[#allocation3 + $0xa8] sm:$0xf]
        %v6505 = vld [vmem:[#allocation3 + $0xac] sm:$0xf]
        %v6506 = vld [vmem:[#allocation3 + $0xb0] sm:$0x1]
        %v6507 = vld [vmem:[#allocation3 + $0xb4] sm:$0xf]
        %v6508 = vld [vmem:[#allocation3 + $0xb8] sm:$0xf]
        %v6509 = vld [vmem:[#allocation3 + $0xbc] sm:$0x1]
        %v6511 = vshrl.u32 %v6462, 16
        %v6513 = vrot.slane %v6511, 4
        %v6514 = vshll.u32 %v6462, 16
        %v6516 = vrot.slane %v6514, 5
        %v6517 = vor.u32 %v6513, %v6516
        %v6518 = vrot.slane %v6517, 4
        %v6520 = vshll.u32 %v6463, 16
        %v6522 = vrot.slane %v6520, 5
        %v6523 = vsel %vm1276, %v6518, %v6522
        %v6524 = vshrl.u32 %v6463, 16
        %v6526 = vrot.slane %v6524, 4
        %v6527 = vor.u32 %v6526, %v6522
        %v6528 = vrot.slane %v6527, 4
        %v6530 = vshll.u32 %v6464, 16
        %v6532 = vrot.slane %v6530, 5
        %v6533 = vsel %vm1276, %v6528, %v6532
        %v6535 = vshrl.u32 %v6465, 16
        %v6537 = vrot.slane %v6535, 4
        %v6538 = vshll.u32 %v6465, 16
        %v6540 = vrot.slane %v6538, 5
        %v6541 = vor.u32 %v6537, %v6540
        %v6542 = vrot.slane %v6541, 4
        %v6544 = vshll.u32 %v6466, 16
        %v6546 = vrot.slane %v6544, 5
        %v6547 = vsel %vm1276, %v6542, %v6546
        %v6548 = vshrl.u32 %v6466, 16
        %v6550 = vrot.slane %v6548, 4
        %v6551 = vor.u32 %v6550, %v6546
        %v6552 = vrot.slane %v6551, 4
        %v6554 = vshll.u32 %v6467, 16
        %v6556 = vrot.slane %v6554, 5
        %v6557 = vsel %vm1276, %v6552, %v6556
        %v6559 = vshrl.u32 %v6468, 16
        %v6561 = vrot.slane %v6559, 4
        %v6562 = vshll.u32 %v6468, 16
        %v6564 = vrot.slane %v6562, 5
        %v6565 = vor.u32 %v6561, %v6564
        %v6566 = vrot.slane %v6565, 4
        %v6568 = vshll.u32 %v6469, 16
        %v6570 = vrot.slane %v6568, 5
        %v6571 = vsel %vm1276, %v6566, %v6570
        %v6572 = vshrl.u32 %v6469, 16
        %v6574 = vrot.slane %v6572, 4
        %v6575 = vor.u32 %v6574, %v6570
        %v6576 = vrot.slane %v6575, 4
        %v6578 = vshll.u32 %v6470, 16
        %v6580 = vrot.slane %v6578, 5
        %v6581 = vsel %vm1276, %v6576, %v6580
        %v6583 = vshrl.u32 %v6471, 16
        %v6585 = vrot.slane %v6583, 4
        %v6586 = vshll.u32 %v6471, 16
        %v6588 = vrot.slane %v6586, 5
        %v6589 = vor.u32 %v6585, %v6588
        %v6590 = vrot.slane %v6589, 4
        %v6592 = vshll.u32 %v6472, 16
        %v6594 = vrot.slane %v6592, 5
        %v6595 = vsel %vm1276, %v6590, %v6594
        %v6596 = vshrl.u32 %v6472, 16
        %v6598 = vrot.slane %v6596, 4
        %v6599 = vor.u32 %v6598, %v6594
        %v6600 = vrot.slane %v6599, 4
        %v6602 = vshll.u32 %v6473, 16
        %v6604 = vrot.slane %v6602, 5
        %v6605 = vsel %vm1276, %v6600, %v6604
        %v6607 = vshrl.u32 %v6474, 16
        %v6609 = vrot.slane %v6607, 4
        %v6610 = vshll.u32 %v6474, 16
        %v6612 = vrot.slane %v6610, 5
        %v6613 = vor.u32 %v6609, %v6612
        %v6614 = vrot.slane %v6613, 4
        %v6616 = vshll.u32 %v6475, 16
        %v6618 = vrot.slane %v6616, 5
        %v6619 = vsel %vm1276, %v6614, %v6618
        %v6620 = vshrl.u32 %v6475, 16
        %v6622 = vrot.slane %v6620, 4
        %v6623 = vor.u32 %v6622, %v6618
        %v6624 = vrot.slane %v6623, 4
        %v6626 = vshll.u32 %v6476, 16
        %v6628 = vrot.slane %v6626, 5
        %v6629 = vsel %vm1276, %v6624, %v6628
        %v6631 = vshrl.u32 %v6477, 16
        %v6633 = vrot.slane %v6631, 4
        %v6634 = vshll.u32 %v6477, 16
        %v6636 = vrot.slane %v6634, 5
        %v6637 = vor.u32 %v6633, %v6636
        %v6638 = vrot.slane %v6637, 4
        %v6640 = vshll.u32 %v6478, 16
        %v6642 = vrot.slane %v6640, 5
        %v6643 = vsel %vm1276, %v6638, %v6642
        %v6644 = vshrl.u32 %v6478, 16
        %v6646 = vrot.slane %v6644, 4
        %v6647 = vor.u32 %v6646, %v6642
        %v6648 = vrot.slane %v6647, 4
        %v6650 = vshll.u32 %v6479, 16
        %v6652 = vrot.slane %v6650, 5
        %v6653 = vsel %vm1276, %v6648, %v6652
        %v6655 = vshrl.u32 %v6480, 16
        %v6657 = vrot.slane %v6655, 4
        %v6658 = vshll.u32 %v6480, 16
        %v6660 = vrot.slane %v6658, 5
        %v6661 = vor.u32 %v6657, %v6660
        %v6662 = vrot.slane %v6661, 4
        %v6664 = vshll.u32 %v6481, 16
        %v6666 = vrot.slane %v6664, 5
        %v6667 = vsel %vm1276, %v6662, %v6666
        %v6668 = vshrl.u32 %v6481, 16
        %v6670 = vrot.slane %v6668, 4
        %v6671 = vor.u32 %v6670, %v6666
        %v6672 = vrot.slane %v6671, 4
        %v6674 = vshll.u32 %v6482, 16
        %v6676 = vrot.slane %v6674, 5
        %v6677 = vsel %vm1276, %v6672, %v6676
        %v6679 = vshrl.u32 %v6483, 16
        %v6681 = vrot.slane %v6679, 4
        %v6682 = vshll.u32 %v6483, 16
        %v6684 = vrot.slane %v6682, 5
        %v6685 = vor.u32 %v6681, %v6684
        %v6686 = vrot.slane %v6685, 4
        %v6688 = vshll.u32 %v6484, 16
        %v6690 = vrot.slane %v6688, 5
        %v6691 = vsel %vm1276, %v6686, %v6690
        %v6692 = vshrl.u32 %v6484, 16
        %v6694 = vrot.slane %v6692, 4
        %v6695 = vor.u32 %v6694, %v6690
        %v6696 = vrot.slane %v6695, 4
        %v6698 = vshll.u32 %v6485, 16
        %v6700 = vrot.slane %v6698, 5
        %v6701 = vsel %vm1276, %v6696, %v6700
        %v6703 = vshrl.u32 %v6486, 16
        %v6705 = vrot.slane %v6703, 4
        %v6706 = vshll.u32 %v6486, 16
        %v6708 = vrot.slane %v6706, 5
        %v6709 = vor.u32 %v6705, %v6708
        %v6710 = vrot.slane %v6709, 4
        %v6712 = vshll.u32 %v6487, 16
        %v6714 = vrot.slane %v6712, 5
        %v6715 = vsel %vm1276, %v6710, %v6714
        %v6716 = vshrl.u32 %v6487, 16
        %v6718 = vrot.slane %v6716, 4
        %v6719 = vor.u32 %v6718, %v6714
        %v6720 = vrot.slane %v6719, 4
        %v6722 = vshll.u32 %v6488, 16
        %v6724 = vrot.slane %v6722, 5
        %v6725 = vsel %vm1276, %v6720, %v6724
        %v6727 = vshrl.u32 %v6489, 16
        %v6729 = vrot.slane %v6727, 4
        %v6730 = vshll.u32 %v6489, 16
        %v6732 = vrot.slane %v6730, 5
        %v6733 = vor.u32 %v6729, %v6732
        %v6734 = vrot.slane %v6733, 4
        %v6736 = vshll.u32 %v6490, 16
        %v6738 = vrot.slane %v6736, 5
        %v6739 = vsel %vm1276, %v6734, %v6738
        %v6740 = vshrl.u32 %v6490, 16
        %v6742 = vrot.slane %v6740, 4
        %v6743 = vor.u32 %v6742, %v6738
        %v6744 = vrot.slane %v6743, 4
        %v6746 = vshll.u32 %v6491, 16
        %v6748 = vrot.slane %v6746, 5
        %v6749 = vsel %vm1276, %v6744, %v6748
        %v6751 = vshrl.u32 %v6492, 16
        %v6753 = vrot.slane %v6751, 4
        %v6754 = vshll.u32 %v6492, 16
        %v6756 = vrot.slane %v6754, 5
        %v6757 = vor.u32 %v6753, %v6756
        %v6758 = vrot.slane %v6757, 4
        %v6760 = vshll.u32 %v6493, 16
        %v6762 = vrot.slane %v6760, 5
        %v6763 = vsel %vm1276, %v6758, %v6762
        %v6764 = vshrl.u32 %v6493, 16
        %v6766 = vrot.slane %v6764, 4
        %v6767 = vor.u32 %v6766, %v6762
        %v6768 = vrot.slane %v6767, 4
        %v6770 = vshll.u32 %v6494, 16
        %v6772 = vrot.slane %v6770, 5
        %v6773 = vsel %vm1276, %v6768, %v6772
        %v6775 = vshrl.u32 %v6495, 16
        %v6777 = vrot.slane %v6775, 4
        %v6778 = vshll.u32 %v6495, 16
        %v6780 = vrot.slane %v6778, 5
        %v6781 = vor.u32 %v6777, %v6780
        %v6782 = vrot.slane %v6781, 4
        %v6784 = vshll.u32 %v6496, 16
        %v6786 = vrot.slane %v6784, 5
        %v6787 = vsel %vm1276, %v6782, %v6786
        %v6788 = vshrl.u32 %v6496, 16
        %v6790 = vrot.slane %v6788, 4
        %v6791 = vor.u32 %v6790, %v6786
        %v6792 = vrot.slane %v6791, 4
        %v6794 = vshll.u32 %v6497, 16
        %v6796 = vrot.slane %v6794, 5
        %v6797 = vsel %vm1276, %v6792, %v6796
        %v6799 = vshrl.u32 %v6498, 16
        %v6801 = vrot.slane %v6799, 4
        %v6802 = vshll.u32 %v6498, 16
        %v6804 = vrot.slane %v6802, 5
        %v6805 = vor.u32 %v6801, %v6804
        %v6806 = vrot.slane %v6805, 4
        %v6808 = vshll.u32 %v6499, 16
        %v6810 = vrot.slane %v6808, 5
        %v6811 = vsel %vm1276, %v6806, %v6810
        %v6812 = vshrl.u32 %v6499, 16
        %v6814 = vrot.slane %v6812, 4
        %v6815 = vor.u32 %v6814, %v6810
        %v6816 = vrot.slane %v6815, 4
        %v6818 = vshll.u32 %v6500, 16
        %v6820 = vrot.slane %v6818, 5
        %v6821 = vsel %vm1276, %v6816, %v6820
        %v6823 = vshrl.u32 %v6501, 16
        %v6825 = vrot.slane %v6823, 4
        %v6826 = vshll.u32 %v6501, 16
        %v6828 = vrot.slane %v6826, 5
        %v6829 = vor.u32 %v6825, %v6828
        %v6830 = vrot.slane %v6829, 4
        %v6832 = vshll.u32 %v6502, 16
        %v6834 = vrot.slane %v6832, 5
        %v6835 = vsel %vm1276, %v6830, %v6834
        %v6836 = vshrl.u32 %v6502, 16
        %v6838 = vrot.slane %v6836, 4
        %v6839 = vor.u32 %v6838, %v6834
        %v6840 = vrot.slane %v6839, 4
        %v6842 = vshll.u32 %v6503, 16
        %v6844 = vrot.slane %v6842, 5
        %v6845 = vsel %vm1276, %v6840, %v6844
        %v6847 = vshrl.u32 %v6504, 16
        %v6849 = vrot.slane %v6847, 4
        %v6850 = vshll.u32 %v6504, 16
        %v6852 = vrot.slane %v6850, 5
        %v6853 = vor.u32 %v6849, %v6852
        %v6854 = vrot.slane %v6853, 4
        %v6856 = vshll.u32 %v6505, 16
        %v6858 = vrot.slane %v6856, 5
        %v6859 = vsel %vm1276, %v6854, %v6858
        %v6860 = vshrl.u32 %v6505, 16
        %v6862 = vrot.slane %v6860, 4
        %v6863 = vor.u32 %v6862, %v6858
        %v6864 = vrot.slane %v6863, 4
        %v6866 = vshll.u32 %v6506, 16
        %v6868 = vrot.slane %v6866, 5
        %v6869 = vsel %vm1276, %v6864, %v6868
        %v6871 = vshrl.u32 %v6507, 16
        %v6873 = vrot.slane %v6871, 4
        %v6874 = vshll.u32 %v6507, 16
        %v6876 = vrot.slane %v6874, 5
        %v6877 = vor.u32 %v6873, %v6876
        %v6878 = vrot.slane %v6877, 4
        %v6880 = vshll.u32 %v6508, 16
        %v6882 = vrot.slane %v6880, 5
        %v6883 = vsel %vm1276, %v6878, %v6882
        %v6884 = vshrl.u32 %v6508, 16
        %v6886 = vrot.slane %v6884, 4
        %v6887 = vor.u32 %v6886, %v6882
        %v6888 = vrot.slane %v6887, 4
        %v6890 = vshll.u32 %v6509, 16
        %v6892 = vrot.slane %v6890, 5
        %v6893 = vsel %vm1276, %v6888, %v6892
        %s6894 = scalar_lea.vmem %s3, 4
        %v6895 = vld [vmem:[%s6894] sm:$0xf]
        %v6896 = vunpack.c.l.b16 %v6523
        %v6897 = vunpack.c.l.b16 %v6533
        %v6898 = vunpack.c.l.b16 %v6547
        %v6899 = vunpack.c.l.b16 %v6557
        %v6900 = vunpack.c.l.b16 %v6571
        %v6901 = vunpack.c.l.b16 %v6581
        %v6902 = vunpack.c.l.b16 %v6595
        %v6903 = vunpack.c.l.b16 %v6605
        %v6904 = vunpack.c.l.b16 %v6619
        %v6905 = vunpack.c.l.b16 %v6629
        %v6906 = vunpack.c.l.b16 %v6643
        %v6907 = vunpack.c.l.b16 %v6653
        %v6908 = vunpack.c.l.b16 %v6667
        %v6909 = vunpack.c.l.b16 %v6677
        %v6910 = vunpack.c.l.b16 %v6691
        %v6911 = vunpack.c.l.b16 %v6701
        %v6912 = vunpack.c.l.b16 %v6715
        %v6913 = vunpack.c.l.b16 %v6725
        %v6914 = vunpack.c.l.b16 %v6739
        %v6915 = vunpack.c.l.b16 %v6749
        %v6916 = vunpack.c.l.b16 %v6763
        %v6917 = vunpack.c.l.b16 %v6773
        %v6918 = vunpack.c.l.b16 %v6787
        %v6919 = vunpack.c.l.b16 %v6797
        %v6920 = vunpack.c.l.b16 %v6811
        %v6921 = vunpack.c.l.b16 %v6821
        %v6922 = vunpack.c.l.b16 %v6835
        %v6923 = vunpack.c.l.b16 %v6845
        %v6924 = vunpack.c.l.b16 %v6859
        %v6925 = vunpack.c.l.b16 %v6869
        %v6926 = vunpack.c.l.b16 %v6883
        %v6927 = vunpack.c.l.b16 %v6893
        %v6928 = vpack.c.b16 %v6897, %v6896
        %v6929 = vpack.c.b16 %v6899, %v6898
        %v6930 = vpack.c.b16 %v6901, %v6900
        %v6931 = vpack.c.b16 %v6903, %v6902
        %v6932 = vpack.c.b16 %v6905, %v6904
        %v6933 = vpack.c.b16 %v6907, %v6906
        %v6934 = vpack.c.b16 %v6909, %v6908
        %v6935 = vpack.c.b16 %v6911, %v6910
        %v6936 = vpack.c.b16 %v6913, %v6912
        %v6937 = vpack.c.b16 %v6915, %v6914
        %v6938 = vpack.c.b16 %v6917, %v6916
        %v6939 = vpack.c.b16 %v6919, %v6918
        %v6940 = vpack.c.b16 %v6921, %v6920
        %v6941 = vpack.c.b16 %v6923, %v6922
        %v6942 = vpack.c.b16 %v6925, %v6924
        %v6943 = vpack.c.b16 %v6927, %v6926
        %v6945 = vsel %vm980, %v6928, 0
        %v6948 = vsel %vm980, %v6929, 0
        %v6951 = vsel %vm980, %v6930, 0
        %v6954 = vsel %vm980, %v6931, 0
        %v6957 = vsel %vm980, %v6932, 0
        %v6960 = vsel %vm980, %v6933, 0
        %v6963 = vsel %vm980, %v6934, 0
        %v6966 = vsel %vm980, %v6935, 0
        %v6969 = vsel %vm980, %v6936, 0
        %v6972 = vsel %vm980, %v6937, 0
        %v6975 = vsel %vm980, %v6938, 0
        %v6978 = vsel %vm980, %v6939, 0
        %v6981 = vsel %vm980, %v6940, 0
        %v6984 = vsel %vm980, %v6941, 0
        %v6987 = vsel %vm980, %v6942, 0
        %v6990 = vsel %vm980, %v6943, 0
        %v6993 = vsel %vm1029, %v6895, 0
        %6995 = vmatprep.subr.bf16.mxu0 0
        %6996 = vmatpush1.bf16.msra.mxu0 %v6993
        %6997 = vmatprep.subr.bf16.mxu0 0
        %6998 = vmatpush1.bf16.msra.mxu0 0
        %6999 = vmatprep.subr.bf16.mxu0 0
        %7000 = vmatpush1.bf16.msra.mxu0 0
        %7001 = vmatprep.subr.bf16.mxu0 0
        %7002 = vmatpush1.bf16.msra.mxu0 0
        %7003 = vmatprep.subr.bf16.mxu0 0
        %7004 = vmatpush1.bf16.msra.mxu0 0
        %7005 = vmatprep.subr.bf16.mxu0 0
        %7006 = vmatpush1.bf16.msra.mxu0 0
        %7007 = vmatprep.subr.bf16.mxu0 0
        %7008 = vmatpush1.bf16.msra.mxu0 0
        %7009 = vmatprep.subr.bf16.mxu0 0
        %7010 = vmatpush1.bf16.msra.mxu0 0
        %7011 = vmatprep.subr.bf16.mxu0 0
        %7012 = vmatpush1.bf16.msra.mxu0 0
        %7013 = vmatprep.subr.bf16.mxu0 0
        %7014 = vmatpush1.bf16.msra.mxu0 0
        %7015 = vmatprep.subr.bf16.mxu0 0
        %7016 = vmatpush1.bf16.msra.mxu0 0
        %7017 = vmatprep.subr.bf16.mxu0 0
        %7018 = vmatpush1.bf16.msra.mxu0 0
        %7019 = vmatprep.subr.bf16.mxu0 0
        %7020 = vmatpush1.bf16.msra.mxu0 0
        %7021 = vmatprep.subr.bf16.mxu0 0
        %7022 = vmatpush1.bf16.msra.mxu0 0
        %7023 = vmatprep.subr.bf16.mxu0 0
        %7024 = vmatpush1.bf16.msra.mxu0 0
        %7025 = vmatprep.subr.bf16.mxu0 0
        %7026 = vmatpush1.bf16.msra.mxu0 0
        %7027 = vmatprep.mubr.bf16.mxu0 0
        %7028 = vmatmul.mubr.bf16.gmra.mrb[0].mxu0 %v6945
        %v7029 = vpop.f32.mrb[0].mxu0
        %v7030 = vadd.f32 0.0, %v7029
        %v7031 = vpop.f32.mrb[0].mxu0
        %v7032 = vpop.f32.mrb[0].mxu0
        %v7033 = vadd.f32 0.0, %v7032
        %v7034 = vpop.f32.mrb[0].mxu0
        %7035 = vmatprep.mubr.bf16.mxu0 0
        %7036 = vmatmul.mubr.bf16.gmra.mrb[0].mxu0 %v6948
        %v7037 = vpop.f32.mrb[0].mxu0
        %v7038 = vadd.f32 0.0, %v7037
        %v7039 = vpop.f32.mrb[0].mxu0
        %v7040 = vpop.f32.mrb[0].mxu0
        %v7041 = vadd.f32 0.0, %v7040
        %v7042 = vpop.f32.mrb[0].mxu0
        %7043 = vmatprep.mubr.bf16.mxu0 0
        %7044 = vmatmul.mubr.bf16.gmra.mrb[0].mxu0 %v6951
        %v7045 = vpop.f32.mrb[0].mxu0
        %v7046 = vadd.f32 0.0, %v7045
        %v7047 = vpop.f32.mrb[0].mxu0
        %v7048 = vpop.f32.mrb[0].mxu0
        %v7049 = vadd.f32 0.0, %v7048
        %v7050 = vpop.f32.mrb[0].mxu0
        %7051 = vmatprep.mubr.bf16.mxu0 0
        %7052 = vmatmul.mubr.bf16.gmra.mrb[0].mxu0 %v6954
        %v7053 = vpop.f32.mrb[0].mxu0
        %v7054 = vadd.f32 0.0, %v7053
        %v7055 = vpop.f32.mrb[0].mxu0
        %v7056 = vpop.f32.mrb[0].mxu0
        %v7057 = vadd.f32 0.0, %v7056
        %v7058 = vpop.f32.mrb[0].mxu0
        %7059 = vmatprep.mubr.bf16.mxu0 0
        %7060 = vmatmul.mubr.bf16.gmra.mrb[0].mxu0 %v6957
        %v7061 = vpop.f32.mrb[0].mxu0
        %v7062 = vadd.f32 0.0, %v7061
        %v7063 = vpop.f32.mrb[0].mxu0
        %v7064 = vpop.f32.mrb[0].mxu0
        %v7065 = vadd.f32 0.0, %v7064
        %v7066 = vpop.f32.mrb[0].mxu0
        %7067 = vmatprep.mubr.bf16.mxu0 0
        %7068 = vmatmul.mubr.bf16.gmra.mrb[0].mxu0 %v6960
        %v7069 = vpop.f32.mrb[0].mxu0
        %v7070 = vadd.f32 0.0, %v7069
        %v7071 = vpop.f32.mrb[0].mxu0
        %v7072 = vpop.f32.mrb[0].mxu0
        %v7073 = vadd.f32 0.0, %v7072
        %v7074 = vpop.f32.mrb[0].mxu0
        %7075 = vmatprep.mubr.bf16.mxu0 0
        %7076 = vmatmul.mubr.bf16.gmra.mrb[0].mxu0 %v6963
        %v7077 = vpop.f32.mrb[0].mxu0
        %v7078 = vadd.f32 0.0, %v7077
        %v7079 = vpop.f32.mrb[0].mxu0
        %v7080 = vpop.f32.mrb[0].mxu0
        %v7081 = vadd.f32 0.0, %v7080
        %v7082 = vpop.f32.mrb[0].mxu0
        %7083 = vmatprep.mubr.bf16.mxu0 0
        %7084 = vmatmul.mubr.bf16.gmra.mrb[0].mxu0 %v6966
        %v7085 = vpop.f32.mrb[0].mxu0
        %v7086 = vadd.f32 0.0, %v7085
        %v7087 = vpop.f32.mrb[0].mxu0
        %v7088 = vpop.f32.mrb[0].mxu0
        %v7089 = vadd.f32 0.0, %v7088
        %v7090 = vpop.f32.mrb[0].mxu0
        %7091 = vmatprep.mubr.bf16.mxu0 0
        %7092 = vmatmul.mubr.bf16.gmra.mrb[0].mxu0 %v6969
        %v7093 = vpop.f32.mrb[0].mxu0
        %v7094 = vadd.f32 0.0, %v7093
        %v7095 = vpop.f32.mrb[0].mxu0
        %v7096 = vpop.f32.mrb[0].mxu0
        %v7097 = vadd.f32 0.0, %v7096
        %v7098 = vpop.f32.mrb[0].mxu0
        %7099 = vmatprep.mubr.bf16.mxu0 0
        %7100 = vmatmul.mubr.bf16.gmra.mrb[0].mxu0 %v6972
        %v7101 = vpop.f32.mrb[0].mxu0
        %v7102 = vadd.f32 0.0, %v7101
        %v7103 = vpop.f32.mrb[0].mxu0
        %v7104 = vpop.f32.mrb[0].mxu0
        %v7105 = vadd.f32 0.0, %v7104
        %v7106 = vpop.f32.mrb[0].mxu0
        %7107 = vmatprep.mubr.bf16.mxu0 0
        %7108 = vmatmul.mubr.bf16.gmra.mrb[0].mxu0 %v6975
        %v7109 = vpop.f32.mrb[0].mxu0
        %v7110 = vadd.f32 0.0, %v7109
        %v7111 = vpop.f32.mrb[0].mxu0
        %v7112 = vpop.f32.mrb[0].mxu0
        %v7113 = vadd.f32 0.0, %v7112
        %v7114 = vpop.f32.mrb[0].mxu0
        %7115 = vmatprep.mubr.bf16.mxu0 0
        %7116 = vmatmul.mubr.bf16.gmra.mrb[0].mxu0 %v6978
        %v7117 = vpop.f32.mrb[0].mxu0
        %v7118 = vadd.f32 0.0, %v7117
        %v7119 = vpop.f32.mrb[0].mxu0
        %v7120 = vpop.f32.mrb[0].mxu0
        %v7121 = vadd.f32 0.0, %v7120
        %v7122 = vpop.f32.mrb[0].mxu0
        %7123 = vmatprep.mubr.bf16.mxu0 0
        %7124 = vmatmul.mubr.bf16.gmra.mrb[0].mxu0 %v6981
        %v7125 = vpop.f32.mrb[0].mxu0
        %v7126 = vadd.f32 0.0, %v7125
        %v7127 = vpop.f32.mrb[0].mxu0
        %v7128 = vpop.f32.mrb[0].mxu0
        %v7129 = vadd.f32 0.0, %v7128
        %v7130 = vpop.f32.mrb[0].mxu0
        %7131 = vmatprep.mubr.bf16.mxu0 0
        %7132 = vmatmul.mubr.bf16.gmra.mrb[0].mxu0 %v6984
        %v7133 = vpop.f32.mrb[0].mxu0
        %v7134 = vadd.f32 0.0, %v7133
        %v7135 = vpop.f32.mrb[0].mxu0
        %v7136 = vpop.f32.mrb[0].mxu0
        %v7137 = vadd.f32 0.0, %v7136
        %v7138 = vpop.f32.mrb[0].mxu0
        %7139 = vmatprep.mubr.bf16.mxu0 0
        %7140 = vmatmul.mubr.bf16.gmra.mrb[0].mxu0 %v6987
        %v7141 = vpop.f32.mrb[0].mxu0
        %v7142 = vadd.f32 0.0, %v7141
        %v7143 = vpop.f32.mrb[0].mxu0
        %v7144 = vpop.f32.mrb[0].mxu0
        %v7145 = vadd.f32 0.0, %v7144
        %v7146 = vpop.f32.mrb[0].mxu0
        %7147 = vmatprep.mubr.bf16.mxu0 0
        %7148 = vmatmul.mubr.bf16.gmra.mrb[0].mxu0 %v6990
        %v7149 = vpop.f32.mrb[0].mxu0
        %v7150 = vadd.f32 0.0, %v7149
        %v7151 = vpop.f32.mrb[0].mxu0
        %v7152 = vpop.f32.mrb[0].mxu0
        %v7153 = vadd.f32 0.0, %v7152
        %v7154 = vpop.f32.mrb[0].mxu0
        %7155 = vdwg.mxu0
        %v7156 = vadd.f32 %v6430, %v7030
        %v7157 = vadd.f32 %v6431, %v7033
        %v7158 = vadd.f32 %v6432, %v7038
        %v7159 = vadd.f32 %v6433, %v7041
        %v7160 = vadd.f32 %v6434, %v7046
        %v7161 = vadd.f32 %v6435, %v7049
        %v7162 = vadd.f32 %v6436, %v7054
        %v7163 = vadd.f32 %v6437, %v7057
        %v7164 = vadd.f32 %v6438, %v7062
        %v7165 = vadd.f32 %v6439, %v7065
        %v7166 = vadd.f32 %v6440, %v7070
        %v7167 = vadd.f32 %v6441, %v7073
        %v7168 = vadd.f32 %v6442, %v7078
        %v7169 = vadd.f32 %v6443, %v7081
        %v7170 = vadd.f32 %v6444, %v7086
        %v7171 = vadd.f32 %v6445, %v7089
        %v7172 = vadd.f32 %v6446, %v7094
        %v7173 = vadd.f32 %v6447, %v7097
        %v7174 = vadd.f32 %v6448, %v7102
        %v7175 = vadd.f32 %v6449, %v7105
        %v7176 = vadd.f32 %v6450, %v7110
        %v7177 = vadd.f32 %v6451, %v7113
        %v7178 = vadd.f32 %v6452, %v7118
        %v7179 = vadd.f32 %v6453, %v7121
        %v7180 = vadd.f32 %v6454, %v7126
        %v7181 = vadd.f32 %v6455, %v7129
        %v7182 = vadd.f32 %v6456, %v7134
        %v7183 = vadd.f32 %v6457, %v7137
        %v7184 = vadd.f32 %v6458, %v7142
        %v7185 = vadd.f32 %v6459, %v7145
        %v7186 = vadd.f32 %v6460, %v7150
        %v7187 = vadd.f32 %v6461, %v7153
        %v7188 = vld [vmem:[#allocation3] sm:$0xe]
        %v7189 = vld [vmem:[#allocation3 + $0xc] sm:$0xe]
        %v7190 = vld [vmem:[#allocation3 + $0x18] sm:$0xe]
        %v7191 = vld [vmem:[#allocation3 + $0x24] sm:$0xe]
        %v7192 = vld [vmem:[#allocation3 + $0x30] sm:$0xe]
        %v7193 = vld [vmem:[#allocation3 + $0x3c] sm:$0xe]
        %v7194 = vld [vmem:[#allocation3 + $0x48] sm:$0xe]
        %v7195 = vld [vmem:[#allocation3 + $0x54] sm:$0xe]
        %v7196 = vld [vmem:[#allocation3 + $0x60] sm:$0xe]
        %v7197 = vld [vmem:[#allocation3 + $0x6c] sm:$0xe]
        %v7198 = vld [vmem:[#allocation3 + $0x78] sm:$0xe]
        %v7199 = vld [vmem:[#allocation3 + $0x84] sm:$0xe]
        %v7200 = vld [vmem:[#allocation3 + $0x90] sm:$0xe]
        %v7201 = vld [vmem:[#allocation3 + $0x9c] sm:$0xe]
        %v7202 = vld [vmem:[#allocation3 + $0xa8] sm:$0xe]
        %v7203 = vld [vmem:[#allocation3 + $0xb4] sm:$0xe]
        %v7252 = vrot.slane %v7188, 5
        %v7253 = vrot.slane %v7252, 4
        %v7254 = vrot.slane %v6463, 5
        %v7255 = vsel %vm2021, %v7253, %v7254
        %v7256 = vrot.slane %v7254, 4
        %v7257 = vrot.slane %v6464, 5
        %v7258 = vsel %vm2021, %v7256, %v7257
        %v7259 = vrot.slane %v7189, 5
        %v7260 = vrot.slane %v7259, 4
        %v7261 = vrot.slane %v6466, 5
        %v7262 = vsel %vm2021, %v7260, %v7261
        %v7263 = vrot.slane %v7261, 4
        %v7264 = vrot.slane %v6467, 5
        %v7265 = vsel %vm2021, %v7263, %v7264
        %v7266 = vrot.slane %v7190, 5
        %v7267 = vrot.slane %v7266, 4
        %v7268 = vrot.slane %v6469, 5
        %v7269 = vsel %vm2021, %v7267, %v7268
        %v7270 = vrot.slane %v7268, 4
        %v7271 = vrot.slane %v6470, 5
        %v7272 = vsel %vm2021, %v7270, %v7271
        %v7273 = vrot.slane %v7191, 5
        %v7274 = vrot.slane %v7273, 4
        %v7275 = vrot.slane %v6472, 5
        %v7276 = vsel %vm2021, %v7274, %v7275
        %v7277 = vrot.slane %v7275, 4
        %v7278 = vrot.slane %v6473, 5
        %v7279 = vsel %vm2021, %v7277, %v7278
        %v7280 = vrot.slane %v7192, 5
        %v7281 = vrot.slane %v7280, 4
        %v7282 = vrot.slane %v6475, 5
        %v7283 = vsel %vm2021, %v7281, %v7282
        %v7284 = vrot.slane %v7282, 4
        %v7285 = vrot.slane %v6476, 5
        %v7286 = vsel %vm2021, %v7284, %v7285
        %v7287 = vrot.slane %v7193, 5
        %v7288 = vrot.slane %v7287, 4
        %v7289 = vrot.slane %v6478, 5
        %v7290 = vsel %vm2021, %v7288, %v7289
        %v7291 = vrot.slane %v7289, 4
        %v7292 = vrot.slane %v6479, 5
        %v7293 = vsel %vm2021, %v7291, %v7292
        %v7294 = vrot.slane %v7194, 5
        %v7295 = vrot.slane %v7294, 4
        %v7296 = vrot.slane %v6481, 5
        %v7297 = vsel %vm2021, %v7295, %v7296
        %v7298 = vrot.slane %v7296, 4
        %v7299 = vrot.slane %v6482, 5
        %v7300 = vsel %vm2021, %v7298, %v7299
        %v7301 = vrot.slane %v7195, 5
        %v7302 = vrot.slane %v7301, 4
        %v7303 = vrot.slane %v6484, 5
        %v7304 = vsel %vm2021, %v7302, %v7303
        %v7305 = vrot.slane %v7303, 4
        %v7306 = vrot.slane %v6485, 5
        %v7307 = vsel %vm2021, %v7305, %v7306
        %v7308 = vrot.slane %v7196, 5
        %v7309 = vrot.slane %v7308, 4
        %v7310 = vrot.slane %v6487, 5
        %v7311 = vsel %vm2021, %v7309, %v7310
        %v7312 = vrot.slane %v7310, 4
        %v7313 = vrot.slane %v6488, 5
        %v7314 = vsel %vm2021, %v7312, %v7313
        %v7315 = vrot.slane %v7197, 5
        %v7316 = vrot.slane %v7315, 4
        %v7317 = vrot.slane %v6490, 5
        %v7318 = vsel %vm2021, %v7316, %v7317
        %v7319 = vrot.slane %v7317, 4
        %v7320 = vrot.slane %v6491, 5
        %v7321 = vsel %vm2021, %v7319, %v7320
        %v7322 = vrot.slane %v7198, 5
        %v7323 = vrot.slane %v7322, 4
        %v7324 = vrot.slane %v6493, 5
        %v7325 = vsel %vm2021, %v7323, %v7324
        %v7326 = vrot.slane %v7324, 4
        %v7327 = vrot.slane %v6494, 5
        %v7328 = vsel %vm2021, %v7326, %v7327
        %v7329 = vrot.slane %v7199, 5
        %v7330 = vrot.slane %v7329, 4
        %v7331 = vrot.slane %v6496, 5
        %v7332 = vsel %vm2021, %v7330, %v7331
        %v7333 = vrot.slane %v7331, 4
        %v7334 = vrot.slane %v6497, 5
        %v7335 = vsel %vm2021, %v7333, %v7334
        %v7336 = vrot.slane %v7200, 5
        %v7337 = vrot.slane %v7336, 4
        %v7338 = vrot.slane %v6499, 5
        %v7339 = vsel %vm2021, %v7337, %v7338
        %v7340 = vrot.slane %v7338, 4
        %v7341 = vrot.slane %v6500, 5
        %v7342 = vsel %vm2021, %v7340, %v7341
        %v7343 = vrot.slane %v7201, 5
        %v7344 = vrot.slane %v7343, 4
        %v7345 = vrot.slane %v6502, 5
        %v7346 = vsel %vm2021, %v7344, %v7345
        %v7347 = vrot.slane %v7345, 4
        %v7348 = vrot.slane %v6503, 5
        %v7349 = vsel %vm2021, %v7347, %v7348
        %v7350 = vrot.slane %v7202, 5
        %v7351 = vrot.slane %v7350, 4
        %v7352 = vrot.slane %v6505, 5
        %v7353 = vsel %vm2021, %v7351, %v7352
        %v7354 = vrot.slane %v7352, 4
        %v7355 = vrot.slane %v6506, 5
        %v7356 = vsel %vm2021, %v7354, %v7355
        %v7357 = vrot.slane %v7203, 5
        %v7358 = vrot.slane %v7357, 4
        %v7359 = vrot.slane %v6508, 5
        %v7360 = vsel %vm2021, %v7358, %v7359
        %v7361 = vrot.slane %v7359, 4
        %v7362 = vrot.slane %v6509, 5
        %v7363 = vsel %vm2021, %v7361, %v7362
        %s7364 = scalar_lea.vmem %s3, 8
        %v7365 = vld [vmem:[%s7364] sm:$0xf]
        %v7366 = vunpack.c.l.b16 %v7255
        %v7367 = vunpack.c.l.b16 %v7258
        %v7368 = vunpack.c.l.b16 %v7262
        %v7369 = vunpack.c.l.b16 %v7265
        %v7370 = vunpack.c.l.b16 %v7269
        %v7371 = vunpack.c.l.b16 %v7272
        %v7372 = vunpack.c.l.b16 %v7276
        %v7373 = vunpack.c.l.b16 %v7279
        %v7374 = vunpack.c.l.b16 %v7283
        %v7375 = vunpack.c.l.b16 %v7286
        %v7376 = vunpack.c.l.b16 %v7290
        %v7377 = vunpack.c.l.b16 %v7293
        %v7378 = vunpack.c.l.b16 %v7297
        %v7379 = vunpack.c.l.b16 %v7300
        %v7380 = vunpack.c.l.b16 %v7304
        %v7381 = vunpack.c.l.b16 %v7307
        %v7382 = vunpack.c.l.b16 %v7311
        %v7383 = vunpack.c.l.b16 %v7314
        %v7384 = vunpack.c.l.b16 %v7318
        %v7385 = vunpack.c.l.b16 %v7321
        %v7386 = vunpack.c.l.b16 %v7325
        %v7387 = vunpack.c.l.b16 %v7328
        %v7388 = vunpack.c.l.b16 %v7332
        %v7389 = vunpack.c.l.b16 %v7335
        %v7390 = vunpack.c.l.b16 %v7339
        %v7391 = vunpack.c.l.b16 %v7342
        %v7392 = vunpack.c.l.b16 %v7346
        %v7393 = vunpack.c.l.b16 %v7349
        %v7394 = vunpack.c.l.b16 %v7353
        %v7395 = vunpack.c.l.b16 %v7356
        %v7396 = vunpack.c.l.b16 %v7360
        %v7397 = vunpack.c.l.b16 %v7363
        %v7398 = vpack.c.b16 %v7367, %v7366
        %v7399 = vpack.c.b16 %v7369, %v7368
        %v7400 = vpack.c.b16 %v7371, %v7370
        %v7401 = vpack.c.b16 %v7373, %v7372
        %v7402 = vpack.c.b16 %v7375, %v7374
        %v7403 = vpack.c.b16 %v7377, %v7376
        %v7404 = vpack.c.b16 %v7379, %v7378
        %v7405 = vpack.c.b16 %v7381, %v7380
        %v7406 = vpack.c.b16 %v7383, %v7382
        %v7407 = vpack.c.b16 %v7385, %v7384
        %v7408 = vpack.c.b16 %v7387, %v7386
        %v7409 = vpack.c.b16 %v7389, %v7388
        %v7410 = vpack.c.b16 %v7391, %v7390
        %v7411 = vpack.c.b16 %v7393, %v7392
        %v7412 = vpack.c.b16 %v7395, %v7394
        %v7413 = vpack.c.b16 %v7397, %v7396
        %v7415 = vsel %vm980, %v7398, 0
        %v7418 = vsel %vm980, %v7399, 0
        %v7421 = vsel %vm980, %v7400, 0
        %v7424 = vsel %vm980, %v7401, 0
        %v7427 = vsel %vm980, %v7402, 0
        %v7430 = vsel %vm980, %v7403, 0
        %v7433 = vsel %vm980, %v7404, 0
        %v7436 = vsel %vm980, %v7405, 0
        %v7439 = vsel %vm980, %v7406, 0
        %v7442 = vsel %vm980, %v7407, 0
        %v7445 = vsel %vm980, %v7408, 0
        %v7448 = vsel %vm980, %v7409, 0
        %v7451 = vsel %vm980, %v7410, 0
        %v7454 = vsel %vm980, %v7411, 0
        %v7457 = vsel %vm980, %v7412, 0
        %v7460 = vsel %vm980, %v7413, 0
        %v7463 = vsel %vm1029, %v7365, 0
        %7465 = vmatprep.subr.bf16.mxu0 0
        %7466 = vmatpush1.bf16.msra.mxu0 %v7463
        %7467 = vmatprep.subr.bf16.mxu0 0
        %7468 = vmatpush1.bf16.msra.mxu0 0
        %7469 = vmatprep.subr.bf16.mxu0 0
        %7470 = vmatpush1.bf16.msra.mxu0 0
        %7471 = vmatprep.subr.bf16.mxu0 0
        %7472 = vmatpush1.bf16.msra.mxu0 0
        %7473 = vmatprep.subr.bf16.mxu0 0
        %7474 = vmatpush1.bf16.msra.mxu0 0
        %7475 = vmatprep.subr.bf16.mxu0 0
        %7476 = vmatpush1.bf16.msra.mxu0 0
        %7477 = vmatprep.subr.bf16.mxu0 0
        %7478 = vmatpush1.bf16.msra.mxu0 0
        %7479 = vmatprep.subr.bf16.mxu0 0
        %7480 = vmatpush1.bf16.msra.mxu0 0
        %7481 = vmatprep.subr.bf16.mxu0 0
        %7482 = vmatpush1.bf16.msra.mxu0 0
        %7483 = vmatprep.subr.bf16.mxu0 0
        %7484 = vmatpush1.bf16.msra.mxu0 0
        %7485 = vmatprep.subr.bf16.mxu0 0
        %7486 = vmatpush1.bf16.msra.mxu0 0
        %7487 = vmatprep.subr.bf16.mxu0 0
        %7488 = vmatpush1.bf16.msra.mxu0 0
        %7489 = vmatprep.subr.bf16.mxu0 0
        %7490 = vmatpush1.bf16.msra.mxu0 0
        %7491 = vmatprep.subr.bf16.mxu0 0
        %7492 = vmatpush1.bf16.msra.mxu0 0
        %7493 = vmatprep.subr.bf16.mxu0 0
        %7494 = vmatpush1.bf16.msra.mxu0 0
        %7495 = vmatprep.subr.bf16.mxu0 0
        %7496 = vmatpush1.bf16.msra.mxu0 0
        %7497 = vmatprep.mubr.bf16.mxu0 0
        %7498 = vmatmul.mubr.bf16.gmra.mrb[0].mxu0 %v7415
        %v7499 = vpop.f32.mrb[0].mxu0
        %v7500 = vadd.f32 0.0, %v7499
        %v7501 = vpop.f32.mrb[0].mxu0
        %v7502 = vpop.f32.mrb[0].mxu0
        %v7503 = vadd.f32 0.0, %v7502
        %v7504 = vpop.f32.mrb[0].mxu0
        %7505 = vmatprep.mubr.bf16.mxu0 0
        %7506 = vmatmul.mubr.bf16.gmra.mrb[0].mxu0 %v7418
        %v7507 = vpop.f32.mrb[0].mxu0
        %v7508 = vadd.f32 0.0, %v7507
        %v7509 = vpop.f32.mrb[0].mxu0
        %v7510 = vpop.f32.mrb[0].mxu0
        %v7511 = vadd.f32 0.0, %v7510
        %v7512 = vpop.f32.mrb[0].mxu0
        %7513 = vmatprep.mubr.bf16.mxu0 0
        %7514 = vmatmul.mubr.bf16.gmra.mrb[0].mxu0 %v7421
        %v7515 = vpop.f32.mrb[0].mxu0
        %v7516 = vadd.f32 0.0, %v7515
        %v7517 = vpop.f32.mrb[0].mxu0
        %v7518 = vpop.f32.mrb[0].mxu0
        %v7519 = vadd.f32 0.0, %v7518
        %v7520 = vpop.f32.mrb[0].mxu0
        %7521 = vmatprep.mubr.bf16.mxu0 0
        %7522 = vmatmul.mubr.bf16.gmra.mrb[0].mxu0 %v7424
        %v7523 = vpop.f32.mrb[0].mxu0
        %v7524 = vadd.f32 0.0, %v7523
        %v7525 = vpop.f32.mrb[0].mxu0
        %v7526 = vpop.f32.mrb[0].mxu0
        %v7527 = vadd.f32 0.0, %v7526
        %v7528 = vpop.f32.mrb[0].mxu0
        %7529 = vmatprep.mubr.bf16.mxu0 0
        %7530 = vmatmul.mubr.bf16.gmra.mrb[0].mxu0 %v7427
        %v7531 = vpop.f32.mrb[0].mxu0
        %v7532 = vadd.f32 0.0, %v7531
        %v7533 = vpop.f32.mrb[0].mxu0
        %v7534 = vpop.f32.mrb[0].mxu0
        %v7535 = vadd.f32 0.0, %v7534
        %v7536 = vpop.f32.mrb[0].mxu0
        %7537 = vmatprep.mubr.bf16.mxu0 0
        %7538 = vmatmul.mubr.bf16.gmra.mrb[0].mxu0 %v7430
        %v7539 = vpop.f32.mrb[0].mxu0
        %v7540 = vadd.f32 0.0, %v7539
        %v7541 = vpop.f32.mrb[0].mxu0
        %v7542 = vpop.f32.mrb[0].mxu0
        %v7543 = vadd.f32 0.0, %v7542
        %v7544 = vpop.f32.mrb[0].mxu0
        %7545 = vmatprep.mubr.bf16.mxu0 0
        %7546 = vmatmul.mubr.bf16.gmra.mrb[0].mxu0 %v7433
        %v7547 = vpop.f32.mrb[0].mxu0
        %v7548 = vadd.f32 0.0, %v7547
        %v7549 = vpop.f32.mrb[0].mxu0
        %v7550 = vpop.f32.mrb[0].mxu0
        %v7551 = vadd.f32 0.0, %v7550
        %v7552 = vpop.f32.mrb[0].mxu0
        %7553 = vmatprep.mubr.bf16.mxu0 0
        %7554 = vmatmul.mubr.bf16.gmra.mrb[0].mxu0 %v7436
        %v7555 = vpop.f32.mrb[0].mxu0
        %v7556 = vadd.f32 0.0, %v7555
        %v7557 = vpop.f32.mrb[0].mxu0
        %v7558 = vpop.f32.mrb[0].mxu0
        %v7559 = vadd.f32 0.0, %v7558
        %v7560 = vpop.f32.mrb[0].mxu0
        %7561 = vmatprep.mubr.bf16.mxu0 0
        %7562 = vmatmul.mubr.bf16.gmra.mrb[0].mxu0 %v7439
        %v7563 = vpop.f32.mrb[0].mxu0
        %v7564 = vadd.f32 0.0, %v7563
        %v7565 = vpop.f32.mrb[0].mxu0
        %v7566 = vpop.f32.mrb[0].mxu0
        %v7567 = vadd.f32 0.0, %v7566
        %v7568 = vpop.f32.mrb[0].mxu0
        %7569 = vmatprep.mubr.bf16.mxu0 0
        %7570 = vmatmul.mubr.bf16.gmra.mrb[0].mxu0 %v7442
        %v7571 = vpop.f32.mrb[0].mxu0
        %v7572 = vadd.f32 0.0, %v7571
        %v7573 = vpop.f32.mrb[0].mxu0
        %v7574 = vpop.f32.mrb[0].mxu0
        %v7575 = vadd.f32 0.0, %v7574
        %v7576 = vpop.f32.mrb[0].mxu0
        %7577 = vmatprep.mubr.bf16.mxu0 0
        %7578 = vmatmul.mubr.bf16.gmra.mrb[0].mxu0 %v7445
        %v7579 = vpop.f32.mrb[0].mxu0
        %v7580 = vadd.f32 0.0, %v7579
        %v7581 = vpop.f32.mrb[0].mxu0
        %v7582 = vpop.f32.mrb[0].mxu0
        %v7583 = vadd.f32 0.0, %v7582
        %v7584 = vpop.f32.mrb[0].mxu0
        %7585 = vmatprep.mubr.bf16.mxu0 0
        %7586 = vmatmul.mubr.bf16.gmra.mrb[0].mxu0 %v7448
        %v7587 = vpop.f32.mrb[0].mxu0
        %v7588 = vadd.f32 0.0, %v7587
        %v7589 = vpop.f32.mrb[0].mxu0
        %v7590 = vpop.f32.mrb[0].mxu0
        %v7591 = vadd.f32 0.0, %v7590
        %v7592 = vpop.f32.mrb[0].mxu0
        %7593 = vmatprep.mubr.bf16.mxu0 0
        %7594 = vmatmul.mubr.bf16.gmra.mrb[0].mxu0 %v7451
        %v7595 = vpop.f32.mrb[0].mxu0
        %v7596 = vadd.f32 0.0, %v7595
        %v7597 = vpop.f32.mrb[0].mxu0
        %v7598 = vpop.f32.mrb[0].mxu0
        %v7599 = vadd.f32 0.0, %v7598
        %v7600 = vpop.f32.mrb[0].mxu0
        %7601 = vmatprep.mubr.bf16.mxu0 0
        %7602 = vmatmul.mubr.bf16.gmra.mrb[0].mxu0 %v7454
        %v7603 = vpop.f32.mrb[0].mxu0
        %v7604 = vadd.f32 0.0, %v7603
        %v7605 = vpop.f32.mrb[0].mxu0
        %v7606 = vpop.f32.mrb[0].mxu0
        %v7607 = vadd.f32 0.0, %v7606
        %v7608 = vpop.f32.mrb[0].mxu0
        %7609 = vmatprep.mubr.bf16.mxu0 0
        %7610 = vmatmul.mubr.bf16.gmra.mrb[0].mxu0 %v7457
        %v7611 = vpop.f32.mrb[0].mxu0
        %v7612 = vadd.f32 0.0, %v7611
        %v7613 = vpop.f32.mrb[0].mxu0
        %v7614 = vpop.f32.mrb[0].mxu0
        %v7615 = vadd.f32 0.0, %v7614
        %v7616 = vpop.f32.mrb[0].mxu0
        %7617 = vmatprep.mubr.bf16.mxu0 0
        %7618 = vmatmul.mubr.bf16.gmra.mrb[0].mxu0 %v7460
        %v7619 = vpop.f32.mrb[0].mxu0
        %v7620 = vadd.f32 0.0, %v7619
        %v7621 = vpop.f32.mrb[0].mxu0
        %v7622 = vpop.f32.mrb[0].mxu0
        %v7623 = vadd.f32 0.0, %v7622
        %v7624 = vpop.f32.mrb[0].mxu0
        %7625 = vdwg.mxu0
        %v7626 = vadd.f32 %v7156, %v7500
        %v7627 = vadd.f32 %v7157, %v7503
        %v7628 = vadd.f32 %v7158, %v7508
        %v7629 = vadd.f32 %v7159, %v7511
        %v7630 = vadd.f32 %v7160, %v7516
        %v7631 = vadd.f32 %v7161, %v7519
        %v7632 = vadd.f32 %v7162, %v7524
        %v7633 = vadd.f32 %v7163, %v7527
        %v7634 = vadd.f32 %v7164, %v7532
        %v7635 = vadd.f32 %v7165, %v7535
        %v7636 = vadd.f32 %v7166, %v7540
        %v7637 = vadd.f32 %v7167, %v7543
        %v7638 = vadd.f32 %v7168, %v7548
        %v7639 = vadd.f32 %v7169, %v7551
        %v7640 = vadd.f32 %v7170, %v7556
        %v7641 = vadd.f32 %v7171, %v7559
        %v7642 = vadd.f32 %v7172, %v7564
        %v7643 = vadd.f32 %v7173, %v7567
        %v7644 = vadd.f32 %v7174, %v7572
        %v7645 = vadd.f32 %v7175, %v7575
        %v7646 = vadd.f32 %v7176, %v7580
        %v7647 = vadd.f32 %v7177, %v7583
        %v7648 = vadd.f32 %v7178, %v7588
        %v7649 = vadd.f32 %v7179, %v7591
        %v7650 = vadd.f32 %v7180, %v7596
        %v7651 = vadd.f32 %v7181, %v7599
        %v7652 = vadd.f32 %v7182, %v7604
        %v7653 = vadd.f32 %v7183, %v7607
        %v7654 = vadd.f32 %v7184, %v7612
        %v7655 = vadd.f32 %v7185, %v7615
        %v7656 = vadd.f32 %v7186, %v7620
        %v7657 = vadd.f32 %v7187, %v7623
        %v7658 = vld [vmem:[%s5985] sm:$0xf]
        %v7659 = vld [vmem:[%s5985 + $0x4] sm:$0xf]
        %v7660 = vld [vmem:[%s5985 + $0xc] sm:$0xf]
        %v7661 = vld [vmem:[%s5985 + $0x10] sm:$0xf]
        %v7662 = vld [vmem:[%s5985 + $0x18] sm:$0xf]
        %v7663 = vld [vmem:[%s5985 + $0x1c] sm:$0xf]
        %v7664 = vld [vmem:[%s5985 + $0x24] sm:$0xf]
        %v7665 = vld [vmem:[%s5985 + $0x28] sm:$0xf]
        %v7666 = vld [vmem:[%s5985 + $0x30] sm:$0xf]
        %v7667 = vld [vmem:[%s5985 + $0x34] sm:$0xf]
        %v7668 = vld [vmem:[%s5985 + $0x3c] sm:$0xf]
        %v7669 = vld [vmem:[%s5985 + $0x40] sm:$0xf]
        %v7670 = vld [vmem:[%s5985 + $0x48] sm:$0xf]
        %v7671 = vld [vmem:[%s5985 + $0x4c] sm:$0xf]
        %v7672 = vld [vmem:[%s5985 + $0x54] sm:$0xf]
        %v7673 = vld [vmem:[%s5985 + $0x58] sm:$0xf]
        %v7674 = vld [vmem:[%s5985 + $0x60] sm:$0xf]
        %v7675 = vld [vmem:[%s5985 + $0x64] sm:$0xf]
        %v7676 = vld [vmem:[%s5985 + $0x6c] sm:$0xf]
        %v7677 = vld [vmem:[%s5985 + $0x70] sm:$0xf]
        %v7678 = vld [vmem:[%s5985 + $0x78] sm:$0xf]
        %v7679 = vld [vmem:[%s5985 + $0x7c] sm:$0xf]
        %v7680 = vld [vmem:[%s5985 + $0x84] sm:$0xf]
        %v7681 = vld [vmem:[%s5985 + $0x88] sm:$0xf]
        %v7682 = vld [vmem:[%s5985 + $0x90] sm:$0xf]
        %v7683 = vld [vmem:[%s5985 + $0x94] sm:$0xf]
        %v7684 = vld [vmem:[%s5985 + $0x9c] sm:$0xf]
        %v7685 = vld [vmem:[%s5985 + $0xa0] sm:$0xf]
        %v7686 = vld [vmem:[%s5985 + $0xa8] sm:$0xf]
        %v7687 = vld [vmem:[%s5985 + $0xac] sm:$0xf]
        %v7688 = vld [vmem:[%s5985 + $0xb4] sm:$0xf]
        %v7689 = vld [vmem:[%s5985 + $0xb8] sm:$0xf]
        %s7690 = scalar_lea.vmem %s3, 12
        %v7691 = vld [vmem:[%s7690] sm:$0xf]
        %v7724 = vunpack.c.l.b16 %v7658
        %v7725 = vunpack.c.l.b16 %v7659
        %v7726 = vunpack.c.l.b16 %v7660
        %v7727 = vunpack.c.l.b16 %v7661
        %v7728 = vunpack.c.l.b16 %v7662
        %v7729 = vunpack.c.l.b16 %v7663
        %v7730 = vunpack.c.l.b16 %v7664
        %v7731 = vunpack.c.l.b16 %v7665
        %v7732 = vunpack.c.l.b16 %v7666
        %v7733 = vunpack.c.l.b16 %v7667
        %v7734 = vunpack.c.l.b16 %v7668
        %v7735 = vunpack.c.l.b16 %v7669
        %v7736 = vunpack.c.l.b16 %v7670
        %v7737 = vunpack.c.l.b16 %v7671
        %v7738 = vunpack.c.l.b16 %v7672
        %v7739 = vunpack.c.l.b16 %v7673
        %v7740 = vunpack.c.l.b16 %v7674
        %v7741 = vunpack.c.l.b16 %v7675
        %v7742 = vunpack.c.l.b16 %v7676
        %v7743 = vunpack.c.l.b16 %v7677
        %v7744 = vunpack.c.l.b16 %v7678
        %v7745 = vunpack.c.l.b16 %v7679
        %v7746 = vunpack.c.l.b16 %v7680
        %v7747 = vunpack.c.l.b16 %v7681
        %v7748 = vunpack.c.l.b16 %v7682
        %v7749 = vunpack.c.l.b16 %v7683
        %v7750 = vunpack.c.l.b16 %v7684
        %v7751 = vunpack.c.l.b16 %v7685
        %v7752 = vunpack.c.l.b16 %v7686
        %v7753 = vunpack.c.l.b16 %v7687
        %v7754 = vunpack.c.l.b16 %v7688
        %v7755 = vunpack.c.l.b16 %v7689
        %v7756 = vpack.c.b16 %v7725, %v7724
        %v7757 = vpack.c.b16 %v7727, %v7726
        %v7758 = vpack.c.b16 %v7729, %v7728
        %v7759 = vpack.c.b16 %v7731, %v7730
        %v7760 = vpack.c.b16 %v7733, %v7732
        %v7761 = vpack.c.b16 %v7735, %v7734
        %v7762 = vpack.c.b16 %v7737, %v7736
        %v7763 = vpack.c.b16 %v7739, %v7738
        %v7764 = vpack.c.b16 %v7741, %v7740
        %v7765 = vpack.c.b16 %v7743, %v7742
        %v7766 = vpack.c.b16 %v7745, %v7744
        %v7767 = vpack.c.b16 %v7747, %v7746
        %v7768 = vpack.c.b16 %v7749, %v7748
        %v7769 = vpack.c.b16 %v7751, %v7750
        %v7770 = vpack.c.b16 %v7753, %v7752
        %v7771 = vpack.c.b16 %v7755, %v7754
        %v7773 = vsel %vm980, %v7756, 0
        %v7776 = vsel %vm980, %v7757, 0
        %v7779 = vsel %vm980, %v7758, 0
        %v7782 = vsel %vm980, %v7759, 0
        %v7785 = vsel %vm980, %v7760, 0
        %v7788 = vsel %vm980, %v7761, 0
        %v7791 = vsel %vm980, %v7762, 0
        %v7794 = vsel %vm980, %v7763, 0
        %v7797 = vsel %vm980, %v7764, 0
        %v7800 = vsel %vm980, %v7765, 0
        %v7803 = vsel %vm980, %v7766, 0
        %v7806 = vsel %vm980, %v7767, 0
        %v7809 = vsel %vm980, %v7768, 0
        %v7812 = vsel %vm980, %v7769, 0
        %v7815 = vsel %vm980, %v7770, 0
        %v7818 = vsel %vm980, %v7771, 0
        %v7821 = vsel %vm1029, %v7691, 0
        %7823 = vmatprep.subr.bf16.mxu0 0
        %7824 = vmatpush1.bf16.msra.mxu0 %v7821
        %7825 = vmatprep.subr.bf16.mxu0 0
        %7826 = vmatpush1.bf16.msra.mxu0 0
        %7827 = vmatprep.subr.bf16.mxu0 0
        %7828 = vmatpush1.bf16.msra.mxu0 0
        %7829 = vmatprep.subr.bf16.mxu0 0
        %7830 = vmatpush1.bf16.msra.mxu0 0
        %7831 = vmatprep.subr.bf16.mxu0 0
        %7832 = vmatpush1.bf16.msra.mxu0 0
        %7833 = vmatprep.subr.bf16.mxu0 0
        %7834 = vmatpush1.bf16.msra.mxu0 0
        %7835 = vmatprep.subr.bf16.mxu0 0
        %7836 = vmatpush1.bf16.msra.mxu0 0
        %7837 = vmatprep.subr.bf16.mxu0 0
        %7838 = vmatpush1.bf16.msra.mxu0 0
        %7839 = vmatprep.subr.bf16.mxu0 0
        %7840 = vmatpush1.bf16.msra.mxu0 0
        %7841 = vmatprep.subr.bf16.mxu0 0
        %7842 = vmatpush1.bf16.msra.mxu0 0
        %7843 = vmatprep.subr.bf16.mxu0 0
        %7844 = vmatpush1.bf16.msra.mxu0 0
        %7845 = vmatprep.subr.bf16.mxu0 0
        %7846 = vmatpush1.bf16.msra.mxu0 0
        %7847 = vmatprep.subr.bf16.mxu0 0
        %7848 = vmatpush1.bf16.msra.mxu0 0
        %7849 = vmatprep.subr.bf16.mxu0 0
        %7850 = vmatpush1.bf16.msra.mxu0 0
        %7851 = vmatprep.subr.bf16.mxu0 0
        %7852 = vmatpush1.bf16.msra.mxu0 0
        %7853 = vmatprep.subr.bf16.mxu0 0
        %7854 = vmatpush1.bf16.msra.mxu0 0
        %7855 = vmatprep.mubr.bf16.mxu0 0
        %7856 = vmatmul.mubr.bf16.gmra.mrb[0].mxu0 %v7773
        %v7857 = vpop.f32.mrb[0].mxu0
        %v7858 = vadd.f32 0.0, %v7857
        %v7859 = vpop.f32.mrb[0].mxu0
        %v7860 = vpop.f32.mrb[0].mxu0
        %v7861 = vadd.f32 0.0, %v7860
        %v7862 = vpop.f32.mrb[0].mxu0
        %7863 = vmatprep.mubr.bf16.mxu0 0
        %7864 = vmatmul.mubr.bf16.gmra.mrb[0].mxu0 %v7776
        %v7865 = vpop.f32.mrb[0].mxu0
        %v7866 = vadd.f32 0.0, %v7865
        %v7867 = vpop.f32.mrb[0].mxu0
        %v7868 = vpop.f32.mrb[0].mxu0
        %v7869 = vadd.f32 0.0, %v7868
        %v7870 = vpop.f32.mrb[0].mxu0
        %7871 = vmatprep.mubr.bf16.mxu0 0
        %7872 = vmatmul.mubr.bf16.gmra.mrb[0].mxu0 %v7779
        %v7873 = vpop.f32.mrb[0].mxu0
        %v7874 = vadd.f32 0.0, %v7873
        %v7875 = vpop.f32.mrb[0].mxu0
        %v7876 = vpop.f32.mrb[0].mxu0
        %v7877 = vadd.f32 0.0, %v7876
        %v7878 = vpop.f32.mrb[0].mxu0
        %7879 = vmatprep.mubr.bf16.mxu0 0
        %7880 = vmatmul.mubr.bf16.gmra.mrb[0].mxu0 %v7782
        %v7881 = vpop.f32.mrb[0].mxu0
        %v7882 = vadd.f32 0.0, %v7881
        %v7883 = vpop.f32.mrb[0].mxu0
        %v7884 = vpop.f32.mrb[0].mxu0
        %v7885 = vadd.f32 0.0, %v7884
        %v7886 = vpop.f32.mrb[0].mxu0
        %7887 = vmatprep.mubr.bf16.mxu0 0
        %7888 = vmatmul.mubr.bf16.gmra.mrb[0].mxu0 %v7785
        %v7889 = vpop.f32.mrb[0].mxu0
        %v7890 = vadd.f32 0.0, %v7889
        %v7891 = vpop.f32.mrb[0].mxu0
        %v7892 = vpop.f32.mrb[0].mxu0
        %v7893 = vadd.f32 0.0, %v7892
        %v7894 = vpop.f32.mrb[0].mxu0
        %7895 = vmatprep.mubr.bf16.mxu0 0
        %7896 = vmatmul.mubr.bf16.gmra.mrb[0].mxu0 %v7788
        %v7897 = vpop.f32.mrb[0].mxu0
        %v7898 = vadd.f32 0.0, %v7897
        %v7899 = vpop.f32.mrb[0].mxu0
        %v7900 = vpop.f32.mrb[0].mxu0
        %v7901 = vadd.f32 0.0, %v7900
        %v7902 = vpop.f32.mrb[0].mxu0
        %7903 = vmatprep.mubr.bf16.mxu0 0
        %7904 = vmatmul.mubr.bf16.gmra.mrb[0].mxu0 %v7791
        %v7905 = vpop.f32.mrb[0].mxu0
        %v7906 = vadd.f32 0.0, %v7905
        %v7907 = vpop.f32.mrb[0].mxu0
        %v7908 = vpop.f32.mrb[0].mxu0
        %v7909 = vadd.f32 0.0, %v7908
        %v7910 = vpop.f32.mrb[0].mxu0
        %7911 = vmatprep.mubr.bf16.mxu0 0
        %7912 = vmatmul.mubr.bf16.gmra.mrb[0].mxu0 %v7794
        %v7913 = vpop.f32.mrb[0].mxu0
        %v7914 = vadd.f32 0.0, %v7913
        %v7915 = vpop.f32.mrb[0].mxu0
        %v7916 = vpop.f32.mrb[0].mxu0
        %v7917 = vadd.f32 0.0, %v7916
        %v7918 = vpop.f32.mrb[0].mxu0
        %7919 = vmatprep.mubr.bf16.mxu0 0
        %7920 = vmatmul.mubr.bf16.gmra.mrb[0].mxu0 %v7797
        %v7921 = vpop.f32.mrb[0].mxu0
        %v7922 = vadd.f32 0.0, %v7921
        %v7923 = vpop.f32.mrb[0].mxu0
        %v7924 = vpop.f32.mrb[0].mxu0
        %v7925 = vadd.f32 0.0, %v7924
        %v7926 = vpop.f32.mrb[0].mxu0
        %7927 = vmatprep.mubr.bf16.mxu0 0
        %7928 = vmatmul.mubr.bf16.gmra.mrb[0].mxu0 %v7800
        %v7929 = vpop.f32.mrb[0].mxu0
        %v7930 = vadd.f32 0.0, %v7929
        %v7931 = vpop.f32.mrb[0].mxu0
        %v7932 = vpop.f32.mrb[0].mxu0
        %v7933 = vadd.f32 0.0, %v7932
        %v7934 = vpop.f32.mrb[0].mxu0
        %7935 = vmatprep.mubr.bf16.mxu0 0
        %7936 = vmatmul.mubr.bf16.gmra.mrb[0].mxu0 %v7803
        %v7937 = vpop.f32.mrb[0].mxu0
        %v7938 = vadd.f32 0.0, %v7937
        %v7939 = vpop.f32.mrb[0].mxu0
        %v7940 = vpop.f32.mrb[0].mxu0
        %v7941 = vadd.f32 0.0, %v7940
        %v7942 = vpop.f32.mrb[0].mxu0
        %7943 = vmatprep.mubr.bf16.mxu0 0
        %7944 = vmatmul.mubr.bf16.gmra.mrb[0].mxu0 %v7806
        %v7945 = vpop.f32.mrb[0].mxu0
        %v7946 = vadd.f32 0.0, %v7945
        %v7947 = vpop.f32.mrb[0].mxu0
        %v7948 = vpop.f32.mrb[0].mxu0
        %v7949 = vadd.f32 0.0, %v7948
        %v7950 = vpop.f32.mrb[0].mxu0
        %7951 = vmatprep.mubr.bf16.mxu0 0
        %7952 = vmatmul.mubr.bf16.gmra.mrb[0].mxu0 %v7809
        %v7953 = vpop.f32.mrb[0].mxu0
        %v7954 = vadd.f32 0.0, %v7953
        %v7955 = vpop.f32.mrb[0].mxu0
        %v7956 = vpop.f32.mrb[0].mxu0
        %v7957 = vadd.f32 0.0, %v7956
        %v7958 = vpop.f32.mrb[0].mxu0
        %7959 = vmatprep.mubr.bf16.mxu0 0
        %7960 = vmatmul.mubr.bf16.gmra.mrb[0].mxu0 %v7812
        %v7961 = vpop.f32.mrb[0].mxu0
        %v7962 = vadd.f32 0.0, %v7961
        %v7963 = vpop.f32.mrb[0].mxu0
        %v7964 = vpop.f32.mrb[0].mxu0
        %v7965 = vadd.f32 0.0, %v7964
        %v7966 = vpop.f32.mrb[0].mxu0
        %7967 = vmatprep.mubr.bf16.mxu0 0
        %7968 = vmatmul.mubr.bf16.gmra.mrb[0].mxu0 %v7815
        %v7969 = vpop.f32.mrb[0].mxu0
        %v7970 = vadd.f32 0.0, %v7969
        %v7971 = vpop.f32.mrb[0].mxu0
        %v7972 = vpop.f32.mrb[0].mxu0
        %v7973 = vadd.f32 0.0, %v7972
        %v7974 = vpop.f32.mrb[0].mxu0
        %7975 = vmatprep.mubr.bf16.mxu0 0
        %7976 = vmatmul.mubr.bf16.gmra.mrb[0].mxu0 %v7818
        %v7977 = vpop.f32.mrb[0].mxu0
        %v7978 = vadd.f32 0.0, %v7977
        %v7979 = vpop.f32.mrb[0].mxu0
        %v7980 = vpop.f32.mrb[0].mxu0
        %v7981 = vadd.f32 0.0, %v7980
        %v7982 = vpop.f32.mrb[0].mxu0
        %7983 = vdwg.mxu0
        %v7984 = vadd.f32 %v7626, %v7858
        %v7985 = vadd.f32 %v7627, %v7861
        %v7986 = vadd.f32 %v7628, %v7866
        %v7987 = vadd.f32 %v7629, %v7869
        %v7988 = vadd.f32 %v7630, %v7874
        %v7989 = vadd.f32 %v7631, %v7877
        %v7990 = vadd.f32 %v7632, %v7882
        %v7991 = vadd.f32 %v7633, %v7885
        %v7992 = vadd.f32 %v7634, %v7890
        %v7993 = vadd.f32 %v7635, %v7893
        %v7994 = vadd.f32 %v7636, %v7898
        %v7995 = vadd.f32 %v7637, %v7901
        %v7996 = vadd.f32 %v7638, %v7906
        %v7997 = vadd.f32 %v7639, %v7909
        %v7998 = vadd.f32 %v7640, %v7914
        %v7999 = vadd.f32 %v7641, %v7917
        %v8000 = vadd.f32 %v7642, %v7922
        %v8001 = vadd.f32 %v7643, %v7925
        %v8002 = vadd.f32 %v7644, %v7930
        %v8003 = vadd.f32 %v7645, %v7933
        %v8004 = vadd.f32 %v7646, %v7938
        %v8005 = vadd.f32 %v7647, %v7941
        %v8006 = vadd.f32 %v7648, %v7946
        %v8007 = vadd.f32 %v7649, %v7949
        %v8008 = vadd.f32 %v7650, %v7954
        %v8009 = vadd.f32 %v7651, %v7957
        %v8010 = vadd.f32 %v7652, %v7962
        %v8011 = vadd.f32 %v7653, %v7965
        %v8012 = vadd.f32 %v7654, %v7970
        %v8013 = vadd.f32 %v7655, %v7973
        %v8014 = vadd.f32 %v7656, %v7978
        %v8015 = vadd.f32 %v7657, %v7981
        %v8016 = vld [vmem:[%s5985] sm:$0xf]
        %v8017 = vld [vmem:[%s5985 + $0x4] sm:$0xf]
        %v8018 = vld [vmem:[%s5985 + $0x8] sm:$0x1]
        %v8019 = vld [vmem:[%s5985 + $0xc] sm:$0xf]
        %v8020 = vld [vmem:[%s5985 + $0x10] sm:$0xf]
        %v8021 = vld [vmem:[%s5985 + $0x14] sm:$0x1]
        %v8022 = vld [vmem:[%s5985 + $0x18] sm:$0xf]
        %v8023 = vld [vmem:[%s5985 + $0x1c] sm:$0xf]
        %v8024 = vld [vmem:[%s5985 + $0x20] sm:$0x1]
        %v8025 = vld [vmem:[%s5985 + $0x24] sm:$0xf]
        %v8026 = vld [vmem:[%s5985 + $0x28] sm:$0xf]
        %v8027 = vld [vmem:[%s5985 + $0x2c] sm:$0x1]
        %v8028 = vld [vmem:[%s5985 + $0x30] sm:$0xf]
        %v8029 = vld [vmem:[%s5985 + $0x34] sm:$0xf]
        %v8030 = vld [vmem:[%s5985 + $0x38] sm:$0x1]
        %v8031 = vld [vmem:[%s5985 + $0x3c] sm:$0xf]
        %v8032 = vld [vmem:[%s5985 + $0x40] sm:$0xf]
        %v8033 = vld [vmem:[%s5985 + $0x44] sm:$0x1]
        %v8034 = vld [vmem:[%s5985 + $0x48] sm:$0xf]
        %v8035 = vld [vmem:[%s5985 + $0x4c] sm:$0xf]
        %v8036 = vld [vmem:[%s5985 + $0x50] sm:$0x1]
        %v8037 = vld [vmem:[%s5985 + $0x54] sm:$0xf]
        %v8038 = vld [vmem:[%s5985 + $0x58] sm:$0xf]
        %v8039 = vld [vmem:[%s5985 + $0x5c] sm:$0x1]
        %v8040 = vld [vmem:[%s5985 + $0x60] sm:$0xf]
        %v8041 = vld [vmem:[%s5985 + $0x64] sm:$0xf]
        %v8042 = vld [vmem:[%s5985 + $0x68] sm:$0x1]
        %v8043 = vld [vmem:[%s5985 + $0x6c] sm:$0xf]
        %v8044 = vld [vmem:[%s5985 + $0x70] sm:$0xf]
        %v8045 = vld [vmem:[%s5985 + $0x74] sm:$0x1]
        %v8046 = vld [vmem:[%s5985 + $0x78] sm:$0xf]
        %v8047 = vld [vmem:[%s5985 + $0x7c] sm:$0xf]
        %v8048 = vld [vmem:[%s5985 + $0x80] sm:$0x1]
        %v8049 = vld [vmem:[%s5985 + $0x84] sm:$0xf]
        %v8050 = vld [vmem:[%s5985 + $0x88] sm:$0xf]
        %v8051 = vld [vmem:[%s5985 + $0x8c] sm:$0x1]
        %v8052 = vld [vmem:[%s5985 + $0x90] sm:$0xf]
        %v8053 = vld [vmem:[%s5985 + $0x94] sm:$0xf]
        %v8054 = vld [vmem:[%s5985 + $0x98] sm:$0x1]
        %v8055 = vld [vmem:[%s5985 + $0x9c] sm:$0xf]
        %v8056 = vld [vmem:[%s5985 + $0xa0] sm:$0xf]
        %v8057 = vld [vmem:[%s5985 + $0xa4] sm:$0x1]
        %v8058 = vld [vmem:[%s5985 + $0xa8] sm:$0xf]
        %v8059 = vld [vmem:[%s5985 + $0xac] sm:$0xf]
        %v8060 = vld [vmem:[%s5985 + $0xb0] sm:$0x1]
        %v8061 = vld [vmem:[%s5985 + $0xb4] sm:$0xf]
        %v8062 = vld [vmem:[%s5985 + $0xb8] sm:$0xf]
        %v8063 = vld [vmem:[%s5985 + $0xbc] sm:$0x1]
        %v8065 = vshrl.u32 %v8016, 16
        %v8067 = vrot.slane %v8065, 4
        %v8068 = vshll.u32 %v8016, 16
        %v8070 = vrot.slane %v8068, 5
        %v8071 = vor.u32 %v8067, %v8070
        %v8072 = vrot.slane %v8071, 4
        %v8074 = vshll.u32 %v8017, 16
        %v8076 = vrot.slane %v8074, 5
        %v8077 = vsel %vm1276, %v8072, %v8076
        %v8078 = vshrl.u32 %v8017, 16
        %v8080 = vrot.slane %v8078, 4
        %v8081 = vor.u32 %v8080, %v8076
        %v8082 = vrot.slane %v8081, 4
        %v8084 = vshll.u32 %v8018, 16
        %v8086 = vrot.slane %v8084, 5
        %v8087 = vsel %vm1276, %v8082, %v8086
        %v8089 = vshrl.u32 %v8019, 16
        %v8091 = vrot.slane %v8089, 4
        %v8092 = vshll.u32 %v8019, 16
        %v8094 = vrot.slane %v8092, 5
        %v8095 = vor.u32 %v8091, %v8094
        %v8096 = vrot.slane %v8095, 4
        %v8098 = vshll.u32 %v8020, 16
        %v8100 = vrot.slane %v8098, 5
        %v8101 = vsel %vm1276, %v8096, %v8100
        %v8102 = vshrl.u32 %v8020, 16
        %v8104 = vrot.slane %v8102, 4
        %v8105 = vor.u32 %v8104, %v8100
        %v8106 = vrot.slane %v8105, 4
        %v8108 = vshll.u32 %v8021, 16
        %v8110 = vrot.slane %v8108, 5
        %v8111 = vsel %vm1276, %v8106, %v8110
        %v8113 = vshrl.u32 %v8022, 16
        %v8115 = vrot.slane %v8113, 4
        %v8116 = vshll.u32 %v8022, 16
        %v8118 = vrot.slane %v8116, 5
        %v8119 = vor.u32 %v8115, %v8118
        %v8120 = vrot.slane %v8119, 4
        %v8122 = vshll.u32 %v8023, 16
        %v8124 = vrot.slane %v8122, 5
        %v8125 = vsel %vm1276, %v8120, %v8124
        %v8126 = vshrl.u32 %v8023, 16
        %v8128 = vrot.slane %v8126, 4
        %v8129 = vor.u32 %v8128, %v8124
        %v8130 = vrot.slane %v8129, 4
        %v8132 = vshll.u32 %v8024, 16
        %v8134 = vrot.slane %v8132, 5
        %v8135 = vsel %vm1276, %v8130, %v8134
        %v8137 = vshrl.u32 %v8025, 16
        %v8139 = vrot.slane %v8137, 4
        %v8140 = vshll.u32 %v8025, 16
        %v8142 = vrot.slane %v8140, 5
        %v8143 = vor.u32 %v8139, %v8142
        %v8144 = vrot.slane %v8143, 4
        %v8146 = vshll.u32 %v8026, 16
        %v8148 = vrot.slane %v8146, 5
        %v8149 = vsel %vm1276, %v8144, %v8148
        %v8150 = vshrl.u32 %v8026, 16
        %v8152 = vrot.slane %v8150, 4
        %v8153 = vor.u32 %v8152, %v8148
        %v8154 = vrot.slane %v8153, 4
        %v8156 = vshll.u32 %v8027, 16
        %v8158 = vrot.slane %v8156, 5
        %v8159 = vsel %vm1276, %v8154, %v8158
        %v8161 = vshrl.u32 %v8028, 16
        %v8163 = vrot.slane %v8161, 4
        %v8164 = vshll.u32 %v8028, 16
        %v8166 = vrot.slane %v8164, 5
        %v8167 = vor.u32 %v8163, %v8166
        %v8168 = vrot.slane %v8167, 4
        %v8170 = vshll.u32 %v8029, 16
        %v8172 = vrot.slane %v8170, 5
        %v8173 = vsel %vm1276, %v8168, %v8172
        %v8174 = vshrl.u32 %v8029, 16
        %v8176 = vrot.slane %v8174, 4
        %v8177 = vor.u32 %v8176, %v8172
        %v8178 = vrot.slane %v8177, 4
        %v8180 = vshll.u32 %v8030, 16
        %v8182 = vrot.slane %v8180, 5
        %v8183 = vsel %vm1276, %v8178, %v8182
        %v8185 = vshrl.u32 %v8031, 16
        %v8187 = vrot.slane %v8185, 4
        %v8188 = vshll.u32 %v8031, 16
        %v8190 = vrot.slane %v8188, 5
        %v8191 = vor.u32 %v8187, %v8190
        %v8192 = vrot.slane %v8191, 4
        %v8194 = vshll.u32 %v8032, 16
        %v8196 = vrot.slane %v8194, 5
        %v8197 = vsel %vm1276, %v8192, %v8196
        %v8198 = vshrl.u32 %v8032, 16
        %v8200 = vrot.slane %v8198, 4
        %v8201 = vor.u32 %v8200, %v8196
        %v8202 = vrot.slane %v8201, 4
        %v8204 = vshll.u32 %v8033, 16
        %v8206 = vrot.slane %v8204, 5
        %v8207 = vsel %vm1276, %v8202, %v8206
        %v8209 = vshrl.u32 %v8034, 16
        %v8211 = vrot.slane %v8209, 4
        %v8212 = vshll.u32 %v8034, 16
        %v8214 = vrot.slane %v8212, 5
        %v8215 = vor.u32 %v8211, %v8214
        %v8216 = vrot.slane %v8215, 4
        %v8218 = vshll.u32 %v8035, 16
        %v8220 = vrot.slane %v8218, 5
        %v8221 = vsel %vm1276, %v8216, %v8220
        %v8222 = vshrl.u32 %v8035, 16
        %v8224 = vrot.slane %v8222, 4
        %v8225 = vor.u32 %v8224, %v8220
        %v8226 = vrot.slane %v8225, 4
        %v8228 = vshll.u32 %v8036, 16
        %v8230 = vrot.slane %v8228, 5
        %v8231 = vsel %vm1276, %v8226, %v8230
        %v8233 = vshrl.u32 %v8037, 16
        %v8235 = vrot.slane %v8233, 4
        %v8236 = vshll.u32 %v8037, 16
        %v8238 = vrot.slane %v8236, 5
        %v8239 = vor.u32 %v8235, %v8238
        %v8240 = vrot.slane %v8239, 4
        %v8242 = vshll.u32 %v8038, 16
        %v8244 = vrot.slane %v8242, 5
        %v8245 = vsel %vm1276, %v8240, %v8244
        %v8246 = vshrl.u32 %v8038, 16
        %v8248 = vrot.slane %v8246, 4
        %v8249 = vor.u32 %v8248, %v8244
        %v8250 = vrot.slane %v8249, 4
        %v8252 = vshll.u32 %v8039, 16
        %v8254 = vrot.slane %v8252, 5
        %v8255 = vsel %vm1276, %v8250, %v8254
        %v8257 = vshrl.u32 %v8040, 16
        %v8259 = vrot.slane %v8257, 4
        %v8260 = vshll.u32 %v8040, 16
        %v8262 = vrot.slane %v8260, 5
        %v8263 = vor.u32 %v8259, %v8262
        %v8264 = vrot.slane %v8263, 4
        %v8266 = vshll.u32 %v8041, 16
        %v8268 = vrot.slane %v8266, 5
        %v8269 = vsel %vm1276, %v8264, %v8268
        %v8270 = vshrl.u32 %v8041, 16
        %v8272 = vrot.slane %v8270, 4
        %v8273 = vor.u32 %v8272, %v8268
        %v8274 = vrot.slane %v8273, 4
        %v8276 = vshll.u32 %v8042, 16
        %v8278 = vrot.slane %v8276, 5
        %v8279 = vsel %vm1276, %v8274, %v8278
        %v8281 = vshrl.u32 %v8043, 16
        %v8283 = vrot.slane %v8281, 4
        %v8284 = vshll.u32 %v8043, 16
        %v8286 = vrot.slane %v8284, 5
        %v8287 = vor.u32 %v8283, %v8286
        %v8288 = vrot.slane %v8287, 4
        %v8290 = vshll.u32 %v8044, 16
        %v8292 = vrot.slane %v8290, 5
        %v8293 = vsel %vm1276, %v8288, %v8292
        %v8294 = vshrl.u32 %v8044, 16
        %v8296 = vrot.slane %v8294, 4
        %v8297 = vor.u32 %v8296, %v8292
        %v8298 = vrot.slane %v8297, 4
        %v8300 = vshll.u32 %v8045, 16
        %v8302 = vrot.slane %v8300, 5
        %v8303 = vsel %vm1276, %v8298, %v8302
        %v8305 = vshrl.u32 %v8046, 16
        %v8307 = vrot.slane %v8305, 4
        %v8308 = vshll.u32 %v8046, 16
        %v8310 = vrot.slane %v8308, 5
        %v8311 = vor.u32 %v8307, %v8310
        %v8312 = vrot.slane %v8311, 4
        %v8314 = vshll.u32 %v8047, 16
        %v8316 = vrot.slane %v8314, 5
        %v8317 = vsel %vm1276, %v8312, %v8316
        %v8318 = vshrl.u32 %v8047, 16
        %v8320 = vrot.slane %v8318, 4
        %v8321 = vor.u32 %v8320, %v8316
        %v8322 = vrot.slane %v8321, 4
        %v8324 = vshll.u32 %v8048, 16
        %v8326 = vrot.slane %v8324, 5
        %v8327 = vsel %vm1276, %v8322, %v8326
        %v8329 = vshrl.u32 %v8049, 16
        %v8331 = vrot.slane %v8329, 4
        %v8332 = vshll.u32 %v8049, 16
        %v8334 = vrot.slane %v8332, 5
        %v8335 = vor.u32 %v8331, %v8334
        %v8336 = vrot.slane %v8335, 4
        %v8338 = vshll.u32 %v8050, 16
        %v8340 = vrot.slane %v8338, 5
        %v8341 = vsel %vm1276, %v8336, %v8340
        %v8342 = vshrl.u32 %v8050, 16
        %v8344 = vrot.slane %v8342, 4
        %v8345 = vor.u32 %v8344, %v8340
        %v8346 = vrot.slane %v8345, 4
        %v8348 = vshll.u32 %v8051, 16
        %v8350 = vrot.slane %v8348, 5
        %v8351 = vsel %vm1276, %v8346, %v8350
        %v8353 = vshrl.u32 %v8052, 16
        %v8355 = vrot.slane %v8353, 4
        %v8356 = vshll.u32 %v8052, 16
        %v8358 = vrot.slane %v8356, 5
        %v8359 = vor.u32 %v8355, %v8358
        %v8360 = vrot.slane %v8359, 4
        %v8362 = vshll.u32 %v8053, 16
        %v8364 = vrot.slane %v8362, 5
        %v8365 = vsel %vm1276, %v8360, %v8364
        %v8366 = vshrl.u32 %v8053, 16
        %v8368 = vrot.slane %v8366, 4
        %v8369 = vor.u32 %v8368, %v8364
        %v8370 = vrot.slane %v8369, 4
        %v8372 = vshll.u32 %v8054, 16
        %v8374 = vrot.slane %v8372, 5
        %v8375 = vsel %vm1276, %v8370, %v8374
        %v8377 = vshrl.u32 %v8055, 16
        %v8379 = vrot.slane %v8377, 4
        %v8380 = vshll.u32 %v8055, 16
        %v8382 = vrot.slane %v8380, 5
        %v8383 = vor.u32 %v8379, %v8382
        %v8384 = vrot.slane %v8383, 4
        %v8386 = vshll.u32 %v8056, 16
        %v8388 = vrot.slane %v8386, 5
        %v8389 = vsel %vm1276, %v8384, %v8388
        %v8390 = vshrl.u32 %v8056, 16
        %v8392 = vrot.slane %v8390, 4
        %v8393 = vor.u32 %v8392, %v8388
        %v8394 = vrot.slane %v8393, 4
        %v8396 = vshll.u32 %v8057, 16
        %v8398 = vrot.slane %v8396, 5
        %v8399 = vsel %vm1276, %v8394, %v8398
        %v8401 = vshrl.u32 %v8058, 16
        %v8403 = vrot.slane %v8401, 4
        %v8404 = vshll.u32 %v8058, 16
        %v8406 = vrot.slane %v8404, 5
        %v8407 = vor.u32 %v8403, %v8406
        %v8408 = vrot.slane %v8407, 4
        %v8410 = vshll.u32 %v8059, 16
        %v8412 = vrot.slane %v8410, 5
        %v8413 = vsel %vm1276, %v8408, %v8412
        %v8414 = vshrl.u32 %v8059, 16
        %v8416 = vrot.slane %v8414, 4
        %v8417 = vor.u32 %v8416, %v8412
        %v8418 = vrot.slane %v8417, 4
        %v8420 = vshll.u32 %v8060, 16
        %v8422 = vrot.slane %v8420, 5
        %v8423 = vsel %vm1276, %v8418, %v8422
        %v8425 = vshrl.u32 %v8061, 16
        %v8427 = vrot.slane %v8425, 4
        %v8428 = vshll.u32 %v8061, 16
        %v8430 = vrot.slane %v8428, 5
        %v8431 = vor.u32 %v8427, %v8430
        %v8432 = vrot.slane %v8431, 4
        %v8434 = vshll.u32 %v8062, 16
        %v8436 = vrot.slane %v8434, 5
        %v8437 = vsel %vm1276, %v8432, %v8436
        %v8438 = vshrl.u32 %v8062, 16
        %v8440 = vrot.slane %v8438, 4
        %v8441 = vor.u32 %v8440, %v8436
        %v8442 = vrot.slane %v8441, 4
        %v8444 = vshll.u32 %v8063, 16
        %v8446 = vrot.slane %v8444, 5
        %v8447 = vsel %vm1276, %v8442, %v8446
        %s8448 = scalar_lea.vmem %s3, 16
        %v8449 = vld [vmem:[%s8448] sm:$0xf]
        %v8450 = vunpack.c.l.b16 %v8077
        %v8451 = vunpack.c.l.b16 %v8087
        %v8452 = vunpack.c.l.b16 %v8101
        %v8453 = vunpack.c.l.b16 %v8111
        %v8454 = vunpack.c.l.b16 %v8125
        %v8455 = vunpack.c.l.b16 %v8135
        %v8456 = vunpack.c.l.b16 %v8149
        %v8457 = vunpack.c.l.b16 %v8159
        %v8458 = vunpack.c.l.b16 %v8173
        %v8459 = vunpack.c.l.b16 %v8183
        %v8460 = vunpack.c.l.b16 %v8197
        %v8461 = vunpack.c.l.b16 %v8207
        %v8462 = vunpack.c.l.b16 %v8221
        %v8463 = vunpack.c.l.b16 %v8231
        %v8464 = vunpack.c.l.b16 %v8245
        %v8465 = vunpack.c.l.b16 %v8255
        %v8466 = vunpack.c.l.b16 %v8269
        %v8467 = vunpack.c.l.b16 %v8279
        %v8468 = vunpack.c.l.b16 %v8293
        %v8469 = vunpack.c.l.b16 %v8303
        %v8470 = vunpack.c.l.b16 %v8317
        %v8471 = vunpack.c.l.b16 %v8327
        %v8472 = vunpack.c.l.b16 %v8341
        %v8473 = vunpack.c.l.b16 %v8351
        %v8474 = vunpack.c.l.b16 %v8365
        %v8475 = vunpack.c.l.b16 %v8375
        %v8476 = vunpack.c.l.b16 %v8389
        %v8477 = vunpack.c.l.b16 %v8399
        %v8478 = vunpack.c.l.b16 %v8413
        %v8479 = vunpack.c.l.b16 %v8423
        %v8480 = vunpack.c.l.b16 %v8437
        %v8481 = vunpack.c.l.b16 %v8447
        %v8482 = vpack.c.b16 %v8451, %v8450
        %v8483 = vpack.c.b16 %v8453, %v8452
        %v8484 = vpack.c.b16 %v8455, %v8454
        %v8485 = vpack.c.b16 %v8457, %v8456
        %v8486 = vpack.c.b16 %v8459, %v8458
        %v8487 = vpack.c.b16 %v8461, %v8460
        %v8488 = vpack.c.b16 %v8463, %v8462
        %v8489 = vpack.c.b16 %v8465, %v8464
        %v8490 = vpack.c.b16 %v8467, %v8466
        %v8491 = vpack.c.b16 %v8469, %v8468
        %v8492 = vpack.c.b16 %v8471, %v8470
        %v8493 = vpack.c.b16 %v8473, %v8472
        %v8494 = vpack.c.b16 %v8475, %v8474
        %v8495 = vpack.c.b16 %v8477, %v8476
        %v8496 = vpack.c.b16 %v8479, %v8478
        %v8497 = vpack.c.b16 %v8481, %v8480
        %v8499 = vsel %vm980, %v8482, 0
        %v8502 = vsel %vm980, %v8483, 0
        %v8505 = vsel %vm980, %v8484, 0
        %v8508 = vsel %vm980, %v8485, 0
        %v8511 = vsel %vm980, %v8486, 0
        %v8514 = vsel %vm980, %v8487, 0
        %v8517 = vsel %vm980, %v8488, 0
        %v8520 = vsel %vm980, %v8489, 0
        %v8523 = vsel %vm980, %v8490, 0
        %v8526 = vsel %vm980, %v8491, 0
        %v8529 = vsel %vm980, %v8492, 0
        %v8532 = vsel %vm980, %v8493, 0
        %v8535 = vsel %vm980, %v8494, 0
        %v8538 = vsel %vm980, %v8495, 0
        %v8541 = vsel %vm980, %v8496, 0
        %v8544 = vsel %vm980, %v8497, 0
        %v8547 = vsel %vm1029, %v8449, 0
        %8549 = vmatprep.subr.bf16.mxu0 0
        %8550 = vmatpush1.bf16.msra.mxu0 %v8547
        %8551 = vmatprep.subr.bf16.mxu0 0
        %8552 = vmatpush1.bf16.msra.mxu0 0
        %8553 = vmatprep.subr.bf16.mxu0 0
        %8554 = vmatpush1.bf16.msra.mxu0 0
        %8555 = vmatprep.subr.bf16.mxu0 0
        %8556 = vmatpush1.bf16.msra.mxu0 0
        %8557 = vmatprep.subr.bf16.mxu0 0
        %8558 = vmatpush1.bf16.msra.mxu0 0
        %8559 = vmatprep.subr.bf16.mxu0 0
        %8560 = vmatpush1.bf16.msra.mxu0 0
        %8561 = vmatprep.subr.bf16.mxu0 0
        %8562 = vmatpush1.bf16.msra.mxu0 0
        %8563 = vmatprep.subr.bf16.mxu0 0
        %8564 = vmatpush1.bf16.msra.mxu0 0
        %8565 = vmatprep.subr.bf16.mxu0 0
        %8566 = vmatpush1.bf16.msra.mxu0 0
        %8567 = vmatprep.subr.bf16.mxu0 0
        %8568 = vmatpush1.bf16.msra.mxu0 0
        %8569 = vmatprep.subr.bf16.mxu0 0
        %8570 = vmatpush1.bf16.msra.mxu0 0
        %8571 = vmatprep.subr.bf16.mxu0 0
        %8572 = vmatpush1.bf16.msra.mxu0 0
        %8573 = vmatprep.subr.bf16.mxu0 0
        %8574 = vmatpush1.bf16.msra.mxu0 0
        %8575 = vmatprep.subr.bf16.mxu0 0
        %8576 = vmatpush1.bf16.msra.mxu0 0
        %8577 = vmatprep.subr.bf16.mxu0 0
        %8578 = vmatpush1.bf16.msra.mxu0 0
        %8579 = vmatprep.subr.bf16.mxu0 0
        %8580 = vmatpush1.bf16.msra.mxu0 0
        %8581 = vmatprep.mubr.bf16.mxu0 0
        %8582 = vmatmul.mubr.bf16.gmra.mrb[0].mxu0 %v8499
        %v8583 = vpop.f32.mrb[0].mxu0
        %v8584 = vadd.f32 0.0, %v8583
        %v8585 = vpop.f32.mrb[0].mxu0
        %v8586 = vpop.f32.mrb[0].mxu0
        %v8587 = vadd.f32 0.0, %v8586
        %v8588 = vpop.f32.mrb[0].mxu0
        %8589 = vmatprep.mubr.bf16.mxu0 0
        %8590 = vmatmul.mubr.bf16.gmra.mrb[0].mxu0 %v8502
        %v8591 = vpop.f32.mrb[0].mxu0
        %v8592 = vadd.f32 0.0, %v8591
        %v8593 = vpop.f32.mrb[0].mxu0
        %v8594 = vpop.f32.mrb[0].mxu0
        %v8595 = vadd.f32 0.0, %v8594
        %v8596 = vpop.f32.mrb[0].mxu0
        %8597 = vmatprep.mubr.bf16.mxu0 0
        %8598 = vmatmul.mubr.bf16.gmra.mrb[0].mxu0 %v8505
        %v8599 = vpop.f32.mrb[0].mxu0
        %v8600 = vadd.f32 0.0, %v8599
        %v8601 = vpop.f32.mrb[0].mxu0
        %v8602 = vpop.f32.mrb[0].mxu0
        %v8603 = vadd.f32 0.0, %v8602
        %v8604 = vpop.f32.mrb[0].mxu0
        %8605 = vmatprep.mubr.bf16.mxu0 0
        %8606 = vmatmul.mubr.bf16.gmra.mrb[0].mxu0 %v8508
        %v8607 = vpop.f32.mrb[0].mxu0
        %v8608 = vadd.f32 0.0, %v8607
        %v8609 = vpop.f32.mrb[0].mxu0
        %v8610 = vpop.f32.mrb[0].mxu0
        %v8611 = vadd.f32 0.0, %v8610
        %v8612 = vpop.f32.mrb[0].mxu0
        %8613 = vmatprep.mubr.bf16.mxu0 0
        %8614 = vmatmul.mubr.bf16.gmra.mrb[0].mxu0 %v8511
        %v8615 = vpop.f32.mrb[0].mxu0
        %v8616 = vadd.f32 0.0, %v8615
        %v8617 = vpop.f32.mrb[0].mxu0
        %v8618 = vpop.f32.mrb[0].mxu0
        %v8619 = vadd.f32 0.0, %v8618
        %v8620 = vpop.f32.mrb[0].mxu0
        %8621 = vmatprep.mubr.bf16.mxu0 0
        %8622 = vmatmul.mubr.bf16.gmra.mrb[0].mxu0 %v8514
        %v8623 = vpop.f32.mrb[0].mxu0
        %v8624 = vadd.f32 0.0, %v8623
        %v8625 = vpop.f32.mrb[0].mxu0
        %v8626 = vpop.f32.mrb[0].mxu0
        %v8627 = vadd.f32 0.0, %v8626
        %v8628 = vpop.f32.mrb[0].mxu0
        %8629 = vmatprep.mubr.bf16.mxu0 0
        %8630 = vmatmul.mubr.bf16.gmra.mrb[0].mxu0 %v8517
        %v8631 = vpop.f32.mrb[0].mxu0
        %v8632 = vadd.f32 0.0, %v8631
        %v8633 = vpop.f32.mrb[0].mxu0
        %v8634 = vpop.f32.mrb[0].mxu0
        %v8635 = vadd.f32 0.0, %v8634
        %v8636 = vpop.f32.mrb[0].mxu0
        %8637 = vmatprep.mubr.bf16.mxu0 0
        %8638 = vmatmul.mubr.bf16.gmra.mrb[0].mxu0 %v8520
        %v8639 = vpop.f32.mrb[0].mxu0
        %v8640 = vadd.f32 0.0, %v8639
        %v8641 = vpop.f32.mrb[0].mxu0
        %v8642 = vpop.f32.mrb[0].mxu0
        %v8643 = vadd.f32 0.0, %v8642
        %v8644 = vpop.f32.mrb[0].mxu0
        %8645 = vmatprep.mubr.bf16.mxu0 0
        %8646 = vmatmul.mubr.bf16.gmra.mrb[0].mxu0 %v8523
        %v8647 = vpop.f32.mrb[0].mxu0
        %v8648 = vadd.f32 0.0, %v8647
        %v8649 = vpop.f32.mrb[0].mxu0
        %v8650 = vpop.f32.mrb[0].mxu0
        %v8651 = vadd.f32 0.0, %v8650
        %v8652 = vpop.f32.mrb[0].mxu0
        %8653 = vmatprep.mubr.bf16.mxu0 0
        %8654 = vmatmul.mubr.bf16.gmra.mrb[0].mxu0 %v8526
        %v8655 = vpop.f32.mrb[0].mxu0
        %v8656 = vadd.f32 0.0, %v8655
        %v8657 = vpop.f32.mrb[0].mxu0
        %v8658 = vpop.f32.mrb[0].mxu0
        %v8659 = vadd.f32 0.0, %v8658
        %v8660 = vpop.f32.mrb[0].mxu0
        %8661 = vmatprep.mubr.bf16.mxu0 0
        %8662 = vmatmul.mubr.bf16.gmra.mrb[0].mxu0 %v8529
        %v8663 = vpop.f32.mrb[0].mxu0
        %v8664 = vadd.f32 0.0, %v8663
        %v8665 = vpop.f32.mrb[0].mxu0
        %v8666 = vpop.f32.mrb[0].mxu0
        %v8667 = vadd.f32 0.0, %v8666
        %v8668 = vpop.f32.mrb[0].mxu0
        %8669 = vmatprep.mubr.bf16.mxu0 0
        %8670 = vmatmul.mubr.bf16.gmra.mrb[0].mxu0 %v8532
        %v8671 = vpop.f32.mrb[0].mxu0
        %v8672 = vadd.f32 0.0, %v8671
        %v8673 = vpop.f32.mrb[0].mxu0
        %v8674 = vpop.f32.mrb[0].mxu0
        %v8675 = vadd.f32 0.0, %v8674
        %v8676 = vpop.f32.mrb[0].mxu0
        %8677 = vmatprep.mubr.bf16.mxu0 0
        %8678 = vmatmul.mubr.bf16.gmra.mrb[0].mxu0 %v8535
        %v8679 = vpop.f32.mrb[0].mxu0
        %v8680 = vadd.f32 0.0, %v8679
        %v8681 = vpop.f32.mrb[0].mxu0
        %v8682 = vpop.f32.mrb[0].mxu0
        %v8683 = vadd.f32 0.0, %v8682
        %v8684 = vpop.f32.mrb[0].mxu0
        %8685 = vmatprep.mubr.bf16.mxu0 0
        %8686 = vmatmul.mubr.bf16.gmra.mrb[0].mxu0 %v8538
        %v8687 = vpop.f32.mrb[0].mxu0
        %v8688 = vadd.f32 0.0, %v8687
        %v8689 = vpop.f32.mrb[0].mxu0
        %v8690 = vpop.f32.mrb[0].mxu0
        %v8691 = vadd.f32 0.0, %v8690
        %v8692 = vpop.f32.mrb[0].mxu0
        %8693 = vmatprep.mubr.bf16.mxu0 0
        %8694 = vmatmul.mubr.bf16.gmra.mrb[0].mxu0 %v8541
        %v8695 = vpop.f32.mrb[0].mxu0
        %v8696 = vadd.f32 0.0, %v8695
        %v8697 = vpop.f32.mrb[0].mxu0
        %v8698 = vpop.f32.mrb[0].mxu0
        %v8699 = vadd.f32 0.0, %v8698
        %v8700 = vpop.f32.mrb[0].mxu0
        %8701 = vmatprep.mubr.bf16.mxu0 0
        %8702 = vmatmul.mubr.bf16.gmra.mrb[0].mxu0 %v8544
        %v8703 = vpop.f32.mrb[0].mxu0
        %v8704 = vadd.f32 0.0, %v8703
        %v8705 = vpop.f32.mrb[0].mxu0
        %v8706 = vpop.f32.mrb[0].mxu0
        %v8707 = vadd.f32 0.0, %v8706
        %v8708 = vpop.f32.mrb[0].mxu0
        %8709 = vdwg.mxu0
        %v8710 = vadd.f32 %v7984, %v8584
        %v8711 = vadd.f32 %v7985, %v8587
        %v8712 = vadd.f32 %v7986, %v8592
        %v8713 = vadd.f32 %v7987, %v8595
        %v8714 = vadd.f32 %v7988, %v8600
        %v8715 = vadd.f32 %v7989, %v8603
        %v8716 = vadd.f32 %v7990, %v8608
        %v8717 = vadd.f32 %v7991, %v8611
        %v8718 = vadd.f32 %v7992, %v8616
        %v8719 = vadd.f32 %v7993, %v8619
        %v8720 = vadd.f32 %v7994, %v8624
        %v8721 = vadd.f32 %v7995, %v8627
        %v8722 = vadd.f32 %v7996, %v8632
        %v8723 = vadd.f32 %v7997, %v8635
        %v8724 = vadd.f32 %v7998, %v8640
        %v8725 = vadd.f32 %v7999, %v8643
        %v8726 = vadd.f32 %v8000, %v8648
        %v8727 = vadd.f32 %v8001, %v8651
        %v8728 = vadd.f32 %v8002, %v8656
        %v8729 = vadd.f32 %v8003, %v8659
        %v8730 = vadd.f32 %v8004, %v8664
        %v8731 = vadd.f32 %v8005, %v8667
        %v8732 = vadd.f32 %v8006, %v8672
        %v8733 = vadd.f32 %v8007, %v8675
        %v8734 = vadd.f32 %v8008, %v8680
        %v8735 = vadd.f32 %v8009, %v8683
        %v8736 = vadd.f32 %v8010, %v8688
        %v8737 = vadd.f32 %v8011, %v8691
        %v8738 = vadd.f32 %v8012, %v8696
        %v8739 = vadd.f32 %v8013, %v8699
        %v8740 = vadd.f32 %v8014, %v8704
        %v8741 = vadd.f32 %v8015, %v8707
        %v8742 = vld [vmem:[%s5985] sm:$0xe]
        %v8743 = vld [vmem:[%s5985 + $0xc] sm:$0xe]
        %v8744 = vld [vmem:[%s5985 + $0x18] sm:$0xe]
        %v8745 = vld [vmem:[%s5985 + $0x24] sm:$0xe]
        %v8746 = vld [vmem:[%s5985 + $0x30] sm:$0xe]
        %v8747 = vld [vmem:[%s5985 + $0x3c] sm:$0xe]
        %v8748 = vld [vmem:[%s5985 + $0x48] sm:$0xe]
        %v8749 = vld [vmem:[%s5985 + $0x54] sm:$0xe]
        %v8750 = vld [vmem:[%s5985 + $0x60] sm:$0xe]
        %v8751 = vld [vmem:[%s5985 + $0x6c] sm:$0xe]
        %v8752 = vld [vmem:[%s5985 + $0x78] sm:$0xe]
        %v8753 = vld [vmem:[%s5985 + $0x84] sm:$0xe]
        %v8754 = vld [vmem:[%s5985 + $0x90] sm:$0xe]
        %v8755 = vld [vmem:[%s5985 + $0x9c] sm:$0xe]
        %v8756 = vld [vmem:[%s5985 + $0xa8] sm:$0xe]
        %v8757 = vld [vmem:[%s5985 + $0xb4] sm:$0xe]
        %v8806 = vrot.slane %v8742, 5
        %v8807 = vrot.slane %v8806, 4
        %v8808 = vrot.slane %v8017, 5
        %v8809 = vsel %vm2021, %v8807, %v8808
        %v8810 = vrot.slane %v8808, 4
        %v8811 = vrot.slane %v8018, 5
        %v8812 = vsel %vm2021, %v8810, %v8811
        %v8813 = vrot.slane %v8743, 5
        %v8814 = vrot.slane %v8813, 4
        %v8815 = vrot.slane %v8020, 5
        %v8816 = vsel %vm2021, %v8814, %v8815
        %v8817 = vrot.slane %v8815, 4
        %v8818 = vrot.slane %v8021, 5
        %v8819 = vsel %vm2021, %v8817, %v8818
        %v8820 = vrot.slane %v8744, 5
        %v8821 = vrot.slane %v8820, 4
        %v8822 = vrot.slane %v8023, 5
        %v8823 = vsel %vm2021, %v8821, %v8822
        %v8824 = vrot.slane %v8822, 4
        %v8825 = vrot.slane %v8024, 5
        %v8826 = vsel %vm2021, %v8824, %v8825
        %v8827 = vrot.slane %v8745, 5
        %v8828 = vrot.slane %v8827, 4
        %v8829 = vrot.slane %v8026, 5
        %v8830 = vsel %vm2021, %v8828, %v8829
        %v8831 = vrot.slane %v8829, 4
        %v8832 = vrot.slane %v8027, 5
        %v8833 = vsel %vm2021, %v8831, %v8832
        %v8834 = vrot.slane %v8746, 5
        %v8835 = vrot.slane %v8834, 4
        %v8836 = vrot.slane %v8029, 5
        %v8837 = vsel %vm2021, %v8835, %v8836
        %v8838 = vrot.slane %v8836, 4
        %v8839 = vrot.slane %v8030, 5
        %v8840 = vsel %vm2021, %v8838, %v8839
        %v8841 = vrot.slane %v8747, 5
        %v8842 = vrot.slane %v8841, 4
        %v8843 = vrot.slane %v8032, 5
        %v8844 = vsel %vm2021, %v8842, %v8843
        %v8845 = vrot.slane %v8843, 4
        %v8846 = vrot.slane %v8033, 5
        %v8847 = vsel %vm2021, %v8845, %v8846
        %v8848 = vrot.slane %v8748, 5
        %v8849 = vrot.slane %v8848, 4
        %v8850 = vrot.slane %v8035, 5
        %v8851 = vsel %vm2021, %v8849, %v8850
        %v8852 = vrot.slane %v8850, 4
        %v8853 = vrot.slane %v8036, 5
        %v8854 = vsel %vm2021, %v8852, %v8853
        %v8855 = vrot.slane %v8749, 5
        %v8856 = vrot.slane %v8855, 4
        %v8857 = vrot.slane %v8038, 5
        %v8858 = vsel %vm2021, %v8856, %v8857
        %v8859 = vrot.slane %v8857, 4
        %v8860 = vrot.slane %v8039, 5
        %v8861 = vsel %vm2021, %v8859, %v8860
        %v8862 = vrot.slane %v8750, 5
        %v8863 = vrot.slane %v8862, 4
        %v8864 = vrot.slane %v8041, 5
        %v8865 = vsel %vm2021, %v8863, %v8864
        %v8866 = vrot.slane %v8864, 4
        %v8867 = vrot.slane %v8042, 5
        %v8868 = vsel %vm2021, %v8866, %v8867
        %v8869 = vrot.slane %v8751, 5
        %v8870 = vrot.slane %v8869, 4
        %v8871 = vrot.slane %v8044, 5
        %v8872 = vsel %vm2021, %v8870, %v8871
        %v8873 = vrot.slane %v8871, 4
        %v8874 = vrot.slane %v8045, 5
        %v8875 = vsel %vm2021, %v8873, %v8874
        %v8876 = vrot.slane %v8752, 5
        %v8877 = vrot.slane %v8876, 4
        %v8878 = vrot.slane %v8047, 5
        %v8879 = vsel %vm2021, %v8877, %v8878
        %v8880 = vrot.slane %v8878, 4
        %v8881 = vrot.slane %v8048, 5
        %v8882 = vsel %vm2021, %v8880, %v8881
        %v8883 = vrot.slane %v8753, 5
        %v8884 = vrot.slane %v8883, 4
        %v8885 = vrot.slane %v8050, 5
        %v8886 = vsel %vm2021, %v8884, %v8885
        %v8887 = vrot.slane %v8885, 4
        %v8888 = vrot.slane %v8051, 5
        %v8889 = vsel %vm2021, %v8887, %v8888
        %v8890 = vrot.slane %v8754, 5
        %v8891 = vrot.slane %v8890, 4
        %v8892 = vrot.slane %v8053, 5
        %v8893 = vsel %vm2021, %v8891, %v8892
        %v8894 = vrot.slane %v8892, 4
        %v8895 = vrot.slane %v8054, 5
        %v8896 = vsel %vm2021, %v8894, %v8895
        %v8897 = vrot.slane %v8755, 5
        %v8898 = vrot.slane %v8897, 4
        %v8899 = vrot.slane %v8056, 5
        %v8900 = vsel %vm2021, %v8898, %v8899
        %v8901 = vrot.slane %v8899, 4
        %v8902 = vrot.slane %v8057, 5
        %v8903 = vsel %vm2021, %v8901, %v8902
        %v8904 = vrot.slane %v8756, 5
        %v8905 = vrot.slane %v8904, 4
        %v8906 = vrot.slane %v8059, 5
        %v8907 = vsel %vm2021, %v8905, %v8906
        %v8908 = vrot.slane %v8906, 4
        %v8909 = vrot.slane %v8060, 5
        %v8910 = vsel %vm2021, %v8908, %v8909
        %v8911 = vrot.slane %v8757, 5
        %v8912 = vrot.slane %v8911, 4
        %v8913 = vrot.slane %v8062, 5
        %v8914 = vsel %vm2021, %v8912, %v8913
        %v8915 = vrot.slane %v8913, 4
        %v8916 = vrot.slane %v8063, 5
        %v8917 = vsel %vm2021, %v8915, %v8916
        %s8918 = scalar_lea.vmem %s3, 20
        %v8919 = vld [vmem:[%s8918] sm:$0xf]
        %v8920 = vunpack.c.l.b16 %v8809
        %v8921 = vunpack.c.l.b16 %v8812
        %v8922 = vunpack.c.l.b16 %v8816
        %v8923 = vunpack.c.l.b16 %v8819
        %v8924 = vunpack.c.l.b16 %v8823
        %v8925 = vunpack.c.l.b16 %v8826
        %v8926 = vunpack.c.l.b16 %v8830
        %v8927 = vunpack.c.l.b16 %v8833
        %v8928 = vunpack.c.l.b16 %v8837
        %v8929 = vunpack.c.l.b16 %v8840
        %v8930 = vunpack.c.l.b16 %v8844
        %v8931 = vunpack.c.l.b16 %v8847
        %v8932 = vunpack.c.l.b16 %v8851
        %v8933 = vunpack.c.l.b16 %v8854
        %v8934 = vunpack.c.l.b16 %v8858
        %v8935 = vunpack.c.l.b16 %v8861
        %v8936 = vunpack.c.l.b16 %v8865
        %v8937 = vunpack.c.l.b16 %v8868
        %v8938 = vunpack.c.l.b16 %v8872
        %v8939 = vunpack.c.l.b16 %v8875
        %v8940 = vunpack.c.l.b16 %v8879
        %v8941 = vunpack.c.l.b16 %v8882
        %v8942 = vunpack.c.l.b16 %v8886
        %v8943 = vunpack.c.l.b16 %v8889
        %v8944 = vunpack.c.l.b16 %v8893
        %v8945 = vunpack.c.l.b16 %v8896
        %v8946 = vunpack.c.l.b16 %v8900
        %v8947 = vunpack.c.l.b16 %v8903
        %v8948 = vunpack.c.l.b16 %v8907
        %v8949 = vunpack.c.l.b16 %v8910
        %v8950 = vunpack.c.l.b16 %v8914
        %v8951 = vunpack.c.l.b16 %v8917
        %v8952 = vpack.c.b16 %v8921, %v8920
        %v8953 = vpack.c.b16 %v8923, %v8922
        %v8954 = vpack.c.b16 %v8925, %v8924
        %v8955 = vpack.c.b16 %v8927, %v8926
        %v8956 = vpack.c.b16 %v8929, %v8928
        %v8957 = vpack.c.b16 %v8931, %v8930
        %v8958 = vpack.c.b16 %v8933, %v8932
        %v8959 = vpack.c.b16 %v8935, %v8934
        %v8960 = vpack.c.b16 %v8937, %v8936
        %v8961 = vpack.c.b16 %v8939, %v8938
        %v8962 = vpack.c.b16 %v8941, %v8940
        %v8963 = vpack.c.b16 %v8943, %v8942
        %v8964 = vpack.c.b16 %v8945, %v8944
        %v8965 = vpack.c.b16 %v8947, %v8946
        %v8966 = vpack.c.b16 %v8949, %v8948
        %v8967 = vpack.c.b16 %v8951, %v8950
        %v8969 = vsel %vm980, %v8952, 0
        %v8972 = vsel %vm980, %v8953, 0
        %v8975 = vsel %vm980, %v8954, 0
        %v8978 = vsel %vm980, %v8955, 0
        %v8981 = vsel %vm980, %v8956, 0
        %v8984 = vsel %vm980, %v8957, 0
        %v8987 = vsel %vm980, %v8958, 0
        %v8990 = vsel %vm980, %v8959, 0
        %v8993 = vsel %vm980, %v8960, 0
        %v8996 = vsel %vm980, %v8961, 0
        %v8999 = vsel %vm980, %v8962, 0
        %v9002 = vsel %vm980, %v8963, 0
        %v9005 = vsel %vm980, %v8964, 0
        %v9008 = vsel %vm980, %v8965, 0
        %v9011 = vsel %vm980, %v8966, 0
        %v9014 = vsel %vm980, %v8967, 0
        %v9017 = vsel %vm1029, %v8919, 0
        %9019 = vmatprep.subr.bf16.mxu0 0
        %9020 = vmatpush1.bf16.msra.mxu0 %v9017
        %9021 = vmatprep.subr.bf16.mxu0 0
        %9022 = vmatpush1.bf16.msra.mxu0 0
        %9023 = vmatprep.subr.bf16.mxu0 0
        %9024 = vmatpush1.bf16.msra.mxu0 0
        %9025 = vmatprep.subr.bf16.mxu0 0
        %9026 = vmatpush1.bf16.msra.mxu0 0
        %9027 = vmatprep.subr.bf16.mxu0 0
        %9028 = vmatpush1.bf16.msra.mxu0 0
        %9029 = vmatprep.subr.bf16.mxu0 0
        %9030 = vmatpush1.bf16.msra.mxu0 0
        %9031 = vmatprep.subr.bf16.mxu0 0
        %9032 = vmatpush1.bf16.msra.mxu0 0
        %9033 = vmatprep.subr.bf16.mxu0 0
        %9034 = vmatpush1.bf16.msra.mxu0 0
        %9035 = vmatprep.subr.bf16.mxu0 0
        %9036 = vmatpush1.bf16.msra.mxu0 0
        %9037 = vmatprep.subr.bf16.mxu0 0
        %9038 = vmatpush1.bf16.msra.mxu0 0
        %9039 = vmatprep.subr.bf16.mxu0 0
        %9040 = vmatpush1.bf16.msra.mxu0 0
        %9041 = vmatprep.subr.bf16.mxu0 0
        %9042 = vmatpush1.bf16.msra.mxu0 0
        %9043 = vmatprep.subr.bf16.mxu0 0
        %9044 = vmatpush1.bf16.msra.mxu0 0
        %9045 = vmatprep.subr.bf16.mxu0 0
        %9046 = vmatpush1.bf16.msra.mxu0 0
        %9047 = vmatprep.subr.bf16.mxu0 0
        %9048 = vmatpush1.bf16.msra.mxu0 0
        %9049 = vmatprep.subr.bf16.mxu0 0
        %9050 = vmatpush1.bf16.msra.mxu0 0
        %9051 = vmatprep.mubr.bf16.mxu0 0
        %9052 = vmatmul.mubr.bf16.gmra.mrb[0].mxu0 %v8969
        %v9053 = vpop.f32.mrb[0].mxu0
        %v9054 = vadd.f32 0.0, %v9053
        %v9055 = vpop.f32.mrb[0].mxu0
        %v9056 = vpop.f32.mrb[0].mxu0
        %v9057 = vadd.f32 0.0, %v9056
        %v9058 = vpop.f32.mrb[0].mxu0
        %9059 = vmatprep.mubr.bf16.mxu0 0
        %9060 = vmatmul.mubr.bf16.gmra.mrb[0].mxu0 %v8972
        %v9061 = vpop.f32.mrb[0].mxu0
        %v9062 = vadd.f32 0.0, %v9061
        %v9063 = vpop.f32.mrb[0].mxu0
        %v9064 = vpop.f32.mrb[0].mxu0
        %v9065 = vadd.f32 0.0, %v9064
        %v9066 = vpop.f32.mrb[0].mxu0
        %9067 = vmatprep.mubr.bf16.mxu0 0
        %9068 = vmatmul.mubr.bf16.gmra.mrb[0].mxu0 %v8975
        %v9069 = vpop.f32.mrb[0].mxu0
        %v9070 = vadd.f32 0.0, %v9069
        %v9071 = vpop.f32.mrb[0].mxu0
        %v9072 = vpop.f32.mrb[0].mxu0
        %v9073 = vadd.f32 0.0, %v9072
        %v9074 = vpop.f32.mrb[0].mxu0
        %9075 = vmatprep.mubr.bf16.mxu0 0
        %9076 = vmatmul.mubr.bf16.gmra.mrb[0].mxu0 %v8978
        %v9077 = vpop.f32.mrb[0].mxu0
        %v9078 = vadd.f32 0.0, %v9077
        %v9079 = vpop.f32.mrb[0].mxu0
        %v9080 = vpop.f32.mrb[0].mxu0
        %v9081 = vadd.f32 0.0, %v9080
        %v9082 = vpop.f32.mrb[0].mxu0
        %9083 = vmatprep.mubr.bf16.mxu0 0
        %9084 = vmatmul.mubr.bf16.gmra.mrb[0].mxu0 %v8981
        %v9085 = vpop.f32.mrb[0].mxu0
        %v9086 = vadd.f32 0.0, %v9085
        %v9087 = vpop.f32.mrb[0].mxu0
        %v9088 = vpop.f32.mrb[0].mxu0
        %v9089 = vadd.f32 0.0, %v9088
        %v9090 = vpop.f32.mrb[0].mxu0
        %9091 = vmatprep.mubr.bf16.mxu0 0
        %9092 = vmatmul.mubr.bf16.gmra.mrb[0].mxu0 %v8984
        %v9093 = vpop.f32.mrb[0].mxu0
        %v9094 = vadd.f32 0.0, %v9093
        %v9095 = vpop.f32.mrb[0].mxu0
        %v9096 = vpop.f32.mrb[0].mxu0
        %v9097 = vadd.f32 0.0, %v9096
        %v9098 = vpop.f32.mrb[0].mxu0
        %9099 = vmatprep.mubr.bf16.mxu0 0
        %9100 = vmatmul.mubr.bf16.gmra.mrb[0].mxu0 %v8987
        %v9101 = vpop.f32.mrb[0].mxu0
        %v9102 = vadd.f32 0.0, %v9101
        %v9103 = vpop.f32.mrb[0].mxu0
        %v9104 = vpop.f32.mrb[0].mxu0
        %v9105 = vadd.f32 0.0, %v9104
        %v9106 = vpop.f32.mrb[0].mxu0
        %9107 = vmatprep.mubr.bf16.mxu0 0
        %9108 = vmatmul.mubr.bf16.gmra.mrb[0].mxu0 %v8990
        %v9109 = vpop.f32.mrb[0].mxu0
        %v9110 = vadd.f32 0.0, %v9109
        %v9111 = vpop.f32.mrb[0].mxu0
        %v9112 = vpop.f32.mrb[0].mxu0
        %v9113 = vadd.f32 0.0, %v9112
        %v9114 = vpop.f32.mrb[0].mxu0
        %9115 = vmatprep.mubr.bf16.mxu0 0
        %9116 = vmatmul.mubr.bf16.gmra.mrb[0].mxu0 %v8993
        %v9117 = vpop.f32.mrb[0].mxu0
        %v9118 = vadd.f32 0.0, %v9117
        %v9119 = vpop.f32.mrb[0].mxu0
        %v9120 = vpop.f32.mrb[0].mxu0
        %v9121 = vadd.f32 0.0, %v9120
        %v9122 = vpop.f32.mrb[0].mxu0
        %9123 = vmatprep.mubr.bf16.mxu0 0
        %9124 = vmatmul.mubr.bf16.gmra.mrb[0].mxu0 %v8996
        %v9125 = vpop.f32.mrb[0].mxu0
        %v9126 = vadd.f32 0.0, %v9125
        %v9127 = vpop.f32.mrb[0].mxu0
        %v9128 = vpop.f32.mrb[0].mxu0
        %v9129 = vadd.f32 0.0, %v9128
        %v9130 = vpop.f32.mrb[0].mxu0
        %9131 = vmatprep.mubr.bf16.mxu0 0
        %9132 = vmatmul.mubr.bf16.gmra.mrb[0].mxu0 %v8999
        %v9133 = vpop.f32.mrb[0].mxu0
        %v9134 = vadd.f32 0.0, %v9133
        %v9135 = vpop.f32.mrb[0].mxu0
        %v9136 = vpop.f32.mrb[0].mxu0
        %v9137 = vadd.f32 0.0, %v9136
        %v9138 = vpop.f32.mrb[0].mxu0
        %9139 = vmatprep.mubr.bf16.mxu0 0
        %9140 = vmatmul.mubr.bf16.gmra.mrb[0].mxu0 %v9002
        %v9141 = vpop.f32.mrb[0].mxu0
        %v9142 = vadd.f32 0.0, %v9141
        %v9143 = vpop.f32.mrb[0].mxu0
        %v9144 = vpop.f32.mrb[0].mxu0
        %v9145 = vadd.f32 0.0, %v9144
        %v9146 = vpop.f32.mrb[0].mxu0
        %9147 = vmatprep.mubr.bf16.mxu0 0
        %9148 = vmatmul.mubr.bf16.gmra.mrb[0].mxu0 %v9005
        %v9149 = vpop.f32.mrb[0].mxu0
        %v9150 = vadd.f32 0.0, %v9149
        %v9151 = vpop.f32.mrb[0].mxu0
        %v9152 = vpop.f32.mrb[0].mxu0
        %v9153 = vadd.f32 0.0, %v9152
        %v9154 = vpop.f32.mrb[0].mxu0
        %9155 = vmatprep.mubr.bf16.mxu0 0
        %9156 = vmatmul.mubr.bf16.gmra.mrb[0].mxu0 %v9008
        %v9157 = vpop.f32.mrb[0].mxu0
        %v9158 = vadd.f32 0.0, %v9157
        %v9159 = vpop.f32.mrb[0].mxu0
        %v9160 = vpop.f32.mrb[0].mxu0
        %v9161 = vadd.f32 0.0, %v9160
        %v9162 = vpop.f32.mrb[0].mxu0
        %9163 = vmatprep.mubr.bf16.mxu0 0
        %9164 = vmatmul.mubr.bf16.gmra.mrb[0].mxu0 %v9011
        %v9165 = vpop.f32.mrb[0].mxu0
        %v9166 = vadd.f32 0.0, %v9165
        %v9167 = vpop.f32.mrb[0].mxu0
        %v9168 = vpop.f32.mrb[0].mxu0
        %v9169 = vadd.f32 0.0, %v9168
        %v9170 = vpop.f32.mrb[0].mxu0
        %9171 = vmatprep.mubr.bf16.mxu0 0
        %9172 = vmatmul.mubr.bf16.gmra.mrb[0].mxu0 %v9014
        %v9173 = vpop.f32.mrb[0].mxu0
        %v9174 = vadd.f32 0.0, %v9173
        %v9175 = vpop.f32.mrb[0].mxu0
        %v9176 = vpop.f32.mrb[0].mxu0
        %v9177 = vadd.f32 0.0, %v9176
        %v9178 = vpop.f32.mrb[0].mxu0
        %9179 = vdwg.mxu0
        %v9180 = vadd.f32 %v8710, %v9054
        %v9181 = vadd.f32 %v8711, %v9057
        %v9182 = vadd.f32 %v8712, %v9062
        %v9183 = vadd.f32 %v8713, %v9065
        %v9184 = vadd.f32 %v8714, %v9070
        %v9185 = vadd.f32 %v8715, %v9073
        %v9186 = vadd.f32 %v8716, %v9078
        %v9187 = vadd.f32 %v8717, %v9081
        %v9188 = vadd.f32 %v8718, %v9086
        %v9189 = vadd.f32 %v8719, %v9089
        %v9190 = vadd.f32 %v8720, %v9094
        %v9191 = vadd.f32 %v8721, %v9097
        %v9192 = vadd.f32 %v8722, %v9102
        %v9193 = vadd.f32 %v8723, %v9105
        %v9194 = vadd.f32 %v8724, %v9110
        %v9195 = vadd.f32 %v8725, %v9113
        %v9196 = vadd.f32 %v8726, %v9118
        %v9197 = vadd.f32 %v8727, %v9121
        %v9198 = vadd.f32 %v8728, %v9126
        %v9199 = vadd.f32 %v8729, %v9129
        %v9200 = vadd.f32 %v8730, %v9134
        %v9201 = vadd.f32 %v8731, %v9137
        %v9202 = vadd.f32 %v8732, %v9142
        %v9203 = vadd.f32 %v8733, %v9145
        %v9204 = vadd.f32 %v8734, %v9150
        %v9205 = vadd.f32 %v8735, %v9153
        %v9206 = vadd.f32 %v8736, %v9158
        %v9207 = vadd.f32 %v8737, %v9161
        %v9208 = vadd.f32 %v8738, %v9166
        %v9209 = vadd.f32 %v8739, %v9169
        %v9210 = vadd.f32 %v8740, %v9174
        %v9211 = vadd.f32 %v8741, %v9177
        %s9212 = scalar_lea.vmem [#allocation3], 24
        %v9213 = vld [vmem:[%s9212] sm:$0xf]
        %v9214 = vld [vmem:[%s9212 + $0x4] sm:$0xf]
        %v9215 = vld [vmem:[%s9212 + $0xc] sm:$0xf]
        %v9216 = vld [vmem:[%s9212 + $0x10] sm:$0xf]
        %v9217 = vld [vmem:[%s9212 + $0x18] sm:$0xf]
        %v9218 = vld [vmem:[%s9212 + $0x1c] sm:$0xf]
        %v9219 = vld [vmem:[%s9212 + $0x24] sm:$0xf]
        %v9220 = vld [vmem:[%s9212 + $0x28] sm:$0xf]
        %v9221 = vld [vmem:[%s9212 + $0x30] sm:$0xf]
        %v9222 = vld [vmem:[%s9212 + $0x34] sm:$0xf]
        %v9223 = vld [vmem:[%s9212 + $0x3c] sm:$0xf]
        %v9224 = vld [vmem:[%s9212 + $0x40] sm:$0xf]
        %v9225 = vld [vmem:[%s9212 + $0x48] sm:$0xf]
        %v9226 = vld [vmem:[%s9212 + $0x4c] sm:$0xf]
        %v9227 = vld [vmem:[%s9212 + $0x54] sm:$0xf]
        %v9228 = vld [vmem:[%s9212 + $0x58] sm:$0xf]
        %v9229 = vld [vmem:[%s9212 + $0x60] sm:$0xf]
        %v9230 = vld [vmem:[%s9212 + $0x64] sm:$0xf]
        %v9231 = vld [vmem:[%s9212 + $0x6c] sm:$0xf]
        %v9232 = vld [vmem:[%s9212 + $0x70] sm:$0xf]
        %v9233 = vld [vmem:[%s9212 + $0x78] sm:$0xf]
        %v9234 = vld [vmem:[%s9212 + $0x7c] sm:$0xf]
        %v9235 = vld [vmem:[%s9212 + $0x84] sm:$0xf]
        %v9236 = vld [vmem:[%s9212 + $0x88] sm:$0xf]
        %v9237 = vld [vmem:[%s9212 + $0x90] sm:$0xf]
        %v9238 = vld [vmem:[%s9212 + $0x94] sm:$0xf]
        %v9239 = vld [vmem:[%s9212 + $0x9c] sm:$0xf]
        %v9240 = vld [vmem:[%s9212 + $0xa0] sm:$0xf]
        %v9241 = vld [vmem:[%s9212 + $0xa8] sm:$0xf]
        %v9242 = vld [vmem:[%s9212 + $0xac] sm:$0xf]
        %v9243 = vld [vmem:[%s9212 + $0xb4] sm:$0xf]
        %v9244 = vld [vmem:[%s9212 + $0xb8] sm:$0xf]
        %s9245 = scalar_lea.vmem %s3, 24
        %v9246 = vld [vmem:[%s9245] sm:$0xf]
        %v9279 = vunpack.c.l.b16 %v9213
        %v9280 = vunpack.c.l.b16 %v9214
        %v9281 = vunpack.c.l.b16 %v9215
        %v9282 = vunpack.c.l.b16 %v9216
        %v9283 = vunpack.c.l.b16 %v9217
        %v9284 = vunpack.c.l.b16 %v9218
        %v9285 = vunpack.c.l.b16 %v9219
        %v9286 = vunpack.c.l.b16 %v9220
        %v9287 = vunpack.c.l.b16 %v9221
        %v9288 = vunpack.c.l.b16 %v9222
        %v9289 = vunpack.c.l.b16 %v9223
        %v9290 = vunpack.c.l.b16 %v9224
        %v9291 = vunpack.c.l.b16 %v9225
        %v9292 = vunpack.c.l.b16 %v9226
        %v9293 = vunpack.c.l.b16 %v9227
        %v9294 = vunpack.c.l.b16 %v9228
        %v9295 = vunpack.c.l.b16 %v9229
        %v9296 = vunpack.c.l.b16 %v9230
        %v9297 = vunpack.c.l.b16 %v9231
        %v9298 = vunpack.c.l.b16 %v9232
        %v9299 = vunpack.c.l.b16 %v9233
        %v9300 = vunpack.c.l.b16 %v9234
        %v9301 = vunpack.c.l.b16 %v9235
        %v9302 = vunpack.c.l.b16 %v9236
        %v9303 = vunpack.c.l.b16 %v9237
        %v9304 = vunpack.c.l.b16 %v9238
        %v9305 = vunpack.c.l.b16 %v9239
        %v9306 = vunpack.c.l.b16 %v9240
        %v9307 = vunpack.c.l.b16 %v9241
        %v9308 = vunpack.c.l.b16 %v9242
        %v9309 = vunpack.c.l.b16 %v9243
        %v9310 = vunpack.c.l.b16 %v9244
        %v9311 = vpack.c.b16 %v9280, %v9279
        %v9312 = vpack.c.b16 %v9282, %v9281
        %v9313 = vpack.c.b16 %v9284, %v9283
        %v9314 = vpack.c.b16 %v9286, %v9285
        %v9315 = vpack.c.b16 %v9288, %v9287
        %v9316 = vpack.c.b16 %v9290, %v9289
        %v9317 = vpack.c.b16 %v9292, %v9291
        %v9318 = vpack.c.b16 %v9294, %v9293
        %v9319 = vpack.c.b16 %v9296, %v9295
        %v9320 = vpack.c.b16 %v9298, %v9297
        %v9321 = vpack.c.b16 %v9300, %v9299
        %v9322 = vpack.c.b16 %v9302, %v9301
        %v9323 = vpack.c.b16 %v9304, %v9303
        %v9324 = vpack.c.b16 %v9306, %v9305
        %v9325 = vpack.c.b16 %v9308, %v9307
        %v9326 = vpack.c.b16 %v9310, %v9309
        %v9328 = vsel %vm980, %v9311, 0
        %v9331 = vsel %vm980, %v9312, 0
        %v9334 = vsel %vm980, %v9313, 0
        %v9337 = vsel %vm980, %v9314, 0
        %v9340 = vsel %vm980, %v9315, 0
        %v9343 = vsel %vm980, %v9316, 0
        %v9346 = vsel %vm980, %v9317, 0
        %v9349 = vsel %vm980, %v9318, 0
        %v9352 = vsel %vm980, %v9319, 0
        %v9355 = vsel %vm980, %v9320, 0
        %v9358 = vsel %vm980, %v9321, 0
        %v9361 = vsel %vm980, %v9322, 0
        %v9364 = vsel %vm980, %v9323, 0
        %v9367 = vsel %vm980, %v9324, 0
        %v9370 = vsel %vm980, %v9325, 0
        %v9373 = vsel %vm980, %v9326, 0
        %v9376 = vsel %vm1029, %v9246, 0
        %9378 = vmatprep.subr.bf16.mxu0 0
        %9379 = vmatpush1.bf16.msra.mxu0 %v9376
        %9380 = vmatprep.subr.bf16.mxu0 0
        %9381 = vmatpush1.bf16.msra.mxu0 0
        %9382 = vmatprep.subr.bf16.mxu0 0
        %9383 = vmatpush1.bf16.msra.mxu0 0
        %9384 = vmatprep.subr.bf16.mxu0 0
        %9385 = vmatpush1.bf16.msra.mxu0 0
        %9386 = vmatprep.subr.bf16.mxu0 0
        %9387 = vmatpush1.bf16.msra.mxu0 0
        %9388 = vmatprep.subr.bf16.mxu0 0
        %9389 = vmatpush1.bf16.msra.mxu0 0
        %9390 = vmatprep.subr.bf16.mxu0 0
        %9391 = vmatpush1.bf16.msra.mxu0 0
        %9392 = vmatprep.subr.bf16.mxu0 0
        %9393 = vmatpush1.bf16.msra.mxu0 0
        %9394 = vmatprep.subr.bf16.mxu0 0
        %9395 = vmatpush1.bf16.msra.mxu0 0
        %9396 = vmatprep.subr.bf16.mxu0 0
        %9397 = vmatpush1.bf16.msra.mxu0 0
        %9398 = vmatprep.subr.bf16.mxu0 0
        %9399 = vmatpush1.bf16.msra.mxu0 0
        %9400 = vmatprep.subr.bf16.mxu0 0
        %9401 = vmatpush1.bf16.msra.mxu0 0
        %9402 = vmatprep.subr.bf16.mxu0 0
        %9403 = vmatpush1.bf16.msra.mxu0 0
        %9404 = vmatprep.subr.bf16.mxu0 0
        %9405 = vmatpush1.bf16.msra.mxu0 0
        %9406 = vmatprep.subr.bf16.mxu0 0
        %9407 = vmatpush1.bf16.msra.mxu0 0
        %9408 = vmatprep.subr.bf16.mxu0 0
        %9409 = vmatpush1.bf16.msra.mxu0 0
        %9410 = vmatprep.mubr.bf16.mxu0 0
        %9411 = vmatmul.mubr.bf16.gmra.mrb[0].mxu0 %v9328
        %v9412 = vpop.f32.mrb[0].mxu0
        %v9413 = vadd.f32 0.0, %v9412
        %v9414 = vpop.f32.mrb[0].mxu0
        %v9415 = vpop.f32.mrb[0].mxu0
        %v9416 = vadd.f32 0.0, %v9415
        %v9417 = vpop.f32.mrb[0].mxu0
        %9418 = vmatprep.mubr.bf16.mxu0 0
        %9419 = vmatmul.mubr.bf16.gmra.mrb[0].mxu0 %v9331
        %v9420 = vpop.f32.mrb[0].mxu0
        %v9421 = vadd.f32 0.0, %v9420
        %v9422 = vpop.f32.mrb[0].mxu0
        %v9423 = vpop.f32.mrb[0].mxu0
        %v9424 = vadd.f32 0.0, %v9423
        %v9425 = vpop.f32.mrb[0].mxu0
        %9426 = vmatprep.mubr.bf16.mxu0 0
        %9427 = vmatmul.mubr.bf16.gmra.mrb[0].mxu0 %v9334
        %v9428 = vpop.f32.mrb[0].mxu0
        %v9429 = vadd.f32 0.0, %v9428
        %v9430 = vpop.f32.mrb[0].mxu0
        %v9431 = vpop.f32.mrb[0].mxu0
        %v9432 = vadd.f32 0.0, %v9431
        %v9433 = vpop.f32.mrb[0].mxu0
        %9434 = vmatprep.mubr.bf16.mxu0 0
        %9435 = vmatmul.mubr.bf16.gmra.mrb[0].mxu0 %v9337
        %v9436 = vpop.f32.mrb[0].mxu0
        %v9437 = vadd.f32 0.0, %v9436
        %v9438 = vpop.f32.mrb[0].mxu0
        %v9439 = vpop.f32.mrb[0].mxu0
        %v9440 = vadd.f32 0.0, %v9439
        %v9441 = vpop.f32.mrb[0].mxu0
        %9442 = vmatprep.mubr.bf16.mxu0 0
        %9443 = vmatmul.mubr.bf16.gmra.mrb[0].mxu0 %v9340
        %v9444 = vpop.f32.mrb[0].mxu0
        %v9445 = vadd.f32 0.0, %v9444
        %v9446 = vpop.f32.mrb[0].mxu0
        %v9447 = vpop.f32.mrb[0].mxu0
        %v9448 = vadd.f32 0.0, %v9447
        %v9449 = vpop.f32.mrb[0].mxu0
        %9450 = vmatprep.mubr.bf16.mxu0 0
        %9451 = vmatmul.mubr.bf16.gmra.mrb[0].mxu0 %v9343
        %v9452 = vpop.f32.mrb[0].mxu0
        %v9453 = vadd.f32 0.0, %v9452
        %v9454 = vpop.f32.mrb[0].mxu0
        %v9455 = vpop.f32.mrb[0].mxu0
        %v9456 = vadd.f32 0.0, %v9455
        %v9457 = vpop.f32.mrb[0].mxu0
        %9458 = vmatprep.mubr.bf16.mxu0 0
        %9459 = vmatmul.mubr.bf16.gmra.mrb[0].mxu0 %v9346
        %v9460 = vpop.f32.mrb[0].mxu0
        %v9461 = vadd.f32 0.0, %v9460
        %v9462 = vpop.f32.mrb[0].mxu0
        %v9463 = vpop.f32.mrb[0].mxu0
        %v9464 = vadd.f32 0.0, %v9463
        %v9465 = vpop.f32.mrb[0].mxu0
        %9466 = vmatprep.mubr.bf16.mxu0 0
        %9467 = vmatmul.mubr.bf16.gmra.mrb[0].mxu0 %v9349
        %v9468 = vpop.f32.mrb[0].mxu0
        %v9469 = vadd.f32 0.0, %v9468
        %v9470 = vpop.f32.mrb[0].mxu0
        %v9471 = vpop.f32.mrb[0].mxu0
        %v9472 = vadd.f32 0.0, %v9471
        %v9473 = vpop.f32.mrb[0].mxu0
        %9474 = vmatprep.mubr.bf16.mxu0 0
        %9475 = vmatmul.mubr.bf16.gmra.mrb[0].mxu0 %v9352
        %v9476 = vpop.f32.mrb[0].mxu0
        %v9477 = vadd.f32 0.0, %v9476
        %v9478 = vpop.f32.mrb[0].mxu0
        %v9479 = vpop.f32.mrb[0].mxu0
        %v9480 = vadd.f32 0.0, %v9479
        %v9481 = vpop.f32.mrb[0].mxu0
        %9482 = vmatprep.mubr.bf16.mxu0 0
        %9483 = vmatmul.mubr.bf16.gmra.mrb[0].mxu0 %v9355
        %v9484 = vpop.f32.mrb[0].mxu0
        %v9485 = vadd.f32 0.0, %v9484
        %v9486 = vpop.f32.mrb[0].mxu0
        %v9487 = vpop.f32.mrb[0].mxu0
        %v9488 = vadd.f32 0.0, %v9487
        %v9489 = vpop.f32.mrb[0].mxu0
        %9490 = vmatprep.mubr.bf16.mxu0 0
        %9491 = vmatmul.mubr.bf16.gmra.mrb[0].mxu0 %v9358
        %v9492 = vpop.f32.mrb[0].mxu0
        %v9493 = vadd.f32 0.0, %v9492
        %v9494 = vpop.f32.mrb[0].mxu0
        %v9495 = vpop.f32.mrb[0].mxu0
        %v9496 = vadd.f32 0.0, %v9495
        %v9497 = vpop.f32.mrb[0].mxu0
        %9498 = vmatprep.mubr.bf16.mxu0 0
        %9499 = vmatmul.mubr.bf16.gmra.mrb[0].mxu0 %v9361
        %v9500 = vpop.f32.mrb[0].mxu0
        %v9501 = vadd.f32 0.0, %v9500
        %v9502 = vpop.f32.mrb[0].mxu0
        %v9503 = vpop.f32.mrb[0].mxu0
        %v9504 = vadd.f32 0.0, %v9503
        %v9505 = vpop.f32.mrb[0].mxu0
        %9506 = vmatprep.mubr.bf16.mxu0 0
        %9507 = vmatmul.mubr.bf16.gmra.mrb[0].mxu0 %v9364
        %v9508 = vpop.f32.mrb[0].mxu0
        %v9509 = vadd.f32 0.0, %v9508
        %v9510 = vpop.f32.mrb[0].mxu0
        %v9511 = vpop.f32.mrb[0].mxu0
        %v9512 = vadd.f32 0.0, %v9511
        %v9513 = vpop.f32.mrb[0].mxu0
        %9514 = vmatprep.mubr.bf16.mxu0 0
        %9515 = vmatmul.mubr.bf16.gmra.mrb[0].mxu0 %v9367
        %v9516 = vpop.f32.mrb[0].mxu0
        %v9517 = vadd.f32 0.0, %v9516
        %v9518 = vpop.f32.mrb[0].mxu0
        %v9519 = vpop.f32.mrb[0].mxu0
        %v9520 = vadd.f32 0.0, %v9519
        %v9521 = vpop.f32.mrb[0].mxu0
        %9522 = vmatprep.mubr.bf16.mxu0 0
        %9523 = vmatmul.mubr.bf16.gmra.mrb[0].mxu0 %v9370
        %v9524 = vpop.f32.mrb[0].mxu0
        %v9525 = vadd.f32 0.0, %v9524
        %v9526 = vpop.f32.mrb[0].mxu0
        %v9527 = vpop.f32.mrb[0].mxu0
        %v9528 = vadd.f32 0.0, %v9527
        %v9529 = vpop.f32.mrb[0].mxu0
        %9530 = vmatprep.mubr.bf16.mxu0 0
        %9531 = vmatmul.mubr.bf16.gmra.mrb[0].mxu0 %v9373
        %v9532 = vpop.f32.mrb[0].mxu0
        %v9533 = vadd.f32 0.0, %v9532
        %v9534 = vpop.f32.mrb[0].mxu0
        %v9535 = vpop.f32.mrb[0].mxu0
        %v9536 = vadd.f32 0.0, %v9535
        %v9537 = vpop.f32.mrb[0].mxu0
        %9538 = vdwg.mxu0
        %v9539 = vadd.f32 %v9180, %v9413
        %v9540 = vadd.f32 %v9181, %v9416
        %v9541 = vadd.f32 %v9182, %v9421
        %v9542 = vadd.f32 %v9183, %v9424
        %v9543 = vadd.f32 %v9184, %v9429
        %v9544 = vadd.f32 %v9185, %v9432
        %v9545 = vadd.f32 %v9186, %v9437
        %v9546 = vadd.f32 %v9187, %v9440
        %v9547 = vadd.f32 %v9188, %v9445
        %v9548 = vadd.f32 %v9189, %v9448
        %v9549 = vadd.f32 %v9190, %v9453
        %v9550 = vadd.f32 %v9191, %v9456
        %v9551 = vadd.f32 %v9192, %v9461
        %v9552 = vadd.f32 %v9193, %v9464
        %v9553 = vadd.f32 %v9194, %v9469
        %v9554 = vadd.f32 %v9195, %v9472
        %v9555 = vadd.f32 %v9196, %v9477
        %v9556 = vadd.f32 %v9197, %v9480
        %v9557 = vadd.f32 %v9198, %v9485
        %v9558 = vadd.f32 %v9199, %v9488
        %v9559 = vadd.f32 %v9200, %v9493
        %v9560 = vadd.f32 %v9201, %v9496
        %v9561 = vadd.f32 %v9202, %v9501
        %v9562 = vadd.f32 %v9203, %v9504
        %v9563 = vadd.f32 %v9204, %v9509
        %v9564 = vadd.f32 %v9205, %v9512
        %v9565 = vadd.f32 %v9206, %v9517
        %v9566 = vadd.f32 %v9207, %v9520
        %v9567 = vadd.f32 %v9208, %v9525
        %v9568 = vadd.f32 %v9209, %v9528
        %v9569 = vadd.f32 %v9210, %v9533
        %v9570 = vadd.f32 %v9211, %v9536
        %v9571 = vld [vmem:[%s9212] sm:$0xf]
        %v9572 = vld [vmem:[%s9212 + $0x4] sm:$0xf]
        %v9573 = vld [vmem:[%s9212 + $0x8] sm:$0x1]
        %v9574 = vld [vmem:[%s9212 + $0xc] sm:$0xf]
        %v9575 = vld [vmem:[%s9212 + $0x10] sm:$0xf]
        %v9576 = vld [vmem:[%s9212 + $0x14] sm:$0x1]
        %v9577 = vld [vmem:[%s9212 + $0x18] sm:$0xf]
        %v9578 = vld [vmem:[%s9212 + $0x1c] sm:$0xf]
        %v9579 = vld [vmem:[%s9212 + $0x20] sm:$0x1]
        %v9580 = vld [vmem:[%s9212 + $0x24] sm:$0xf]
        %v9581 = vld [vmem:[%s9212 + $0x28] sm:$0xf]
        %v9582 = vld [vmem:[%s9212 + $0x2c] sm:$0x1]
        %v9583 = vld [vmem:[%s9212 + $0x30] sm:$0xf]
        %v9584 = vld [vmem:[%s9212 + $0x34] sm:$0xf]
        %v9585 = vld [vmem:[%s9212 + $0x38] sm:$0x1]
        %v9586 = vld [vmem:[%s9212 + $0x3c] sm:$0xf]
        %v9587 = vld [vmem:[%s9212 + $0x40] sm:$0xf]
        %v9588 = vld [vmem:[%s9212 + $0x44] sm:$0x1]
        %v9589 = vld [vmem:[%s9212 + $0x48] sm:$0xf]
        %v9590 = vld [vmem:[%s9212 + $0x4c] sm:$0xf]
        %v9591 = vld [vmem:[%s9212 + $0x50] sm:$0x1]
        %v9592 = vld [vmem:[%s9212 + $0x54] sm:$0xf]
        %v9593 = vld [vmem:[%s9212 + $0x58] sm:$0xf]
        %v9594 = vld [vmem:[%s9212 + $0x5c] sm:$0x1]
        %v9595 = vld [vmem:[%s9212 + $0x60] sm:$0xf]
        %v9596 = vld [vmem:[%s9212 + $0x64] sm:$0xf]
        %v9597 = vld [vmem:[%s9212 + $0x68] sm:$0x1]
        %v9598 = vld [vmem:[%s9212 + $0x6c] sm:$0xf]
        %v9599 = vld [vmem:[%s9212 + $0x70] sm:$0xf]
        %v9600 = vld [vmem:[%s9212 + $0x74] sm:$0x1]
        %v9601 = vld [vmem:[%s9212 + $0x78] sm:$0xf]
        %v9602 = vld [vmem:[%s9212 + $0x7c] sm:$0xf]
        %v9603 = vld [vmem:[%s9212 + $0x80] sm:$0x1]
        %v9604 = vld [vmem:[%s9212 + $0x84] sm:$0xf]
        %v9605 = vld [vmem:[%s9212 + $0x88] sm:$0xf]
        %v9606 = vld [vmem:[%s9212 + $0x8c] sm:$0x1]
        %v9607 = vld [vmem:[%s9212 + $0x90] sm:$0xf]
        %v9608 = vld [vmem:[%s9212 + $0x94] sm:$0xf]
        %v9609 = vld [vmem:[%s9212 + $0x98] sm:$0x1]
        %v9610 = vld [vmem:[%s9212 + $0x9c] sm:$0xf]
        %v9611 = vld [vmem:[%s9212 + $0xa0] sm:$0xf]
        %v9612 = vld [vmem:[%s9212 + $0xa4] sm:$0x1]
        %v9613 = vld [vmem:[%s9212 + $0xa8] sm:$0xf]
        %v9614 = vld [vmem:[%s9212 + $0xac] sm:$0xf]
        %v9615 = vld [vmem:[%s9212 + $0xb0] sm:$0x1]
        %v9616 = vld [vmem:[%s9212 + $0xb4] sm:$0xf]
        %v9617 = vld [vmem:[%s9212 + $0xb8] sm:$0xf]
        %v9618 = vld [vmem:[%s9212 + $0xbc] sm:$0x1]
        %v9620 = vshrl.u32 %v9571, 16
        %v9622 = vrot.slane %v9620, 4
        %v9623 = vshll.u32 %v9571, 16
        %v9625 = vrot.slane %v9623, 5
        %v9626 = vor.u32 %v9622, %v9625
        %v9627 = vrot.slane %v9626, 4
        %v9629 = vshll.u32 %v9572, 16
        %v9631 = vrot.slane %v9629, 5
        %v9632 = vsel %vm1276, %v9627, %v9631
        %v9633 = vshrl.u32 %v9572, 16
        %v9635 = vrot.slane %v9633, 4
        %v9636 = vor.u32 %v9635, %v9631
        %v9637 = vrot.slane %v9636, 4
        %v9639 = vshll.u32 %v9573, 16
        %v9641 = vrot.slane %v9639, 5
        %v9642 = vsel %vm1276, %v9637, %v9641
        %v9644 = vshrl.u32 %v9574, 16
        %v9646 = vrot.slane %v9644, 4
        %v9647 = vshll.u32 %v9574, 16
        %v9649 = vrot.slane %v9647, 5
        %v9650 = vor.u32 %v9646, %v9649
        %v9651 = vrot.slane %v9650, 4
        %v9653 = vshll.u32 %v9575, 16
        %v9655 = vrot.slane %v9653, 5
        %v9656 = vsel %vm1276, %v9651, %v9655
        %v9657 = vshrl.u32 %v9575, 16
        %v9659 = vrot.slane %v9657, 4
        %v9660 = vor.u32 %v9659, %v9655
        %v9661 = vrot.slane %v9660, 4
        %v9663 = vshll.u32 %v9576, 16
        %v9665 = vrot.slane %v9663, 5
        %v9666 = vsel %vm1276, %v9661, %v9665
        %v9668 = vshrl.u32 %v9577, 16
        %v9670 = vrot.slane %v9668, 4
        %v9671 = vshll.u32 %v9577, 16
        %v9673 = vrot.slane %v9671, 5
        %v9674 = vor.u32 %v9670, %v9673
        %v9675 = vrot.slane %v9674, 4
        %v9677 = vshll.u32 %v9578, 16
        %v9679 = vrot.slane %v9677, 5
        %v9680 = vsel %vm1276, %v9675, %v9679
        %v9681 = vshrl.u32 %v9578, 16
        %v9683 = vrot.slane %v9681, 4
        %v9684 = vor.u32 %v9683, %v9679
        %v9685 = vrot.slane %v9684, 4
        %v9687 = vshll.u32 %v9579, 16
        %v9689 = vrot.slane %v9687, 5
        %v9690 = vsel %vm1276, %v9685, %v9689
        %v9692 = vshrl.u32 %v9580, 16
        %v9694 = vrot.slane %v9692, 4
        %v9695 = vshll.u32 %v9580, 16
        %v9697 = vrot.slane %v9695, 5
        %v9698 = vor.u32 %v9694, %v9697
        %v9699 = vrot.slane %v9698, 4
        %v9701 = vshll.u32 %v9581, 16
        %v9703 = vrot.slane %v9701, 5
        %v9704 = vsel %vm1276, %v9699, %v9703
        %v9705 = vshrl.u32 %v9581, 16
        %v9707 = vrot.slane %v9705, 4
        %v9708 = vor.u32 %v9707, %v9703
        %v9709 = vrot.slane %v9708, 4
        %v9711 = vshll.u32 %v9582, 16
        %v9713 = vrot.slane %v9711, 5
        %v9714 = vsel %vm1276, %v9709, %v9713
        %v9716 = vshrl.u32 %v9583, 16
        %v9718 = vrot.slane %v9716, 4
        %v9719 = vshll.u32 %v9583, 16
        %v9721 = vrot.slane %v9719, 5
        %v9722 = vor.u32 %v9718, %v9721
        %v9723 = vrot.slane %v9722, 4
        %v9725 = vshll.u32 %v9584, 16
        %v9727 = vrot.slane %v9725, 5
        %v9728 = vsel %vm1276, %v9723, %v9727
        %v9729 = vshrl.u32 %v9584, 16
        %v9731 = vrot.slane %v9729, 4
        %v9732 = vor.u32 %v9731, %v9727
        %v9733 = vrot.slane %v9732, 4
        %v9735 = vshll.u32 %v9585, 16
        %v9737 = vrot.slane %v9735, 5
        %v9738 = vsel %vm1276, %v9733, %v9737
        %v9740 = vshrl.u32 %v9586, 16
        %v9742 = vrot.slane %v9740, 4
        %v9743 = vshll.u32 %v9586, 16
        %v9745 = vrot.slane %v9743, 5
        %v9746 = vor.u32 %v9742, %v9745
        %v9747 = vrot.slane %v9746, 4
        %v9749 = vshll.u32 %v9587, 16
        %v9751 = vrot.slane %v9749, 5
        %v9752 = vsel %vm1276, %v9747, %v9751
        %v9753 = vshrl.u32 %v9587, 16
        %v9755 = vrot.slane %v9753, 4
        %v9756 = vor.u32 %v9755, %v9751
        %v9757 = vrot.slane %v9756, 4
        %v9759 = vshll.u32 %v9588, 16
        %v9761 = vrot.slane %v9759, 5
        %v9762 = vsel %vm1276, %v9757, %v9761
        %v9764 = vshrl.u32 %v9589, 16
        %v9766 = vrot.slane %v9764, 4
        %v9767 = vshll.u32 %v9589, 16
        %v9769 = vrot.slane %v9767, 5
        %v9770 = vor.u32 %v9766, %v9769
        %v9771 = vrot.slane %v9770, 4
        %v9773 = vshll.u32 %v9590, 16
        %v9775 = vrot.slane %v9773, 5
        %v9776 = vsel %vm1276, %v9771, %v9775
        %v9777 = vshrl.u32 %v9590, 16
        %v9779 = vrot.slane %v9777, 4
        %v9780 = vor.u32 %v9779, %v9775
        %v9781 = vrot.slane %v9780, 4
        %v9783 = vshll.u32 %v9591, 16
        %v9785 = vrot.slane %v9783, 5
        %v9786 = vsel %vm1276, %v9781, %v9785
        %v9788 = vshrl.u32 %v9592, 16
        %v9790 = vrot.slane %v9788, 4
        %v9791 = vshll.u32 %v9592, 16
        %v9793 = vrot.slane %v9791, 5
        %v9794 = vor.u32 %v9790, %v9793
        %v9795 = vrot.slane %v9794, 4
        %v9797 = vshll.u32 %v9593, 16
        %v9799 = vrot.slane %v9797, 5
        %v9800 = vsel %vm1276, %v9795, %v9799
        %v9801 = vshrl.u32 %v9593, 16
        %v9803 = vrot.slane %v9801, 4
        %v9804 = vor.u32 %v9803, %v9799
        %v9805 = vrot.slane %v9804, 4
        %v9807 = vshll.u32 %v9594, 16
        %v9809 = vrot.slane %v9807, 5
        %v9810 = vsel %vm1276, %v9805, %v9809
        %v9812 = vshrl.u32 %v9595, 16
        %v9814 = vrot.slane %v9812, 4
        %v9815 = vshll.u32 %v9595, 16
        %v9817 = vrot.slane %v9815, 5
        %v9818 = vor.u32 %v9814, %v9817
        %v9819 = vrot.slane %v9818, 4
        %v9821 = vshll.u32 %v9596, 16
        %v9823 = vrot.slane %v9821, 5
        %v9824 = vsel %vm1276, %v9819, %v9823
        %v9825 = vshrl.u32 %v9596, 16
        %v9827 = vrot.slane %v9825, 4
        %v9828 = vor.u32 %v9827, %v9823
        %v9829 = vrot.slane %v9828, 4
        %v9831 = vshll.u32 %v9597, 16
        %v9833 = vrot.slane %v9831, 5
        %v9834 = vsel %vm1276, %v9829, %v9833
        %v9836 = vshrl.u32 %v9598, 16
        %v9838 = vrot.slane %v9836, 4
        %v9839 = vshll.u32 %v9598, 16
        %v9841 = vrot.slane %v9839, 5
        %v9842 = vor.u32 %v9838, %v9841
        %v9843 = vrot.slane %v9842, 4
        %v9845 = vshll.u32 %v9599, 16
        %v9847 = vrot.slane %v9845, 5
        %v9848 = vsel %vm1276, %v9843, %v9847
        %v9849 = vshrl.u32 %v9599, 16
        %v9851 = vrot.slane %v9849, 4
        %v9852 = vor.u32 %v9851, %v9847
        %v9853 = vrot.slane %v9852, 4
        %v9855 = vshll.u32 %v9600, 16
        %v9857 = vrot.slane %v9855, 5
        %v9858 = vsel %vm1276, %v9853, %v9857
        %v9860 = vshrl.u32 %v9601, 16
        %v9862 = vrot.slane %v9860, 4
        %v9863 = vshll.u32 %v9601, 16
        %v9865 = vrot.slane %v9863, 5
        %v9866 = vor.u32 %v9862, %v9865
        %v9867 = vrot.slane %v9866, 4
        %v9869 = vshll.u32 %v9602, 16
        %v9871 = vrot.slane %v9869, 5
        %v9872 = vsel %vm1276, %v9867, %v9871
        %v9873 = vshrl.u32 %v9602, 16
        %v9875 = vrot.slane %v9873, 4
        %v9876 = vor.u32 %v9875, %v9871
        %v9877 = vrot.slane %v9876, 4
        %v9879 = vshll.u32 %v9603, 16
        %v9881 = vrot.slane %v9879, 5
        %v9882 = vsel %vm1276, %v9877, %v9881
        %v9884 = vshrl.u32 %v9604, 16
        %v9886 = vrot.slane %v9884, 4
        %v9887 = vshll.u32 %v9604, 16
        %v9889 = vrot.slane %v9887, 5
        %v9890 = vor.u32 %v9886, %v9889
        %v9891 = vrot.slane %v9890, 4
        %v9893 = vshll.u32 %v9605, 16
        %v9895 = vrot.slane %v9893, 5
        %v9896 = vsel %vm1276, %v9891, %v9895
        %v9897 = vshrl.u32 %v9605, 16
        %v9899 = vrot.slane %v9897, 4
        %v9900 = vor.u32 %v9899, %v9895
        %v9901 = vrot.slane %v9900, 4
        %v9903 = vshll.u32 %v9606, 16
        %v9905 = vrot.slane %v9903, 5
        %v9906 = vsel %vm1276, %v9901, %v9905
        %v9908 = vshrl.u32 %v9607, 16
        %v9910 = vrot.slane %v9908, 4
        %v9911 = vshll.u32 %v9607, 16
        %v9913 = vrot.slane %v9911, 5
        %v9914 = vor.u32 %v9910, %v9913
        %v9915 = vrot.slane %v9914, 4
        %v9917 = vshll.u32 %v9608, 16
        %v9919 = vrot.slane %v9917, 5
        %v9920 = vsel %vm1276, %v9915, %v9919
        %v9921 = vshrl.u32 %v9608, 16
        %v9923 = vrot.slane %v9921, 4
        %v9924 = vor.u32 %v9923, %v9919
        %v9925 = vrot.slane %v9924, 4
        %v9927 = vshll.u32 %v9609, 16
        %v9929 = vrot.slane %v9927, 5
        %v9930 = vsel %vm1276, %v9925, %v9929
        %v9932 = vshrl.u32 %v9610, 16
        %v9934 = vrot.slane %v9932, 4
        %v9935 = vshll.u32 %v9610, 16
        %v9937 = vrot.slane %v9935, 5
        %v9938 = vor.u32 %v9934, %v9937
        %v9939 = vrot.slane %v9938, 4
        %v9941 = vshll.u32 %v9611, 16
        %v9943 = vrot.slane %v9941, 5
        %v9944 = vsel %vm1276, %v9939, %v9943
        %v9945 = vshrl.u32 %v9611, 16
        %v9947 = vrot.slane %v9945, 4
        %v9948 = vor.u32 %v9947, %v9943
        %v9949 = vrot.slane %v9948, 4
        %v9951 = vshll.u32 %v9612, 16
        %v9953 = vrot.slane %v9951, 5
        %v9954 = vsel %vm1276, %v9949, %v9953
        %v9956 = vshrl.u32 %v9613, 16
        %v9958 = vrot.slane %v9956, 4
        %v9959 = vshll.u32 %v9613, 16
        %v9961 = vrot.slane %v9959, 5
        %v9962 = vor.u32 %v9958, %v9961
        %v9963 = vrot.slane %v9962, 4
        %v9965 = vshll.u32 %v9614, 16
        %v9967 = vrot.slane %v9965, 5
        %v9968 = vsel %vm1276, %v9963, %v9967
        %v9969 = vshrl.u32 %v9614, 16
        %v9971 = vrot.slane %v9969, 4
        %v9972 = vor.u32 %v9971, %v9967
        %v9973 = vrot.slane %v9972, 4
        %v9975 = vshll.u32 %v9615, 16
        %v9977 = vrot.slane %v9975, 5
        %v9978 = vsel %vm1276, %v9973, %v9977
        %v9980 = vshrl.u32 %v9616, 16
        %v9982 = vrot.slane %v9980, 4
        %v9983 = vshll.u32 %v9616, 16
        %v9985 = vrot.slane %v9983, 5
        %v9986 = vor.u32 %v9982, %v9985
        %v9987 = vrot.slane %v9986, 4
        %v9989 = vshll.u32 %v9617, 16
        %v9991 = vrot.slane %v9989, 5
        %v9992 = vsel %vm1276, %v9987, %v9991
        %v9993 = vshrl.u32 %v9617, 16
        %v9995 = vrot.slane %v9993, 4
        %v9996 = vor.u32 %v9995, %v9991
        %v9997 = vrot.slane %v9996, 4
        %v9999 = vshll.u32 %v9618, 16
        %v10001 = vrot.slane %v9999, 5
        %v10002 = vsel %vm1276, %v9997, %v10001
        %s10003 = scalar_lea.vmem %s3, 28
        %v10004 = vld [vmem:[%s10003] sm:$0xf]
        %v10005 = vunpack.c.l.b16 %v9632
        %v10006 = vunpack.c.l.b16 %v9642
        %v10007 = vunpack.c.l.b16 %v9656
        %v10008 = vunpack.c.l.b16 %v9666
        %v10009 = vunpack.c.l.b16 %v9680
        %v10010 = vunpack.c.l.b16 %v9690
        %v10011 = vunpack.c.l.b16 %v9704
        %v10012 = vunpack.c.l.b16 %v9714
        %v10013 = vunpack.c.l.b16 %v9728
        %v10014 = vunpack.c.l.b16 %v9738
        %v10015 = vunpack.c.l.b16 %v9752
        %v10016 = vunpack.c.l.b16 %v9762
        %v10017 = vunpack.c.l.b16 %v9776
        %v10018 = vunpack.c.l.b16 %v9786
        %v10019 = vunpack.c.l.b16 %v9800
        %v10020 = vunpack.c.l.b16 %v9810
        %v10021 = vunpack.c.l.b16 %v9824
        %v10022 = vunpack.c.l.b16 %v9834
        %v10023 = vunpack.c.l.b16 %v9848
        %v10024 = vunpack.c.l.b16 %v9858
        %v10025 = vunpack.c.l.b16 %v9872
        %v10026 = vunpack.c.l.b16 %v9882
        %v10027 = vunpack.c.l.b16 %v9896
        %v10028 = vunpack.c.l.b16 %v9906
        %v10029 = vunpack.c.l.b16 %v9920
        %v10030 = vunpack.c.l.b16 %v9930
        %v10031 = vunpack.c.l.b16 %v9944
        %v10032 = vunpack.c.l.b16 %v9954
        %v10033 = vunpack.c.l.b16 %v9968
        %v10034 = vunpack.c.l.b16 %v9978
        %v10035 = vunpack.c.l.b16 %v9992
        %v10036 = vunpack.c.l.b16 %v10002
        %v10037 = vpack.c.b16 %v10006, %v10005
        %v10038 = vpack.c.b16 %v10008, %v10007
        %v10039 = vpack.c.b16 %v10010, %v10009
        %v10040 = vpack.c.b16 %v10012, %v10011
        %v10041 = vpack.c.b16 %v10014, %v10013
        %v10042 = vpack.c.b16 %v10016, %v10015
        %v10043 = vpack.c.b16 %v10018, %v10017
        %v10044 = vpack.c.b16 %v10020, %v10019
        %v10045 = vpack.c.b16 %v10022, %v10021
        %v10046 = vpack.c.b16 %v10024, %v10023
        %v10047 = vpack.c.b16 %v10026, %v10025
        %v10048 = vpack.c.b16 %v10028, %v10027
        %v10049 = vpack.c.b16 %v10030, %v10029
        %v10050 = vpack.c.b16 %v10032, %v10031
        %v10051 = vpack.c.b16 %v10034, %v10033
        %v10052 = vpack.c.b16 %v10036, %v10035
        %v10054 = vsel %vm980, %v10037, 0
        %v10057 = vsel %vm980, %v10038, 0
        %v10060 = vsel %vm980, %v10039, 0
        %v10063 = vsel %vm980, %v10040, 0
        %v10066 = vsel %vm980, %v10041, 0
        %v10069 = vsel %vm980, %v10042, 0
        %v10072 = vsel %vm980, %v10043, 0
        %v10075 = vsel %vm980, %v10044, 0
        %v10078 = vsel %vm980, %v10045, 0
        %v10081 = vsel %vm980, %v10046, 0
        %v10084 = vsel %vm980, %v10047, 0
        %v10087 = vsel %vm980, %v10048, 0
        %v10090 = vsel %vm980, %v10049, 0
        %v10093 = vsel %vm980, %v10050, 0
        %v10096 = vsel %vm980, %v10051, 0
        %v10099 = vsel %vm980, %v10052, 0
        %v10102 = vsel %vm1029, %v10004, 0
        %10104 = vmatprep.subr.bf16.mxu0 0
        %10105 = vmatpush1.bf16.msra.mxu0 %v10102
        %10106 = vmatprep.subr.bf16.mxu0 0
        %10107 = vmatpush1.bf16.msra.mxu0 0
        %10108 = vmatprep.subr.bf16.mxu0 0
        %10109 = vmatpush1.bf16.msra.mxu0 0
        %10110 = vmatprep.subr.bf16.mxu0 0
        %10111 = vmatpush1.bf16.msra.mxu0 0
        %10112 = vmatprep.subr.bf16.mxu0 0
        %10113 = vmatpush1.bf16.msra.mxu0 0
        %10114 = vmatprep.subr.bf16.mxu0 0
        %10115 = vmatpush1.bf16.msra.mxu0 0
        %10116 = vmatprep.subr.bf16.mxu0 0
        %10117 = vmatpush1.bf16.msra.mxu0 0
        %10118 = vmatprep.subr.bf16.mxu0 0
        %10119 = vmatpush1.bf16.msra.mxu0 0
        %10120 = vmatprep.subr.bf16.mxu0 0
        %10121 = vmatpush1.bf16.msra.mxu0 0
        %10122 = vmatprep.subr.bf16.mxu0 0
        %10123 = vmatpush1.bf16.msra.mxu0 0
        %10124 = vmatprep.subr.bf16.mxu0 0
        %10125 = vmatpush1.bf16.msra.mxu0 0
        %10126 = vmatprep.subr.bf16.mxu0 0
        %10127 = vmatpush1.bf16.msra.mxu0 0
        %10128 = vmatprep.subr.bf16.mxu0 0
        %10129 = vmatpush1.bf16.msra.mxu0 0
        %10130 = vmatprep.subr.bf16.mxu0 0
        %10131 = vmatpush1.bf16.msra.mxu0 0
        %10132 = vmatprep.subr.bf16.mxu0 0
        %10133 = vmatpush1.bf16.msra.mxu0 0
        %10134 = vmatprep.subr.bf16.mxu0 0
        %10135 = vmatpush1.bf16.msra.mxu0 0
        %10136 = vmatprep.mubr.bf16.mxu0 0
        %10137 = vmatmul.mubr.bf16.gmra.mrb[0].mxu0 %v10054
        %v10138 = vpop.f32.mrb[0].mxu0
        %v10139 = vadd.f32 0.0, %v10138
        %v10140 = vpop.f32.mrb[0].mxu0
        %v10141 = vpop.f32.mrb[0].mxu0
        %v10142 = vadd.f32 0.0, %v10141
        %v10143 = vpop.f32.mrb[0].mxu0
        %10144 = vmatprep.mubr.bf16.mxu0 0
        %10145 = vmatmul.mubr.bf16.gmra.mrb[0].mxu0 %v10057
        %v10146 = vpop.f32.mrb[0].mxu0
        %v10147 = vadd.f32 0.0, %v10146
        %v10148 = vpop.f32.mrb[0].mxu0
        %v10149 = vpop.f32.mrb[0].mxu0
        %v10150 = vadd.f32 0.0, %v10149
        %v10151 = vpop.f32.mrb[0].mxu0
        %10152 = vmatprep.mubr.bf16.mxu0 0
        %10153 = vmatmul.mubr.bf16.gmra.mrb[0].mxu0 %v10060
        %v10154 = vpop.f32.mrb[0].mxu0
        %v10155 = vadd.f32 0.0, %v10154
        %v10156 = vpop.f32.mrb[0].mxu0
        %v10157 = vpop.f32.mrb[0].mxu0
        %v10158 = vadd.f32 0.0, %v10157
        %v10159 = vpop.f32.mrb[0].mxu0
        %10160 = vmatprep.mubr.bf16.mxu0 0
        %10161 = vmatmul.mubr.bf16.gmra.mrb[0].mxu0 %v10063
        %v10162 = vpop.f32.mrb[0].mxu0
        %v10163 = vadd.f32 0.0, %v10162
        %v10164 = vpop.f32.mrb[0].mxu0
        %v10165 = vpop.f32.mrb[0].mxu0
        %v10166 = vadd.f32 0.0, %v10165
        %v10167 = vpop.f32.mrb[0].mxu0
        %10168 = vmatprep.mubr.bf16.mxu0 0
        %10169 = vmatmul.mubr.bf16.gmra.mrb[0].mxu0 %v10066
        %v10170 = vpop.f32.mrb[0].mxu0
        %v10171 = vadd.f32 0.0, %v10170
        %v10172 = vpop.f32.mrb[0].mxu0
        %v10173 = vpop.f32.mrb[0].mxu0
        %v10174 = vadd.f32 0.0, %v10173
        %v10175 = vpop.f32.mrb[0].mxu0
        %10176 = vmatprep.mubr.bf16.mxu0 0
        %10177 = vmatmul.mubr.bf16.gmra.mrb[0].mxu0 %v10069
        %v10178 = vpop.f32.mrb[0].mxu0
        %v10179 = vadd.f32 0.0, %v10178
        %v10180 = vpop.f32.mrb[0].mxu0
        %v10181 = vpop.f32.mrb[0].mxu0
        %v10182 = vadd.f32 0.0, %v10181
        %v10183 = vpop.f32.mrb[0].mxu0
        %10184 = vmatprep.mubr.bf16.mxu0 0
        %10185 = vmatmul.mubr.bf16.gmra.mrb[0].mxu0 %v10072
        %v10186 = vpop.f32.mrb[0].mxu0
        %v10187 = vadd.f32 0.0, %v10186
        %v10188 = vpop.f32.mrb[0].mxu0
        %v10189 = vpop.f32.mrb[0].mxu0
        %v10190 = vadd.f32 0.0, %v10189
        %v10191 = vpop.f32.mrb[0].mxu0
        %10192 = vmatprep.mubr.bf16.mxu0 0
        %10193 = vmatmul.mubr.bf16.gmra.mrb[0].mxu0 %v10075
        %v10194 = vpop.f32.mrb[0].mxu0
        %v10195 = vadd.f32 0.0, %v10194
        %v10196 = vpop.f32.mrb[0].mxu0
        %v10197 = vpop.f32.mrb[0].mxu0
        %v10198 = vadd.f32 0.0, %v10197
        %v10199 = vpop.f32.mrb[0].mxu0
        %10200 = vmatprep.mubr.bf16.mxu0 0
        %10201 = vmatmul.mubr.bf16.gmra.mrb[0].mxu0 %v10078
        %v10202 = vpop.f32.mrb[0].mxu0
        %v10203 = vadd.f32 0.0, %v10202
        %v10204 = vpop.f32.mrb[0].mxu0
        %v10205 = vpop.f32.mrb[0].mxu0
        %v10206 = vadd.f32 0.0, %v10205
        %v10207 = vpop.f32.mrb[0].mxu0
        %10208 = vmatprep.mubr.bf16.mxu0 0
        %10209 = vmatmul.mubr.bf16.gmra.mrb[0].mxu0 %v10081
        %v10210 = vpop.f32.mrb[0].mxu0
        %v10211 = vadd.f32 0.0, %v10210
        %v10212 = vpop.f32.mrb[0].mxu0
        %v10213 = vpop.f32.mrb[0].mxu0
        %v10214 = vadd.f32 0.0, %v10213
        %v10215 = vpop.f32.mrb[0].mxu0
        %10216 = vmatprep.mubr.bf16.mxu0 0
        %10217 = vmatmul.mubr.bf16.gmra.mrb[0].mxu0 %v10084
        %v10218 = vpop.f32.mrb[0].mxu0
        %v10219 = vadd.f32 0.0, %v10218
        %v10220 = vpop.f32.mrb[0].mxu0
        %v10221 = vpop.f32.mrb[0].mxu0
        %v10222 = vadd.f32 0.0, %v10221
        %v10223 = vpop.f32.mrb[0].mxu0
        %10224 = vmatprep.mubr.bf16.mxu0 0
        %10225 = vmatmul.mubr.bf16.gmra.mrb[0].mxu0 %v10087
        %v10226 = vpop.f32.mrb[0].mxu0
        %v10227 = vadd.f32 0.0, %v10226
        %v10228 = vpop.f32.mrb[0].mxu0
        %v10229 = vpop.f32.mrb[0].mxu0
        %v10230 = vadd.f32 0.0, %v10229
        %v10231 = vpop.f32.mrb[0].mxu0
        %10232 = vmatprep.mubr.bf16.mxu0 0
        %10233 = vmatmul.mubr.bf16.gmra.mrb[0].mxu0 %v10090
        %v10234 = vpop.f32.mrb[0].mxu0
        %v10235 = vadd.f32 0.0, %v10234
        %v10236 = vpop.f32.mrb[0].mxu0
        %v10237 = vpop.f32.mrb[0].mxu0
        %v10238 = vadd.f32 0.0, %v10237
        %v10239 = vpop.f32.mrb[0].mxu0
        %10240 = vmatprep.mubr.bf16.mxu0 0
        %10241 = vmatmul.mubr.bf16.gmra.mrb[0].mxu0 %v10093
        %v10242 = vpop.f32.mrb[0].mxu0
        %v10243 = vadd.f32 0.0, %v10242
        %v10244 = vpop.f32.mrb[0].mxu0
        %v10245 = vpop.f32.mrb[0].mxu0
        %v10246 = vadd.f32 0.0, %v10245
        %v10247 = vpop.f32.mrb[0].mxu0
        %10248 = vmatprep.mubr.bf16.mxu0 0
        %10249 = vmatmul.mubr.bf16.gmra.mrb[0].mxu0 %v10096
        %v10250 = vpop.f32.mrb[0].mxu0
        %v10251 = vadd.f32 0.0, %v10250
        %v10252 = vpop.f32.mrb[0].mxu0
        %v10253 = vpop.f32.mrb[0].mxu0
        %v10254 = vadd.f32 0.0, %v10253
        %v10255 = vpop.f32.mrb[0].mxu0
        %10256 = vmatprep.mubr.bf16.mxu0 0
        %10257 = vmatmul.mubr.bf16.gmra.mrb[0].mxu0 %v10099
        %v10258 = vpop.f32.mrb[0].mxu0
        %v10259 = vadd.f32 0.0, %v10258
        %v10260 = vpop.f32.mrb[0].mxu0
        %v10261 = vpop.f32.mrb[0].mxu0
        %v10262 = vadd.f32 0.0, %v10261
        %v10263 = vpop.f32.mrb[0].mxu0
        %10264 = vdwg.mxu0
        %v10265 = vadd.f32 %v9539, %v10139
        %v10266 = vadd.f32 %v9540, %v10142
        %v10267 = vadd.f32 %v9541, %v10147
        %v10268 = vadd.f32 %v9542, %v10150
        %v10269 = vadd.f32 %v9543, %v10155
        %v10270 = vadd.f32 %v9544, %v10158
        %v10271 = vadd.f32 %v9545, %v10163
        %v10272 = vadd.f32 %v9546, %v10166
        %v10273 = vadd.f32 %v9547, %v10171
        %v10274 = vadd.f32 %v9548, %v10174
        %v10275 = vadd.f32 %v9549, %v10179
        %v10276 = vadd.f32 %v9550, %v10182
        %v10277 = vadd.f32 %v9551, %v10187
        %v10278 = vadd.f32 %v9552, %v10190
        %v10279 = vadd.f32 %v9553, %v10195
        %v10280 = vadd.f32 %v9554, %v10198
        %v10281 = vadd.f32 %v9555, %v10203
        %v10282 = vadd.f32 %v9556, %v10206
        %v10283 = vadd.f32 %v9557, %v10211
        %v10284 = vadd.f32 %v9558, %v10214
        %v10285 = vadd.f32 %v9559, %v10219
        %v10286 = vadd.f32 %v9560, %v10222
        %v10287 = vadd.f32 %v9561, %v10227
        %v10288 = vadd.f32 %v9562, %v10230
        %v10289 = vadd.f32 %v9563, %v10235
        %v10290 = vadd.f32 %v9564, %v10238
        %v10291 = vadd.f32 %v9565, %v10243
        %v10292 = vadd.f32 %v9566, %v10246
        %v10293 = vadd.f32 %v9567, %v10251
        %v10294 = vadd.f32 %v9568, %v10254
        %v10295 = vadd.f32 %v9569, %v10259
        %v10296 = vadd.f32 %v9570, %v10262
        %v10297 = vld [vmem:[%s9212] sm:$0xe]
        %v10298 = vld [vmem:[%s9212 + $0xc] sm:$0xe]
        %v10299 = vld [vmem:[%s9212 + $0x18] sm:$0xe]
        %v10300 = vld [vmem:[%s9212 + $0x24] sm:$0xe]
        %v10301 = vld [vmem:[%s9212 + $0x30] sm:$0xe]
        %v10302 = vld [vmem:[%s9212 + $0x3c] sm:$0xe]
        %v10303 = vld [vmem:[%s9212 + $0x48] sm:$0xe]
        %v10304 = vld [vmem:[%s9212 + $0x54] sm:$0xe]
        %v10305 = vld [vmem:[%s9212 + $0x60] sm:$0xe]
        %v10306 = vld [vmem:[%s9212 + $0x6c] sm:$0xe]
        %v10307 = vld [vmem:[%s9212 + $0x78] sm:$0xe]
        %v10308 = vld [vmem:[%s9212 + $0x84] sm:$0xe]
        %v10309 = vld [vmem:[%s9212 + $0x90] sm:$0xe]
        %v10310 = vld [vmem:[%s9212 + $0x9c] sm:$0xe]
        %v10311 = vld [vmem:[%s9212 + $0xa8] sm:$0xe]
        %v10312 = vld [vmem:[%s9212 + $0xb4] sm:$0xe]
        %v10361 = vrot.slane %v10297, 5
        %v10362 = vrot.slane %v10361, 4
        %v10363 = vrot.slane %v9572, 5
        %v10364 = vsel %vm2021, %v10362, %v10363
        %v10365 = vrot.slane %v10363, 4
        %v10366 = vrot.slane %v9573, 5
        %v10367 = vsel %vm2021, %v10365, %v10366
        %v10368 = vrot.slane %v10298, 5
        %v10369 = vrot.slane %v10368, 4
        %v10370 = vrot.slane %v9575, 5
        %v10371 = vsel %vm2021, %v10369, %v10370
        %v10372 = vrot.slane %v10370, 4
        %v10373 = vrot.slane %v9576, 5
        %v10374 = vsel %vm2021, %v10372, %v10373
        %v10375 = vrot.slane %v10299, 5
        %v10376 = vrot.slane %v10375, 4
        %v10377 = vrot.slane %v9578, 5
        %v10378 = vsel %vm2021, %v10376, %v10377
        %v10379 = vrot.slane %v10377, 4
        %v10380 = vrot.slane %v9579, 5
        %v10381 = vsel %vm2021, %v10379, %v10380
        %v10382 = vrot.slane %v10300, 5
        %v10383 = vrot.slane %v10382, 4
        %v10384 = vrot.slane %v9581, 5
        %v10385 = vsel %vm2021, %v10383, %v10384
        %v10386 = vrot.slane %v10384, 4
        %v10387 = vrot.slane %v9582, 5
        %v10388 = vsel %vm2021, %v10386, %v10387
        %v10389 = vrot.slane %v10301, 5
        %v10390 = vrot.slane %v10389, 4
        %v10391 = vrot.slane %v9584, 5
        %v10392 = vsel %vm2021, %v10390, %v10391
        %v10393 = vrot.slane %v10391, 4
        %v10394 = vrot.slane %v9585, 5
        %v10395 = vsel %vm2021, %v10393, %v10394
        %v10396 = vrot.slane %v10302, 5
        %v10397 = vrot.slane %v10396, 4
        %v10398 = vrot.slane %v9587, 5
        %v10399 = vsel %vm2021, %v10397, %v10398
        %v10400 = vrot.slane %v10398, 4
        %v10401 = vrot.slane %v9588, 5
        %v10402 = vsel %vm2021, %v10400, %v10401
        %v10403 = vrot.slane %v10303, 5
        %v10404 = vrot.slane %v10403, 4
        %v10405 = vrot.slane %v9590, 5
        %v10406 = vsel %vm2021, %v10404, %v10405
        %v10407 = vrot.slane %v10405, 4
        %v10408 = vrot.slane %v9591, 5
        %v10409 = vsel %vm2021, %v10407, %v10408
        %v10410 = vrot.slane %v10304, 5
        %v10411 = vrot.slane %v10410, 4
        %v10412 = vrot.slane %v9593, 5
        %v10413 = vsel %vm2021, %v10411, %v10412
        %v10414 = vrot.slane %v10412, 4
        %v10415 = vrot.slane %v9594, 5
        %v10416 = vsel %vm2021, %v10414, %v10415
        %v10417 = vrot.slane %v10305, 5
        %v10418 = vrot.slane %v10417, 4
        %v10419 = vrot.slane %v9596, 5
        %v10420 = vsel %vm2021, %v10418, %v10419
        %v10421 = vrot.slane %v10419, 4
        %v10422 = vrot.slane %v9597, 5
        %v10423 = vsel %vm2021, %v10421, %v10422
        %v10424 = vrot.slane %v10306, 5
        %v10425 = vrot.slane %v10424, 4
        %v10426 = vrot.slane %v9599, 5
        %v10427 = vsel %vm2021, %v10425, %v10426
        %v10428 = vrot.slane %v10426, 4
        %v10429 = vrot.slane %v9600, 5
        %v10430 = vsel %vm2021, %v10428, %v10429
        %v10431 = vrot.slane %v10307, 5
        %v10432 = vrot.slane %v10431, 4
        %v10433 = vrot.slane %v9602, 5
        %v10434 = vsel %vm2021, %v10432, %v10433
        %v10435 = vrot.slane %v10433, 4
        %v10436 = vrot.slane %v9603, 5
        %v10437 = vsel %vm2021, %v10435, %v10436
        %v10438 = vrot.slane %v10308, 5
        %v10439 = vrot.slane %v10438, 4
        %v10440 = vrot.slane %v9605, 5
        %v10441 = vsel %vm2021, %v10439, %v10440
        %v10442 = vrot.slane %v10440, 4
        %v10443 = vrot.slane %v9606, 5
        %v10444 = vsel %vm2021, %v10442, %v10443
        %v10445 = vrot.slane %v10309, 5
        %v10446 = vrot.slane %v10445, 4
        %v10447 = vrot.slane %v9608, 5
        %v10448 = vsel %vm2021, %v10446, %v10447
        %v10449 = vrot.slane %v10447, 4
        %v10450 = vrot.slane %v9609, 5
        %v10451 = vsel %vm2021, %v10449, %v10450
        %v10452 = vrot.slane %v10310, 5
        %v10453 = vrot.slane %v10452, 4
        %v10454 = vrot.slane %v9611, 5
        %v10455 = vsel %vm2021, %v10453, %v10454
        %v10456 = vrot.slane %v10454, 4
        %v10457 = vrot.slane %v9612, 5
        %v10458 = vsel %vm2021, %v10456, %v10457
        %v10459 = vrot.slane %v10311, 5
        %v10460 = vrot.slane %v10459, 4
        %v10461 = vrot.slane %v9614, 5
        %v10462 = vsel %vm2021, %v10460, %v10461
        %v10463 = vrot.slane %v10461, 4
        %v10464 = vrot.slane %v9615, 5
        %v10465 = vsel %vm2021, %v10463, %v10464
        %v10466 = vrot.slane %v10312, 5
        %v10467 = vrot.slane %v10466, 4
        %v10468 = vrot.slane %v9617, 5
        %v10469 = vsel %vm2021, %v10467, %v10468
        %v10470 = vrot.slane %v10468, 4
        %v10471 = vrot.slane %v9618, 5
        %v10472 = vsel %vm2021, %v10470, %v10471
        %s10473 = scalar_lea.vmem %s3, 32
        %v10474 = vld [vmem:[%s10473] sm:$0xf]
        %v10475 = vunpack.c.l.b16 %v10364
        %v10476 = vunpack.c.l.b16 %v10367
        %v10477 = vunpack.c.l.b16 %v10371
        %v10478 = vunpack.c.l.b16 %v10374
        %v10479 = vunpack.c.l.b16 %v10378
        %v10480 = vunpack.c.l.b16 %v10381
        %v10481 = vunpack.c.l.b16 %v10385
        %v10482 = vunpack.c.l.b16 %v10388
        %v10483 = vunpack.c.l.b16 %v10392
        %v10484 = vunpack.c.l.b16 %v10395
        %v10485 = vunpack.c.l.b16 %v10399
        %v10486 = vunpack.c.l.b16 %v10402
        %v10487 = vunpack.c.l.b16 %v10406
        %v10488 = vunpack.c.l.b16 %v10409
        %v10489 = vunpack.c.l.b16 %v10413
        %v10490 = vunpack.c.l.b16 %v10416
        %v10491 = vunpack.c.l.b16 %v10420
        %v10492 = vunpack.c.l.b16 %v10423
        %v10493 = vunpack.c.l.b16 %v10427
        %v10494 = vunpack.c.l.b16 %v10430
        %v10495 = vunpack.c.l.b16 %v10434
        %v10496 = vunpack.c.l.b16 %v10437
        %v10497 = vunpack.c.l.b16 %v10441
        %v10498 = vunpack.c.l.b16 %v10444
        %v10499 = vunpack.c.l.b16 %v10448
        %v10500 = vunpack.c.l.b16 %v10451
        %v10501 = vunpack.c.l.b16 %v10455
        %v10502 = vunpack.c.l.b16 %v10458
        %v10503 = vunpack.c.l.b16 %v10462
        %v10504 = vunpack.c.l.b16 %v10465
        %v10505 = vunpack.c.l.b16 %v10469
        %v10506 = vunpack.c.l.b16 %v10472
        %v10507 = vpack.c.b16 %v10476, %v10475
        %v10508 = vpack.c.b16 %v10478, %v10477
        %v10509 = vpack.c.b16 %v10480, %v10479
        %v10510 = vpack.c.b16 %v10482, %v10481
        %v10511 = vpack.c.b16 %v10484, %v10483
        %v10512 = vpack.c.b16 %v10486, %v10485
        %v10513 = vpack.c.b16 %v10488, %v10487
        %v10514 = vpack.c.b16 %v10490, %v10489
        %v10515 = vpack.c.b16 %v10492, %v10491
        %v10516 = vpack.c.b16 %v10494, %v10493
        %v10517 = vpack.c.b16 %v10496, %v10495
        %v10518 = vpack.c.b16 %v10498, %v10497
        %v10519 = vpack.c.b16 %v10500, %v10499
        %v10520 = vpack.c.b16 %v10502, %v10501
        %v10521 = vpack.c.b16 %v10504, %v10503
        %v10522 = vpack.c.b16 %v10506, %v10505
        %v10524 = vsel %vm980, %v10507, 0
        %v10527 = vsel %vm980, %v10508, 0
        %v10530 = vsel %vm980, %v10509, 0
        %v10533 = vsel %vm980, %v10510, 0
        %v10536 = vsel %vm980, %v10511, 0
        %v10539 = vsel %vm980, %v10512, 0
        %v10542 = vsel %vm980, %v10513, 0
        %v10545 = vsel %vm980, %v10514, 0
        %v10548 = vsel %vm980, %v10515, 0
        %v10551 = vsel %vm980, %v10516, 0
        %v10554 = vsel %vm980, %v10517, 0
        %v10557 = vsel %vm980, %v10518, 0
        %v10560 = vsel %vm980, %v10519, 0
        %v10563 = vsel %vm980, %v10520, 0
        %v10566 = vsel %vm980, %v10521, 0
        %v10569 = vsel %vm980, %v10522, 0
        %v10572 = vsel %vm1029, %v10474, 0
        %10574 = vmatprep.subr.bf16.mxu0 0
        %10575 = vmatpush1.bf16.msra.mxu0 %v10572
        %10576 = vmatprep.subr.bf16.mxu0 0
        %10577 = vmatpush1.bf16.msra.mxu0 0
        %10578 = vmatprep.subr.bf16.mxu0 0
        %10579 = vmatpush1.bf16.msra.mxu0 0
        %10580 = vmatprep.subr.bf16.mxu0 0
        %10581 = vmatpush1.bf16.msra.mxu0 0
        %10582 = vmatprep.subr.bf16.mxu0 0
        %10583 = vmatpush1.bf16.msra.mxu0 0
        %10584 = vmatprep.subr.bf16.mxu0 0
        %10585 = vmatpush1.bf16.msra.mxu0 0
        %10586 = vmatprep.subr.bf16.mxu0 0
        %10587 = vmatpush1.bf16.msra.mxu0 0
        %10588 = vmatprep.subr.bf16.mxu0 0
        %10589 = vmatpush1.bf16.msra.mxu0 0
        %10590 = vmatprep.subr.bf16.mxu0 0
        %10591 = vmatpush1.bf16.msra.mxu0 0
        %10592 = vmatprep.subr.bf16.mxu0 0
        %10593 = vmatpush1.bf16.msra.mxu0 0
        %10594 = vmatprep.subr.bf16.mxu0 0
        %10595 = vmatpush1.bf16.msra.mxu0 0
        %10596 = vmatprep.subr.bf16.mxu0 0
        %10597 = vmatpush1.bf16.msra.mxu0 0
        %10598 = vmatprep.subr.bf16.mxu0 0
        %10599 = vmatpush1.bf16.msra.mxu0 0
        %10600 = vmatprep.subr.bf16.mxu0 0
        %10601 = vmatpush1.bf16.msra.mxu0 0
        %10602 = vmatprep.subr.bf16.mxu0 0
        %10603 = vmatpush1.bf16.msra.mxu0 0
        %10604 = vmatprep.subr.bf16.mxu0 0
        %10605 = vmatpush1.bf16.msra.mxu0 0
        %10606 = vmatprep.mubr.bf16.mxu0 0
        %10607 = vmatmul.mubr.bf16.gmra.mrb[0].mxu0 %v10524
        %v10608 = vpop.f32.mrb[0].mxu0
        %v10609 = vadd.f32 0.0, %v10608
        %v10610 = vpop.f32.mrb[0].mxu0
        %v10611 = vpop.f32.mrb[0].mxu0
        %v10612 = vadd.f32 0.0, %v10611
        %v10613 = vpop.f32.mrb[0].mxu0
        %10614 = vmatprep.mubr.bf16.mxu0 0
        %10615 = vmatmul.mubr.bf16.gmra.mrb[0].mxu0 %v10527
        %v10616 = vpop.f32.mrb[0].mxu0
        %v10617 = vadd.f32 0.0, %v10616
        %v10618 = vpop.f32.mrb[0].mxu0
        %v10619 = vpop.f32.mrb[0].mxu0
        %v10620 = vadd.f32 0.0, %v10619
        %v10621 = vpop.f32.mrb[0].mxu0
        %10622 = vmatprep.mubr.bf16.mxu0 0
        %10623 = vmatmul.mubr.bf16.gmra.mrb[0].mxu0 %v10530
        %v10624 = vpop.f32.mrb[0].mxu0
        %v10625 = vadd.f32 0.0, %v10624
        %v10626 = vpop.f32.mrb[0].mxu0
        %v10627 = vpop.f32.mrb[0].mxu0
        %v10628 = vadd.f32 0.0, %v10627
        %v10629 = vpop.f32.mrb[0].mxu0
        %10630 = vmatprep.mubr.bf16.mxu0 0
        %10631 = vmatmul.mubr.bf16.gmra.mrb[0].mxu0 %v10533
        %v10632 = vpop.f32.mrb[0].mxu0
        %v10633 = vadd.f32 0.0, %v10632
        %v10634 = vpop.f32.mrb[0].mxu0
        %v10635 = vpop.f32.mrb[0].mxu0
        %v10636 = vadd.f32 0.0, %v10635
        %v10637 = vpop.f32.mrb[0].mxu0
        %10638 = vmatprep.mubr.bf16.mxu0 0
        %10639 = vmatmul.mubr.bf16.gmra.mrb[0].mxu0 %v10536
        %v10640 = vpop.f32.mrb[0].mxu0
        %v10641 = vadd.f32 0.0, %v10640
        %v10642 = vpop.f32.mrb[0].mxu0
        %v10643 = vpop.f32.mrb[0].mxu0
        %v10644 = vadd.f32 0.0, %v10643
        %v10645 = vpop.f32.mrb[0].mxu0
        %10646 = vmatprep.mubr.bf16.mxu0 0
        %10647 = vmatmul.mubr.bf16.gmra.mrb[0].mxu0 %v10539
        %v10648 = vpop.f32.mrb[0].mxu0
        %v10649 = vadd.f32 0.0, %v10648
        %v10650 = vpop.f32.mrb[0].mxu0
        %v10651 = vpop.f32.mrb[0].mxu0
        %v10652 = vadd.f32 0.0, %v10651
        %v10653 = vpop.f32.mrb[0].mxu0
        %10654 = vmatprep.mubr.bf16.mxu0 0
        %10655 = vmatmul.mubr.bf16.gmra.mrb[0].mxu0 %v10542
        %v10656 = vpop.f32.mrb[0].mxu0
        %v10657 = vadd.f32 0.0, %v10656
        %v10658 = vpop.f32.mrb[0].mxu0
        %v10659 = vpop.f32.mrb[0].mxu0
        %v10660 = vadd.f32 0.0, %v10659
        %v10661 = vpop.f32.mrb[0].mxu0
        %10662 = vmatprep.mubr.bf16.mxu0 0
        %10663 = vmatmul.mubr.bf16.gmra.mrb[0].mxu0 %v10545
        %v10664 = vpop.f32.mrb[0].mxu0
        %v10665 = vadd.f32 0.0, %v10664
        %v10666 = vpop.f32.mrb[0].mxu0
        %v10667 = vpop.f32.mrb[0].mxu0
        %v10668 = vadd.f32 0.0, %v10667
        %v10669 = vpop.f32.mrb[0].mxu0
        %10670 = vmatprep.mubr.bf16.mxu0 0
        %10671 = vmatmul.mubr.bf16.gmra.mrb[0].mxu0 %v10548
        %v10672 = vpop.f32.mrb[0].mxu0
        %v10673 = vadd.f32 0.0, %v10672
        %v10674 = vpop.f32.mrb[0].mxu0
        %v10675 = vpop.f32.mrb[0].mxu0
        %v10676 = vadd.f32 0.0, %v10675
        %v10677 = vpop.f32.mrb[0].mxu0
        %10678 = vmatprep.mubr.bf16.mxu0 0
        %10679 = vmatmul.mubr.bf16.gmra.mrb[0].mxu0 %v10551
        %v10680 = vpop.f32.mrb[0].mxu0
        %v10681 = vadd.f32 0.0, %v10680
        %v10682 = vpop.f32.mrb[0].mxu0
        %v10683 = vpop.f32.mrb[0].mxu0
        %v10684 = vadd.f32 0.0, %v10683
        %v10685 = vpop.f32.mrb[0].mxu0
        %10686 = vmatprep.mubr.bf16.mxu0 0
        %10687 = vmatmul.mubr.bf16.gmra.mrb[0].mxu0 %v10554
        %v10688 = vpop.f32.mrb[0].mxu0
        %v10689 = vadd.f32 0.0, %v10688
        %v10690 = vpop.f32.mrb[0].mxu0
        %v10691 = vpop.f32.mrb[0].mxu0
        %v10692 = vadd.f32 0.0, %v10691
        %v10693 = vpop.f32.mrb[0].mxu0
        %10694 = vmatprep.mubr.bf16.mxu0 0
        %10695 = vmatmul.mubr.bf16.gmra.mrb[0].mxu0 %v10557
        %v10696 = vpop.f32.mrb[0].mxu0
        %v10697 = vadd.f32 0.0, %v10696
        %v10698 = vpop.f32.mrb[0].mxu0
        %v10699 = vpop.f32.mrb[0].mxu0
        %v10700 = vadd.f32 0.0, %v10699
        %v10701 = vpop.f32.mrb[0].mxu0
        %10702 = vmatprep.mubr.bf16.mxu0 0
        %10703 = vmatmul.mubr.bf16.gmra.mrb[0].mxu0 %v10560
        %v10704 = vpop.f32.mrb[0].mxu0
        %v10705 = vadd.f32 0.0, %v10704
        %v10706 = vpop.f32.mrb[0].mxu0
        %v10707 = vpop.f32.mrb[0].mxu0
        %v10708 = vadd.f32 0.0, %v10707
        %v10709 = vpop.f32.mrb[0].mxu0
        %10710 = vmatprep.mubr.bf16.mxu0 0
        %10711 = vmatmul.mubr.bf16.gmra.mrb[0].mxu0 %v10563
        %v10712 = vpop.f32.mrb[0].mxu0
        %v10713 = vadd.f32 0.0, %v10712
        %v10714 = vpop.f32.mrb[0].mxu0
        %v10715 = vpop.f32.mrb[0].mxu0
        %v10716 = vadd.f32 0.0, %v10715
        %v10717 = vpop.f32.mrb[0].mxu0
        %10718 = vmatprep.mubr.bf16.mxu0 0
        %10719 = vmatmul.mubr.bf16.gmra.mrb[0].mxu0 %v10566
        %v10720 = vpop.f32.mrb[0].mxu0
        %v10721 = vadd.f32 0.0, %v10720
        %v10722 = vpop.f32.mrb[0].mxu0
        %v10723 = vpop.f32.mrb[0].mxu0
        %v10724 = vadd.f32 0.0, %v10723
        %v10725 = vpop.f32.mrb[0].mxu0
        %10726 = vmatprep.mubr.bf16.mxu0 0
        %10727 = vmatmul.mubr.bf16.gmra.mrb[0].mxu0 %v10569
        %v10728 = vpop.f32.mrb[0].mxu0
        %v10729 = vadd.f32 0.0, %v10728
        %v10730 = vpop.f32.mrb[0].mxu0
        %v10731 = vpop.f32.mrb[0].mxu0
        %v10732 = vadd.f32 0.0, %v10731
        %v10733 = vpop.f32.mrb[0].mxu0
        %10734 = vdwg.mxu0
        %v10735 = vadd.f32 %v10265, %v10609
        %v10736 = vadd.f32 %v10266, %v10612
        %v10737 = vadd.f32 %v10267, %v10617
        %v10738 = vadd.f32 %v10268, %v10620
        %v10739 = vadd.f32 %v10269, %v10625
        %v10740 = vadd.f32 %v10270, %v10628
        %v10741 = vadd.f32 %v10271, %v10633
        %v10742 = vadd.f32 %v10272, %v10636
        %v10743 = vadd.f32 %v10273, %v10641
        %v10744 = vadd.f32 %v10274, %v10644
        %v10745 = vadd.f32 %v10275, %v10649
        %v10746 = vadd.f32 %v10276, %v10652
        %v10747 = vadd.f32 %v10277, %v10657
        %v10748 = vadd.f32 %v10278, %v10660
        %v10749 = vadd.f32 %v10279, %v10665
        %v10750 = vadd.f32 %v10280, %v10668
        %v10751 = vadd.f32 %v10281, %v10673
        %v10752 = vadd.f32 %v10282, %v10676
        %v10753 = vadd.f32 %v10283, %v10681
        %v10754 = vadd.f32 %v10284, %v10684
        %v10755 = vadd.f32 %v10285, %v10689
        %v10756 = vadd.f32 %v10286, %v10692
        %v10757 = vadd.f32 %v10287, %v10697
        %v10758 = vadd.f32 %v10288, %v10700
        %v10759 = vadd.f32 %v10289, %v10705
        %v10760 = vadd.f32 %v10290, %v10708
        %v10761 = vadd.f32 %v10291, %v10713
        %v10762 = vadd.f32 %v10292, %v10716
        %v10763 = vadd.f32 %v10293, %v10721
        %v10764 = vadd.f32 %v10294, %v10724
        %v10765 = vadd.f32 %v10295, %v10729
        %v10766 = vadd.f32 %v10296, %v10732
        %v10767 = vmax.f32 %v10735, 0.0
        %v10768 = vmax.f32 %v10736, 0.0
        %v10769 = vmax.f32 %v10737, 0.0
        %v10770 = vmax.f32 %v10738, 0.0
        %v10771 = vmax.f32 %v10739, 0.0
        %v10772 = vmax.f32 %v10740, 0.0
        %v10773 = vmax.f32 %v10741, 0.0
        %v10774 = vmax.f32 %v10742, 0.0
        %v10775 = vmax.f32 %v10743, 0.0
        %v10776 = vmax.f32 %v10744, 0.0
        %v10777 = vmax.f32 %v10745, 0.0
        %v10778 = vmax.f32 %v10746, 0.0
        %v10779 = vmax.f32 %v10747, 0.0
        %v10780 = vmax.f32 %v10748, 0.0
        %v10781 = vmax.f32 %v10749, 0.0
        %v10782 = vmax.f32 %v10750, 0.0
        %v10783 = vmax.f32 %v10751, 0.0
        %v10784 = vmax.f32 %v10752, 0.0
        %v10785 = vmax.f32 %v10753, 0.0
        %v10786 = vmax.f32 %v10754, 0.0
        %v10787 = vmax.f32 %v10755, 0.0
        %v10788 = vmax.f32 %v10756, 0.0
        %v10789 = vmax.f32 %v10757, 0.0
        %v10790 = vmax.f32 %v10758, 0.0
        %v10791 = vmax.f32 %v10759, 0.0
        %v10792 = vmax.f32 %v10760, 0.0
        %v10793 = vmax.f32 %v10761, 0.0
        %v10794 = vmax.f32 %v10762, 0.0
        %v10795 = vmax.f32 %v10763, 0.0
        %v10796 = vmax.f32 %v10764, 0.0
        %v10797 = vmax.f32 %v10765, 0.0
        %v10798 = vmax.f32 %v10766, 0.0
        %v10799 = vlaneseq
        %v10800 = vand.u32 %v10799, 127
        %v10801 = vadd.s32 %v10800, 128
        %v10802 = vlaneseq
        %v10803 = vshrl.u32 %v10802, 7
        %v10804 = vmul.u32 %v10803, 256
        %vm10805 = vcmp.ge.s32.totalorder %v10800, %v10804
        %vm10806 = vcmp.ge.s32.totalorder %v10801, %v10804
        %v10807 = vadd.s32 %v10803, 1
        %v10808 = vmul.u32 %v10807, 256
        %vm10809 = vcmp.lt.s32.totalorder %v10800, %v10808
        %vm10810 = vcmp.lt.s32.totalorder %v10801, %v10808
        %vm10811 = vmand %vm10805, %vm10809
        %vm10812 = vmand %vm10806, %vm10810
        %v10813 = vsel %vm10811, 1, 0
        %v10814 = vsel %vm10812, 1, 0
        %v10815 = vcvt.s32.f32 %v10813
        %v10816 = vcvt.s32.f32 %v10814
        %10817 = vmatprep.subr.mxu0 0.0
        %10818 = vmatpush1.msra.mxu0 %v10767
        %10819 = vmatprep.subr.mxu0 0.0
        %10820 = vmatpush1.msra.mxu0 %v10768
        %10821 = vmatprep.subr.mxu0 0.0
        %10822 = vmatpush1.msra.mxu0 %v10769
        %10823 = vmatprep.subr.mxu0 0.0
        %10824 = vmatpush1.msra.mxu0 %v10770
        %10825 = vmatprep.subr.mxu0 0.0
        %10826 = vmatpush1.msra.mxu0 %v10771
        %10827 = vmatprep.subr.mxu0 0.0
        %10828 = vmatpush1.msra.mxu0 %v10772
        %10829 = vmatprep.subr.mxu0 0.0
        %10830 = vmatpush1.msra.mxu0 %v10773
        %10831 = vmatprep.subr.mxu0 0.0
        %10832 = vmatpush1.msra.mxu0 %v10774
        %10833 = vmatprep.subr.mxu0 0.0
        %10834 = vmatpush1.msra.mxu0 %v10775
        %10835 = vmatprep.subr.mxu0 0.0
        %10836 = vmatpush1.msra.mxu0 %v10776
        %10837 = vmatprep.subr.mxu0 0.0
        %10838 = vmatpush1.msra.mxu0 %v10777
        %10839 = vmatprep.subr.mxu0 0.0
        %10840 = vmatpush1.msra.mxu0 %v10778
        %10841 = vmatprep.subr.mxu0 0.0
        %10842 = vmatpush1.msra.mxu0 %v10779
        %10843 = vmatprep.subr.mxu0 0.0
        %10844 = vmatpush1.msra.mxu0 %v10780
        %10845 = vmatprep.subr.mxu0 0.0
        %10846 = vmatpush1.msra.mxu0 %v10781
        %10847 = vmatprep.subr.mxu0 0.0
        %10848 = vmatpush1.msra.mxu0 %v10782
        %10849 = vmatprep.subr.mxu0 0.0
        %10850 = vmatpush1.msra.mxu0 %v10783
        %10851 = vmatprep.subr.mxu0 0.0
        %10852 = vmatpush1.msra.mxu0 %v10784
        %10853 = vmatprep.subr.mxu0 0.0
        %10854 = vmatpush1.msra.mxu0 %v10785
        %10855 = vmatprep.subr.mxu0 0.0
        %10856 = vmatpush1.msra.mxu0 %v10786
        %10857 = vmatprep.subr.mxu0 0.0
        %10858 = vmatpush1.msra.mxu0 %v10787
        %10859 = vmatprep.subr.mxu0 0.0
        %10860 = vmatpush1.msra.mxu0 %v10788
        %10861 = vmatprep.subr.mxu0 0.0
        %10862 = vmatpush1.msra.mxu0 %v10789
        %10863 = vmatprep.subr.mxu0 0.0
        %10864 = vmatpush1.msra.mxu0 %v10790
        %10865 = vmatprep.subr.mxu0 0.0
        %10866 = vmatpush1.msra.mxu0 %v10791
        %10867 = vmatprep.subr.mxu0 0.0
        %10868 = vmatpush1.msra.mxu0 %v10792
        %10869 = vmatprep.subr.mxu0 0.0
        %10870 = vmatpush1.msra.mxu0 %v10793
        %10871 = vmatprep.subr.mxu0 0.0
        %10872 = vmatpush1.msra.mxu0 %v10794
        %10873 = vmatprep.subr.mxu0 0.0
        %10874 = vmatpush1.msra.mxu0 %v10795
        %10875 = vmatprep.subr.mxu0 0.0
        %10876 = vmatpush1.msra.mxu0 %v10796
        %10877 = vmatprep.subr.mxu0 0.0
        %10878 = vmatpush1.msra.mxu0 %v10797
        %10879 = vmatprep.subr.mxu0 0.0
        %10880 = vmatpush1.msra.mxu0 %v10798
        %10881 = vmatprep.mubr.f32.mxu0 %v10816
        %10882 = vmatmul.mubr.f32.gmra.mrb[0].mxu0 %v10815
        %v10883 = vpop.f32.mrb[0].mxu0
        %v10884 = vadd.f32 0.0, %v10883
        %v10885 = vpop.f32.mrb[0].mxu0
        %10886 = vdwg.mxu0
        %v10887 = vld [vmem:[%s5] sm:$0xff]
        %v10888 = vld [vmem:[%s6] sm:$0x1]
        %v10890 = vsel %vm980, %v10884, 0
        %10892 = vmatprep.subr.mxu0 0.0
        %10893 = vmatpush1.msra.mxu0 %v10887
        %10894 = vmatprep.subr.mxu0 0.0
        %10895 = vmatpush1.msra.mxu0 0.0
        %10896 = vmatprep.subr.mxu0 0.0
        %10897 = vmatpush1.msra.mxu0 0.0
        %10898 = vmatprep.subr.mxu0 0.0
        %10899 = vmatpush1.msra.mxu0 0.0
        %10900 = vmatprep.subr.mxu0 0.0
        %10901 = vmatpush1.msra.mxu0 0.0
        %10902 = vmatprep.subr.mxu0 0.0
        %10903 = vmatpush1.msra.mxu0 0.0
        %10904 = vmatprep.subr.mxu0 0.0
        %10905 = vmatpush1.msra.mxu0 0.0
        %10906 = vmatprep.subr.mxu0 0.0
        %10907 = vmatpush1.msra.mxu0 0.0
        %10908 = vmatprep.subr.mxu0 0.0
        %10909 = vmatpush1.msra.mxu0 0.0
        %10910 = vmatprep.subr.mxu0 0.0
        %10911 = vmatpush1.msra.mxu0 0.0
        %10912 = vmatprep.subr.mxu0 0.0
        %10913 = vmatpush1.msra.mxu0 0.0
        %10914 = vmatprep.subr.mxu0 0.0
        %10915 = vmatpush1.msra.mxu0 0.0
        %10916 = vmatprep.subr.mxu0 0.0
        %10917 = vmatpush1.msra.mxu0 0.0
        %10918 = vmatprep.subr.mxu0 0.0
        %10919 = vmatpush1.msra.mxu0 0.0
        %10920 = vmatprep.subr.mxu0 0.0
        %10921 = vmatpush1.msra.mxu0 0.0
        %10922 = vmatprep.subr.mxu0 0.0
        %10923 = vmatpush1.msra.mxu0 0.0
        %10924 = vmatprep.subr.mxu0 0.0
        %10925 = vmatpush1.msra.mxu0 0.0
        %10926 = vmatprep.subr.mxu0 0.0
        %10927 = vmatpush1.msra.mxu0 0.0
        %10928 = vmatprep.subr.mxu0 0.0
        %10929 = vmatpush1.msra.mxu0 0.0
        %10930 = vmatprep.subr.mxu0 0.0
        %10931 = vmatpush1.msra.mxu0 0.0
        %10932 = vmatprep.subr.mxu0 0.0
        %10933 = vmatpush1.msra.mxu0 0.0
        %10934 = vmatprep.subr.mxu0 0.0
        %10935 = vmatpush1.msra.mxu0 0.0
        %10936 = vmatprep.subr.mxu0 0.0
        %10937 = vmatpush1.msra.mxu0 0.0
        %10938 = vmatprep.subr.mxu0 0.0
        %10939 = vmatpush1.msra.mxu0 0.0
        %10940 = vmatprep.subr.mxu0 0.0
        %10941 = vmatpush1.msra.mxu0 0.0
        %10942 = vmatprep.subr.mxu0 0.0
        %10943 = vmatpush1.msra.mxu0 0.0
        %10944 = vmatprep.subr.mxu0 0.0
        %10945 = vmatpush1.msra.mxu0 0.0
        %10946 = vmatprep.subr.mxu0 0.0
        %10947 = vmatpush1.msra.mxu0 0.0
        %10948 = vmatprep.subr.mxu0 0.0
        %10949 = vmatpush1.msra.mxu0 0.0
        %10950 = vmatprep.subr.mxu0 0.0
        %10951 = vmatpush1.msra.mxu0 0.0
        %10952 = vmatprep.subr.mxu0 0.0
        %10953 = vmatpush1.msra.mxu0 0.0
        %10954 = vmatprep.subr.mxu0 0.0
        %10955 = vmatpush1.msra.mxu0 0.0
        %10956 = vmatprep.mubr.f32.mxu0 0.0
        %10957 = vmatmul.mubr.f32.gmra.mrb[0].mxu0 %v10890
        %v10958 = vpop.f32.mrb[0].mxu0
        %v10959 = vadd.f32 %v10888, %v10958
        %v10960 = vpop.f32.mrb[0].mxu0
        %10961 = vdwg.mxu0
        %10962 = vst [vmem:[%s270] sm:$0x1] %v10959
        %s10963 = sand.u32 %s181, 1
        %s10964 = scalar_lea.sflag [#allocation5], %s10963
        %s10965 = sand.u32 %s181, 1
        %s10966 = scalar_lea.vmem [#allocation4], %s10965
        // Predicated region
        $region49: #{evalnet2_forward.1} parent=47 // pred_check
          %p10967 = pneg %p191
        $region50: #{evalnet2_forward.1} parent=47 // pred_check_branch
          %10969 = sbr.rel (%p10967) target = $region52
        $region51: #{evalnet2_forward.1} parent=47 // pred_region
          %s10971 = ssub.s32 16, 16
          %10972 = vsyncadd %s10964, %s10971
          %s10973 = smul.addr %s21, 16
          %s10974 = scalar_lea.hbm %s7, %s10973
          %s10976 = sshll.u32 %s10966, 4
          %s10977 = int_to_ptr.vmem [resolvable:$true] %s10976
          %10979 = dma.vmem_to_hbm [thread:$0]  %s10977, 16, %s10974, %s10964
        $region52: #{evalnet2_forward.1} parent=47 // pred_fallthru
          _
      $region48: #{evalnet2_forward.1} parent=5 // pred_fallthru
        _
      %p10980 = scmp.le.s32.totalorder 2, %s16
      // Predicated region
      $region53: #{evalnet2_forward.1} parent=5 // pred_check
        %p10981 = pneg %p10980
      $region54: #{evalnet2_forward.1} parent=5 // pred_check_branch
        %10983 = sbr.rel (%p10981) target = $region56
      $region55: #{evalnet2_forward.1} parent=5 // pred_region
        %s10984 = ssub.s32 %s16, 2
        // Predicated region
        $region57: #{evalnet2_forward.1} parent=55 // pred_check
          %p10985 = pneg %p197
        $region58: #{evalnet2_forward.1} parent=55 // pred_check_branch
          %10987 = sbr.rel (%p10985) target = $region60
        $region59: #{evalnet2_forward.1} parent=55 // pred_region
          %s10988 = sand.u32 %s182, 1
          %s10989 = scalar_lea.sflag [#allocation5], %s10988
          %s10990 = sand.u32 %s182, 1
          %s10991 = scalar_lea.vmem [#allocation4], %s10990
          %10992 = dma.done %s10989, 16
        $region60: #{evalnet2_forward.1} parent=55 // pred_fallthru
          _
      $region56: #{evalnet2_forward.1} parent=5 // pred_fallthru
        _
    $region6: #{evalnet2_forward.1} parent=1 // loop_footer
      %s20 = sadd.s32 1, %s16
    $region7: #{evalnet2_forward.1} parent=1 // loop_footer_branch
      %15 = sbr.rel target = $region3
    $region8: #{evalnet2_forward.1} parent=1 // loop_exit
      _
    %10993 = vsyncpa [#allocation5], 1
    %s10994 = scalar_lea.sflag [#allocation5], 1
    %10995 = vsyncpa %s10994, 1

</llo_original>
